<compile_context>
chip_gen: v6e
topology: v6e:2x2x1
jax: 0.10.0
libtpu: 0.0.40
codegen_flags: <defaults>
</compile_context>

<pallas_src>
import math
import functools

import jax
import jax.numpy as jnp
from jax.experimental import pallas as pl
from jax.experimental.pallas import tpu as pltpu


# ----------------------------------------------------------------------------
# Config (small, consistent with the module's __init__)
# ----------------------------------------------------------------------------
INPUT_SIZE = 40       # source vocab
OUTPUT_SIZE = 40      # target vocab
HIDDEN = 32
N_SPLITS = 4          # heads
DK = HIDDEN // N_SPLITS
N_ENC_BLOCKS = 2
N_DEC_BLOCKS = 2
MAX_LENGTH = 64
BATCH = 2
T_SRC = 8
T_TGT = 8

V_PAD = 128           # lane-dense logits store (multiple of 128 lanes)
NEG = -1e30           # finite "masked" additive bias (no -inf -> no NaN)
LN_EPS = 1e-5


# ----------------------------------------------------------------------------
# Static packing layouts (shared by the host packer and the kernel)
# ----------------------------------------------------------------------------
def _build_layouts():
    w32, w128, vec = {}, {}, {}
    c32, c128, r = [0], [0], [0]

    def a32(name, width):
        w32[name] = (c32[0], width)
        c32[0] += width

    def a128(name, width):
        w128[name] = (c128[0], width)
        c128[0] += width

    def av(name):
        vec[name] = r[0]
        r[0] += 1

    for blk in range(N_ENC_BLOCKS):
        a32(f"enc{blk}_wqkv", 3 * HIDDEN)
        a32(f"enc{blk}_wo", HIDDEN)
        a32(f"enc{blk}_w1", 4 * HIDDEN)
        a128(f"enc{blk}_w2", HIDDEN)
        for n in ("ln1_g", "ln1_b", "ln2_g", "ln2_b", "b1", "b2"):
            av(f"enc{blk}_{n}")
    for blk in range(N_DEC_BLOCKS):
        a32(f"dec{blk}_wqkv_s", 3 * HIDDEN)
        a32(f"dec{blk}_wo_s", HIDDEN)
        a32(f"dec{blk}_wqkv_c", 3 * HIDDEN)
        a32(f"dec{blk}_wo_c", HIDDEN)
        a32(f"dec{blk}_w1", 4 * HIDDEN)
        a128(f"dec{blk}_w2", HIDDEN)
        for n in ("ln1_g", "ln1_b", "ln2_g", "ln2_b", "ln3_g", "ln3_b", "b1", "b2"):
            av(f"dec{blk}_{n}")
    a32("gen_w", V_PAD)
    for n in ("gen_ln_g", "gen_ln_b", "gen_b"):
        av(n)

    pad128 = lambda x: ((x + 127) // 128) * 128
    pad8 = lambda x: ((x + 7) // 8) * 8
    return (w32, pad128(c32[0])), (w128, pad128(c128[0])), (vec, pad8(r[0]))


(W32_LAYOUT, W32_COLS), (W128_LAYOUT, W128_COLS), (VEC_LAYOUT, VEC_ROWS) = _build_layouts()


# ----------------------------------------------------------------------------
# Fused Pallas kernel: encoder blocks -> decoder blocks -> generator
# ----------------------------------------------------------------------------
def transformer_kernel(
    x_enc_ref, x_dec_ref, bias_enc_ref, bias_self_ref, bias_cross_ref,
    vec_ref, w32_ref, w128_ref,
    o_ref,
    *, n_enc, n_dec, n_heads, dk):

    H = HIDDEN
    scale = 1.0 / math.sqrt(dk)

    # Small f32 parameter-vector table, loaded once and kept vreg-resident.
    vt = vec_ref[...]                                      # (VEC_ROWS, 128) f32

    def vrow(name, width):
        r = VEC_LAYOUT[name]
        return vt[r:r + 1, 0:width]                        # (1, width) f32

    def wslab32(name):
        off, width = W32_LAYOUT[name]
        return w32_ref[:, off:off + width]                 # (H, width) bf16

    def wslab128(name):
        off, width = W128_LAYOUT[name]
        return w128_ref[:, off:off + width]                # (4H, width) bf16

    def layernorm(x, gname, bname):
        mu = jnp.mean(x, axis=-1, keepdims=True)
        var = jnp.mean((x - mu) ** 2, axis=-1, keepdims=True)
        return (x - mu) * jax.lax.rsqrt(var + LN_EPS) * vrow(gname, H) + vrow(bname, H)

    def mha(zq, zkv, bias, wqkv_name, wo_name, self_attn):
        wqkv = wslab32(wqkv_name)                          # (H, 3H) bf16
        wo = wslab32(wo_name)                              # (H, H)  bf16
        zq_b = zq.astype(jnp.bfloat16)
        if self_attn:
            # One fused Q|K|V projection matmul.
            qkv = jnp.dot(zq_b, wqkv, preferred_element_type=jnp.float32)   # (Rq, 3H)
            q, k, v = qkv[:, 0:H], qkv[:, H:2 * H], qkv[:, 2 * H:3 * H]
        else:
            # Cross-attention: Q from decoder stream, fused K|V from memory.
            zkv_b = zkv.astype(jnp.bfloat16)
            q = jnp.dot(zq_b, wqkv[:, 0:H], preferred_element_type=jnp.float32)
            kv = jnp.dot(zkv_b, wqkv[:, H:3 * H], preferred_element_type=jnp.float32)
            k, v = kv[:, 0:H], kv[:, H:2 * H]
        kt = k.T                                           # one XLU transpose per MHA
        heads = []
        for hd in range(n_heads):
            qh = q[:, hd * dk:(hd + 1) * dk].astype(jnp.bfloat16)     # (Rq, dk)
            kth = kt[hd * dk:(hd + 1) * dk, :].astype(jnp.bfloat16)   # (dk, Rk)
            s = jnp.dot(qh, kth, preferred_element_type=jnp.float32)  # (Rq, Rk) f32
            s = s * scale + bias                # additive mask applied AFTER scaling
            m = jnp.max(s, axis=-1, keepdims=True)
            e = jnp.exp(s - m)
            w = e * pl.reciprocal(jnp.sum(e, axis=-1, keepdims=True), approx=True)
            vh = v[:, hd * dk:(hd + 1) * dk].astype(jnp.bfloat16)     # (Rk, dk)
            heads.append(jnp.dot(w.astype(jnp.bfloat16), vh,
                                 preferred_element_type=jnp.float32))  # (Rq, dk)
        ctx = jnp.concatenate(heads, axis=-1)              # (Rq, H), register-resident
        return jnp.dot(ctx.astype(jnp.bfloat16), wo, preferred_element_type=jnp.float32)

    def ffn(x, w1_name, w2_name, b1_name, b2_name):
        h1 = jnp.dot(x.astype(jnp.bfloat16), wslab32(w1_name),
                     preferred_element_type=jnp.float32) + vrow(b1_name, 4 * H)
        h1 = jnp.maximum(h1, 0.0)                          # ReLU (f32)
        return jnp.dot(h1.astype(jnp.bfloat16), wslab128(w2_name),
                       preferred_element_type=jnp.float32) + vrow(b2_name, H)

    # ---------------- encoder ----------------
    z = x_enc_ref[...]                     # (B*Ts, H) f32
    bias_enc = bias_enc_ref[...]           # (B*Ts, B*Ts)
    for blk in range(n_enc):
        p = f"enc{blk}_"
        zn = layernorm(z, p + "ln1_g", p + "ln1_b")
        z = z + mha(zn, zn, bias_enc, p + "wqkv", p + "wo", True)
        zn = layernorm(z, p + "ln2_g", p + "ln2_b")
        z = z + ffn(zn, p + "w1", p + "w2", p + "b1", p + "b2")

    # ---------------- decoder ----------------
    h = x_dec_ref[...]                     # (B*Tt, H) f32
    bias_self = bias_self_ref[...]         # (B*Tt, B*Tt)   future-masked
    bias_cross = bias_cross_ref[...]       # (B*Tt, B*Ts)   src-pad masked
    for blk in range(n_dec):
        p = f"dec{blk}_"
        hn = layernorm(h, p + "ln1_g", p + "ln1_b")
        h = h + mha(hn, hn, bias_self, p + "wqkv_s", p + "wo_s", True)
        # Shared attn_norm normalizes both the decoder stream and the encoder
        # memory (matches simple_nmt's DecoderBlock semantics).
        mem = layernorm(z, p + "ln2_g", p + "ln2_b")
        hn = layernorm(h, p + "ln2_g", p + "ln2_b")
        h = h + mha(hn, mem, bias_cross, p + "wqkv_c", p + "wo_c", False)
        hn = layernorm(h, p + "ln3_g", p + "ln3_b")
        h = h + ffn(hn, p + "w1", p + "w2", p + "b1", p + "b2")

    # ------------- generator: LayerNorm -> Linear -> LogSoftmax -------------
    g = layernorm(h, "gen_ln_g", "gen_ln_b")
    # gen_w zero-padded to 128 lanes; pad bias lanes = NEG -> LSE unaffected.
    logits = jnp.dot(g.astype(jnp.bfloat16), wslab32("gen_w"),
                     preferred_element_type=jnp.float32) + vrow("gen_b", V_PAD)
    m = jnp.max(logits, axis=-1, keepdims=True)
    lse = m + jnp.log(jnp.sum(jnp.exp(logits - m), axis=-1, keepdims=True))
    o_ref[...] = logits - lse                              # lane-dense (B*Tt, 128)


# ----------------------------------------------------------------------------
# Wrapper: embeddings / positional encoding / masks in plain JAX, one fused
# pallas_call for everything else (only 8 inputs, all VMEM resident).
# ----------------------------------------------------------------------------
def _full_spec(arr):
    nd = arr.ndim
    shape = arr.shape

    def idx(i):
        return (0,) * nd

    return pl.BlockSpec(shape, idx)


def transformer_forward(packed, x_tokens, lengths, y_tokens):
    B, Ts = x_tokens.shape
    Tt = y_tokens.shape[1]
    H = HIDDEN
    rows_enc = B * Ts
    rows_dec = B * Tt

    pos_enc = packed["pos_enc"]
    x_enc = (packed["emb_enc"][x_tokens] + pos_enc[:Ts][None, :, :]).reshape(rows_enc, H)
    x_dec = (packed["emb_dec"][y_tokens] + pos_enc[:Tt][None, :, :]).reshape(rows_dec, H)

    # Additive mask biases: 0 = attend, NEG = masked.  Cross-batch blocks are
    # also masked, which lets the kernel fold batch into the matmul rows.
    valid_src = (jnp.arange(Ts)[None, :] < lengths[:, None]).reshape(rows_enc)   # (B*Ts,)
    rb_enc = jnp.repeat(jnp.arange(B), Ts)
    rb_dec = jnp.repeat(jnp.arange(B), Tt)
    pos_dec = jnp.tile(jnp.arange(Tt), B)

    same_ee = rb_enc[:, None] == rb_enc[None, :]
    bias_enc = jnp.where(same_ee & valid_src[None, :], 0.0, NEG).astype(jnp.float32)

    same_dd = rb_dec[:, None] == rb_dec[None, :]
    causal = pos_dec[None, :] <= pos_dec[:, None]
    bias_self = jnp.where(same_dd & causal, 0.0, NEG).astype(jnp.float32)

    same_de = rb_dec[:, None] == rb_enc[None, :]
    bias_cross = jnp.where(same_de & valid_src[None, :], 0.0, NEG).astype(jnp.float32)

    inputs = (x_enc, x_dec, bias_enc, bias_self, bias_cross,
              packed["vecs"], packed["w32"], packed["w128"])

    kern = functools.partial(
        transformer_kernel,
        n_enc=N_ENC_BLOCKS, n_dec=N_DEC_BLOCKS, n_heads=N_SPLITS, dk=DK)

    out = pl.pallas_call(
        kern,
        out_shape=jax.ShapeDtypeStruct((rows_dec, V_PAD), jnp.float32),
        grid=(1,),
        in_specs=[_full_spec(a) for a in inputs],
        out_specs=pl.BlockSpec((rows_dec, V_PAD), lambda i: (0, 0)),
        compiler_params=pltpu.CompilerParams(
            dimension_semantics=("arbitrary",)),
    )(*inputs)

    # slice padded vocab lanes, restore (B, Tt, V)
    return out[:, :OUTPUT_SIZE].reshape(B, Tt, OUTPUT_SIZE)


# ----------------------------------------------------------------------------
# Deterministic parameter init (PyTorch nn.Linear layout) + host-side packing
# into 3 slabs (bf16 weights, f32 vector table).
# ----------------------------------------------------------------------------
def generate_pos_enc(hidden_size, max_length):
    pos = jnp.arange(max_length, dtype=jnp.float32)[:, None]
    dim = jnp.arange(hidden_size // 2, dtype=jnp.float32)[None, :]
    angles = pos / (10000.0 ** (dim / float(hidden_size)))
    enc = jnp.zeros((max_length, hidden_size), jnp.float32)
    enc = enc.at[:, 0::2].set(jnp.sin(angles))
    enc = enc.at[:, 1::2].set(jnp.cos(angles))
    return enc


def init_params(key):
    keys = iter(jax.random.split(key, 512))

    def lin_w(out_f, in_f):
        bound = 1.0 / math.sqrt(in_f)
        return jax.random.uniform(next(keys), (out_f, in_f), jnp.float32, -bound, bound)

    def lin_b(out_f, in_f):
        bound = 1.0 / math.sqrt(in_f)
        return jax.random.uniform(next(keys), (out_f,), jnp.float32, -bound, bound)

    def mha():
        return dict(wq=lin_w(HIDDEN, HIDDEN), wk=lin_w(HIDDEN, HIDDEN),
                    wv=lin_w(HIDDEN, HIDDEN), wo=lin_w(HIDDEN, HIDDEN))

    def enc_block():
        return dict(
            attn=mha(),
            attn_norm_g=jnp.ones((HIDDEN,), jnp.float32),
            attn_norm_b=jnp.zeros((HIDDEN,), jnp.float32),
            fc_w1=lin_w(4 * HIDDEN, HIDDEN), fc_b1=lin_b(4 * HIDDEN, HIDDEN),
            fc_w2=lin_w(HIDDEN, 4 * HIDDEN), fc_b2=lin_b(HIDDEN, 4 * HIDDEN),
            fc_norm_g=jnp.ones((HIDDEN,), jnp.float32),
            fc_norm_b=jnp.zeros((HIDDEN,), jnp.float32),
        )

    def dec_block():
        return dict(
            masked_attn=mha(),
            masked_attn_norm_g=jnp.ones((HIDDEN,), jnp.float32),
            masked_attn_norm_b=jnp.zeros((HIDDEN,), jnp.float32),
            attn=mha(),
            attn_norm_g=jnp.ones((HIDDEN,), jnp.float32),
            attn_norm_b=jnp.zeros((HIDDEN,), jnp.float32),
            fc_w1=lin_w(4 * HIDDEN, HIDDEN), fc_b1=lin_b(4 * HIDDEN, HIDDEN),
            fc_w2=lin_w(HIDDEN, 4 * HIDDEN), fc_b2=lin_b(HIDDEN, 4 * HIDDEN),
            fc_norm_g=jnp.ones((HIDDEN,), jnp.float32),
            fc_norm_b=jnp.zeros((HIDDEN,), jnp.float32),
        )

    return dict(
        emb_enc=jax.random.normal(next(keys), (INPUT_SIZE, HIDDEN), jnp.float32),
        emb_dec=jax.random.normal(next(keys), (OUTPUT_SIZE, HIDDEN), jnp.float32),
        pos_enc=generate_pos_enc(HIDDEN, MAX_LENGTH),
        enc_blocks=[enc_block() for _ in range(N_ENC_BLOCKS)],
        dec_blocks=[dec_block() for _ in range(N_DEC_BLOCKS)],
        gen_ln_g=jnp.ones((HIDDEN,), jnp.float32),
        gen_ln_b=jnp.zeros((HIDDEN,), jnp.float32),
        gen_w=lin_w(OUTPUT_SIZE, HIDDEN),
        gen_b=lin_b(OUTPUT_SIZE, HIDDEN),
    )


def pack_params(p):
    H = HIDDEN

    def t(w):  # pre-transpose on the host so kernels compute x @ W
        return jnp.asarray(w).T

    w32 = jnp.zeros((H, W32_COLS), jnp.float32)
    w128 = jnp.zeros((4 * H, W128_COLS), jnp.float32)
    vecs = jnp.zeros((VEC_ROWS, 128), jnp.float32)

    def put32(name, mat):
        nonlocal w32
        off, _ = W32_LAYOUT[name]
        w32 = w32.at[:, off:off + mat.shape[1]].set(mat)

    def put128(name, mat):
        nonlocal w128
        off, _ = W128_LAYOUT[name]
        w128 = w128.at[:, off:off + mat.shape[1]].set(mat)

    def putv(name, v):
        nonlocal vecs
        vecs = vecs.at[VEC_LAYOUT[name], 0:v.shape[0]].set(v)

    def pack_block(prefix, blk, attn_keys):
        for suffix, key in attn_keys:
            m = blk[key]
            put32(prefix + "wqkv" + suffix,
                  jnp.concatenate([t(m["wq"]), t(m["wk"]), t(m["wv"])], axis=1))
            put32(prefix + "wo" + suffix, t(m["wo"]))
        put32(prefix + "w1", t(blk["fc_w1"]))
        put128(prefix + "w2", t(blk["fc_w2"]))
        putv(prefix + "b1", blk["fc_b1"])
        putv(prefix + "b2", blk["fc_b2"])

    for i, blk in enumerate(p["enc_blocks"]):
        prefix = f"enc{i}_"
        pack_block(prefix, blk, [("", "attn")])
        putv(prefix + "ln1_g", blk["attn_norm_g"])
        putv(prefix + "ln1_b", blk["attn_norm_b"])
        putv(prefix + "ln2_g", blk["fc_norm_g"])
        putv(prefix + "ln2_b", blk["fc_norm_b"])

    for i, blk in enumerate(p["dec_blocks"]):
        prefix = f"dec{i}_"
        pack_block(prefix, blk, [("_s", "masked_attn"), ("_c", "attn")])
        putv(prefix + "ln1_g", blk["masked_attn_norm_g"])
        putv(prefix + "ln1_b", blk["masked_attn_norm_b"])
        putv(prefix + "ln2_g", blk["attn_norm_g"])
        putv(prefix + "ln2_b", blk["attn_norm_b"])
        putv(prefix + "ln3_g", blk["fc_norm_g"])
        putv(prefix + "ln3_b", blk["fc_norm_b"])

    # generator (vocab weight zero-padded to 128 lanes; pad bias = NEG so the
    # in-kernel log-sum-exp ignores the padded lanes)
    put32("gen_w", t(p["gen_w"]))
    putv("gen_ln_g", p["gen_ln_g"])
    putv("gen_ln_b", p["gen_ln_b"])
    putv("gen_b", jnp.pad(p["gen_b"], (0, V_PAD - OUTPUT_SIZE), constant_values=NEG))

    return dict(
        emb_enc=p["emb_enc"], emb_dec=p["emb_dec"], pos_enc=p["pos_enc"],
        vecs=vecs,
        w32=w32.astype(jnp.bfloat16),     # bf16 MXU operands, f32 accumulation
        w128=w128.astype(jnp.bfloat16),
    )


# ----------------------------------------------------------------------------
# Main
# ----------------------------------------------------------------------------
if __name__ == "__main__":
    key = jax.random.PRNGKey(0)
    k_params, k_x, k_y = jax.random.split(key, 3)

    params = init_params(k_params)
    packed = pack_params(params)

    x_tokens = jax.random.randint(k_x, (BATCH, T_SRC), 1, INPUT_SIZE, dtype=jnp.int32)
    y_tokens = jax.random.randint(k_y, (BATCH, T_TGT), 1, OUTPUT_SIZE, dtype=jnp.int32)
    lengths = jnp.array([T_SRC, T_SRC - 2], dtype=jnp.int32)  # second sequence padded

    fwd = jax.jit(transformer_forward)
    y_hat = fwd(packed, x_tokens, lengths, y_tokens)
    jax.block_until_ready(y_hat)

    assert y_hat.shape == (BATCH, T_TGT, OUTPUT_SIZE)
    assert bool(jnp.all(jnp.isfinite(y_hat)))
    # log-softmax rows sum to 1 in prob space
    assert bool(jnp.allclose(jnp.sum(jnp.exp(y_hat), axis=-1), 1.0, atol=1e-3))

    print("KERNEL_OK")
</pallas_src>

<mosaic_0001>
module attributes {stable_mosaic.version = 11 : i64} {
  func.func @transformer_kernel(%arg0: i32, %arg1: memref<16x32xf32, #tpu.memory_space<vmem>>, %arg2: memref<16x32xf32, #tpu.memory_space<vmem>>, %arg3: memref<16x16xf32, #tpu.memory_space<vmem>>, %arg4: memref<16x16xf32, #tpu.memory_space<vmem>>, %arg5: memref<16x16xf32, #tpu.memory_space<vmem>>, %arg6: memref<32x128xf32, #tpu.memory_space<vmem>>, %arg7: memref<32x1408xbf16, #tpu.memory_space<vmem>>, %arg8: memref<128x128xbf16, #tpu.memory_space<vmem>>, %arg9: memref<16x128xf32, #tpu.memory_space<vmem>>) attributes {dimension_semantics = [#tpu.dimension_semantics<arbitrary>], iteration_bounds = array<i64: 1>, scalar_prefetch = 0 : i64, scratch_operands = 0 : i64, tpu.core_type = #tpu.core_type<tc>, window_params = [{pipeline_mode = #tpu.pipeline_mode<synchronous>, transform_indices = @transform_0, window_bounds = array<i64: 16, 32>}, {pipeline_mode = #tpu.pipeline_mode<synchronous>, transform_indices = @transform_1, window_bounds = array<i64: 16, 32>}, {pipeline_mode = #tpu.pipeline_mode<synchronous>, transform_indices = @transform_2, window_bounds = array<i64: 16, 16>}, {pipeline_mode = #tpu.pipeline_mode<synchronous>, transform_indices = @transform_3, window_bounds = array<i64: 16, 16>}, {pipeline_mode = #tpu.pipeline_mode<synchronous>, transform_indices = @transform_4, window_bounds = array<i64: 16, 16>}, {pipeline_mode = #tpu.pipeline_mode<synchronous>, transform_indices = @transform_5, window_bounds = array<i64: 32, 128>}, {pipeline_mode = #tpu.pipeline_mode<synchronous>, transform_indices = @transform_6, window_bounds = array<i64: 32, 1408>}, {pipeline_mode = #tpu.pipeline_mode<synchronous>, transform_indices = @transform_7, window_bounds = array<i64: 128, 128>}, {pipeline_mode = #tpu.pipeline_mode<synchronous>, transform_indices = @transform_8, window_bounds = array<i64: 16, 128>}]} {
    %c0 = arith.constant 0 : index
    %c0_0 = arith.constant 0 : index
    %0 = vector.load %arg6[%c0, %c0_0] : memref<32x128xf32, #tpu.memory_space<vmem>>, vector<32x128xf32>
    %c0_1 = arith.constant 0 : index
    %c0_2 = arith.constant 0 : index
    %1 = vector.load %arg1[%c0_1, %c0_2] : memref<16x32xf32, #tpu.memory_space<vmem>>, vector<16x32xf32>
    %c0_3 = arith.constant 0 : index
    %c0_4 = arith.constant 0 : index
    %2 = vector.load %arg3[%c0_3, %c0_4] : memref<16x16xf32, #tpu.memory_space<vmem>>, vector<16x16xf32>
    %cst = arith.constant dense<0.000000e+00> : vector<16xf32>
    %3 = vector.multi_reduction <add>, %1, %cst [1] : vector<16x32xf32> to vector<16xf32>
    %4 = vector.shape_cast %3 : vector<16xf32> to vector<16x1xf32>
    %cst_5 = arith.constant 3.200000e+01 : f32
    %5 = vector.broadcast %cst_5 : f32 to vector<16x1xf32>
    %6 = arith.divf %4, %5 : vector<16x1xf32>
    %7 = vector.broadcast %6 : vector<16x1xf32> to vector<16x32xf32>
    %8 = arith.subf %1, %7 : vector<16x32xf32>
    %9 = arith.mulf %8, %8 : vector<16x32xf32>
    %cst_6 = arith.constant dense<0.000000e+00> : vector<16xf32>
    %10 = vector.multi_reduction <add>, %9, %cst_6 [1] : vector<16x32xf32> to vector<16xf32>
    %11 = vector.shape_cast %10 : vector<16xf32> to vector<16x1xf32>
    %cst_7 = arith.constant 3.200000e+01 : f32
    %12 = vector.broadcast %cst_7 : f32 to vector<16x1xf32>
    %13 = arith.divf %11, %12 : vector<16x1xf32>
    %14 = vector.broadcast %6 : vector<16x1xf32> to vector<16x32xf32>
    %15 = arith.subf %1, %14 : vector<16x32xf32>
    %cst_8 = arith.constant 9.99999974E-6 : f32
    %16 = vector.broadcast %cst_8 : f32 to vector<16x1xf32>
    %17 = arith.addf %13, %16 : vector<16x1xf32>
    %18 = math.rsqrt %17 : vector<16x1xf32>
    %19 = vector.broadcast %18 : vector<16x1xf32> to vector<16x32xf32>
    %20 = arith.mulf %15, %19 : vector<16x32xf32>
    %21 = vector.extract_strided_slice %0 {offsets = [0, 0], sizes = [1, 32], strides = [1, 1]} : vector<32x128xf32> to vector<1x32xf32>
    %22 = vector.broadcast %21 : vector<1x32xf32> to vector<16x32xf32>
    %23 = arith.mulf %20, %22 : vector<16x32xf32>
    %24 = vector.extract_strided_slice %0 {offsets = [1, 0], sizes = [1, 32], strides = [1, 1]} : vector<32x128xf32> to vector<1x32xf32>
    %25 = vector.broadcast %24 : vector<1x32xf32> to vector<16x32xf32>
    %26 = arith.addf %23, %25 : vector<16x32xf32>
    %c0_9 = arith.constant 0 : index
    %c0_10 = arith.constant 0 : index
    %27 = vector.load %arg7[%c0_9, %c0_10] : memref<32x1408xbf16, #tpu.memory_space<vmem>>, vector<32x96xbf16>
    %c0_11 = arith.constant 0 : index
    %c96 = arith.constant 96 : index
    %28 = vector.load %arg7[%c0_11, %c96] : memref<32x1408xbf16, #tpu.memory_space<vmem>>, vector<32x32xbf16>
    %29 = arith.truncf %26 : vector<16x32xf32> to vector<16x32xbf16>
    %cst_12 = arith.constant dense<0.000000e+00> : vector<16x96xf32>
    %30 = tpu.matmul %29, %27, %cst_12 {dimension_numbers = #tpu.dot_dimension_numbers<[1], [0], [0], [1], [0, 0, 1, 1], [], []>} : vector<16x32xbf16>, vector<32x96xbf16>, vector<16x96xf32> -> vector<16x96xf32>
    %31 = vector.extract_strided_slice %30 {offsets = [0, 0], sizes = [16, 32], strides = [1, 1]} : vector<16x96xf32> to vector<16x32xf32>
    %32 = vector.extract_strided_slice %30 {offsets = [0, 32], sizes = [16, 32], strides = [1, 1]} : vector<16x96xf32> to vector<16x32xf32>
    %33 = vector.extract_strided_slice %30 {offsets = [0, 64], sizes = [16, 32], strides = [1, 1]} : vector<16x96xf32> to vector<16x32xf32>
    %34 = tpu.transpose %32, [1, 0] : vector<16x32xf32> -> vector<32x16xf32>
    %35 = vector.extract_strided_slice %31 {offsets = [0, 0], sizes = [16, 8], strides = [1, 1]} : vector<16x32xf32> to vector<16x8xf32>
    %36 = arith.truncf %35 : vector<16x8xf32> to vector<16x8xbf16>
    %37 = vector.extract_strided_slice %34 {offsets = [0, 0], sizes = [8, 16], strides = [1, 1]} : vector<32x16xf32> to vector<8x16xf32>
    %38 = arith.truncf %37 : vector<8x16xf32> to vector<8x16xbf16>
    %cst_13 = arith.constant dense<0.000000e+00> : vector<16x16xf32>
    %39 = tpu.matmul %36, %38, %cst_13 {dimension_numbers = #tpu.dot_dimension_numbers<[1], [0], [0], [1], [0, 0, 1, 1], [], []>} : vector<16x8xbf16>, vector<8x16xbf16>, vector<16x16xf32> -> vector<16x16xf32>
    %cst_14 = arith.constant 0.353553385 : f32
    %40 = vector.broadcast %cst_14 : f32 to vector<16x16xf32>
    %41 = arith.mulf %39, %40 : vector<16x16xf32>
    %42 = arith.addf %41, %2 : vector<16x16xf32>
    %cst_15 = arith.constant dense<0xFF800000> : vector<16xf32>
    %43 = vector.multi_reduction <maximumf>, %42, %cst_15 [1] : vector<16x16xf32> to vector<16xf32>
    %44 = vector.shape_cast %43 : vector<16xf32> to vector<16x1xf32>
    %45 = vector.broadcast %44 : vector<16x1xf32> to vector<16x16xf32>
    %46 = arith.subf %42, %45 : vector<16x16xf32>
    %47 = math.exp %46 : vector<16x16xf32>
    %cst_16 = arith.constant dense<0.000000e+00> : vector<16xf32>
    %48 = vector.multi_reduction <add>, %47, %cst_16 [1] : vector<16x16xf32> to vector<16xf32>
    %49 = vector.shape_cast %48 : vector<16xf32> to vector<16x1xf32>
    %50 = tpu.reciprocal %49 {approx = true} : vector<16x1xf32> -> vector<16x1xf32>
    %51 = vector.broadcast %50 : vector<16x1xf32> to vector<16x16xf32>
    %52 = arith.mulf %47, %51 : vector<16x16xf32>
    %53 = vector.extract_strided_slice %33 {offsets = [0, 0], sizes = [16, 8], strides = [1, 1]} : vector<16x32xf32> to vector<16x8xf32>
    %54 = arith.truncf %53 : vector<16x8xf32> to vector<16x8xbf16>
    %55 = arith.truncf %52 : vector<16x16xf32> to vector<16x16xbf16>
    %cst_17 = arith.constant dense<0.000000e+00> : vector<16x8xf32>
    %56 = tpu.matmul %55, %54, %cst_17 {dimension_numbers = #tpu.dot_dimension_numbers<[1], [0], [0], [1], [0, 0, 1, 1], [], []>} : vector<16x16xbf16>, vector<16x8xbf16>, vector<16x8xf32> -> vector<16x8xf32>
    %57 = vector.extract_strided_slice %31 {offsets = [0, 8], sizes = [16, 8], strides = [1, 1]} : vector<16x32xf32> to vector<16x8xf32>
    %58 = arith.truncf %57 : vector<16x8xf32> to vector<16x8xbf16>
    %59 = vector.extract_strided_slice %34 {offsets = [8, 0], sizes = [8, 16], strides = [1, 1]} : vector<32x16xf32> to vector<8x16xf32>
    %60 = arith.truncf %59 : vector<8x16xf32> to vector<8x16xbf16>
    %cst_18 = arith.constant dense<0.000000e+00> : vector<16x16xf32>
    %61 = tpu.matmul %58, %60, %cst_18 {dimension_numbers = #tpu.dot_dimension_numbers<[1], [0], [0], [1], [0, 0, 1, 1], [], []>} : vector<16x8xbf16>, vector<8x16xbf16>, vector<16x16xf32> -> vector<16x16xf32>
    %cst_19 = arith.constant 0.353553385 : f32
    %62 = vector.broadcast %cst_19 : f32 to vector<16x16xf32>
    %63 = arith.mulf %61, %62 : vector<16x16xf32>
    %64 = arith.addf %63, %2 : vector<16x16xf32>
    %cst_20 = arith.constant dense<0xFF800000> : vector<16xf32>
    %65 = vector.multi_reduction <maximumf>, %64, %cst_20 [1] : vector<16x16xf32> to vector<16xf32>
    %66 = vector.shape_cast %65 : vector<16xf32> to vector<16x1xf32>
    %67 = vector.broadcast %66 : vector<16x1xf32> to vector<16x16xf32>
    %68 = arith.subf %64, %67 : vector<16x16xf32>
    %69 = math.exp %68 : vector<16x16xf32>
    %cst_21 = arith.constant dense<0.000000e+00> : vector<16xf32>
    %70 = vector.multi_reduction <add>, %69, %cst_21 [1] : vector<16x16xf32> to vector<16xf32>
    %71 = vector.shape_cast %70 : vector<16xf32> to vector<16x1xf32>
    %72 = tpu.reciprocal %71 {approx = true} : vector<16x1xf32> -> vector<16x1xf32>
    %73 = vector.broadcast %72 : vector<16x1xf32> to vector<16x16xf32>
    %74 = arith.mulf %69, %73 : vector<16x16xf32>
    %75 = vector.extract_strided_slice %33 {offsets = [0, 8], sizes = [16, 8], strides = [1, 1]} : vector<16x32xf32> to vector<16x8xf32>
    %76 = arith.truncf %75 : vector<16x8xf32> to vector<16x8xbf16>
    %77 = arith.truncf %74 : vector<16x16xf32> to vector<16x16xbf16>
    %cst_22 = arith.constant dense<0.000000e+00> : vector<16x8xf32>
    %78 = tpu.matmul %77, %76, %cst_22 {dimension_numbers = #tpu.dot_dimension_numbers<[1], [0], [0], [1], [0, 0, 1, 1], [], []>} : vector<16x16xbf16>, vector<16x8xbf16>, vector<16x8xf32> -> vector<16x8xf32>
    %79 = vector.extract_strided_slice %31 {offsets = [0, 16], sizes = [16, 8], strides = [1, 1]} : vector<16x32xf32> to vector<16x8xf32>
    %80 = arith.truncf %79 : vector<16x8xf32> to vector<16x8xbf16>
    %81 = vector.extract_strided_slice %34 {offsets = [16, 0], sizes = [8, 16], strides = [1, 1]} : vector<32x16xf32> to vector<8x16xf32>
    %82 = arith.truncf %81 : vector<8x16xf32> to vector<8x16xbf16>
    %cst_23 = arith.constant dense<0.000000e+00> : vector<16x16xf32>
    %83 = tpu.matmul %80, %82, %cst_23 {dimension_numbers = #tpu.dot_dimension_numbers<[1], [0], [0], [1], [0, 0, 1, 1], [], []>} : vector<16x8xbf16>, vector<8x16xbf16>, vector<16x16xf32> -> vector<16x16xf32>
    %cst_24 = arith.constant 0.353553385 : f32
    %84 = vector.broadcast %cst_24 : f32 to vector<16x16xf32>
    %85 = arith.mulf %83, %84 : vector<16x16xf32>
    %86 = arith.addf %85, %2 : vector<16x16xf32>
    %cst_25 = arith.constant dense<0xFF800000> : vector<16xf32>
    %87 = vector.multi_reduction <maximumf>, %86, %cst_25 [1] : vector<16x16xf32> to vector<16xf32>
    %88 = vector.shape_cast %87 : vector<16xf32> to vector<16x1xf32>
    %89 = vector.broadcast %88 : vector<16x1xf32> to vector<16x16xf32>
    %90 = arith.subf %86, %89 : vector<16x16xf32>
    %91 = math.exp %90 : vector<16x16xf32>
    %cst_26 = arith.constant dense<0.000000e+00> : vector<16xf32>
    %92 = vector.multi_reduction <add>, %91, %cst_26 [1] : vector<16x16xf32> to vector<16xf32>
    %93 = vector.shape_cast %92 : vector<16xf32> to vector<16x1xf32>
    %94 = tpu.reciprocal %93 {approx = true} : vector<16x1xf32> -> vector<16x1xf32>
    %95 = vector.broadcast %94 : vector<16x1xf32> to vector<16x16xf32>
    %96 = arith.mulf %91, %95 : vector<16x16xf32>
    %97 = vector.extract_strided_slice %33 {offsets = [0, 16], sizes = [16, 8], strides = [1, 1]} : vector<16x32xf32> to vector<16x8xf32>
    %98 = arith.truncf %97 : vector<16x8xf32> to vector<16x8xbf16>
    %99 = arith.truncf %96 : vector<16x16xf32> to vector<16x16xbf16>
    %cst_27 = arith.constant dense<0.000000e+00> : vector<16x8xf32>
    %100 = tpu.matmul %99, %98, %cst_27 {dimension_numbers = #tpu.dot_dimension_numbers<[1], [0], [0], [1], [0, 0, 1, 1], [], []>} : vector<16x16xbf16>, vector<16x8xbf16>, vector<16x8xf32> -> vector<16x8xf32>
    %101 = vector.extract_strided_slice %31 {offsets = [0, 24], sizes = [16, 8], strides = [1, 1]} : vector<16x32xf32> to vector<16x8xf32>
    %102 = arith.truncf %101 : vector<16x8xf32> to vector<16x8xbf16>
    %103 = vector.extract_strided_slice %34 {offsets = [24, 0], sizes = [8, 16], strides = [1, 1]} : vector<32x16xf32> to vector<8x16xf32>
    %104 = arith.truncf %103 : vector<8x16xf32> to vector<8x16xbf16>
    %cst_28 = arith.constant dense<0.000000e+00> : vector<16x16xf32>
    %105 = tpu.matmul %102, %104, %cst_28 {dimension_numbers = #tpu.dot_dimension_numbers<[1], [0], [0], [1], [0, 0, 1, 1], [], []>} : vector<16x8xbf16>, vector<8x16xbf16>, vector<16x16xf32> -> vector<16x16xf32>
    %cst_29 = arith.constant 0.353553385 : f32
    %106 = vector.broadcast %cst_29 : f32 to vector<16x16xf32>
    %107 = arith.mulf %105, %106 : vector<16x16xf32>
    %108 = arith.addf %107, %2 : vector<16x16xf32>
    %cst_30 = arith.constant dense<0xFF800000> : vector<16xf32>
    %109 = vector.multi_reduction <maximumf>, %108, %cst_30 [1] : vector<16x16xf32> to vector<16xf32>
    %110 = vector.shape_cast %109 : vector<16xf32> to vector<16x1xf32>
    %111 = vector.broadcast %110 : vector<16x1xf32> to vector<16x16xf32>
    %112 = arith.subf %108, %111 : vector<16x16xf32>
    %113 = math.exp %112 : vector<16x16xf32>
    %cst_31 = arith.constant dense<0.000000e+00> : vector<16xf32>
    %114 = vector.multi_reduction <add>, %113, %cst_31 [1] : vector<16x16xf32> to vector<16xf32>
    %115 = vector.shape_cast %114 : vector<16xf32> to vector<16x1xf32>
    %116 = tpu.reciprocal %115 {approx = true} : vector<16x1xf32> -> vector<16x1xf32>
    %117 = vector.broadcast %116 : vector<16x1xf32> to vector<16x16xf32>
    %118 = arith.mulf %113, %117 : vector<16x16xf32>
    %119 = vector.extract_strided_slice %33 {offsets = [0, 24], sizes = [16, 8], strides = [1, 1]} : vector<16x32xf32> to vector<16x8xf32>
    %120 = arith.truncf %119 : vector<16x8xf32> to vector<16x8xbf16>
    %121 = arith.truncf %118 : vector<16x16xf32> to vector<16x16xbf16>
    %cst_32 = arith.constant dense<0.000000e+00> : vector<16x8xf32>
    %122 = tpu.matmul %121, %120, %cst_32 {dimension_numbers = #tpu.dot_dimension_numbers<[1], [0], [0], [1], [0, 0, 1, 1], [], []>} : vector<16x16xbf16>, vector<16x8xbf16>, vector<16x8xf32> -> vector<16x8xf32>
    %123 = tpu.concatenate %56, %78, %100, %122 in 1 : vector<16x8xf32>, vector<16x8xf32>, vector<16x8xf32>, vector<16x8xf32> -> vector<16x32xf32>
    %124 = arith.truncf %123 : vector<16x32xf32> to vector<16x32xbf16>
    %cst_33 = arith.constant dense<0.000000e+00> : vector<16x32xf32>
    %125 = tpu.matmul %124, %28, %cst_33 {dimension_numbers = #tpu.dot_dimension_numbers<[1], [0], [0], [1], [0, 0, 1, 1], [], []>} : vector<16x32xbf16>, vector<32x32xbf16>, vector<16x32xf32> -> vector<16x32xf32>
    %126 = arith.addf %1, %125 : vector<16x32xf32>
    %cst_34 = arith.constant dense<0.000000e+00> : vector<16xf32>
    %127 = vector.multi_reduction <add>, %126, %cst_34 [1] : vector<16x32xf32> to vector<16xf32>
    %128 = vector.shape_cast %127 : vector<16xf32> to vector<16x1xf32>
    %cst_35 = arith.constant 3.200000e+01 : f32
    %129 = vector.broadcast %cst_35 : f32 to vector<16x1xf32>
    %130 = arith.divf %128, %129 : vector<16x1xf32>
    %131 = vector.broadcast %130 : vector<16x1xf32> to vector<16x32xf32>
    %132 = arith.subf %126, %131 : vector<16x32xf32>
    %133 = arith.mulf %132, %132 : vector<16x32xf32>
    %cst_36 = arith.constant dense<0.000000e+00> : vector<16xf32>
    %134 = vector.multi_reduction <add>, %133, %cst_36 [1] : vector<16x32xf32> to vector<16xf32>
    %135 = vector.shape_cast %134 : vector<16xf32> to vector<16x1xf32>
    %cst_37 = arith.constant 3.200000e+01 : f32
    %136 = vector.broadcast %cst_37 : f32 to vector<16x1xf32>
    %137 = arith.divf %135, %136 : vector<16x1xf32>
    %138 = vector.broadcast %130 : vector<16x1xf32> to vector<16x32xf32>
    %139 = arith.subf %126, %138 : vector<16x32xf32>
    %cst_38 = arith.constant 9.99999974E-6 : f32
    %140 = vector.broadcast %cst_38 : f32 to vector<16x1xf32>
    %141 = arith.addf %137, %140 : vector<16x1xf32>
    %142 = math.rsqrt %141 : vector<16x1xf32>
    %143 = vector.broadcast %142 : vector<16x1xf32> to vector<16x32xf32>
    %144 = arith.mulf %139, %143 : vector<16x32xf32>
    %145 = vector.extract_strided_slice %0 {offsets = [2, 0], sizes = [1, 32], strides = [1, 1]} : vector<32x128xf32> to vector<1x32xf32>
    %146 = vector.broadcast %145 : vector<1x32xf32> to vector<16x32xf32>
    %147 = arith.mulf %144, %146 : vector<16x32xf32>
    %148 = vector.extract_strided_slice %0 {offsets = [3, 0], sizes = [1, 32], strides = [1, 1]} : vector<32x128xf32> to vector<1x32xf32>
    %149 = vector.broadcast %148 : vector<1x32xf32> to vector<16x32xf32>
    %150 = arith.addf %147, %149 : vector<16x32xf32>
    %151 = arith.truncf %150 : vector<16x32xf32> to vector<16x32xbf16>
    %c0_39 = arith.constant 0 : index
    %c128 = arith.constant 128 : index
    %152 = vector.load %arg7[%c0_39, %c128] : memref<32x1408xbf16, #tpu.memory_space<vmem>>, vector<32x128xbf16>
    %cst_40 = arith.constant dense<0.000000e+00> : vector<16x128xf32>
    %153 = tpu.matmul %151, %152, %cst_40 {dimension_numbers = #tpu.dot_dimension_numbers<[1], [0], [0], [1], [0, 0, 1, 1], [], []>} : vector<16x32xbf16>, vector<32x128xbf16>, vector<16x128xf32> -> vector<16x128xf32>
    %154 = vector.extract_strided_slice %0 {offsets = [4, 0], sizes = [1, 128], strides = [1, 1]} : vector<32x128xf32> to vector<1x128xf32>
    %155 = vector.broadcast %154 : vector<1x128xf32> to vector<16x128xf32>
    %156 = arith.addf %153, %155 : vector<16x128xf32>
    %cst_41 = arith.constant 0.000000e+00 : f32
    %157 = vector.broadcast %cst_41 : f32 to vector<16x128xf32>
    %158 = arith.maximumf %156, %157 : vector<16x128xf32>
    %159 = arith.truncf %158 : vector<16x128xf32> to vector<16x128xbf16>
    %c0_42 = arith.constant 0 : index
    %c0_43 = arith.constant 0 : index
    %160 = vector.load %arg8[%c0_42, %c0_43] : memref<128x128xbf16, #tpu.memory_space<vmem>>, vector<128x32xbf16>
    %cst_44 = arith.constant dense<0.000000e+00> : vector<16x32xf32>
    %161 = tpu.matmul %159, %160, %cst_44 {dimension_numbers = #tpu.dot_dimension_numbers<[1], [0], [0], [1], [0, 0, 1, 1], [], []>} : vector<16x128xbf16>, vector<128x32xbf16>, vector<16x32xf32> -> vector<16x32xf32>
    %162 = vector.extract_strided_slice %0 {offsets = [5, 0], sizes = [1, 32], strides = [1, 1]} : vector<32x128xf32> to vector<1x32xf32>
    %163 = vector.broadcast %162 : vector<1x32xf32> to vector<16x32xf32>
    %164 = arith.addf %161, %163 : vector<16x32xf32>
    %165 = arith.addf %126, %164 : vector<16x32xf32>
    %cst_45 = arith.constant dense<0.000000e+00> : vector<16xf32>
    %166 = vector.multi_reduction <add>, %165, %cst_45 [1] : vector<16x32xf32> to vector<16xf32>
    %167 = vector.shape_cast %166 : vector<16xf32> to vector<16x1xf32>
    %cst_46 = arith.constant 3.200000e+01 : f32
    %168 = vector.broadcast %cst_46 : f32 to vector<16x1xf32>
    %169 = arith.divf %167, %168 : vector<16x1xf32>
    %170 = vector.broadcast %169 : vector<16x1xf32> to vector<16x32xf32>
    %171 = arith.subf %165, %170 : vector<16x32xf32>
    %172 = arith.mulf %171, %171 : vector<16x32xf32>
    %cst_47 = arith.constant dense<0.000000e+00> : vector<16xf32>
    %173 = vector.multi_reduction <add>, %172, %cst_47 [1] : vector<16x32xf32> to vector<16xf32>
    %174 = vector.shape_cast %173 : vector<16xf32> to vector<16x1xf32>
    %cst_48 = arith.constant 3.200000e+01 : f32
    %175 = vector.broadcast %cst_48 : f32 to vector<16x1xf32>
    %176 = arith.divf %174, %175 : vector<16x1xf32>
    %177 = vector.broadcast %169 : vector<16x1xf32> to vector<16x32xf32>
    %178 = arith.subf %165, %177 : vector<16x32xf32>
    %cst_49 = arith.constant 9.99999974E-6 : f32
    %179 = vector.broadcast %cst_49 : f32 to vector<16x1xf32>
    %180 = arith.addf %176, %179 : vector<16x1xf32>
    %181 = math.rsqrt %180 : vector<16x1xf32>
    %182 = vector.broadcast %181 : vector<16x1xf32> to vector<16x32xf32>
    %183 = arith.mulf %178, %182 : vector<16x32xf32>
    %184 = vector.extract_strided_slice %0 {offsets = [6, 0], sizes = [1, 32], strides = [1, 1]} : vector<32x128xf32> to vector<1x32xf32>
    %185 = vector.broadcast %184 : vector<1x32xf32> to vector<16x32xf32>
    %186 = arith.mulf %183, %185 : vector<16x32xf32>
    %187 = vector.extract_strided_slice %0 {offsets = [7, 0], sizes = [1, 32], strides = [1, 1]} : vector<32x128xf32> to vector<1x32xf32>
    %188 = vector.broadcast %187 : vector<1x32xf32> to vector<16x32xf32>
    %189 = arith.addf %186, %188 : vector<16x32xf32>
    %c0_50 = arith.constant 0 : index
    %c256 = arith.constant 256 : index
    %190 = vector.load %arg7[%c0_50, %c256] : memref<32x1408xbf16, #tpu.memory_space<vmem>>, vector<32x96xbf16>
    %c0_51 = arith.constant 0 : index
    %c352 = arith.constant 352 : index
    %191 = vector.load %arg7[%c0_51, %c352] : memref<32x1408xbf16, #tpu.memory_space<vmem>>, vector<32x32xbf16>
    %192 = arith.truncf %189 : vector<16x32xf32> to vector<16x32xbf16>
    %cst_52 = arith.constant dense<0.000000e+00> : vector<16x96xf32>
    %193 = tpu.matmul %192, %190, %cst_52 {dimension_numbers = #tpu.dot_dimension_numbers<[1], [0], [0], [1], [0, 0, 1, 1], [], []>} : vector<16x32xbf16>, vector<32x96xbf16>, vector<16x96xf32> -> vector<16x96xf32>
    %194 = vector.extract_strided_slice %193 {offsets = [0, 0], sizes = [16, 32], strides = [1, 1]} : vector<16x96xf32> to vector<16x32xf32>
    %195 = vector.extract_strided_slice %193 {offsets = [0, 32], sizes = [16, 32], strides = [1, 1]} : vector<16x96xf32> to vector<16x32xf32>
    %196 = vector.extract_strided_slice %193 {offsets = [0, 64], sizes = [16, 32], strides = [1, 1]} : vector<16x96xf32> to vector<16x32xf32>
    %197 = tpu.transpose %195, [1, 0] : vector<16x32xf32> -> vector<32x16xf32>
    %198 = vector.extract_strided_slice %194 {offsets = [0, 0], sizes = [16, 8], strides = [1, 1]} : vector<16x32xf32> to vector<16x8xf32>
    %199 = arith.truncf %198 : vector<16x8xf32> to vector<16x8xbf16>
    %200 = vector.extract_strided_slice %197 {offsets = [0, 0], sizes = [8, 16], strides = [1, 1]} : vector<32x16xf32> to vector<8x16xf32>
    %201 = arith.truncf %200 : vector<8x16xf32> to vector<8x16xbf16>
    %cst_53 = arith.constant dense<0.000000e+00> : vector<16x16xf32>
    %202 = tpu.matmul %199, %201, %cst_53 {dimension_numbers = #tpu.dot_dimension_numbers<[1], [0], [0], [1], [0, 0, 1, 1], [], []>} : vector<16x8xbf16>, vector<8x16xbf16>, vector<16x16xf32> -> vector<16x16xf32>
    %cst_54 = arith.constant 0.353553385 : f32
    %203 = vector.broadcast %cst_54 : f32 to vector<16x16xf32>
    %204 = arith.mulf %202, %203 : vector<16x16xf32>
    %205 = arith.addf %204, %2 : vector<16x16xf32>
    %cst_55 = arith.constant dense<0xFF800000> : vector<16xf32>
    %206 = vector.multi_reduction <maximumf>, %205, %cst_55 [1] : vector<16x16xf32> to vector<16xf32>
    %207 = vector.shape_cast %206 : vector<16xf32> to vector<16x1xf32>
    %208 = vector.broadcast %207 : vector<16x1xf32> to vector<16x16xf32>
    %209 = arith.subf %205, %208 : vector<16x16xf32>
    %210 = math.exp %209 : vector<16x16xf32>
    %cst_56 = arith.constant dense<0.000000e+00> : vector<16xf32>
    %211 = vector.multi_reduction <add>, %210, %cst_56 [1] : vector<16x16xf32> to vector<16xf32>
    %212 = vector.shape_cast %211 : vector<16xf32> to vector<16x1xf32>
    %213 = tpu.reciprocal %212 {approx = true} : vector<16x1xf32> -> vector<16x1xf32>
    %214 = vector.broadcast %213 : vector<16x1xf32> to vector<16x16xf32>
    %215 = arith.mulf %210, %214 : vector<16x16xf32>
    %216 = vector.extract_strided_slice %196 {offsets = [0, 0], sizes = [16, 8], strides = [1, 1]} : vector<16x32xf32> to vector<16x8xf32>
    %217 = arith.truncf %216 : vector<16x8xf32> to vector<16x8xbf16>
    %218 = arith.truncf %215 : vector<16x16xf32> to vector<16x16xbf16>
    %cst_57 = arith.constant dense<0.000000e+00> : vector<16x8xf32>
    %219 = tpu.matmul %218, %217, %cst_57 {dimension_numbers = #tpu.dot_dimension_numbers<[1], [0], [0], [1], [0, 0, 1, 1], [], []>} : vector<16x16xbf16>, vector<16x8xbf16>, vector<16x8xf32> -> vector<16x8xf32>
    %220 = vector.extract_strided_slice %194 {offsets = [0, 8], sizes = [16, 8], strides = [1, 1]} : vector<16x32xf32> to vector<16x8xf32>
    %221 = arith.truncf %220 : vector<16x8xf32> to vector<16x8xbf16>
    %222 = vector.extract_strided_slice %197 {offsets = [8, 0], sizes = [8, 16], strides = [1, 1]} : vector<32x16xf32> to vector<8x16xf32>
    %223 = arith.truncf %222 : vector<8x16xf32> to vector<8x16xbf16>
    %cst_58 = arith.constant dense<0.000000e+00> : vector<16x16xf32>
    %224 = tpu.matmul %221, %223, %cst_58 {dimension_numbers = #tpu.dot_dimension_numbers<[1], [0], [0], [1], [0, 0, 1, 1], [], []>} : vector<16x8xbf16>, vector<8x16xbf16>, vector<16x16xf32> -> vector<16x16xf32>
    %cst_59 = arith.constant 0.353553385 : f32
    %225 = vector.broadcast %cst_59 : f32 to vector<16x16xf32>
    %226 = arith.mulf %224, %225 : vector<16x16xf32>
    %227 = arith.addf %226, %2 : vector<16x16xf32>
    %cst_60 = arith.constant dense<0xFF800000> : vector<16xf32>
    %228 = vector.multi_reduction <maximumf>, %227, %cst_60 [1] : vector<16x16xf32> to vector<16xf32>
    %229 = vector.shape_cast %228 : vector<16xf32> to vector<16x1xf32>
    %230 = vector.broadcast %229 : vector<16x1xf32> to vector<16x16xf32>
    %231 = arith.subf %227, %230 : vector<16x16xf32>
    %232 = math.exp %231 : vector<16x16xf32>
    %cst_61 = arith.constant dense<0.000000e+00> : vector<16xf32>
    %233 = vector.multi_reduction <add>, %232, %cst_61 [1] : vector<16x16xf32> to vector<16xf32>
    %234 = vector.shape_cast %233 : vector<16xf32> to vector<16x1xf32>
    %235 = tpu.reciprocal %234 {approx = true} : vector<16x1xf32> -> vector<16x1xf32>
    %236 = vector.broadcast %235 : vector<16x1xf32> to vector<16x16xf32>
    %237 = arith.mulf %232, %236 : vector<16x16xf32>
    %238 = vector.extract_strided_slice %196 {offsets = [0, 8], sizes = [16, 8], strides = [1, 1]} : vector<16x32xf32> to vector<16x8xf32>
    %239 = arith.truncf %238 : vector<16x8xf32> to vector<16x8xbf16>
    %240 = arith.truncf %237 : vector<16x16xf32> to vector<16x16xbf16>
    %cst_62 = arith.constant dense<0.000000e+00> : vector<16x8xf32>
    %241 = tpu.matmul %240, %239, %cst_62 {dimension_numbers = #tpu.dot_dimension_numbers<[1], [0], [0], [1], [0, 0, 1, 1], [], []>} : vector<16x16xbf16>, vector<16x8xbf16>, vector<16x8xf32> -> vector<16x8xf32>
    %242 = vector.extract_strided_slice %194 {offsets = [0, 16], sizes = [16, 8], strides = [1, 1]} : vector<16x32xf32> to vector<16x8xf32>
    %243 = arith.truncf %242 : vector<16x8xf32> to vector<16x8xbf16>
    %244 = vector.extract_strided_slice %197 {offsets = [16, 0], sizes = [8, 16], strides = [1, 1]} : vector<32x16xf32> to vector<8x16xf32>
    %245 = arith.truncf %244 : vector<8x16xf32> to vector<8x16xbf16>
    %cst_63 = arith.constant dense<0.000000e+00> : vector<16x16xf32>
    %246 = tpu.matmul %243, %245, %cst_63 {dimension_numbers = #tpu.dot_dimension_numbers<[1], [0], [0], [1], [0, 0, 1, 1], [], []>} : vector<16x8xbf16>, vector<8x16xbf16>, vector<16x16xf32> -> vector<16x16xf32>
    %cst_64 = arith.constant 0.353553385 : f32
    %247 = vector.broadcast %cst_64 : f32 to vector<16x16xf32>
    %248 = arith.mulf %246, %247 : vector<16x16xf32>
    %249 = arith.addf %248, %2 : vector<16x16xf32>
    %cst_65 = arith.constant dense<0xFF800000> : vector<16xf32>
    %250 = vector.multi_reduction <maximumf>, %249, %cst_65 [1] : vector<16x16xf32> to vector<16xf32>
    %251 = vector.shape_cast %250 : vector<16xf32> to vector<16x1xf32>
    %252 = vector.broadcast %251 : vector<16x1xf32> to vector<16x16xf32>
    %253 = arith.subf %249, %252 : vector<16x16xf32>
    %254 = math.exp %253 : vector<16x16xf32>
    %cst_66 = arith.constant dense<0.000000e+00> : vector<16xf32>
    %255 = vector.multi_reduction <add>, %254, %cst_66 [1] : vector<16x16xf32> to vector<16xf32>
    %256 = vector.shape_cast %255 : vector<16xf32> to vector<16x1xf32>
    %257 = tpu.reciprocal %256 {approx = true} : vector<16x1xf32> -> vector<16x1xf32>
    %258 = vector.broadcast %257 : vector<16x1xf32> to vector<16x16xf32>
    %259 = arith.mulf %254, %258 : vector<16x16xf32>
    %260 = vector.extract_strided_slice %196 {offsets = [0, 16], sizes = [16, 8], strides = [1, 1]} : vector<16x32xf32> to vector<16x8xf32>
    %261 = arith.truncf %260 : vector<16x8xf32> to vector<16x8xbf16>
    %262 = arith.truncf %259 : vector<16x16xf32> to vector<16x16xbf16>
    %cst_67 = arith.constant dense<0.000000e+00> : vector<16x8xf32>
    %263 = tpu.matmul %262, %261, %cst_67 {dimension_numbers = #tpu.dot_dimension_numbers<[1], [0], [0], [1], [0, 0, 1, 1], [], []>} : vector<16x16xbf16>, vector<16x8xbf16>, vector<16x8xf32> -> vector<16x8xf32>
    %264 = vector.extract_strided_slice %194 {offsets = [0, 24], sizes = [16, 8], strides = [1, 1]} : vector<16x32xf32> to vector<16x8xf32>
    %265 = arith.truncf %264 : vector<16x8xf32> to vector<16x8xbf16>
    %266 = vector.extract_strided_slice %197 {offsets = [24, 0], sizes = [8, 16], strides = [1, 1]} : vector<32x16xf32> to vector<8x16xf32>
    %267 = arith.truncf %266 : vector<8x16xf32> to vector<8x16xbf16>
    %cst_68 = arith.constant dense<0.000000e+00> : vector<16x16xf32>
    %268 = tpu.matmul %265, %267, %cst_68 {dimension_numbers = #tpu.dot_dimension_numbers<[1], [0], [0], [1], [0, 0, 1, 1], [], []>} : vector<16x8xbf16>, vector<8x16xbf16>, vector<16x16xf32> -> vector<16x16xf32>
    %cst_69 = arith.constant 0.353553385 : f32
    %269 = vector.broadcast %cst_69 : f32 to vector<16x16xf32>
    %270 = arith.mulf %268, %269 : vector<16x16xf32>
    %271 = arith.addf %270, %2 : vector<16x16xf32>
    %cst_70 = arith.constant dense<0xFF800000> : vector<16xf32>
    %272 = vector.multi_reduction <maximumf>, %271, %cst_70 [1] : vector<16x16xf32> to vector<16xf32>
    %273 = vector.shape_cast %272 : vector<16xf32> to vector<16x1xf32>
    %274 = vector.broadcast %273 : vector<16x1xf32> to vector<16x16xf32>
    %275 = arith.subf %271, %274 : vector<16x16xf32>
    %276 = math.exp %275 : vector<16x16xf32>
    %cst_71 = arith.constant dense<0.000000e+00> : vector<16xf32>
    %277 = vector.multi_reduction <add>, %276, %cst_71 [1] : vector<16x16xf32> to vector<16xf32>
    %278 = vector.shape_cast %277 : vector<16xf32> to vector<16x1xf32>
    %279 = tpu.reciprocal %278 {approx = true} : vector<16x1xf32> -> vector<16x1xf32>
    %280 = vector.broadcast %279 : vector<16x1xf32> to vector<16x16xf32>
    %281 = arith.mulf %276, %280 : vector<16x16xf32>
    %282 = vector.extract_strided_slice %196 {offsets = [0, 24], sizes = [16, 8], strides = [1, 1]} : vector<16x32xf32> to vector<16x8xf32>
    %283 = arith.truncf %282 : vector<16x8xf32> to vector<16x8xbf16>
    %284 = arith.truncf %281 : vector<16x16xf32> to vector<16x16xbf16>
    %cst_72 = arith.constant dense<0.000000e+00> : vector<16x8xf32>
    %285 = tpu.matmul %284, %283, %cst_72 {dimension_numbers = #tpu.dot_dimension_numbers<[1], [0], [0], [1], [0, 0, 1, 1], [], []>} : vector<16x16xbf16>, vector<16x8xbf16>, vector<16x8xf32> -> vector<16x8xf32>
    %286 = tpu.concatenate %219, %241, %263, %285 in 1 : vector<16x8xf32>, vector<16x8xf32>, vector<16x8xf32>, vector<16x8xf32> -> vector<16x32xf32>
    %287 = arith.truncf %286 : vector<16x32xf32> to vector<16x32xbf16>
    %cst_73 = arith.constant dense<0.000000e+00> : vector<16x32xf32>
    %288 = tpu.matmul %287, %191, %cst_73 {dimension_numbers = #tpu.dot_dimension_numbers<[1], [0], [0], [1], [0, 0, 1, 1], [], []>} : vector<16x32xbf16>, vector<32x32xbf16>, vector<16x32xf32> -> vector<16x32xf32>
    %289 = arith.addf %165, %288 : vector<16x32xf32>
    %cst_74 = arith.constant dense<0.000000e+00> : vector<16xf32>
    %290 = vector.multi_reduction <add>, %289, %cst_74 [1] : vector<16x32xf32> to vector<16xf32>
    %291 = vector.shape_cast %290 : vector<16xf32> to vector<16x1xf32>
    %cst_75 = arith.constant 3.200000e+01 : f32
    %292 = vector.broadcast %cst_75 : f32 to vector<16x1xf32>
    %293 = arith.divf %291, %292 : vector<16x1xf32>
    %294 = vector.broadcast %293 : vector<16x1xf32> to vector<16x32xf32>
    %295 = arith.subf %289, %294 : vector<16x32xf32>
    %296 = arith.mulf %295, %295 : vector<16x32xf32>
    %cst_76 = arith.constant dense<0.000000e+00> : vector<16xf32>
    %297 = vector.multi_reduction <add>, %296, %cst_76 [1] : vector<16x32xf32> to vector<16xf32>
    %298 = vector.shape_cast %297 : vector<16xf32> to vector<16x1xf32>
    %cst_77 = arith.constant 3.200000e+01 : f32
    %299 = vector.broadcast %cst_77 : f32 to vector<16x1xf32>
    %300 = arith.divf %298, %299 : vector<16x1xf32>
    %301 = vector.broadcast %293 : vector<16x1xf32> to vector<16x32xf32>
    %302 = arith.subf %289, %301 : vector<16x32xf32>
    %cst_78 = arith.constant 9.99999974E-6 : f32
    %303 = vector.broadcast %cst_78 : f32 to vector<16x1xf32>
    %304 = arith.addf %300, %303 : vector<16x1xf32>
    %305 = math.rsqrt %304 : vector<16x1xf32>
    %306 = vector.broadcast %305 : vector<16x1xf32> to vector<16x32xf32>
    %307 = arith.mulf %302, %306 : vector<16x32xf32>
    %308 = vector.extract_strided_slice %0 {offsets = [8, 0], sizes = [1, 32], strides = [1, 1]} : vector<32x128xf32> to vector<1x32xf32>
    %309 = vector.broadcast %308 : vector<1x32xf32> to vector<16x32xf32>
    %310 = arith.mulf %307, %309 : vector<16x32xf32>
    %311 = vector.extract_strided_slice %0 {offsets = [9, 0], sizes = [1, 32], strides = [1, 1]} : vector<32x128xf32> to vector<1x32xf32>
    %312 = vector.broadcast %311 : vector<1x32xf32> to vector<16x32xf32>
    %313 = arith.addf %310, %312 : vector<16x32xf32>
    %314 = arith.truncf %313 : vector<16x32xf32> to vector<16x32xbf16>
    %c0_79 = arith.constant 0 : index
    %c384 = arith.constant 384 : index
    %315 = vector.load %arg7[%c0_79, %c384] : memref<32x1408xbf16, #tpu.memory_space<vmem>>, vector<32x128xbf16>
    %cst_80 = arith.constant dense<0.000000e+00> : vector<16x128xf32>
    %316 = tpu.matmul %314, %315, %cst_80 {dimension_numbers = #tpu.dot_dimension_numbers<[1], [0], [0], [1], [0, 0, 1, 1], [], []>} : vector<16x32xbf16>, vector<32x128xbf16>, vector<16x128xf32> -> vector<16x128xf32>
    %317 = vector.extract_strided_slice %0 {offsets = [10, 0], sizes = [1, 128], strides = [1, 1]} : vector<32x128xf32> to vector<1x128xf32>
    %318 = vector.broadcast %317 : vector<1x128xf32> to vector<16x128xf32>
    %319 = arith.addf %316, %318 : vector<16x128xf32>
    %cst_81 = arith.constant 0.000000e+00 : f32
    %320 = vector.broadcast %cst_81 : f32 to vector<16x128xf32>
    %321 = arith.maximumf %319, %320 : vector<16x128xf32>
    %322 = arith.truncf %321 : vector<16x128xf32> to vector<16x128xbf16>
    %c0_82 = arith.constant 0 : index
    %c32 = arith.constant 32 : index
    %323 = vector.load %arg8[%c0_82, %c32] : memref<128x128xbf16, #tpu.memory_space<vmem>>, vector<128x32xbf16>
    %cst_83 = arith.constant dense<0.000000e+00> : vector<16x32xf32>
    %324 = tpu.matmul %322, %323, %cst_83 {dimension_numbers = #tpu.dot_dimension_numbers<[1], [0], [0], [1], [0, 0, 1, 1], [], []>} : vector<16x128xbf16>, vector<128x32xbf16>, vector<16x32xf32> -> vector<16x32xf32>
    %325 = vector.extract_strided_slice %0 {offsets = [11, 0], sizes = [1, 32], strides = [1, 1]} : vector<32x128xf32> to vector<1x32xf32>
    %326 = vector.broadcast %325 : vector<1x32xf32> to vector<16x32xf32>
    %327 = arith.addf %324, %326 : vector<16x32xf32>
    %328 = arith.addf %289, %327 : vector<16x32xf32>
    %c0_84 = arith.constant 0 : index
    %c0_85 = arith.constant 0 : index
    %329 = vector.load %arg2[%c0_84, %c0_85] : memref<16x32xf32, #tpu.memory_space<vmem>>, vector<16x32xf32>
    %c0_86 = arith.constant 0 : index
    %c0_87 = arith.constant 0 : index
    %330 = vector.load %arg4[%c0_86, %c0_87] : memref<16x16xf32, #tpu.memory_space<vmem>>, vector<16x16xf32>
    %c0_88 = arith.constant 0 : index
    %c0_89 = arith.constant 0 : index
    %331 = vector.load %arg5[%c0_88, %c0_89] : memref<16x16xf32, #tpu.memory_space<vmem>>, vector<16x16xf32>
    %cst_90 = arith.constant dense<0.000000e+00> : vector<16xf32>
    %332 = vector.multi_reduction <add>, %329, %cst_90 [1] : vector<16x32xf32> to vector<16xf32>
    %333 = vector.shape_cast %332 : vector<16xf32> to vector<16x1xf32>
    %cst_91 = arith.constant 3.200000e+01 : f32
    %334 = vector.broadcast %cst_91 : f32 to vector<16x1xf32>
    %335 = arith.divf %333, %334 : vector<16x1xf32>
    %336 = vector.broadcast %335 : vector<16x1xf32> to vector<16x32xf32>
    %337 = arith.subf %329, %336 : vector<16x32xf32>
    %338 = arith.mulf %337, %337 : vector<16x32xf32>
    %cst_92 = arith.constant dense<0.000000e+00> : vector<16xf32>
    %339 = vector.multi_reduction <add>, %338, %cst_92 [1] : vector<16x32xf32> to vector<16xf32>
    %340 = vector.shape_cast %339 : vector<16xf32> to vector<16x1xf32>
    %cst_93 = arith.constant 3.200000e+01 : f32
    %341 = vector.broadcast %cst_93 : f32 to vector<16x1xf32>
    %342 = arith.divf %340, %341 : vector<16x1xf32>
    %343 = vector.broadcast %335 : vector<16x1xf32> to vector<16x32xf32>
    %344 = arith.subf %329, %343 : vector<16x32xf32>
    %cst_94 = arith.constant 9.99999974E-6 : f32
    %345 = vector.broadcast %cst_94 : f32 to vector<16x1xf32>
    %346 = arith.addf %342, %345 : vector<16x1xf32>
    %347 = math.rsqrt %346 : vector<16x1xf32>
    %348 = vector.broadcast %347 : vector<16x1xf32> to vector<16x32xf32>
    %349 = arith.mulf %344, %348 : vector<16x32xf32>
    %350 = vector.extract_strided_slice %0 {offsets = [12, 0], sizes = [1, 32], strides = [1, 1]} : vector<32x128xf32> to vector<1x32xf32>
    %351 = vector.broadcast %350 : vector<1x32xf32> to vector<16x32xf32>
    %352 = arith.mulf %349, %351 : vector<16x32xf32>
    %353 = vector.extract_strided_slice %0 {offsets = [13, 0], sizes = [1, 32], strides = [1, 1]} : vector<32x128xf32> to vector<1x32xf32>
    %354 = vector.broadcast %353 : vector<1x32xf32> to vector<16x32xf32>
    %355 = arith.addf %352, %354 : vector<16x32xf32>
    %c0_95 = arith.constant 0 : index
    %c512 = arith.constant 512 : index
    %356 = vector.load %arg7[%c0_95, %c512] : memref<32x1408xbf16, #tpu.memory_space<vmem>>, vector<32x96xbf16>
    %c0_96 = arith.constant 0 : index
    %c608 = arith.constant 608 : index
    %357 = vector.load %arg7[%c0_96, %c608] : memref<32x1408xbf16, #tpu.memory_space<vmem>>, vector<32x32xbf16>
    %358 = arith.truncf %355 : vector<16x32xf32> to vector<16x32xbf16>
    %cst_97 = arith.constant dense<0.000000e+00> : vector<16x96xf32>
    %359 = tpu.matmul %358, %356, %cst_97 {dimension_numbers = #tpu.dot_dimension_numbers<[1], [0], [0], [1], [0, 0, 1, 1], [], []>} : vector<16x32xbf16>, vector<32x96xbf16>, vector<16x96xf32> -> vector<16x96xf32>
    %360 = vector.extract_strided_slice %359 {offsets = [0, 0], sizes = [16, 32], strides = [1, 1]} : vector<16x96xf32> to vector<16x32xf32>
    %361 = vector.extract_strided_slice %359 {offsets = [0, 32], sizes = [16, 32], strides = [1, 1]} : vector<16x96xf32> to vector<16x32xf32>
    %362 = vector.extract_strided_slice %359 {offsets = [0, 64], sizes = [16, 32], strides = [1, 1]} : vector<16x96xf32> to vector<16x32xf32>
    %363 = tpu.transpose %361, [1, 0] : vector<16x32xf32> -> vector<32x16xf32>
    %364 = vector.extract_strided_slice %360 {offsets = [0, 0], sizes = [16, 8], strides = [1, 1]} : vector<16x32xf32> to vector<16x8xf32>
    %365 = arith.truncf %364 : vector<16x8xf32> to vector<16x8xbf16>
    %366 = vector.extract_strided_slice %363 {offsets = [0, 0], sizes = [8, 16], strides = [1, 1]} : vector<32x16xf32> to vector<8x16xf32>
    %367 = arith.truncf %366 : vector<8x16xf32> to vector<8x16xbf16>
    %cst_98 = arith.constant dense<0.000000e+00> : vector<16x16xf32>
    %368 = tpu.matmul %365, %367, %cst_98 {dimension_numbers = #tpu.dot_dimension_numbers<[1], [0], [0], [1], [0, 0, 1, 1], [], []>} : vector<16x8xbf16>, vector<8x16xbf16>, vector<16x16xf32> -> vector<16x16xf32>
    %cst_99 = arith.constant 0.353553385 : f32
    %369 = vector.broadcast %cst_99 : f32 to vector<16x16xf32>
    %370 = arith.mulf %368, %369 : vector<16x16xf32>
    %371 = arith.addf %370, %330 : vector<16x16xf32>
    %cst_100 = arith.constant dense<0xFF800000> : vector<16xf32>
    %372 = vector.multi_reduction <maximumf>, %371, %cst_100 [1] : vector<16x16xf32> to vector<16xf32>
    %373 = vector.shape_cast %372 : vector<16xf32> to vector<16x1xf32>
    %374 = vector.broadcast %373 : vector<16x1xf32> to vector<16x16xf32>
    %375 = arith.subf %371, %374 : vector<16x16xf32>
    %376 = math.exp %375 : vector<16x16xf32>
    %cst_101 = arith.constant dense<0.000000e+00> : vector<16xf32>
    %377 = vector.multi_reduction <add>, %376, %cst_101 [1] : vector<16x16xf32> to vector<16xf32>
    %378 = vector.shape_cast %377 : vector<16xf32> to vector<16x1xf32>
    %379 = tpu.reciprocal %378 {approx = true} : vector<16x1xf32> -> vector<16x1xf32>
    %380 = vector.broadcast %379 : vector<16x1xf32> to vector<16x16xf32>
    %381 = arith.mulf %376, %380 : vector<16x16xf32>
    %382 = vector.extract_strided_slice %362 {offsets = [0, 0], sizes = [16, 8], strides = [1, 1]} : vector<16x32xf32> to vector<16x8xf32>
    %383 = arith.truncf %382 : vector<16x8xf32> to vector<16x8xbf16>
    %384 = arith.truncf %381 : vector<16x16xf32> to vector<16x16xbf16>
    %cst_102 = arith.constant dense<0.000000e+00> : vector<16x8xf32>
    %385 = tpu.matmul %384, %383, %cst_102 {dimension_numbers = #tpu.dot_dimension_numbers<[1], [0], [0], [1], [0, 0, 1, 1], [], []>} : vector<16x16xbf16>, vector<16x8xbf16>, vector<16x8xf32> -> vector<16x8xf32>
    %386 = vector.extract_strided_slice %360 {offsets = [0, 8], sizes = [16, 8], strides = [1, 1]} : vector<16x32xf32> to vector<16x8xf32>
    %387 = arith.truncf %386 : vector<16x8xf32> to vector<16x8xbf16>
    %388 = vector.extract_strided_slice %363 {offsets = [8, 0], sizes = [8, 16], strides = [1, 1]} : vector<32x16xf32> to vector<8x16xf32>
    %389 = arith.truncf %388 : vector<8x16xf32> to vector<8x16xbf16>
    %cst_103 = arith.constant dense<0.000000e+00> : vector<16x16xf32>
    %390 = tpu.matmul %387, %389, %cst_103 {dimension_numbers = #tpu.dot_dimension_numbers<[1], [0], [0], [1], [0, 0, 1, 1], [], []>} : vector<16x8xbf16>, vector<8x16xbf16>, vector<16x16xf32> -> vector<16x16xf32>
    %cst_104 = arith.constant 0.353553385 : f32
    %391 = vector.broadcast %cst_104 : f32 to vector<16x16xf32>
    %392 = arith.mulf %390, %391 : vector<16x16xf32>
    %393 = arith.addf %392, %330 : vector<16x16xf32>
    %cst_105 = arith.constant dense<0xFF800000> : vector<16xf32>
    %394 = vector.multi_reduction <maximumf>, %393, %cst_105 [1] : vector<16x16xf32> to vector<16xf32>
    %395 = vector.shape_cast %394 : vector<16xf32> to vector<16x1xf32>
    %396 = vector.broadcast %395 : vector<16x1xf32> to vector<16x16xf32>
    %397 = arith.subf %393, %396 : vector<16x16xf32>
    %398 = math.exp %397 : vector<16x16xf32>
    %cst_106 = arith.constant dense<0.000000e+00> : vector<16xf32>
    %399 = vector.multi_reduction <add>, %398, %cst_106 [1] : vector<16x16xf32> to vector<16xf32>
    %400 = vector.shape_cast %399 : vector<16xf32> to vector<16x1xf32>
    %401 = tpu.reciprocal %400 {approx = true} : vector<16x1xf32> -> vector<16x1xf32>
    %402 = vector.broadcast %401 : vector<16x1xf32> to vector<16x16xf32>
    %403 = arith.mulf %398, %402 : vector<16x16xf32>
    %404 = vector.extract_strided_slice %362 {offsets = [0, 8], sizes = [16, 8], strides = [1, 1]} : vector<16x32xf32> to vector<16x8xf32>
    %405 = arith.truncf %404 : vector<16x8xf32> to vector<16x8xbf16>
    %406 = arith.truncf %403 : vector<16x16xf32> to vector<16x16xbf16>
    %cst_107 = arith.constant dense<0.000000e+00> : vector<16x8xf32>
    %407 = tpu.matmul %406, %405, %cst_107 {dimension_numbers = #tpu.dot_dimension_numbers<[1], [0], [0], [1], [0, 0, 1, 1], [], []>} : vector<16x16xbf16>, vector<16x8xbf16>, vector<16x8xf32> -> vector<16x8xf32>
    %408 = vector.extract_strided_slice %360 {offsets = [0, 16], sizes = [16, 8], strides = [1, 1]} : vector<16x32xf32> to vector<16x8xf32>
    %409 = arith.truncf %408 : vector<16x8xf32> to vector<16x8xbf16>
    %410 = vector.extract_strided_slice %363 {offsets = [16, 0], sizes = [8, 16], strides = [1, 1]} : vector<32x16xf32> to vector<8x16xf32>
    %411 = arith.truncf %410 : vector<8x16xf32> to vector<8x16xbf16>
    %cst_108 = arith.constant dense<0.000000e+00> : vector<16x16xf32>
    %412 = tpu.matmul %409, %411, %cst_108 {dimension_numbers = #tpu.dot_dimension_numbers<[1], [0], [0], [1], [0, 0, 1, 1], [], []>} : vector<16x8xbf16>, vector<8x16xbf16>, vector<16x16xf32> -> vector<16x16xf32>
    %cst_109 = arith.constant 0.353553385 : f32
    %413 = vector.broadcast %cst_109 : f32 to vector<16x16xf32>
    %414 = arith.mulf %412, %413 : vector<16x16xf32>
    %415 = arith.addf %414, %330 : vector<16x16xf32>
    %cst_110 = arith.constant dense<0xFF800000> : vector<16xf32>
    %416 = vector.multi_reduction <maximumf>, %415, %cst_110 [1] : vector<16x16xf32> to vector<16xf32>
    %417 = vector.shape_cast %416 : vector<16xf32> to vector<16x1xf32>
    %418 = vector.broadcast %417 : vector<16x1xf32> to vector<16x16xf32>
    %419 = arith.subf %415, %418 : vector<16x16xf32>
    %420 = math.exp %419 : vector<16x16xf32>
    %cst_111 = arith.constant dense<0.000000e+00> : vector<16xf32>
    %421 = vector.multi_reduction <add>, %420, %cst_111 [1] : vector<16x16xf32> to vector<16xf32>
    %422 = vector.shape_cast %421 : vector<16xf32> to vector<16x1xf32>
    %423 = tpu.reciprocal %422 {approx = true} : vector<16x1xf32> -> vector<16x1xf32>
    %424 = vector.broadcast %423 : vector<16x1xf32> to vector<16x16xf32>
    %425 = arith.mulf %420, %424 : vector<16x16xf32>
    %426 = vector.extract_strided_slice %362 {offsets = [0, 16], sizes = [16, 8], strides = [1, 1]} : vector<16x32xf32> to vector<16x8xf32>
    %427 = arith.truncf %426 : vector<16x8xf32> to vector<16x8xbf16>
    %428 = arith.truncf %425 : vector<16x16xf32> to vector<16x16xbf16>
    %cst_112 = arith.constant dense<0.000000e+00> : vector<16x8xf32>
    %429 = tpu.matmul %428, %427, %cst_112 {dimension_numbers = #tpu.dot_dimension_numbers<[1], [0], [0], [1], [0, 0, 1, 1], [], []>} : vector<16x16xbf16>, vector<16x8xbf16>, vector<16x8xf32> -> vector<16x8xf32>
    %430 = vector.extract_strided_slice %360 {offsets = [0, 24], sizes = [16, 8], strides = [1, 1]} : vector<16x32xf32> to vector<16x8xf32>
    %431 = arith.truncf %430 : vector<16x8xf32> to vector<16x8xbf16>
    %432 = vector.extract_strided_slice %363 {offsets = [24, 0], sizes = [8, 16], strides = [1, 1]} : vector<32x16xf32> to vector<8x16xf32>
    %433 = arith.truncf %432 : vector<8x16xf32> to vector<8x16xbf16>
    %cst_113 = arith.constant dense<0.000000e+00> : vector<16x16xf32>
    %434 = tpu.matmul %431, %433, %cst_113 {dimension_numbers = #tpu.dot_dimension_numbers<[1], [0], [0], [1], [0, 0, 1, 1], [], []>} : vector<16x8xbf16>, vector<8x16xbf16>, vector<16x16xf32> -> vector<16x16xf32>
    %cst_114 = arith.constant 0.353553385 : f32
    %435 = vector.broadcast %cst_114 : f32 to vector<16x16xf32>
    %436 = arith.mulf %434, %435 : vector<16x16xf32>
    %437 = arith.addf %436, %330 : vector<16x16xf32>
    %cst_115 = arith.constant dense<0xFF800000> : vector<16xf32>
    %438 = vector.multi_reduction <maximumf>, %437, %cst_115 [1] : vector<16x16xf32> to vector<16xf32>
    %439 = vector.shape_cast %438 : vector<16xf32> to vector<16x1xf32>
    %440 = vector.broadcast %439 : vector<16x1xf32> to vector<16x16xf32>
    %441 = arith.subf %437, %440 : vector<16x16xf32>
    %442 = math.exp %441 : vector<16x16xf32>
    %cst_116 = arith.constant dense<0.000000e+00> : vector<16xf32>
    %443 = vector.multi_reduction <add>, %442, %cst_116 [1] : vector<16x16xf32> to vector<16xf32>
    %444 = vector.shape_cast %443 : vector<16xf32> to vector<16x1xf32>
    %445 = tpu.reciprocal %444 {approx = true} : vector<16x1xf32> -> vector<16x1xf32>
    %446 = vector.broadcast %445 : vector<16x1xf32> to vector<16x16xf32>
    %447 = arith.mulf %442, %446 : vector<16x16xf32>
    %448 = vector.extract_strided_slice %362 {offsets = [0, 24], sizes = [16, 8], strides = [1, 1]} : vector<16x32xf32> to vector<16x8xf32>
    %449 = arith.truncf %448 : vector<16x8xf32> to vector<16x8xbf16>
    %450 = arith.truncf %447 : vector<16x16xf32> to vector<16x16xbf16>
    %cst_117 = arith.constant dense<0.000000e+00> : vector<16x8xf32>
    %451 = tpu.matmul %450, %449, %cst_117 {dimension_numbers = #tpu.dot_dimension_numbers<[1], [0], [0], [1], [0, 0, 1, 1], [], []>} : vector<16x16xbf16>, vector<16x8xbf16>, vector<16x8xf32> -> vector<16x8xf32>
    %452 = tpu.concatenate %385, %407, %429, %451 in 1 : vector<16x8xf32>, vector<16x8xf32>, vector<16x8xf32>, vector<16x8xf32> -> vector<16x32xf32>
    %453 = arith.truncf %452 : vector<16x32xf32> to vector<16x32xbf16>
    %cst_118 = arith.constant dense<0.000000e+00> : vector<16x32xf32>
    %454 = tpu.matmul %453, %357, %cst_118 {dimension_numbers = #tpu.dot_dimension_numbers<[1], [0], [0], [1], [0, 0, 1, 1], [], []>} : vector<16x32xbf16>, vector<32x32xbf16>, vector<16x32xf32> -> vector<16x32xf32>
    %455 = arith.addf %329, %454 : vector<16x32xf32>
    %cst_119 = arith.constant dense<0.000000e+00> : vector<16xf32>
    %456 = vector.multi_reduction <add>, %328, %cst_119 [1] : vector<16x32xf32> to vector<16xf32>
    %457 = vector.shape_cast %456 : vector<16xf32> to vector<16x1xf32>
    %cst_120 = arith.constant 3.200000e+01 : f32
    %458 = vector.broadcast %cst_120 : f32 to vector<16x1xf32>
    %459 = arith.divf %457, %458 : vector<16x1xf32>
    %460 = vector.broadcast %459 : vector<16x1xf32> to vector<16x32xf32>
    %461 = arith.subf %328, %460 : vector<16x32xf32>
    %462 = arith.mulf %461, %461 : vector<16x32xf32>
    %cst_121 = arith.constant dense<0.000000e+00> : vector<16xf32>
    %463 = vector.multi_reduction <add>, %462, %cst_121 [1] : vector<16x32xf32> to vector<16xf32>
    %464 = vector.shape_cast %463 : vector<16xf32> to vector<16x1xf32>
    %cst_122 = arith.constant 3.200000e+01 : f32
    %465 = vector.broadcast %cst_122 : f32 to vector<16x1xf32>
    %466 = arith.divf %464, %465 : vector<16x1xf32>
    %467 = vector.broadcast %459 : vector<16x1xf32> to vector<16x32xf32>
    %468 = arith.subf %328, %467 : vector<16x32xf32>
    %cst_123 = arith.constant 9.99999974E-6 : f32
    %469 = vector.broadcast %cst_123 : f32 to vector<16x1xf32>
    %470 = arith.addf %466, %469 : vector<16x1xf32>
    %471 = math.rsqrt %470 : vector<16x1xf32>
    %472 = vector.broadcast %471 : vector<16x1xf32> to vector<16x32xf32>
    %473 = arith.mulf %468, %472 : vector<16x32xf32>
    %474 = vector.extract_strided_slice %0 {offsets = [14, 0], sizes = [1, 32], strides = [1, 1]} : vector<32x128xf32> to vector<1x32xf32>
    %475 = vector.broadcast %474 : vector<1x32xf32> to vector<16x32xf32>
    %476 = arith.mulf %473, %475 : vector<16x32xf32>
    %477 = vector.extract_strided_slice %0 {offsets = [15, 0], sizes = [1, 32], strides = [1, 1]} : vector<32x128xf32> to vector<1x32xf32>
    %478 = vector.broadcast %477 : vector<1x32xf32> to vector<16x32xf32>
    %479 = arith.addf %476, %478 : vector<16x32xf32>
    %cst_124 = arith.constant dense<0.000000e+00> : vector<16xf32>
    %480 = vector.multi_reduction <add>, %455, %cst_124 [1] : vector<16x32xf32> to vector<16xf32>
    %481 = vector.shape_cast %480 : vector<16xf32> to vector<16x1xf32>
    %cst_125 = arith.constant 3.200000e+01 : f32
    %482 = vector.broadcast %cst_125 : f32 to vector<16x1xf32>
    %483 = arith.divf %481, %482 : vector<16x1xf32>
    %484 = vector.broadcast %483 : vector<16x1xf32> to vector<16x32xf32>
    %485 = arith.subf %455, %484 : vector<16x32xf32>
    %486 = arith.mulf %485, %485 : vector<16x32xf32>
    %cst_126 = arith.constant dense<0.000000e+00> : vector<16xf32>
    %487 = vector.multi_reduction <add>, %486, %cst_126 [1] : vector<16x32xf32> to vector<16xf32>
    %488 = vector.shape_cast %487 : vector<16xf32> to vector<16x1xf32>
    %cst_127 = arith.constant 3.200000e+01 : f32
    %489 = vector.broadcast %cst_127 : f32 to vector<16x1xf32>
    %490 = arith.divf %488, %489 : vector<16x1xf32>
    %491 = vector.broadcast %483 : vector<16x1xf32> to vector<16x32xf32>
    %492 = arith.subf %455, %491 : vector<16x32xf32>
    %cst_128 = arith.constant 9.99999974E-6 : f32
    %493 = vector.broadcast %cst_128 : f32 to vector<16x1xf32>
    %494 = arith.addf %490, %493 : vector<16x1xf32>
    %495 = math.rsqrt %494 : vector<16x1xf32>
    %496 = vector.broadcast %495 : vector<16x1xf32> to vector<16x32xf32>
    %497 = arith.mulf %492, %496 : vector<16x32xf32>
    %498 = vector.extract_strided_slice %0 {offsets = [14, 0], sizes = [1, 32], strides = [1, 1]} : vector<32x128xf32> to vector<1x32xf32>
    %499 = vector.broadcast %498 : vector<1x32xf32> to vector<16x32xf32>
    %500 = arith.mulf %497, %499 : vector<16x32xf32>
    %501 = vector.extract_strided_slice %0 {offsets = [15, 0], sizes = [1, 32], strides = [1, 1]} : vector<32x128xf32> to vector<1x32xf32>
    %502 = vector.broadcast %501 : vector<1x32xf32> to vector<16x32xf32>
    %503 = arith.addf %500, %502 : vector<16x32xf32>
    %c0_129 = arith.constant 0 : index
    %c640 = arith.constant 640 : index
    %504 = vector.load %arg7[%c0_129, %c640] : memref<32x1408xbf16, #tpu.memory_space<vmem>>, vector<32x96xbf16>
    %c0_130 = arith.constant 0 : index
    %c736 = arith.constant 736 : index
    %505 = vector.load %arg7[%c0_130, %c736] : memref<32x1408xbf16, #tpu.memory_space<vmem>>, vector<32x32xbf16>
    %506 = arith.truncf %503 : vector<16x32xf32> to vector<16x32xbf16>
    %507 = arith.truncf %479 : vector<16x32xf32> to vector<16x32xbf16>
    %508 = vector.extract_strided_slice %504 {offsets = [0, 0], sizes = [32, 32], strides = [1, 1]} : vector<32x96xbf16> to vector<32x32xbf16>
    %cst_131 = arith.constant dense<0.000000e+00> : vector<16x32xf32>
    %509 = tpu.matmul %506, %508, %cst_131 {dimension_numbers = #tpu.dot_dimension_numbers<[1], [0], [0], [1], [0, 0, 1, 1], [], []>} : vector<16x32xbf16>, vector<32x32xbf16>, vector<16x32xf32> -> vector<16x32xf32>
    %510 = vector.extract_strided_slice %504 {offsets = [0, 32], sizes = [32, 64], strides = [1, 1]} : vector<32x96xbf16> to vector<32x64xbf16>
    %cst_132 = arith.constant dense<0.000000e+00> : vector<16x64xf32>
    %511 = tpu.matmul %507, %510, %cst_132 {dimension_numbers = #tpu.dot_dimension_numbers<[1], [0], [0], [1], [0, 0, 1, 1], [], []>} : vector<16x32xbf16>, vector<32x64xbf16>, vector<16x64xf32> -> vector<16x64xf32>
    %512 = vector.extract_strided_slice %511 {offsets = [0, 0], sizes = [16, 32], strides = [1, 1]} : vector<16x64xf32> to vector<16x32xf32>
    %513 = vector.extract_strided_slice %511 {offsets = [0, 32], sizes = [16, 32], strides = [1, 1]} : vector<16x64xf32> to vector<16x32xf32>
    %514 = tpu.transpose %512, [1, 0] : vector<16x32xf32> -> vector<32x16xf32>
    %515 = vector.extract_strided_slice %509 {offsets = [0, 0], sizes = [16, 8], strides = [1, 1]} : vector<16x32xf32> to vector<16x8xf32>
    %516 = arith.truncf %515 : vector<16x8xf32> to vector<16x8xbf16>
    %517 = vector.extract_strided_slice %514 {offsets = [0, 0], sizes = [8, 16], strides = [1, 1]} : vector<32x16xf32> to vector<8x16xf32>
    %518 = arith.truncf %517 : vector<8x16xf32> to vector<8x16xbf16>
    %cst_133 = arith.constant dense<0.000000e+00> : vector<16x16xf32>
    %519 = tpu.matmul %516, %518, %cst_133 {dimension_numbers = #tpu.dot_dimension_numbers<[1], [0], [0], [1], [0, 0, 1, 1], [], []>} : vector<16x8xbf16>, vector<8x16xbf16>, vector<16x16xf32> -> vector<16x16xf32>
    %cst_134 = arith.constant 0.353553385 : f32
    %520 = vector.broadcast %cst_134 : f32 to vector<16x16xf32>
    %521 = arith.mulf %519, %520 : vector<16x16xf32>
    %522 = arith.addf %521, %331 : vector<16x16xf32>
    %cst_135 = arith.constant dense<0xFF800000> : vector<16xf32>
    %523 = vector.multi_reduction <maximumf>, %522, %cst_135 [1] : vector<16x16xf32> to vector<16xf32>
    %524 = vector.shape_cast %523 : vector<16xf32> to vector<16x1xf32>
    %525 = vector.broadcast %524 : vector<16x1xf32> to vector<16x16xf32>
    %526 = arith.subf %522, %525 : vector<16x16xf32>
    %527 = math.exp %526 : vector<16x16xf32>
    %cst_136 = arith.constant dense<0.000000e+00> : vector<16xf32>
    %528 = vector.multi_reduction <add>, %527, %cst_136 [1] : vector<16x16xf32> to vector<16xf32>
    %529 = vector.shape_cast %528 : vector<16xf32> to vector<16x1xf32>
    %530 = tpu.reciprocal %529 {approx = true} : vector<16x1xf32> -> vector<16x1xf32>
    %531 = vector.broadcast %530 : vector<16x1xf32> to vector<16x16xf32>
    %532 = arith.mulf %527, %531 : vector<16x16xf32>
    %533 = vector.extract_strided_slice %513 {offsets = [0, 0], sizes = [16, 8], strides = [1, 1]} : vector<16x32xf32> to vector<16x8xf32>
    %534 = arith.truncf %533 : vector<16x8xf32> to vector<16x8xbf16>
    %535 = arith.truncf %532 : vector<16x16xf32> to vector<16x16xbf16>
    %cst_137 = arith.constant dense<0.000000e+00> : vector<16x8xf32>
    %536 = tpu.matmul %535, %534, %cst_137 {dimension_numbers = #tpu.dot_dimension_numbers<[1], [0], [0], [1], [0, 0, 1, 1], [], []>} : vector<16x16xbf16>, vector<16x8xbf16>, vector<16x8xf32> -> vector<16x8xf32>
    %537 = vector.extract_strided_slice %509 {offsets = [0, 8], sizes = [16, 8], strides = [1, 1]} : vector<16x32xf32> to vector<16x8xf32>
    %538 = arith.truncf %537 : vector<16x8xf32> to vector<16x8xbf16>
    %539 = vector.extract_strided_slice %514 {offsets = [8, 0], sizes = [8, 16], strides = [1, 1]} : vector<32x16xf32> to vector<8x16xf32>
    %540 = arith.truncf %539 : vector<8x16xf32> to vector<8x16xbf16>
    %cst_138 = arith.constant dense<0.000000e+00> : vector<16x16xf32>
    %541 = tpu.matmul %538, %540, %cst_138 {dimension_numbers = #tpu.dot_dimension_numbers<[1], [0], [0], [1], [0, 0, 1, 1], [], []>} : vector<16x8xbf16>, vector<8x16xbf16>, vector<16x16xf32> -> vector<16x16xf32>
    %cst_139 = arith.constant 0.353553385 : f32
    %542 = vector.broadcast %cst_139 : f32 to vector<16x16xf32>
    %543 = arith.mulf %541, %542 : vector<16x16xf32>
    %544 = arith.addf %543, %331 : vector<16x16xf32>
    %cst_140 = arith.constant dense<0xFF800000> : vector<16xf32>
    %545 = vector.multi_reduction <maximumf>, %544, %cst_140 [1] : vector<16x16xf32> to vector<16xf32>
    %546 = vector.shape_cast %545 : vector<16xf32> to vector<16x1xf32>
    %547 = vector.broadcast %546 : vector<16x1xf32> to vector<16x16xf32>
    %548 = arith.subf %544, %547 : vector<16x16xf32>
    %549 = math.exp %548 : vector<16x16xf32>
    %cst_141 = arith.constant dense<0.000000e+00> : vector<16xf32>
    %550 = vector.multi_reduction <add>, %549, %cst_141 [1] : vector<16x16xf32> to vector<16xf32>
    %551 = vector.shape_cast %550 : vector<16xf32> to vector<16x1xf32>
    %552 = tpu.reciprocal %551 {approx = true} : vector<16x1xf32> -> vector<16x1xf32>
    %553 = vector.broadcast %552 : vector<16x1xf32> to vector<16x16xf32>
    %554 = arith.mulf %549, %553 : vector<16x16xf32>
    %555 = vector.extract_strided_slice %513 {offsets = [0, 8], sizes = [16, 8], strides = [1, 1]} : vector<16x32xf32> to vector<16x8xf32>
    %556 = arith.truncf %555 : vector<16x8xf32> to vector<16x8xbf16>
    %557 = arith.truncf %554 : vector<16x16xf32> to vector<16x16xbf16>
    %cst_142 = arith.constant dense<0.000000e+00> : vector<16x8xf32>
    %558 = tpu.matmul %557, %556, %cst_142 {dimension_numbers = #tpu.dot_dimension_numbers<[1], [0], [0], [1], [0, 0, 1, 1], [], []>} : vector<16x16xbf16>, vector<16x8xbf16>, vector<16x8xf32> -> vector<16x8xf32>
    %559 = vector.extract_strided_slice %509 {offsets = [0, 16], sizes = [16, 8], strides = [1, 1]} : vector<16x32xf32> to vector<16x8xf32>
    %560 = arith.truncf %559 : vector<16x8xf32> to vector<16x8xbf16>
    %561 = vector.extract_strided_slice %514 {offsets = [16, 0], sizes = [8, 16], strides = [1, 1]} : vector<32x16xf32> to vector<8x16xf32>
    %562 = arith.truncf %561 : vector<8x16xf32> to vector<8x16xbf16>
    %cst_143 = arith.constant dense<0.000000e+00> : vector<16x16xf32>
    %563 = tpu.matmul %560, %562, %cst_143 {dimension_numbers = #tpu.dot_dimension_numbers<[1], [0], [0], [1], [0, 0, 1, 1], [], []>} : vector<16x8xbf16>, vector<8x16xbf16>, vector<16x16xf32> -> vector<16x16xf32>
    %cst_144 = arith.constant 0.353553385 : f32
    %564 = vector.broadcast %cst_144 : f32 to vector<16x16xf32>
    %565 = arith.mulf %563, %564 : vector<16x16xf32>
    %566 = arith.addf %565, %331 : vector<16x16xf32>
    %cst_145 = arith.constant dense<0xFF800000> : vector<16xf32>
    %567 = vector.multi_reduction <maximumf>, %566, %cst_145 [1] : vector<16x16xf32> to vector<16xf32>
    %568 = vector.shape_cast %567 : vector<16xf32> to vector<16x1xf32>
    %569 = vector.broadcast %568 : vector<16x1xf32> to vector<16x16xf32>
    %570 = arith.subf %566, %569 : vector<16x16xf32>
    %571 = math.exp %570 : vector<16x16xf32>
    %cst_146 = arith.constant dense<0.000000e+00> : vector<16xf32>
    %572 = vector.multi_reduction <add>, %571, %cst_146 [1] : vector<16x16xf32> to vector<16xf32>
    %573 = vector.shape_cast %572 : vector<16xf32> to vector<16x1xf32>
    %574 = tpu.reciprocal %573 {approx = true} : vector<16x1xf32> -> vector<16x1xf32>
    %575 = vector.broadcast %574 : vector<16x1xf32> to vector<16x16xf32>
    %576 = arith.mulf %571, %575 : vector<16x16xf32>
    %577 = vector.extract_strided_slice %513 {offsets = [0, 16], sizes = [16, 8], strides = [1, 1]} : vector<16x32xf32> to vector<16x8xf32>
    %578 = arith.truncf %577 : vector<16x8xf32> to vector<16x8xbf16>
    %579 = arith.truncf %576 : vector<16x16xf32> to vector<16x16xbf16>
    %cst_147 = arith.constant dense<0.000000e+00> : vector<16x8xf32>
    %580 = tpu.matmul %579, %578, %cst_147 {dimension_numbers = #tpu.dot_dimension_numbers<[1], [0], [0], [1], [0, 0, 1, 1], [], []>} : vector<16x16xbf16>, vector<16x8xbf16>, vector<16x8xf32> -> vector<16x8xf32>
    %581 = vector.extract_strided_slice %509 {offsets = [0, 24], sizes = [16, 8], strides = [1, 1]} : vector<16x32xf32> to vector<16x8xf32>
    %582 = arith.truncf %581 : vector<16x8xf32> to vector<16x8xbf16>
    %583 = vector.extract_strided_slice %514 {offsets = [24, 0], sizes = [8, 16], strides = [1, 1]} : vector<32x16xf32> to vector<8x16xf32>
    %584 = arith.truncf %583 : vector<8x16xf32> to vector<8x16xbf16>
    %cst_148 = arith.constant dense<0.000000e+00> : vector<16x16xf32>
    %585 = tpu.matmul %582, %584, %cst_148 {dimension_numbers = #tpu.dot_dimension_numbers<[1], [0], [0], [1], [0, 0, 1, 1], [], []>} : vector<16x8xbf16>, vector<8x16xbf16>, vector<16x16xf32> -> vector<16x16xf32>
    %cst_149 = arith.constant 0.353553385 : f32
    %586 = vector.broadcast %cst_149 : f32 to vector<16x16xf32>
    %587 = arith.mulf %585, %586 : vector<16x16xf32>
    %588 = arith.addf %587, %331 : vector<16x16xf32>
    %cst_150 = arith.constant dense<0xFF800000> : vector<16xf32>
    %589 = vector.multi_reduction <maximumf>, %588, %cst_150 [1] : vector<16x16xf32> to vector<16xf32>
    %590 = vector.shape_cast %589 : vector<16xf32> to vector<16x1xf32>
    %591 = vector.broadcast %590 : vector<16x1xf32> to vector<16x16xf32>
    %592 = arith.subf %588, %591 : vector<16x16xf32>
    %593 = math.exp %592 : vector<16x16xf32>
    %cst_151 = arith.constant dense<0.000000e+00> : vector<16xf32>
    %594 = vector.multi_reduction <add>, %593, %cst_151 [1] : vector<16x16xf32> to vector<16xf32>
    %595 = vector.shape_cast %594 : vector<16xf32> to vector<16x1xf32>
    %596 = tpu.reciprocal %595 {approx = true} : vector<16x1xf32> -> vector<16x1xf32>
    %597 = vector.broadcast %596 : vector<16x1xf32> to vector<16x16xf32>
    %598 = arith.mulf %593, %597 : vector<16x16xf32>
    %599 = vector.extract_strided_slice %513 {offsets = [0, 24], sizes = [16, 8], strides = [1, 1]} : vector<16x32xf32> to vector<16x8xf32>
    %600 = arith.truncf %599 : vector<16x8xf32> to vector<16x8xbf16>
    %601 = arith.truncf %598 : vector<16x16xf32> to vector<16x16xbf16>
    %cst_152 = arith.constant dense<0.000000e+00> : vector<16x8xf32>
    %602 = tpu.matmul %601, %600, %cst_152 {dimension_numbers = #tpu.dot_dimension_numbers<[1], [0], [0], [1], [0, 0, 1, 1], [], []>} : vector<16x16xbf16>, vector<16x8xbf16>, vector<16x8xf32> -> vector<16x8xf32>
    %603 = tpu.concatenate %536, %558, %580, %602 in 1 : vector<16x8xf32>, vector<16x8xf32>, vector<16x8xf32>, vector<16x8xf32> -> vector<16x32xf32>
    %604 = arith.truncf %603 : vector<16x32xf32> to vector<16x32xbf16>
    %cst_153 = arith.constant dense<0.000000e+00> : vector<16x32xf32>
    %605 = tpu.matmul %604, %505, %cst_153 {dimension_numbers = #tpu.dot_dimension_numbers<[1], [0], [0], [1], [0, 0, 1, 1], [], []>} : vector<16x32xbf16>, vector<32x32xbf16>, vector<16x32xf32> -> vector<16x32xf32>
    %606 = arith.addf %455, %605 : vector<16x32xf32>
    %cst_154 = arith.constant dense<0.000000e+00> : vector<16xf32>
    %607 = vector.multi_reduction <add>, %606, %cst_154 [1] : vector<16x32xf32> to vector<16xf32>
    %608 = vector.shape_cast %607 : vector<16xf32> to vector<16x1xf32>
    %cst_155 = arith.constant 3.200000e+01 : f32
    %609 = vector.broadcast %cst_155 : f32 to vector<16x1xf32>
    %610 = arith.divf %608, %609 : vector<16x1xf32>
    %611 = vector.broadcast %610 : vector<16x1xf32> to vector<16x32xf32>
    %612 = arith.subf %606, %611 : vector<16x32xf32>
    %613 = arith.mulf %612, %612 : vector<16x32xf32>
    %cst_156 = arith.constant dense<0.000000e+00> : vector<16xf32>
    %614 = vector.multi_reduction <add>, %613, %cst_156 [1] : vector<16x32xf32> to vector<16xf32>
    %615 = vector.shape_cast %614 : vector<16xf32> to vector<16x1xf32>
    %cst_157 = arith.constant 3.200000e+01 : f32
    %616 = vector.broadcast %cst_157 : f32 to vector<16x1xf32>
    %617 = arith.divf %615, %616 : vector<16x1xf32>
    %618 = vector.broadcast %610 : vector<16x1xf32> to vector<16x32xf32>
    %619 = arith.subf %606, %618 : vector<16x32xf32>
    %cst_158 = arith.constant 9.99999974E-6 : f32
    %620 = vector.broadcast %cst_158 : f32 to vector<16x1xf32>
    %621 = arith.addf %617, %620 : vector<16x1xf32>
    %622 = math.rsqrt %621 : vector<16x1xf32>
    %623 = vector.broadcast %622 : vector<16x1xf32> to vector<16x32xf32>
    %624 = arith.mulf %619, %623 : vector<16x32xf32>
    %625 = vector.extract_strided_slice %0 {offsets = [16, 0], sizes = [1, 32], strides = [1, 1]} : vector<32x128xf32> to vector<1x32xf32>
    %626 = vector.broadcast %625 : vector<1x32xf32> to vector<16x32xf32>
    %627 = arith.mulf %624, %626 : vector<16x32xf32>
    %628 = vector.extract_strided_slice %0 {offsets = [17, 0], sizes = [1, 32], strides = [1, 1]} : vector<32x128xf32> to vector<1x32xf32>
    %629 = vector.broadcast %628 : vector<1x32xf32> to vector<16x32xf32>
    %630 = arith.addf %627, %629 : vector<16x32xf32>
    %631 = arith.truncf %630 : vector<16x32xf32> to vector<16x32xbf16>
    %c0_159 = arith.constant 0 : index
    %c768 = arith.constant 768 : index
    %632 = vector.load %arg7[%c0_159, %c768] : memref<32x1408xbf16, #tpu.memory_space<vmem>>, vector<32x128xbf16>
    %cst_160 = arith.constant dense<0.000000e+00> : vector<16x128xf32>
    %633 = tpu.matmul %631, %632, %cst_160 {dimension_numbers = #tpu.dot_dimension_numbers<[1], [0], [0], [1], [0, 0, 1, 1], [], []>} : vector<16x32xbf16>, vector<32x128xbf16>, vector<16x128xf32> -> vector<16x128xf32>
    %634 = vector.extract_strided_slice %0 {offsets = [18, 0], sizes = [1, 128], strides = [1, 1]} : vector<32x128xf32> to vector<1x128xf32>
    %635 = vector.broadcast %634 : vector<1x128xf32> to vector<16x128xf32>
    %636 = arith.addf %633, %635 : vector<16x128xf32>
    %cst_161 = arith.constant 0.000000e+00 : f32
    %637 = vector.broadcast %cst_161 : f32 to vector<16x128xf32>
    %638 = arith.maximumf %636, %637 : vector<16x128xf32>
    %639 = arith.truncf %638 : vector<16x128xf32> to vector<16x128xbf16>
    %c0_162 = arith.constant 0 : index
    %c64 = arith.constant 64 : index
    %640 = vector.load %arg8[%c0_162, %c64] : memref<128x128xbf16, #tpu.memory_space<vmem>>, vector<128x32xbf16>
    %cst_163 = arith.constant dense<0.000000e+00> : vector<16x32xf32>
    %641 = tpu.matmul %639, %640, %cst_163 {dimension_numbers = #tpu.dot_dimension_numbers<[1], [0], [0], [1], [0, 0, 1, 1], [], []>} : vector<16x128xbf16>, vector<128x32xbf16>, vector<16x32xf32> -> vector<16x32xf32>
    %642 = vector.extract_strided_slice %0 {offsets = [19, 0], sizes = [1, 32], strides = [1, 1]} : vector<32x128xf32> to vector<1x32xf32>
    %643 = vector.broadcast %642 : vector<1x32xf32> to vector<16x32xf32>
    %644 = arith.addf %641, %643 : vector<16x32xf32>
    %645 = arith.addf %606, %644 : vector<16x32xf32>
    %cst_164 = arith.constant dense<0.000000e+00> : vector<16xf32>
    %646 = vector.multi_reduction <add>, %645, %cst_164 [1] : vector<16x32xf32> to vector<16xf32>
    %647 = vector.shape_cast %646 : vector<16xf32> to vector<16x1xf32>
    %cst_165 = arith.constant 3.200000e+01 : f32
    %648 = vector.broadcast %cst_165 : f32 to vector<16x1xf32>
    %649 = arith.divf %647, %648 : vector<16x1xf32>
    %650 = vector.broadcast %649 : vector<16x1xf32> to vector<16x32xf32>
    %651 = arith.subf %645, %650 : vector<16x32xf32>
    %652 = arith.mulf %651, %651 : vector<16x32xf32>
    %cst_166 = arith.constant dense<0.000000e+00> : vector<16xf32>
    %653 = vector.multi_reduction <add>, %652, %cst_166 [1] : vector<16x32xf32> to vector<16xf32>
    %654 = vector.shape_cast %653 : vector<16xf32> to vector<16x1xf32>
    %cst_167 = arith.constant 3.200000e+01 : f32
    %655 = vector.broadcast %cst_167 : f32 to vector<16x1xf32>
    %656 = arith.divf %654, %655 : vector<16x1xf32>
    %657 = vector.broadcast %649 : vector<16x1xf32> to vector<16x32xf32>
    %658 = arith.subf %645, %657 : vector<16x32xf32>
    %cst_168 = arith.constant 9.99999974E-6 : f32
    %659 = vector.broadcast %cst_168 : f32 to vector<16x1xf32>
    %660 = arith.addf %656, %659 : vector<16x1xf32>
    %661 = math.rsqrt %660 : vector<16x1xf32>
    %662 = vector.broadcast %661 : vector<16x1xf32> to vector<16x32xf32>
    %663 = arith.mulf %658, %662 : vector<16x32xf32>
    %664 = vector.extract_strided_slice %0 {offsets = [20, 0], sizes = [1, 32], strides = [1, 1]} : vector<32x128xf32> to vector<1x32xf32>
    %665 = vector.broadcast %664 : vector<1x32xf32> to vector<16x32xf32>
    %666 = arith.mulf %663, %665 : vector<16x32xf32>
    %667 = vector.extract_strided_slice %0 {offsets = [21, 0], sizes = [1, 32], strides = [1, 1]} : vector<32x128xf32> to vector<1x32xf32>
    %668 = vector.broadcast %667 : vector<1x32xf32> to vector<16x32xf32>
    %669 = arith.addf %666, %668 : vector<16x32xf32>
    %c0_169 = arith.constant 0 : index
    %c896 = arith.constant 896 : index
    %670 = vector.load %arg7[%c0_169, %c896] : memref<32x1408xbf16, #tpu.memory_space<vmem>>, vector<32x96xbf16>
    %c0_170 = arith.constant 0 : index
    %c992 = arith.constant 992 : index
    %671 = vector.load %arg7[%c0_170, %c992] : memref<32x1408xbf16, #tpu.memory_space<vmem>>, vector<32x32xbf16>
    %672 = arith.truncf %669 : vector<16x32xf32> to vector<16x32xbf16>
    %cst_171 = arith.constant dense<0.000000e+00> : vector<16x96xf32>
    %673 = tpu.matmul %672, %670, %cst_171 {dimension_numbers = #tpu.dot_dimension_numbers<[1], [0], [0], [1], [0, 0, 1, 1], [], []>} : vector<16x32xbf16>, vector<32x96xbf16>, vector<16x96xf32> -> vector<16x96xf32>
    %674 = vector.extract_strided_slice %673 {offsets = [0, 0], sizes = [16, 32], strides = [1, 1]} : vector<16x96xf32> to vector<16x32xf32>
    %675 = vector.extract_strided_slice %673 {offsets = [0, 32], sizes = [16, 32], strides = [1, 1]} : vector<16x96xf32> to vector<16x32xf32>
    %676 = vector.extract_strided_slice %673 {offsets = [0, 64], sizes = [16, 32], strides = [1, 1]} : vector<16x96xf32> to vector<16x32xf32>
    %677 = tpu.transpose %675, [1, 0] : vector<16x32xf32> -> vector<32x16xf32>
    %678 = vector.extract_strided_slice %674 {offsets = [0, 0], sizes = [16, 8], strides = [1, 1]} : vector<16x32xf32> to vector<16x8xf32>
    %679 = arith.truncf %678 : vector<16x8xf32> to vector<16x8xbf16>
    %680 = vector.extract_strided_slice %677 {offsets = [0, 0], sizes = [8, 16], strides = [1, 1]} : vector<32x16xf32> to vector<8x16xf32>
    %681 = arith.truncf %680 : vector<8x16xf32> to vector<8x16xbf16>
    %cst_172 = arith.constant dense<0.000000e+00> : vector<16x16xf32>
    %682 = tpu.matmul %679, %681, %cst_172 {dimension_numbers = #tpu.dot_dimension_numbers<[1], [0], [0], [1], [0, 0, 1, 1], [], []>} : vector<16x8xbf16>, vector<8x16xbf16>, vector<16x16xf32> -> vector<16x16xf32>
    %cst_173 = arith.constant 0.353553385 : f32
    %683 = vector.broadcast %cst_173 : f32 to vector<16x16xf32>
    %684 = arith.mulf %682, %683 : vector<16x16xf32>
    %685 = arith.addf %684, %330 : vector<16x16xf32>
    %cst_174 = arith.constant dense<0xFF800000> : vector<16xf32>
    %686 = vector.multi_reduction <maximumf>, %685, %cst_174 [1] : vector<16x16xf32> to vector<16xf32>
    %687 = vector.shape_cast %686 : vector<16xf32> to vector<16x1xf32>
    %688 = vector.broadcast %687 : vector<16x1xf32> to vector<16x16xf32>
    %689 = arith.subf %685, %688 : vector<16x16xf32>
    %690 = math.exp %689 : vector<16x16xf32>
    %cst_175 = arith.constant dense<0.000000e+00> : vector<16xf32>
    %691 = vector.multi_reduction <add>, %690, %cst_175 [1] : vector<16x16xf32> to vector<16xf32>
    %692 = vector.shape_cast %691 : vector<16xf32> to vector<16x1xf32>
    %693 = tpu.reciprocal %692 {approx = true} : vector<16x1xf32> -> vector<16x1xf32>
    %694 = vector.broadcast %693 : vector<16x1xf32> to vector<16x16xf32>
    %695 = arith.mulf %690, %694 : vector<16x16xf32>
    %696 = vector.extract_strided_slice %676 {offsets = [0, 0], sizes = [16, 8], strides = [1, 1]} : vector<16x32xf32> to vector<16x8xf32>
    %697 = arith.truncf %696 : vector<16x8xf32> to vector<16x8xbf16>
    %698 = arith.truncf %695 : vector<16x16xf32> to vector<16x16xbf16>
    %cst_176 = arith.constant dense<0.000000e+00> : vector<16x8xf32>
    %699 = tpu.matmul %698, %697, %cst_176 {dimension_numbers = #tpu.dot_dimension_numbers<[1], [0], [0], [1], [0, 0, 1, 1], [], []>} : vector<16x16xbf16>, vector<16x8xbf16>, vector<16x8xf32> -> vector<16x8xf32>
    %700 = vector.extract_strided_slice %674 {offsets = [0, 8], sizes = [16, 8], strides = [1, 1]} : vector<16x32xf32> to vector<16x8xf32>
    %701 = arith.truncf %700 : vector<16x8xf32> to vector<16x8xbf16>
    %702 = vector.extract_strided_slice %677 {offsets = [8, 0], sizes = [8, 16], strides = [1, 1]} : vector<32x16xf32> to vector<8x16xf32>
    %703 = arith.truncf %702 : vector<8x16xf32> to vector<8x16xbf16>
    %cst_177 = arith.constant dense<0.000000e+00> : vector<16x16xf32>
    %704 = tpu.matmul %701, %703, %cst_177 {dimension_numbers = #tpu.dot_dimension_numbers<[1], [0], [0], [1], [0, 0, 1, 1], [], []>} : vector<16x8xbf16>, vector<8x16xbf16>, vector<16x16xf32> -> vector<16x16xf32>
    %cst_178 = arith.constant 0.353553385 : f32
    %705 = vector.broadcast %cst_178 : f32 to vector<16x16xf32>
    %706 = arith.mulf %704, %705 : vector<16x16xf32>
    %707 = arith.addf %706, %330 : vector<16x16xf32>
    %cst_179 = arith.constant dense<0xFF800000> : vector<16xf32>
    %708 = vector.multi_reduction <maximumf>, %707, %cst_179 [1] : vector<16x16xf32> to vector<16xf32>
    %709 = vector.shape_cast %708 : vector<16xf32> to vector<16x1xf32>
    %710 = vector.broadcast %709 : vector<16x1xf32> to vector<16x16xf32>
    %711 = arith.subf %707, %710 : vector<16x16xf32>
    %712 = math.exp %711 : vector<16x16xf32>
    %cst_180 = arith.constant dense<0.000000e+00> : vector<16xf32>
    %713 = vector.multi_reduction <add>, %712, %cst_180 [1] : vector<16x16xf32> to vector<16xf32>
    %714 = vector.shape_cast %713 : vector<16xf32> to vector<16x1xf32>
    %715 = tpu.reciprocal %714 {approx = true} : vector<16x1xf32> -> vector<16x1xf32>
    %716 = vector.broadcast %715 : vector<16x1xf32> to vector<16x16xf32>
    %717 = arith.mulf %712, %716 : vector<16x16xf32>
    %718 = vector.extract_strided_slice %676 {offsets = [0, 8], sizes = [16, 8], strides = [1, 1]} : vector<16x32xf32> to vector<16x8xf32>
    %719 = arith.truncf %718 : vector<16x8xf32> to vector<16x8xbf16>
    %720 = arith.truncf %717 : vector<16x16xf32> to vector<16x16xbf16>
    %cst_181 = arith.constant dense<0.000000e+00> : vector<16x8xf32>
    %721 = tpu.matmul %720, %719, %cst_181 {dimension_numbers = #tpu.dot_dimension_numbers<[1], [0], [0], [1], [0, 0, 1, 1], [], []>} : vector<16x16xbf16>, vector<16x8xbf16>, vector<16x8xf32> -> vector<16x8xf32>
    %722 = vector.extract_strided_slice %674 {offsets = [0, 16], sizes = [16, 8], strides = [1, 1]} : vector<16x32xf32> to vector<16x8xf32>
    %723 = arith.truncf %722 : vector<16x8xf32> to vector<16x8xbf16>
    %724 = vector.extract_strided_slice %677 {offsets = [16, 0], sizes = [8, 16], strides = [1, 1]} : vector<32x16xf32> to vector<8x16xf32>
    %725 = arith.truncf %724 : vector<8x16xf32> to vector<8x16xbf16>
    %cst_182 = arith.constant dense<0.000000e+00> : vector<16x16xf32>
    %726 = tpu.matmul %723, %725, %cst_182 {dimension_numbers = #tpu.dot_dimension_numbers<[1], [0], [0], [1], [0, 0, 1, 1], [], []>} : vector<16x8xbf16>, vector<8x16xbf16>, vector<16x16xf32> -> vector<16x16xf32>
    %cst_183 = arith.constant 0.353553385 : f32
    %727 = vector.broadcast %cst_183 : f32 to vector<16x16xf32>
    %728 = arith.mulf %726, %727 : vector<16x16xf32>
    %729 = arith.addf %728, %330 : vector<16x16xf32>
    %cst_184 = arith.constant dense<0xFF800000> : vector<16xf32>
    %730 = vector.multi_reduction <maximumf>, %729, %cst_184 [1] : vector<16x16xf32> to vector<16xf32>
    %731 = vector.shape_cast %730 : vector<16xf32> to vector<16x1xf32>
    %732 = vector.broadcast %731 : vector<16x1xf32> to vector<16x16xf32>
    %733 = arith.subf %729, %732 : vector<16x16xf32>
    %734 = math.exp %733 : vector<16x16xf32>
    %cst_185 = arith.constant dense<0.000000e+00> : vector<16xf32>
    %735 = vector.multi_reduction <add>, %734, %cst_185 [1] : vector<16x16xf32> to vector<16xf32>
    %736 = vector.shape_cast %735 : vector<16xf32> to vector<16x1xf32>
    %737 = tpu.reciprocal %736 {approx = true} : vector<16x1xf32> -> vector<16x1xf32>
    %738 = vector.broadcast %737 : vector<16x1xf32> to vector<16x16xf32>
    %739 = arith.mulf %734, %738 : vector<16x16xf32>
    %740 = vector.extract_strided_slice %676 {offsets = [0, 16], sizes = [16, 8], strides = [1, 1]} : vector<16x32xf32> to vector<16x8xf32>
    %741 = arith.truncf %740 : vector<16x8xf32> to vector<16x8xbf16>
    %742 = arith.truncf %739 : vector<16x16xf32> to vector<16x16xbf16>
    %cst_186 = arith.constant dense<0.000000e+00> : vector<16x8xf32>
    %743 = tpu.matmul %742, %741, %cst_186 {dimension_numbers = #tpu.dot_dimension_numbers<[1], [0], [0], [1], [0, 0, 1, 1], [], []>} : vector<16x16xbf16>, vector<16x8xbf16>, vector<16x8xf32> -> vector<16x8xf32>
    %744 = vector.extract_strided_slice %674 {offsets = [0, 24], sizes = [16, 8], strides = [1, 1]} : vector<16x32xf32> to vector<16x8xf32>
    %745 = arith.truncf %744 : vector<16x8xf32> to vector<16x8xbf16>
    %746 = vector.extract_strided_slice %677 {offsets = [24, 0], sizes = [8, 16], strides = [1, 1]} : vector<32x16xf32> to vector<8x16xf32>
    %747 = arith.truncf %746 : vector<8x16xf32> to vector<8x16xbf16>
    %cst_187 = arith.constant dense<0.000000e+00> : vector<16x16xf32>
    %748 = tpu.matmul %745, %747, %cst_187 {dimension_numbers = #tpu.dot_dimension_numbers<[1], [0], [0], [1], [0, 0, 1, 1], [], []>} : vector<16x8xbf16>, vector<8x16xbf16>, vector<16x16xf32> -> vector<16x16xf32>
    %cst_188 = arith.constant 0.353553385 : f32
    %749 = vector.broadcast %cst_188 : f32 to vector<16x16xf32>
    %750 = arith.mulf %748, %749 : vector<16x16xf32>
    %751 = arith.addf %750, %330 : vector<16x16xf32>
    %cst_189 = arith.constant dense<0xFF800000> : vector<16xf32>
    %752 = vector.multi_reduction <maximumf>, %751, %cst_189 [1] : vector<16x16xf32> to vector<16xf32>
    %753 = vector.shape_cast %752 : vector<16xf32> to vector<16x1xf32>
    %754 = vector.broadcast %753 : vector<16x1xf32> to vector<16x16xf32>
    %755 = arith.subf %751, %754 : vector<16x16xf32>
    %756 = math.exp %755 : vector<16x16xf32>
    %cst_190 = arith.constant dense<0.000000e+00> : vector<16xf32>
    %757 = vector.multi_reduction <add>, %756, %cst_190 [1] : vector<16x16xf32> to vector<16xf32>
    %758 = vector.shape_cast %757 : vector<16xf32> to vector<16x1xf32>
    %759 = tpu.reciprocal %758 {approx = true} : vector<16x1xf32> -> vector<16x1xf32>
    %760 = vector.broadcast %759 : vector<16x1xf32> to vector<16x16xf32>
    %761 = arith.mulf %756, %760 : vector<16x16xf32>
    %762 = vector.extract_strided_slice %676 {offsets = [0, 24], sizes = [16, 8], strides = [1, 1]} : vector<16x32xf32> to vector<16x8xf32>
    %763 = arith.truncf %762 : vector<16x8xf32> to vector<16x8xbf16>
    %764 = arith.truncf %761 : vector<16x16xf32> to vector<16x16xbf16>
    %cst_191 = arith.constant dense<0.000000e+00> : vector<16x8xf32>
    %765 = tpu.matmul %764, %763, %cst_191 {dimension_numbers = #tpu.dot_dimension_numbers<[1], [0], [0], [1], [0, 0, 1, 1], [], []>} : vector<16x16xbf16>, vector<16x8xbf16>, vector<16x8xf32> -> vector<16x8xf32>
    %766 = tpu.concatenate %699, %721, %743, %765 in 1 : vector<16x8xf32>, vector<16x8xf32>, vector<16x8xf32>, vector<16x8xf32> -> vector<16x32xf32>
    %767 = arith.truncf %766 : vector<16x32xf32> to vector<16x32xbf16>
    %cst_192 = arith.constant dense<0.000000e+00> : vector<16x32xf32>
    %768 = tpu.matmul %767, %671, %cst_192 {dimension_numbers = #tpu.dot_dimension_numbers<[1], [0], [0], [1], [0, 0, 1, 1], [], []>} : vector<16x32xbf16>, vector<32x32xbf16>, vector<16x32xf32> -> vector<16x32xf32>
    %769 = arith.addf %645, %768 : vector<16x32xf32>
    %cst_193 = arith.constant dense<0.000000e+00> : vector<16xf32>
    %770 = vector.multi_reduction <add>, %328, %cst_193 [1] : vector<16x32xf32> to vector<16xf32>
    %771 = vector.shape_cast %770 : vector<16xf32> to vector<16x1xf32>
    %cst_194 = arith.constant 3.200000e+01 : f32
    %772 = vector.broadcast %cst_194 : f32 to vector<16x1xf32>
    %773 = arith.divf %771, %772 : vector<16x1xf32>
    %774 = vector.broadcast %773 : vector<16x1xf32> to vector<16x32xf32>
    %775 = arith.subf %328, %774 : vector<16x32xf32>
    %776 = arith.mulf %775, %775 : vector<16x32xf32>
    %cst_195 = arith.constant dense<0.000000e+00> : vector<16xf32>
    %777 = vector.multi_reduction <add>, %776, %cst_195 [1] : vector<16x32xf32> to vector<16xf32>
    %778 = vector.shape_cast %777 : vector<16xf32> to vector<16x1xf32>
    %cst_196 = arith.constant 3.200000e+01 : f32
    %779 = vector.broadcast %cst_196 : f32 to vector<16x1xf32>
    %780 = arith.divf %778, %779 : vector<16x1xf32>
    %781 = vector.broadcast %773 : vector<16x1xf32> to vector<16x32xf32>
    %782 = arith.subf %328, %781 : vector<16x32xf32>
    %cst_197 = arith.constant 9.99999974E-6 : f32
    %783 = vector.broadcast %cst_197 : f32 to vector<16x1xf32>
    %784 = arith.addf %780, %783 : vector<16x1xf32>
    %785 = math.rsqrt %784 : vector<16x1xf32>
    %786 = vector.broadcast %785 : vector<16x1xf32> to vector<16x32xf32>
    %787 = arith.mulf %782, %786 : vector<16x32xf32>
    %788 = vector.extract_strided_slice %0 {offsets = [22, 0], sizes = [1, 32], strides = [1, 1]} : vector<32x128xf32> to vector<1x32xf32>
    %789 = vector.broadcast %788 : vector<1x32xf32> to vector<16x32xf32>
    %790 = arith.mulf %787, %789 : vector<16x32xf32>
    %791 = vector.extract_strided_slice %0 {offsets = [23, 0], sizes = [1, 32], strides = [1, 1]} : vector<32x128xf32> to vector<1x32xf32>
    %792 = vector.broadcast %791 : vector<1x32xf32> to vector<16x32xf32>
    %793 = arith.addf %790, %792 : vector<16x32xf32>
    %cst_198 = arith.constant dense<0.000000e+00> : vector<16xf32>
    %794 = vector.multi_reduction <add>, %769, %cst_198 [1] : vector<16x32xf32> to vector<16xf32>
    %795 = vector.shape_cast %794 : vector<16xf32> to vector<16x1xf32>
    %cst_199 = arith.constant 3.200000e+01 : f32
    %796 = vector.broadcast %cst_199 : f32 to vector<16x1xf32>
    %797 = arith.divf %795, %796 : vector<16x1xf32>
    %798 = vector.broadcast %797 : vector<16x1xf32> to vector<16x32xf32>
    %799 = arith.subf %769, %798 : vector<16x32xf32>
    %800 = arith.mulf %799, %799 : vector<16x32xf32>
    %cst_200 = arith.constant dense<0.000000e+00> : vector<16xf32>
    %801 = vector.multi_reduction <add>, %800, %cst_200 [1] : vector<16x32xf32> to vector<16xf32>
    %802 = vector.shape_cast %801 : vector<16xf32> to vector<16x1xf32>
    %cst_201 = arith.constant 3.200000e+01 : f32
    %803 = vector.broadcast %cst_201 : f32 to vector<16x1xf32>
    %804 = arith.divf %802, %803 : vector<16x1xf32>
    %805 = vector.broadcast %797 : vector<16x1xf32> to vector<16x32xf32>
    %806 = arith.subf %769, %805 : vector<16x32xf32>
    %cst_202 = arith.constant 9.99999974E-6 : f32
    %807 = vector.broadcast %cst_202 : f32 to vector<16x1xf32>
    %808 = arith.addf %804, %807 : vector<16x1xf32>
    %809 = math.rsqrt %808 : vector<16x1xf32>
    %810 = vector.broadcast %809 : vector<16x1xf32> to vector<16x32xf32>
    %811 = arith.mulf %806, %810 : vector<16x32xf32>
    %812 = vector.extract_strided_slice %0 {offsets = [22, 0], sizes = [1, 32], strides = [1, 1]} : vector<32x128xf32> to vector<1x32xf32>
    %813 = vector.broadcast %812 : vector<1x32xf32> to vector<16x32xf32>
    %814 = arith.mulf %811, %813 : vector<16x32xf32>
    %815 = vector.extract_strided_slice %0 {offsets = [23, 0], sizes = [1, 32], strides = [1, 1]} : vector<32x128xf32> to vector<1x32xf32>
    %816 = vector.broadcast %815 : vector<1x32xf32> to vector<16x32xf32>
    %817 = arith.addf %814, %816 : vector<16x32xf32>
    %c0_203 = arith.constant 0 : index
    %c1024 = arith.constant 1024 : index
    %818 = vector.load %arg7[%c0_203, %c1024] : memref<32x1408xbf16, #tpu.memory_space<vmem>>, vector<32x96xbf16>
    %c0_204 = arith.constant 0 : index
    %c1120 = arith.constant 1120 : index
    %819 = vector.load %arg7[%c0_204, %c1120] : memref<32x1408xbf16, #tpu.memory_space<vmem>>, vector<32x32xbf16>
    %820 = arith.truncf %817 : vector<16x32xf32> to vector<16x32xbf16>
    %821 = arith.truncf %793 : vector<16x32xf32> to vector<16x32xbf16>
    %822 = vector.extract_strided_slice %818 {offsets = [0, 0], sizes = [32, 32], strides = [1, 1]} : vector<32x96xbf16> to vector<32x32xbf16>
    %cst_205 = arith.constant dense<0.000000e+00> : vector<16x32xf32>
    %823 = tpu.matmul %820, %822, %cst_205 {dimension_numbers = #tpu.dot_dimension_numbers<[1], [0], [0], [1], [0, 0, 1, 1], [], []>} : vector<16x32xbf16>, vector<32x32xbf16>, vector<16x32xf32> -> vector<16x32xf32>
    %824 = vector.extract_strided_slice %818 {offsets = [0, 32], sizes = [32, 64], strides = [1, 1]} : vector<32x96xbf16> to vector<32x64xbf16>
    %cst_206 = arith.constant dense<0.000000e+00> : vector<16x64xf32>
    %825 = tpu.matmul %821, %824, %cst_206 {dimension_numbers = #tpu.dot_dimension_numbers<[1], [0], [0], [1], [0, 0, 1, 1], [], []>} : vector<16x32xbf16>, vector<32x64xbf16>, vector<16x64xf32> -> vector<16x64xf32>
    %826 = vector.extract_strided_slice %825 {offsets = [0, 0], sizes = [16, 32], strides = [1, 1]} : vector<16x64xf32> to vector<16x32xf32>
    %827 = vector.extract_strided_slice %825 {offsets = [0, 32], sizes = [16, 32], strides = [1, 1]} : vector<16x64xf32> to vector<16x32xf32>
    %828 = tpu.transpose %826, [1, 0] : vector<16x32xf32> -> vector<32x16xf32>
    %829 = vector.extract_strided_slice %823 {offsets = [0, 0], sizes = [16, 8], strides = [1, 1]} : vector<16x32xf32> to vector<16x8xf32>
    %830 = arith.truncf %829 : vector<16x8xf32> to vector<16x8xbf16>
    %831 = vector.extract_strided_slice %828 {offsets = [0, 0], sizes = [8, 16], strides = [1, 1]} : vector<32x16xf32> to vector<8x16xf32>
    %832 = arith.truncf %831 : vector<8x16xf32> to vector<8x16xbf16>
    %cst_207 = arith.constant dense<0.000000e+00> : vector<16x16xf32>
    %833 = tpu.matmul %830, %832, %cst_207 {dimension_numbers = #tpu.dot_dimension_numbers<[1], [0], [0], [1], [0, 0, 1, 1], [], []>} : vector<16x8xbf16>, vector<8x16xbf16>, vector<16x16xf32> -> vector<16x16xf32>
    %cst_208 = arith.constant 0.353553385 : f32
    %834 = vector.broadcast %cst_208 : f32 to vector<16x16xf32>
    %835 = arith.mulf %833, %834 : vector<16x16xf32>
    %836 = arith.addf %835, %331 : vector<16x16xf32>
    %cst_209 = arith.constant dense<0xFF800000> : vector<16xf32>
    %837 = vector.multi_reduction <maximumf>, %836, %cst_209 [1] : vector<16x16xf32> to vector<16xf32>
    %838 = vector.shape_cast %837 : vector<16xf32> to vector<16x1xf32>
    %839 = vector.broadcast %838 : vector<16x1xf32> to vector<16x16xf32>
    %840 = arith.subf %836, %839 : vector<16x16xf32>
    %841 = math.exp %840 : vector<16x16xf32>
    %cst_210 = arith.constant dense<0.000000e+00> : vector<16xf32>
    %842 = vector.multi_reduction <add>, %841, %cst_210 [1] : vector<16x16xf32> to vector<16xf32>
    %843 = vector.shape_cast %842 : vector<16xf32> to vector<16x1xf32>
    %844 = tpu.reciprocal %843 {approx = true} : vector<16x1xf32> -> vector<16x1xf32>
    %845 = vector.broadcast %844 : vector<16x1xf32> to vector<16x16xf32>
    %846 = arith.mulf %841, %845 : vector<16x16xf32>
    %847 = vector.extract_strided_slice %827 {offsets = [0, 0], sizes = [16, 8], strides = [1, 1]} : vector<16x32xf32> to vector<16x8xf32>
    %848 = arith.truncf %847 : vector<16x8xf32> to vector<16x8xbf16>
    %849 = arith.truncf %846 : vector<16x16xf32> to vector<16x16xbf16>
    %cst_211 = arith.constant dense<0.000000e+00> : vector<16x8xf32>
    %850 = tpu.matmul %849, %848, %cst_211 {dimension_numbers = #tpu.dot_dimension_numbers<[1], [0], [0], [1], [0, 0, 1, 1], [], []>} : vector<16x16xbf16>, vector<16x8xbf16>, vector<16x8xf32> -> vector<16x8xf32>
    %851 = vector.extract_strided_slice %823 {offsets = [0, 8], sizes = [16, 8], strides = [1, 1]} : vector<16x32xf32> to vector<16x8xf32>
    %852 = arith.truncf %851 : vector<16x8xf32> to vector<16x8xbf16>
    %853 = vector.extract_strided_slice %828 {offsets = [8, 0], sizes = [8, 16], strides = [1, 1]} : vector<32x16xf32> to vector<8x16xf32>
    %854 = arith.truncf %853 : vector<8x16xf32> to vector<8x16xbf16>
    %cst_212 = arith.constant dense<0.000000e+00> : vector<16x16xf32>
    %855 = tpu.matmul %852, %854, %cst_212 {dimension_numbers = #tpu.dot_dimension_numbers<[1], [0], [0], [1], [0, 0, 1, 1], [], []>} : vector<16x8xbf16>, vector<8x16xbf16>, vector<16x16xf32> -> vector<16x16xf32>
    %cst_213 = arith.constant 0.353553385 : f32
    %856 = vector.broadcast %cst_213 : f32 to vector<16x16xf32>
    %857 = arith.mulf %855, %856 : vector<16x16xf32>
    %858 = arith.addf %857, %331 : vector<16x16xf32>
    %cst_214 = arith.constant dense<0xFF800000> : vector<16xf32>
    %859 = vector.multi_reduction <maximumf>, %858, %cst_214 [1] : vector<16x16xf32> to vector<16xf32>
    %860 = vector.shape_cast %859 : vector<16xf32> to vector<16x1xf32>
    %861 = vector.broadcast %860 : vector<16x1xf32> to vector<16x16xf32>
    %862 = arith.subf %858, %861 : vector<16x16xf32>
    %863 = math.exp %862 : vector<16x16xf32>
    %cst_215 = arith.constant dense<0.000000e+00> : vector<16xf32>
    %864 = vector.multi_reduction <add>, %863, %cst_215 [1] : vector<16x16xf32> to vector<16xf32>
    %865 = vector.shape_cast %864 : vector<16xf32> to vector<16x1xf32>
    %866 = tpu.reciprocal %865 {approx = true} : vector<16x1xf32> -> vector<16x1xf32>
    %867 = vector.broadcast %866 : vector<16x1xf32> to vector<16x16xf32>
    %868 = arith.mulf %863, %867 : vector<16x16xf32>
    %869 = vector.extract_strided_slice %827 {offsets = [0, 8], sizes = [16, 8], strides = [1, 1]} : vector<16x32xf32> to vector<16x8xf32>
    %870 = arith.truncf %869 : vector<16x8xf32> to vector<16x8xbf16>
    %871 = arith.truncf %868 : vector<16x16xf32> to vector<16x16xbf16>
    %cst_216 = arith.constant dense<0.000000e+00> : vector<16x8xf32>
    %872 = tpu.matmul %871, %870, %cst_216 {dimension_numbers = #tpu.dot_dimension_numbers<[1], [0], [0], [1], [0, 0, 1, 1], [], []>} : vector<16x16xbf16>, vector<16x8xbf16>, vector<16x8xf32> -> vector<16x8xf32>
    %873 = vector.extract_strided_slice %823 {offsets = [0, 16], sizes = [16, 8], strides = [1, 1]} : vector<16x32xf32> to vector<16x8xf32>
    %874 = arith.truncf %873 : vector<16x8xf32> to vector<16x8xbf16>
    %875 = vector.extract_strided_slice %828 {offsets = [16, 0], sizes = [8, 16], strides = [1, 1]} : vector<32x16xf32> to vector<8x16xf32>
    %876 = arith.truncf %875 : vector<8x16xf32> to vector<8x16xbf16>
    %cst_217 = arith.constant dense<0.000000e+00> : vector<16x16xf32>
    %877 = tpu.matmul %874, %876, %cst_217 {dimension_numbers = #tpu.dot_dimension_numbers<[1], [0], [0], [1], [0, 0, 1, 1], [], []>} : vector<16x8xbf16>, vector<8x16xbf16>, vector<16x16xf32> -> vector<16x16xf32>
    %cst_218 = arith.constant 0.353553385 : f32
    %878 = vector.broadcast %cst_218 : f32 to vector<16x16xf32>
    %879 = arith.mulf %877, %878 : vector<16x16xf32>
    %880 = arith.addf %879, %331 : vector<16x16xf32>
    %cst_219 = arith.constant dense<0xFF800000> : vector<16xf32>
    %881 = vector.multi_reduction <maximumf>, %880, %cst_219 [1] : vector<16x16xf32> to vector<16xf32>
    %882 = vector.shape_cast %881 : vector<16xf32> to vector<16x1xf32>
    %883 = vector.broadcast %882 : vector<16x1xf32> to vector<16x16xf32>
    %884 = arith.subf %880, %883 : vector<16x16xf32>
    %885 = math.exp %884 : vector<16x16xf32>
    %cst_220 = arith.constant dense<0.000000e+00> : vector<16xf32>
    %886 = vector.multi_reduction <add>, %885, %cst_220 [1] : vector<16x16xf32> to vector<16xf32>
    %887 = vector.shape_cast %886 : vector<16xf32> to vector<16x1xf32>
    %888 = tpu.reciprocal %887 {approx = true} : vector<16x1xf32> -> vector<16x1xf32>
    %889 = vector.broadcast %888 : vector<16x1xf32> to vector<16x16xf32>
    %890 = arith.mulf %885, %889 : vector<16x16xf32>
    %891 = vector.extract_strided_slice %827 {offsets = [0, 16], sizes = [16, 8], strides = [1, 1]} : vector<16x32xf32> to vector<16x8xf32>
    %892 = arith.truncf %891 : vector<16x8xf32> to vector<16x8xbf16>
    %893 = arith.truncf %890 : vector<16x16xf32> to vector<16x16xbf16>
    %cst_221 = arith.constant dense<0.000000e+00> : vector<16x8xf32>
    %894 = tpu.matmul %893, %892, %cst_221 {dimension_numbers = #tpu.dot_dimension_numbers<[1], [0], [0], [1], [0, 0, 1, 1], [], []>} : vector<16x16xbf16>, vector<16x8xbf16>, vector<16x8xf32> -> vector<16x8xf32>
    %895 = vector.extract_strided_slice %823 {offsets = [0, 24], sizes = [16, 8], strides = [1, 1]} : vector<16x32xf32> to vector<16x8xf32>
    %896 = arith.truncf %895 : vector<16x8xf32> to vector<16x8xbf16>
    %897 = vector.extract_strided_slice %828 {offsets = [24, 0], sizes = [8, 16], strides = [1, 1]} : vector<32x16xf32> to vector<8x16xf32>
    %898 = arith.truncf %897 : vector<8x16xf32> to vector<8x16xbf16>
    %cst_222 = arith.constant dense<0.000000e+00> : vector<16x16xf32>
    %899 = tpu.matmul %896, %898, %cst_222 {dimension_numbers = #tpu.dot_dimension_numbers<[1], [0], [0], [1], [0, 0, 1, 1], [], []>} : vector<16x8xbf16>, vector<8x16xbf16>, vector<16x16xf32> -> vector<16x16xf32>
    %cst_223 = arith.constant 0.353553385 : f32
    %900 = vector.broadcast %cst_223 : f32 to vector<16x16xf32>
    %901 = arith.mulf %899, %900 : vector<16x16xf32>
    %902 = arith.addf %901, %331 : vector<16x16xf32>
    %cst_224 = arith.constant dense<0xFF800000> : vector<16xf32>
    %903 = vector.multi_reduction <maximumf>, %902, %cst_224 [1] : vector<16x16xf32> to vector<16xf32>
    %904 = vector.shape_cast %903 : vector<16xf32> to vector<16x1xf32>
    %905 = vector.broadcast %904 : vector<16x1xf32> to vector<16x16xf32>
    %906 = arith.subf %902, %905 : vector<16x16xf32>
    %907 = math.exp %906 : vector<16x16xf32>
    %cst_225 = arith.constant dense<0.000000e+00> : vector<16xf32>
    %908 = vector.multi_reduction <add>, %907, %cst_225 [1] : vector<16x16xf32> to vector<16xf32>
    %909 = vector.shape_cast %908 : vector<16xf32> to vector<16x1xf32>
    %910 = tpu.reciprocal %909 {approx = true} : vector<16x1xf32> -> vector<16x1xf32>
    %911 = vector.broadcast %910 : vector<16x1xf32> to vector<16x16xf32>
    %912 = arith.mulf %907, %911 : vector<16x16xf32>
    %913 = vector.extract_strided_slice %827 {offsets = [0, 24], sizes = [16, 8], strides = [1, 1]} : vector<16x32xf32> to vector<16x8xf32>
    %914 = arith.truncf %913 : vector<16x8xf32> to vector<16x8xbf16>
    %915 = arith.truncf %912 : vector<16x16xf32> to vector<16x16xbf16>
    %cst_226 = arith.constant dense<0.000000e+00> : vector<16x8xf32>
    %916 = tpu.matmul %915, %914, %cst_226 {dimension_numbers = #tpu.dot_dimension_numbers<[1], [0], [0], [1], [0, 0, 1, 1], [], []>} : vector<16x16xbf16>, vector<16x8xbf16>, vector<16x8xf32> -> vector<16x8xf32>
    %917 = tpu.concatenate %850, %872, %894, %916 in 1 : vector<16x8xf32>, vector<16x8xf32>, vector<16x8xf32>, vector<16x8xf32> -> vector<16x32xf32>
    %918 = arith.truncf %917 : vector<16x32xf32> to vector<16x32xbf16>
    %cst_227 = arith.constant dense<0.000000e+00> : vector<16x32xf32>
    %919 = tpu.matmul %918, %819, %cst_227 {dimension_numbers = #tpu.dot_dimension_numbers<[1], [0], [0], [1], [0, 0, 1, 1], [], []>} : vector<16x32xbf16>, vector<32x32xbf16>, vector<16x32xf32> -> vector<16x32xf32>
    %920 = arith.addf %769, %919 : vector<16x32xf32>
    %cst_228 = arith.constant dense<0.000000e+00> : vector<16xf32>
    %921 = vector.multi_reduction <add>, %920, %cst_228 [1] : vector<16x32xf32> to vector<16xf32>
    %922 = vector.shape_cast %921 : vector<16xf32> to vector<16x1xf32>
    %cst_229 = arith.constant 3.200000e+01 : f32
    %923 = vector.broadcast %cst_229 : f32 to vector<16x1xf32>
    %924 = arith.divf %922, %923 : vector<16x1xf32>
    %925 = vector.broadcast %924 : vector<16x1xf32> to vector<16x32xf32>
    %926 = arith.subf %920, %925 : vector<16x32xf32>
    %927 = arith.mulf %926, %926 : vector<16x32xf32>
    %cst_230 = arith.constant dense<0.000000e+00> : vector<16xf32>
    %928 = vector.multi_reduction <add>, %927, %cst_230 [1] : vector<16x32xf32> to vector<16xf32>
    %929 = vector.shape_cast %928 : vector<16xf32> to vector<16x1xf32>
    %cst_231 = arith.constant 3.200000e+01 : f32
    %930 = vector.broadcast %cst_231 : f32 to vector<16x1xf32>
    %931 = arith.divf %929, %930 : vector<16x1xf32>
    %932 = vector.broadcast %924 : vector<16x1xf32> to vector<16x32xf32>
    %933 = arith.subf %920, %932 : vector<16x32xf32>
    %cst_232 = arith.constant 9.99999974E-6 : f32
    %934 = vector.broadcast %cst_232 : f32 to vector<16x1xf32>
    %935 = arith.addf %931, %934 : vector<16x1xf32>
    %936 = math.rsqrt %935 : vector<16x1xf32>
    %937 = vector.broadcast %936 : vector<16x1xf32> to vector<16x32xf32>
    %938 = arith.mulf %933, %937 : vector<16x32xf32>
    %939 = vector.extract_strided_slice %0 {offsets = [24, 0], sizes = [1, 32], strides = [1, 1]} : vector<32x128xf32> to vector<1x32xf32>
    %940 = vector.broadcast %939 : vector<1x32xf32> to vector<16x32xf32>
    %941 = arith.mulf %938, %940 : vector<16x32xf32>
    %942 = vector.extract_strided_slice %0 {offsets = [25, 0], sizes = [1, 32], strides = [1, 1]} : vector<32x128xf32> to vector<1x32xf32>
    %943 = vector.broadcast %942 : vector<1x32xf32> to vector<16x32xf32>
    %944 = arith.addf %941, %943 : vector<16x32xf32>
    %945 = arith.truncf %944 : vector<16x32xf32> to vector<16x32xbf16>
    %c0_233 = arith.constant 0 : index
    %c1152 = arith.constant 1152 : index
    %946 = vector.load %arg7[%c0_233, %c1152] : memref<32x1408xbf16, #tpu.memory_space<vmem>>, vector<32x128xbf16>
    %cst_234 = arith.constant dense<0.000000e+00> : vector<16x128xf32>
    %947 = tpu.matmul %945, %946, %cst_234 {dimension_numbers = #tpu.dot_dimension_numbers<[1], [0], [0], [1], [0, 0, 1, 1], [], []>} : vector<16x32xbf16>, vector<32x128xbf16>, vector<16x128xf32> -> vector<16x128xf32>
    %948 = vector.extract_strided_slice %0 {offsets = [26, 0], sizes = [1, 128], strides = [1, 1]} : vector<32x128xf32> to vector<1x128xf32>
    %949 = vector.broadcast %948 : vector<1x128xf32> to vector<16x128xf32>
    %950 = arith.addf %947, %949 : vector<16x128xf32>
    %cst_235 = arith.constant 0.000000e+00 : f32
    %951 = vector.broadcast %cst_235 : f32 to vector<16x128xf32>
    %952 = arith.maximumf %950, %951 : vector<16x128xf32>
    %953 = arith.truncf %952 : vector<16x128xf32> to vector<16x128xbf16>
    %c0_236 = arith.constant 0 : index
    %c96_237 = arith.constant 96 : index
    %954 = vector.load %arg8[%c0_236, %c96_237] : memref<128x128xbf16, #tpu.memory_space<vmem>>, vector<128x32xbf16>
    %cst_238 = arith.constant dense<0.000000e+00> : vector<16x32xf32>
    %955 = tpu.matmul %953, %954, %cst_238 {dimension_numbers = #tpu.dot_dimension_numbers<[1], [0], [0], [1], [0, 0, 1, 1], [], []>} : vector<16x128xbf16>, vector<128x32xbf16>, vector<16x32xf32> -> vector<16x32xf32>
    %956 = vector.extract_strided_slice %0 {offsets = [27, 0], sizes = [1, 32], strides = [1, 1]} : vector<32x128xf32> to vector<1x32xf32>
    %957 = vector.broadcast %956 : vector<1x32xf32> to vector<16x32xf32>
    %958 = arith.addf %955, %957 : vector<16x32xf32>
    %959 = arith.addf %920, %958 : vector<16x32xf32>
    %cst_239 = arith.constant dense<0.000000e+00> : vector<16xf32>
    %960 = vector.multi_reduction <add>, %959, %cst_239 [1] : vector<16x32xf32> to vector<16xf32>
    %961 = vector.shape_cast %960 : vector<16xf32> to vector<16x1xf32>
    %cst_240 = arith.constant 3.200000e+01 : f32
    %962 = vector.broadcast %cst_240 : f32 to vector<16x1xf32>
    %963 = arith.divf %961, %962 : vector<16x1xf32>
    %964 = vector.broadcast %963 : vector<16x1xf32> to vector<16x32xf32>
    %965 = arith.subf %959, %964 : vector<16x32xf32>
    %966 = arith.mulf %965, %965 : vector<16x32xf32>
    %cst_241 = arith.constant dense<0.000000e+00> : vector<16xf32>
    %967 = vector.multi_reduction <add>, %966, %cst_241 [1] : vector<16x32xf32> to vector<16xf32>
    %968 = vector.shape_cast %967 : vector<16xf32> to vector<16x1xf32>
    %cst_242 = arith.constant 3.200000e+01 : f32
    %969 = vector.broadcast %cst_242 : f32 to vector<16x1xf32>
    %970 = arith.divf %968, %969 : vector<16x1xf32>
    %971 = vector.broadcast %963 : vector<16x1xf32> to vector<16x32xf32>
    %972 = arith.subf %959, %971 : vector<16x32xf32>
    %cst_243 = arith.constant 9.99999974E-6 : f32
    %973 = vector.broadcast %cst_243 : f32 to vector<16x1xf32>
    %974 = arith.addf %970, %973 : vector<16x1xf32>
    %975 = math.rsqrt %974 : vector<16x1xf32>
    %976 = vector.broadcast %975 : vector<16x1xf32> to vector<16x32xf32>
    %977 = arith.mulf %972, %976 : vector<16x32xf32>
    %978 = vector.extract_strided_slice %0 {offsets = [28, 0], sizes = [1, 32], strides = [1, 1]} : vector<32x128xf32> to vector<1x32xf32>
    %979 = vector.broadcast %978 : vector<1x32xf32> to vector<16x32xf32>
    %980 = arith.mulf %977, %979 : vector<16x32xf32>
    %981 = vector.extract_strided_slice %0 {offsets = [29, 0], sizes = [1, 32], strides = [1, 1]} : vector<32x128xf32> to vector<1x32xf32>
    %982 = vector.broadcast %981 : vector<1x32xf32> to vector<16x32xf32>
    %983 = arith.addf %980, %982 : vector<16x32xf32>
    %984 = arith.truncf %983 : vector<16x32xf32> to vector<16x32xbf16>
    %c0_244 = arith.constant 0 : index
    %c1280 = arith.constant 1280 : index
    %985 = vector.load %arg7[%c0_244, %c1280] : memref<32x1408xbf16, #tpu.memory_space<vmem>>, vector<32x128xbf16>
    %cst_245 = arith.constant dense<0.000000e+00> : vector<16x128xf32>
    %986 = tpu.matmul %984, %985, %cst_245 {dimension_numbers = #tpu.dot_dimension_numbers<[1], [0], [0], [1], [0, 0, 1, 1], [], []>} : vector<16x32xbf16>, vector<32x128xbf16>, vector<16x128xf32> -> vector<16x128xf32>
    %987 = vector.extract_strided_slice %0 {offsets = [30, 0], sizes = [1, 128], strides = [1, 1]} : vector<32x128xf32> to vector<1x128xf32>
    %988 = vector.broadcast %987 : vector<1x128xf32> to vector<16x128xf32>
    %989 = arith.addf %986, %988 : vector<16x128xf32>
    %cst_246 = arith.constant dense<0xFF800000> : vector<16xf32>
    %990 = vector.multi_reduction <maximumf>, %989, %cst_246 [1] : vector<16x128xf32> to vector<16xf32>
    %991 = vector.shape_cast %990 : vector<16xf32> to vector<16x1xf32>
    %992 = vector.broadcast %991 : vector<16x1xf32> to vector<16x128xf32>
    %993 = arith.subf %989, %992 : vector<16x128xf32>
    %994 = math.exp %993 : vector<16x128xf32>
    %cst_247 = arith.constant dense<0.000000e+00> : vector<16xf32>
    %995 = vector.multi_reduction <add>, %994, %cst_247 [1] : vector<16x128xf32> to vector<16xf32>
    %996 = vector.shape_cast %995 : vector<16xf32> to vector<16x1xf32>
    %997 = math.log %996 : vector<16x1xf32>
    %998 = arith.addf %991, %997 : vector<16x1xf32>
    %999 = vector.broadcast %998 : vector<16x1xf32> to vector<16x128xf32>
    %1000 = arith.subf %989, %999 : vector<16x128xf32>
    %c0_248 = arith.constant 0 : index
    %c0_249 = arith.constant 0 : index
    %1001 = vector.load %arg9[%c0_248, %c0_249] : memref<16x128xf32, #tpu.memory_space<vmem>>, vector<16x128xf32>
    tpu.vector_store %arg9[%c0_248, %c0_249], %1000 {strides = array<i32>} : memref<16x128xf32, #tpu.memory_space<vmem>>, vector<16x128xf32>,
    return
  }
  func.func @transform_0(%arg0: i32) -> (i32, i32) {
    %c0_i32 = arith.constant 0 : i32
    %c0_i32_0 = arith.constant 0 : i32
    %c0_i32_1 = arith.constant 0 : i32
    return %c0_i32, %c0_i32_0 : i32, i32
  }
  func.func @transform_1(%arg0: i32) -> (i32, i32) {
    %c0_i32 = arith.constant 0 : i32
    %c0_i32_0 = arith.constant 0 : i32
    %c0_i32_1 = arith.constant 0 : i32
    return %c0_i32, %c0_i32_0 : i32, i32
  }
  func.func @transform_2(%arg0: i32) -> (i32, i32) {
    %c0_i32 = arith.constant 0 : i32
    %c0_i32_0 = arith.constant 0 : i32
    %c0_i32_1 = arith.constant 0 : i32
    return %c0_i32, %c0_i32_0 : i32, i32
  }
  func.func @transform_3(%arg0: i32) -> (i32, i32) {
    %c0_i32 = arith.constant 0 : i32
    %c0_i32_0 = arith.constant 0 : i32
    %c0_i32_1 = arith.constant 0 : i32
    return %c0_i32, %c0_i32_0 : i32, i32
  }
  func.func @transform_4(%arg0: i32) -> (i32, i32) {
    %c0_i32 = arith.constant 0 : i32
    %c0_i32_0 = arith.constant 0 : i32
    %c0_i32_1 = arith.constant 0 : i32
    return %c0_i32, %c0_i32_0 : i32, i32
  }
  func.func @transform_5(%arg0: i32) -> (i32, i32) {
    %c0_i32 = arith.constant 0 : i32
    %c0_i32_0 = arith.constant 0 : i32
    %c0_i32_1 = arith.constant 0 : i32
    return %c0_i32, %c0_i32_0 : i32, i32
  }
  func.func @transform_6(%arg0: i32) -> (i32, i32) {
    %c0_i32 = arith.constant 0 : i32
    %c0_i32_0 = arith.constant 0 : i32
    %c0_i32_1 = arith.constant 0 : i32
    return %c0_i32, %c0_i32_0 : i32, i32
  }
  func.func @transform_7(%arg0: i32) -> (i32, i32) {
    %c0_i32 = arith.constant 0 : i32
    %c0_i32_0 = arith.constant 0 : i32
    %c0_i32_1 = arith.constant 0 : i32
    return %c0_i32, %c0_i32_0 : i32, i32
  }
  func.func @transform_8(%arg0: i32) -> (i32, i32) {
    %c0_i32 = arith.constant 0 : i32
    %c0_i32_0 = arith.constant 0 : i32
    %c0_i32_1 = arith.constant 0 : i32
    return %c0_i32, %c0_i32_0 : i32, i32
  }
}

</mosaic_0001>

<llo_original>
// kernel: lt.3
$region0: #{lt.3}
  #allocation0 [shape = 's32[1]{0}', space=sflag, size = 0x4, scoped, tag = 'scoped memory for lt.3']
  %s0 = inlined_call_operand.vmem [shape: s32[16], index: 0, kind: input, shape index: {}]
  %s1 = inlined_call_operand.vmem [shape: s32[16], index: 1, kind: input, shape index: {}]
  %s2 = inlined_call_operand.vmem [shape: pred[16], index: 2, kind: output, shape index: {}]
  %v3 = vld [vmem:[%s0] sm:$0x1]
  %v4 = vld [vmem:[%s1] sm:$0x1]
  %5 = xla_tuple %v3, %v4
  %6 = xla_tuple %5
  %vm7 = vcmp.lt.s32.totalorder %v3, %v4
  %v8 = vsel %vm7, 1, 0
  %9 = xla_tuple %v8
  %v10 = vpack.c.b16 0, %v8
  %v11 = vpack.c.b8 0, %v10
  %s13 = ssub.s32 2, 1
  %14 = vst [vmem:[%s2] sm:%s13] %v11

// kernel: transformer_forward.1
$region0: #{transformer_forward.1}
  #allocation0 [shape = 'u32[]', space=smem, size = 0x4, offset = 0x4, fixed_abs, tag = 'smem constant byte address 0x4 - core index']
  #allocation1 [shape = 'u32[144,128]{1,0:T(1,128)}', space=vmem, size = 0x12000, scoped, tag = 'internal scratch']
  %s0 = inlined_call_operand.vmem [shape: f32[16,32], index: 0, kind: input, shape index: {}]
  %s1 = inlined_call_operand.vmem [shape: f32[16,32], index: 1, kind: input, shape index: {}]
  %s2 = inlined_call_operand.vmem [shape: f32[16,16], index: 2, kind: input, shape index: {}, may-alias: {2,4}]
  %s3 = inlined_call_operand.vmem [shape: f32[16,16], index: 3, kind: input, shape index: {}]
  %s4 = inlined_call_operand.vmem [shape: f32[16,16], index: 4, kind: input, shape index: {}, may-alias: {2,4}]
  %s5 = inlined_call_operand.vmem [shape: f32[32,128], index: 5, kind: input, shape index: {}]
  %s6 = inlined_call_operand.vmem [shape: bf16[32,1408], index: 6, kind: input, shape index: {}]
  %s7 = inlined_call_operand.vmem [shape: bf16[128,128], index: 7, kind: input, shape index: {}]
  %s8 = inlined_call_operand.vmem [shape: f32[16,128], index: 8, kind: output, shape index: {}]
  %s9 = sld [smem:[#allocation0]]
  $region42: #{transformer_forward.1} parent=0
    _
  %s11 = ssub.s32 1, %s9
  %s12 = scalar_select 0, %s11, %s9
  // Predicated region
  $region2: #{transformer_forward.1} parent=0 // pred_check
    _
  $region3: #{transformer_forward.1} parent=0 // pred_check_branch
    %14 = sbr.rel (0) target = $region5
  $region4: #{transformer_forward.1} parent=0 // pred_region
    _
  $region5: #{transformer_forward.1} parent=0 // pred_fallthru
    _
  // Predicated region
  $region6: #{transformer_forward.1} parent=0 // pred_check
    _
  $region7: #{transformer_forward.1} parent=0 // pred_check_branch
    %16 = sbr.rel (0) target = $region9
  $region8: #{transformer_forward.1} parent=0 // pred_region
    _
  $region9: #{transformer_forward.1} parent=0 // pred_fallthru
    _
  // Predicated region
  $region10: #{transformer_forward.1} parent=0 // pred_check
    _
  $region11: #{transformer_forward.1} parent=0 // pred_check_branch
    %18 = sbr.rel (0) target = $region13
  $region12: #{transformer_forward.1} parent=0 // pred_region
    _
  $region13: #{transformer_forward.1} parent=0 // pred_fallthru
    _
  // Predicated region
  $region14: #{transformer_forward.1} parent=0 // pred_check
    _
  $region15: #{transformer_forward.1} parent=0 // pred_check_branch
    %20 = sbr.rel (0) target = $region17
  $region16: #{transformer_forward.1} parent=0 // pred_region
    _
  $region17: #{transformer_forward.1} parent=0 // pred_fallthru
    _
  // Predicated region
  $region18: #{transformer_forward.1} parent=0 // pred_check
    _
  $region19: #{transformer_forward.1} parent=0 // pred_check_branch
    %22 = sbr.rel (0) target = $region21
  $region20: #{transformer_forward.1} parent=0 // pred_region
    _
  $region21: #{transformer_forward.1} parent=0 // pred_fallthru
    _
  // Predicated region
  $region22: #{transformer_forward.1} parent=0 // pred_check
    _
  $region23: #{transformer_forward.1} parent=0 // pred_check_branch
    %24 = sbr.rel (0) target = $region25
  $region24: #{transformer_forward.1} parent=0 // pred_region
    _
  $region25: #{transformer_forward.1} parent=0 // pred_fallthru
    _
  // Predicated region
  $region26: #{transformer_forward.1} parent=0 // pred_check
    _
  $region27: #{transformer_forward.1} parent=0 // pred_check_branch
    %26 = sbr.rel (0) target = $region29
  $region28: #{transformer_forward.1} parent=0 // pred_region
    _
  $region29: #{transformer_forward.1} parent=0 // pred_fallthru
    _
  // Predicated region
  $region30: #{transformer_forward.1} parent=0 // pred_check
    _
  $region31: #{transformer_forward.1} parent=0 // pred_check_branch
    %28 = sbr.rel (0) target = $region33
  $region32: #{transformer_forward.1} parent=0 // pred_region
    _
  $region33: #{transformer_forward.1} parent=0 // pred_fallthru
    _
  %v30 = vld [vmem:[%s5] sm:$0xff]
  %v31 = vld [vmem:[%s5 + $0x8] sm:$0xff]
  %v32 = vld [vmem:[%s5 + $0x10] sm:$0xff]
  %v33 = vld [vmem:[%s5 + $0x18] sm:$0xff]
  %v34 = vld [vmem:[%s0] sm:$0xff]
  %v35 = vld [vmem:[%s0 + $0x8] sm:$0xff]
  %v36 = vld [vmem:[%s2] sm:$0xff]
  %v37 = vld [vmem:[%s2 + $0x8] sm:$0xff]
  %vm38 = vcmask 261120
  %v39 = vsel %vm38, %v34, 0.0
  %40 = vadd.xlane.f32.xlu0 %v39
  %v41 = vpop.xlane.xlu0 %40
  %v42 = vsel %vm38, %v35, 0.0
  %43 = vadd.xlane.f32.xlu0 %v42
  %v44 = vpop.xlane.xlu0 %43
  %v45 = vrcp.pop 32.0
  %v46 = vmul.f32 %v41, %v45
  %v47 = vmul.f32 %v44, %v45
  %v48 = vsub.f32 %v34, %v46
  %v49 = vsub.f32 %v35, %v47
  %v50 = vmul.f32 %v48, %v48
  %v51 = vmul.f32 %v49, %v49
  %v52 = vsel %vm38, %v50, 0.0
  %53 = vadd.xlane.f32.xlu0 %v52
  %v54 = vpop.xlane.xlu0 %53
  %v55 = vsel %vm38, %v51, 0.0
  %56 = vadd.xlane.f32.xlu0 %v55
  %v57 = vpop.xlane.xlu0 %56
  %v58 = vmul.f32 %v54, %v45
  %v59 = vmul.f32 %v57, %v45
  %v60 = vadd.f32 %v58, 1e-05
  %v61 = vadd.f32 %v59, 1e-05
  %v62 = vrsqrt.pop %v60
  %v63 = vrsqrt.pop %v61
  %v64 = vmul.f32 %v48, %v62
  %v65 = vmul.f32 %v49, %v63
  %v66 = vlaneseq
  %v67 = vshrl.u32 %v66, 7
  %v68 = vsub.s32 0, %v67
  %v69 = vrot.slane %v30, %v68
  %v70 = vmul.f32 %v64, %v69
  %v71 = vmul.f32 %v65, %v69
  %v72 = vlaneseq
  %v73 = vshrl.u32 %v72, 7
  %v74 = vsub.s32 1, %v73
  %v75 = vrot.slane %v30, %v74
  %v76 = vadd.f32 %v70, %v75
  %v77 = vadd.f32 %v71, %v75
  %v78 = vld [vmem:[%s6] sm:$0xf]
  %v79 = vld [vmem:[%s6 + $0x2c] sm:$0xf]
  %v80 = vld [vmem:[%s6 + $0x58] sm:$0xf]
  %v81 = vld [vmem:[%s6 + $0x84] sm:$0xf]
  %v82 = vpack.c.bf16 %v77, %v76
  %v87 = vunpack.c.l.b16 %v78
  %v88 = vunpack.c.l.b16 %v79
  %v89 = vunpack.c.l.b16 %v80
  %v90 = vunpack.c.l.b16 %v81
  %v91 = vpack.c.b16 %v88, %v87
  %v92 = vpack.c.b16 %v90, %v89
  %v96 = vsel %vm38, %v82, 0
  %98 = vmatprep.subr.bf16.mxu0 0
  %99 = vmatpush1.bf16.msra.mxu0 0
  %100 = vmatprep.subr.bf16.mxu0 0
  %101 = vmatpush1.bf16.msra.mxu0 0
  %102 = vmatprep.subr.bf16.mxu0 0
  %103 = vmatpush1.bf16.msra.mxu0 0
  %104 = vmatprep.subr.bf16.mxu0 0
  %105 = vmatpush1.bf16.msra.mxu0 0
  %106 = vmatprep.subr.bf16.mxu0 0
  %107 = vmatpush1.bf16.msra.mxu0 0
  %108 = vmatprep.subr.bf16.mxu0 0
  %109 = vmatpush1.bf16.msra.mxu0 0
  %110 = vmatprep.subr.bf16.mxu0 0
  %111 = vmatpush1.bf16.msra.mxu0 %v92
  %112 = vmatprep.subr.bf16.mxu0 0
  %113 = vmatpush1.bf16.msra.mxu0 %v91
  %114 = vmatprep.subr.bf16.mxu0 0
  %115 = vmatpush2.bf16.msra.mxu0 0
  %116 = vmatprep.subr.bf16.mxu0 0
  %117 = vmatpush2.bf16.msra.mxu0 0
  %118 = vmatprep.subr.bf16.mxu0 0
  %119 = vmatpush2.bf16.msra.mxu0 0
  %120 = vmatprep.subr.bf16.mxu0 0
  %121 = vmatpush2.bf16.msra.mxu0 0
  %122 = vmatprep.subr.bf16.mxu0 0
  %123 = vmatpush2.bf16.msra.mxu0 0
  %124 = vmatprep.subr.bf16.mxu0 0
  %125 = vmatpush2.bf16.msra.mxu0 0
  %126 = vmatprep.subr.bf16.mxu0 0
  %127 = vmatpush2.bf16.msra.mxu0 0
  %128 = vmatprep.subr.bf16.mxu0 0
  %129 = vmatpush2.bf16.msra.mxu0 0
  %130 = vmatprep.mubr.bf16.mxu0 0
  %131 = vmatmul.mubr.bf16.gmra.mxu0 %v96
  %v132 = vpop.f32.mrf.mxu0
  %v133 = vadd.f32 0.0, %v132
  %v134 = vpop.f32.mrf.mxu0
  %v135 = vpop.f32.mrf.mxu0
  %v136 = vadd.f32 0.0, %v135
  %v137 = vpop.f32.mrf.mxu0
  %138 = vdwg.mxu0
  %141 = vrot.lane.b32.xlu0 %v133, 96
  %v142 = vpop.permute.xlu0 %141
  %143 = vrot.lane.b32.xlu0 %v136, 96
  %v144 = vpop.permute.xlu0 %143
  %147 = vxpose.xlu0.b32.start [1/16] %v142, 128
  %148 = vxpose.xlu0.b32.cont [2/16] %v144, 128
  %149 = vxpose.xlu0.b32.cont [3/16] 0.0, 128
  %150 = vxpose.xlu0.b32.cont [4/16] 0.0, 128
  %151 = vxpose.xlu0.b32.cont [5/16] 0.0, 128
  %152 = vxpose.xlu0.b32.cont [6/16] 0.0, 128
  %153 = vxpose.xlu0.b32.cont [7/16] 0.0, 128
  %154 = vxpose.xlu0.b32.cont [8/16] 0.0, 128
  %155 = vxpose.xlu0.b32.cont [9/16] 0.0, 128
  %156 = vxpose.xlu0.b32.cont [10/16] 0.0, 128
  %157 = vxpose.xlu0.b32.cont [11/16] 0.0, 128
  %158 = vxpose.xlu0.b32.cont [12/16] 0.0, 128
  %159 = vxpose.xlu0.b32.cont [13/16] 0.0, 128
  %160 = vxpose.xlu0.b32.cont [14/16] 0.0, 128
  %161 = vxpose.xlu0.b32.cont [15/16] 0.0, 128
  %162 = vxpose.xlu0.b32.end [16/16] 0.0, 128
  %v163 = vpop.trf.xlu0
  %v164 = vpop.trf.xlu0
  %v165 = vpop.trf.xlu0
  %v166 = vpop.trf.xlu0
  %v167 = vpop.trf.xlu0
  %v168 = vpop.trf.xlu0
  %v169 = vpop.trf.xlu0
  %v170 = vpop.trf.xlu0
  %v171 = vpop.trf.xlu0
  %v172 = vpop.trf.xlu0
  %v173 = vpop.trf.xlu0
  %v174 = vpop.trf.xlu0
  %v175 = vpop.trf.xlu0
  %v176 = vpop.trf.xlu0
  %v177 = vpop.trf.xlu0
  %v178 = vpop.trf.xlu0
  %v179 = vpack.c.bf16 %v136, %v133
  %v180 = vpack.c.bf16 %v163, %v163
  %vm181 = vcmask 64512
  %v183 = vsel %vm181, %v179, 0
  %vm185 = vcmask 1043456
  %v187 = vsel %vm185, %v180, 0
  %189 = vmatprep.subr.bf16.mxu0 0
  %190 = vmatpush1.bf16.msra.mxu0 0
  %191 = vmatprep.subr.bf16.mxu0 0
  %192 = vmatpush1.bf16.msra.mxu0 0
  %193 = vmatprep.subr.bf16.mxu0 0
  %194 = vmatpush1.bf16.msra.mxu0 0
  %195 = vmatprep.subr.bf16.mxu0 0
  %196 = vmatpush1.bf16.msra.mxu0 0
  %197 = vmatprep.subr.bf16.mxu0 0
  %198 = vmatpush1.bf16.msra.mxu0 0
  %199 = vmatprep.subr.bf16.mxu0 0
  %200 = vmatpush1.bf16.msra.mxu0 0
  %201 = vmatprep.subr.bf16.mxu0 0
  %202 = vmatpush1.bf16.msra.mxu0 0
  %203 = vmatprep.subr.bf16.mxu0 0
  %204 = vmatpush1.bf16.msra.mxu0 %v187
  %205 = vmatprep.subr.bf16.mxu0 0
  %206 = vmatpush2.bf16.msra.mxu0 0
  %207 = vmatprep.subr.bf16.mxu0 0
  %208 = vmatpush2.bf16.msra.mxu0 0
  %209 = vmatprep.subr.bf16.mxu0 0
  %210 = vmatpush2.bf16.msra.mxu0 0
  %211 = vmatprep.subr.bf16.mxu0 0
  %212 = vmatpush2.bf16.msra.mxu0 0
  %213 = vmatprep.subr.bf16.mxu0 0
  %214 = vmatpush2.bf16.msra.mxu0 0
  %215 = vmatprep.subr.bf16.mxu0 0
  %216 = vmatpush2.bf16.msra.mxu0 0
  %217 = vmatprep.subr.bf16.mxu0 0
  %218 = vmatpush2.bf16.msra.mxu0 0
  %219 = vmatprep.subr.bf16.mxu0 0
  %220 = vmatpush2.bf16.msra.mxu0 0
  %221 = vmatprep.mubr.bf16.mxu0 0
  %222 = vmatmul.mubr.bf16.gmra.mxu0 %v183
  %v223 = vpop.f32.mrf.mxu0
  %v224 = vadd.f32 0.0, %v223
  %v225 = vpop.f32.mrf.mxu0
  %v226 = vpop.f32.mrf.mxu0
  %v227 = vadd.f32 0.0, %v226
  %v228 = vpop.f32.mrf.mxu0
  %229 = vdwg.mxu0
  %v230 = vmul.f32 %v224, 0.35355338
  %v231 = vmul.f32 %v227, 0.35355338
  %v232 = vadd.f32 %v230, %v36
  %v233 = vadd.f32 %v231, %v37
  %vm234 = vcmask 130048
  %v235 = vsel %vm234, %v232, -inf
  %236 = vmax.xlane.f32.xlu0 %v235
  %v237 = vpop.xlane.xlu0 %236
  %v238 = vsel %vm234, %v233, -inf
  %239 = vmax.xlane.f32.xlu0 %v238
  %v240 = vpop.xlane.xlu0 %239
  %v241 = vsub.f32 %v232, %v237
  %v242 = vsub.f32 %v233, %v240
  %v243 = vmul.f32 %v241, 1.442695
  %v244 = vpow.pop %v243
  %v245 = vmul.f32 %v242, 1.442695
  %v246 = vpow.pop %v245
  %v247 = vsel %vm234, %v244, 0.0
  %248 = vadd.xlane.f32.xlu0 %v247
  %v249 = vpop.xlane.xlu0 %248
  %v250 = vsel %vm234, %v246, 0.0
  %251 = vadd.xlane.f32.xlu0 %v250
  %v252 = vpop.xlane.xlu0 %251
  %v253 = vrcp.pop %v249
  %v254 = vrcp.pop %v252
  %v255 = vmul.f32 %v244, %v253
  %v256 = vmul.f32 %v246, %v254
  %v257 = vpack.c.bf16 %v256, %v255
  %259 = vrot.lane.b32.xlu0 %v179, 64
  %v260 = vpop.permute.xlu0 %259
  %v263 = vsel %vm234, %v257, 0
  %265 = vmatprep.subr.bf16.mxu0 0
  %266 = vmatpush1.bf16.msra.mxu0 0
  %267 = vmatprep.subr.bf16.mxu0 0
  %268 = vmatpush1.bf16.msra.mxu0 0
  %269 = vmatprep.subr.bf16.mxu0 0
  %270 = vmatpush1.bf16.msra.mxu0 0
  %271 = vmatprep.subr.bf16.mxu0 0
  %272 = vmatpush1.bf16.msra.mxu0 0
  %273 = vmatprep.subr.bf16.mxu0 0
  %274 = vmatpush1.bf16.msra.mxu0 0
  %275 = vmatprep.subr.bf16.mxu0 0
  %276 = vmatpush1.bf16.msra.mxu0 0
  %277 = vmatprep.subr.bf16.mxu0 0
  %278 = vmatpush1.bf16.msra.mxu0 0
  %279 = vmatprep.subr.bf16.mxu0 0
  %280 = vmatpush1.bf16.msra.mxu0 %v260
  %281 = vmatprep.subr.bf16.mxu0 0
  %282 = vmatpush2.bf16.msra.mxu0 0
  %283 = vmatprep.subr.bf16.mxu0 0
  %284 = vmatpush2.bf16.msra.mxu0 0
  %285 = vmatprep.subr.bf16.mxu0 0
  %286 = vmatpush2.bf16.msra.mxu0 0
  %287 = vmatprep.subr.bf16.mxu0 0
  %288 = vmatpush2.bf16.msra.mxu0 0
  %289 = vmatprep.subr.bf16.mxu0 0
  %290 = vmatpush2.bf16.msra.mxu0 0
  %291 = vmatprep.subr.bf16.mxu0 0
  %292 = vmatpush2.bf16.msra.mxu0 0
  %293 = vmatprep.subr.bf16.mxu0 0
  %294 = vmatpush2.bf16.msra.mxu0 0
  %295 = vmatprep.subr.bf16.mxu0 0
  %296 = vmatpush2.bf16.msra.mxu0 0
  %297 = vmatprep.mubr.bf16.mxu0 0
  %298 = vmatmul.mubr.bf16.gmra.mxu0 %v263
  %v299 = vpop.f32.mrf.mxu0
  %v300 = vadd.f32 0.0, %v299
  %v301 = vpop.f32.mrf.mxu0
  %v302 = vpop.f32.mrf.mxu0
  %v303 = vadd.f32 0.0, %v302
  %v304 = vpop.f32.mrf.mxu0
  %305 = vdwg.mxu0
  %v306 = vpack.c.bf16 %v164, %v164
  %307 = vrot.lane.b32.xlu0 %v179, 120
  %v308 = vpop.permute.xlu0 %307
  %v310 = vsel %vm181, %v308, 0
  %v313 = vsel %vm185, %v306, 0
  %315 = vmatprep.subr.bf16.mxu0 0
  %316 = vmatpush1.bf16.msra.mxu0 0
  %317 = vmatprep.subr.bf16.mxu0 0
  %318 = vmatpush1.bf16.msra.mxu0 0
  %319 = vmatprep.subr.bf16.mxu0 0
  %320 = vmatpush1.bf16.msra.mxu0 0
  %321 = vmatprep.subr.bf16.mxu0 0
  %322 = vmatpush1.bf16.msra.mxu0 0
  %323 = vmatprep.subr.bf16.mxu0 0
  %324 = vmatpush1.bf16.msra.mxu0 0
  %325 = vmatprep.subr.bf16.mxu0 0
  %326 = vmatpush1.bf16.msra.mxu0 0
  %327 = vmatprep.subr.bf16.mxu0 0
  %328 = vmatpush1.bf16.msra.mxu0 0
  %329 = vmatprep.subr.bf16.mxu0 0
  %330 = vmatpush1.bf16.msra.mxu0 %v313
  %331 = vmatprep.subr.bf16.mxu0 0
  %332 = vmatpush2.bf16.msra.mxu0 0
  %333 = vmatprep.subr.bf16.mxu0 0
  %334 = vmatpush2.bf16.msra.mxu0 0
  %335 = vmatprep.subr.bf16.mxu0 0
  %336 = vmatpush2.bf16.msra.mxu0 0
  %337 = vmatprep.subr.bf16.mxu0 0
  %338 = vmatpush2.bf16.msra.mxu0 0
  %339 = vmatprep.subr.bf16.mxu0 0
  %340 = vmatpush2.bf16.msra.mxu0 0
  %341 = vmatprep.subr.bf16.mxu0 0
  %342 = vmatpush2.bf16.msra.mxu0 0
  %343 = vmatprep.subr.bf16.mxu0 0
  %344 = vmatpush2.bf16.msra.mxu0 0
  %345 = vmatprep.subr.bf16.mxu0 0
  %346 = vmatpush2.bf16.msra.mxu0 0
  %347 = vmatprep.mubr.bf16.mxu0 0
  %348 = vmatmul.mubr.bf16.gmra.mxu0 %v310
  %v349 = vpop.f32.mrf.mxu0
  %v350 = vadd.f32 0.0, %v349
  %v351 = vpop.f32.mrf.mxu0
  %v352 = vpop.f32.mrf.mxu0
  %v353 = vadd.f32 0.0, %v352
  %v354 = vpop.f32.mrf.mxu0
  %355 = vdwg.mxu0
  %v356 = vmul.f32 %v350, 0.35355338
  %v357 = vmul.f32 %v353, 0.35355338
  %v358 = vadd.f32 %v356, %v36
  %v359 = vadd.f32 %v357, %v37
  %v360 = vsel %vm234, %v358, -inf
  %361 = vmax.xlane.f32.xlu0 %v360
  %v362 = vpop.xlane.xlu0 %361
  %v363 = vsel %vm234, %v359, -inf
  %364 = vmax.xlane.f32.xlu0 %v363
  %v365 = vpop.xlane.xlu0 %364
  %v366 = vsub.f32 %v358, %v362
  %v367 = vsub.f32 %v359, %v365
  %v368 = vmul.f32 %v366, 1.442695
  %v369 = vpow.pop %v368
  %v370 = vmul.f32 %v367, 1.442695
  %v371 = vpow.pop %v370
  %v372 = vsel %vm234, %v369, 0.0
  %373 = vadd.xlane.f32.xlu0 %v372
  %v374 = vpop.xlane.xlu0 %373
  %v375 = vsel %vm234, %v371, 0.0
  %376 = vadd.xlane.f32.xlu0 %v375
  %v377 = vpop.xlane.xlu0 %376
  %v378 = vrcp.pop %v374
  %v379 = vrcp.pop %v377
  %v380 = vmul.f32 %v369, %v378
  %v381 = vmul.f32 %v371, %v379
  %v382 = vpack.c.bf16 %v381, %v380
  %383 = vrot.lane.b32.xlu0 %v179, 56
  %v384 = vpop.permute.xlu0 %383
  %v387 = vsel %vm234, %v382, 0
  %389 = vmatprep.subr.bf16.mxu0 0
  %390 = vmatpush1.bf16.msra.mxu0 0
  %391 = vmatprep.subr.bf16.mxu0 0
  %392 = vmatpush1.bf16.msra.mxu0 0
  %393 = vmatprep.subr.bf16.mxu0 0
  %394 = vmatpush1.bf16.msra.mxu0 0
  %395 = vmatprep.subr.bf16.mxu0 0
  %396 = vmatpush1.bf16.msra.mxu0 0
  %397 = vmatprep.subr.bf16.mxu0 0
  %398 = vmatpush1.bf16.msra.mxu0 0
  %399 = vmatprep.subr.bf16.mxu0 0
  %400 = vmatpush1.bf16.msra.mxu0 0
  %401 = vmatprep.subr.bf16.mxu0 0
  %402 = vmatpush1.bf16.msra.mxu0 0
  %403 = vmatprep.subr.bf16.mxu0 0
  %404 = vmatpush1.bf16.msra.mxu0 %v384
  %405 = vmatprep.subr.bf16.mxu0 0
  %406 = vmatpush2.bf16.msra.mxu0 0
  %407 = vmatprep.subr.bf16.mxu0 0
  %408 = vmatpush2.bf16.msra.mxu0 0
  %409 = vmatprep.subr.bf16.mxu0 0
  %410 = vmatpush2.bf16.msra.mxu0 0
  %411 = vmatprep.subr.bf16.mxu0 0
  %412 = vmatpush2.bf16.msra.mxu0 0
  %413 = vmatprep.subr.bf16.mxu0 0
  %414 = vmatpush2.bf16.msra.mxu0 0
  %415 = vmatprep.subr.bf16.mxu0 0
  %416 = vmatpush2.bf16.msra.mxu0 0
  %417 = vmatprep.subr.bf16.mxu0 0
  %418 = vmatpush2.bf16.msra.mxu0 0
  %419 = vmatprep.subr.bf16.mxu0 0
  %420 = vmatpush2.bf16.msra.mxu0 0
  %421 = vmatprep.mubr.bf16.mxu0 0
  %422 = vmatmul.mubr.bf16.gmra.mxu0 %v387
  %v423 = vpop.f32.mrf.mxu0
  %v424 = vadd.f32 0.0, %v423
  %v425 = vpop.f32.mrf.mxu0
  %v426 = vpop.f32.mrf.mxu0
  %v427 = vadd.f32 0.0, %v426
  %v428 = vpop.f32.mrf.mxu0
  %429 = vdwg.mxu0
  %v430 = vpack.c.bf16 %v165, %v165
  %431 = vrot.lane.b32.xlu0 %v179, 112
  %v432 = vpop.permute.xlu0 %431
  %v434 = vsel %vm181, %v432, 0
  %v437 = vsel %vm185, %v430, 0
  %439 = vmatprep.subr.bf16.mxu0 0
  %440 = vmatpush1.bf16.msra.mxu0 0
  %441 = vmatprep.subr.bf16.mxu0 0
  %442 = vmatpush1.bf16.msra.mxu0 0
  %443 = vmatprep.subr.bf16.mxu0 0
  %444 = vmatpush1.bf16.msra.mxu0 0
  %445 = vmatprep.subr.bf16.mxu0 0
  %446 = vmatpush1.bf16.msra.mxu0 0
  %447 = vmatprep.subr.bf16.mxu0 0
  %448 = vmatpush1.bf16.msra.mxu0 0
  %449 = vmatprep.subr.bf16.mxu0 0
  %450 = vmatpush1.bf16.msra.mxu0 0
  %451 = vmatprep.subr.bf16.mxu0 0
  %452 = vmatpush1.bf16.msra.mxu0 0
  %453 = vmatprep.subr.bf16.mxu0 0
  %454 = vmatpush1.bf16.msra.mxu0 %v437
  %455 = vmatprep.subr.bf16.mxu0 0
  %456 = vmatpush2.bf16.msra.mxu0 0
  %457 = vmatprep.subr.bf16.mxu0 0
  %458 = vmatpush2.bf16.msra.mxu0 0
  %459 = vmatprep.subr.bf16.mxu0 0
  %460 = vmatpush2.bf16.msra.mxu0 0
  %461 = vmatprep.subr.bf16.mxu0 0
  %462 = vmatpush2.bf16.msra.mxu0 0
  %463 = vmatprep.subr.bf16.mxu0 0
  %464 = vmatpush2.bf16.msra.mxu0 0
  %465 = vmatprep.subr.bf16.mxu0 0
  %466 = vmatpush2.bf16.msra.mxu0 0
  %467 = vmatprep.subr.bf16.mxu0 0
  %468 = vmatpush2.bf16.msra.mxu0 0
  %469 = vmatprep.subr.bf16.mxu0 0
  %470 = vmatpush2.bf16.msra.mxu0 0
  %471 = vmatprep.mubr.bf16.mxu0 0
  %472 = vmatmul.mubr.bf16.gmra.mxu0 %v434
  %v473 = vpop.f32.mrf.mxu0
  %v474 = vadd.f32 0.0, %v473
  %v475 = vpop.f32.mrf.mxu0
  %v476 = vpop.f32.mrf.mxu0
  %v477 = vadd.f32 0.0, %v476
  %v478 = vpop.f32.mrf.mxu0
  %479 = vdwg.mxu0
  %v480 = vmul.f32 %v474, 0.35355338
  %v481 = vmul.f32 %v477, 0.35355338
  %v482 = vadd.f32 %v480, %v36
  %v483 = vadd.f32 %v481, %v37
  %v484 = vsel %vm234, %v482, -inf
  %485 = vmax.xlane.f32.xlu0 %v484
  %v486 = vpop.xlane.xlu0 %485
  %v487 = vsel %vm234, %v483, -inf
  %488 = vmax.xlane.f32.xlu0 %v487
  %v489 = vpop.xlane.xlu0 %488
  %v490 = vsub.f32 %v482, %v486
  %v491 = vsub.f32 %v483, %v489
  %v492 = vmul.f32 %v490, 1.442695
  %v493 = vpow.pop %v492
  %v494 = vmul.f32 %v491, 1.442695
  %v495 = vpow.pop %v494
  %v496 = vsel %vm234, %v493, 0.0
  %497 = vadd.xlane.f32.xlu0 %v496
  %v498 = vpop.xlane.xlu0 %497
  %v499 = vsel %vm234, %v495, 0.0
  %500 = vadd.xlane.f32.xlu0 %v499
  %v501 = vpop.xlane.xlu0 %500
  %v502 = vrcp.pop %v498
  %v503 = vrcp.pop %v501
  %v504 = vmul.f32 %v493, %v502
  %v505 = vmul.f32 %v495, %v503
  %v506 = vpack.c.bf16 %v505, %v504
  %507 = vrot.lane.b32.xlu0 %v179, 48
  %v508 = vpop.permute.xlu0 %507
  %v511 = vsel %vm234, %v506, 0
  %513 = vmatprep.subr.bf16.mxu0 0
  %514 = vmatpush1.bf16.msra.mxu0 0
  %515 = vmatprep.subr.bf16.mxu0 0
  %516 = vmatpush1.bf16.msra.mxu0 0
  %517 = vmatprep.subr.bf16.mxu0 0
  %518 = vmatpush1.bf16.msra.mxu0 0
  %519 = vmatprep.subr.bf16.mxu0 0
  %520 = vmatpush1.bf16.msra.mxu0 0
  %521 = vmatprep.subr.bf16.mxu0 0
  %522 = vmatpush1.bf16.msra.mxu0 0
  %523 = vmatprep.subr.bf16.mxu0 0
  %524 = vmatpush1.bf16.msra.mxu0 0
  %525 = vmatprep.subr.bf16.mxu0 0
  %526 = vmatpush1.bf16.msra.mxu0 0
  %527 = vmatprep.subr.bf16.mxu0 0
  %528 = vmatpush1.bf16.msra.mxu0 %v508
  %529 = vmatprep.subr.bf16.mxu0 0
  %530 = vmatpush2.bf16.msra.mxu0 0
  %531 = vmatprep.subr.bf16.mxu0 0
  %532 = vmatpush2.bf16.msra.mxu0 0
  %533 = vmatprep.subr.bf16.mxu0 0
  %534 = vmatpush2.bf16.msra.mxu0 0
  %535 = vmatprep.subr.bf16.mxu0 0
  %536 = vmatpush2.bf16.msra.mxu0 0
  %537 = vmatprep.subr.bf16.mxu0 0
  %538 = vmatpush2.bf16.msra.mxu0 0
  %539 = vmatprep.subr.bf16.mxu0 0
  %540 = vmatpush2.bf16.msra.mxu0 0
  %541 = vmatprep.subr.bf16.mxu0 0
  %542 = vmatpush2.bf16.msra.mxu0 0
  %543 = vmatprep.subr.bf16.mxu0 0
  %544 = vmatpush2.bf16.msra.mxu0 0
  %545 = vmatprep.mubr.bf16.mxu0 0
  %546 = vmatmul.mubr.bf16.gmra.mxu0 %v511
  %v547 = vpop.f32.mrf.mxu0
  %v548 = vadd.f32 0.0, %v547
  %v549 = vpop.f32.mrf.mxu0
  %v550 = vpop.f32.mrf.mxu0
  %v551 = vadd.f32 0.0, %v550
  %v552 = vpop.f32.mrf.mxu0
  %553 = vdwg.mxu0
  %v554 = vpack.c.bf16 %v166, %v166
  %555 = vrot.lane.b32.xlu0 %v179, 104
  %v556 = vpop.permute.xlu0 %555
  %v558 = vsel %vm181, %v556, 0
  %v561 = vsel %vm185, %v554, 0
  %563 = vmatprep.subr.bf16.mxu0 0
  %564 = vmatpush1.bf16.msra.mxu0 0
  %565 = vmatprep.subr.bf16.mxu0 0
  %566 = vmatpush1.bf16.msra.mxu0 0
  %567 = vmatprep.subr.bf16.mxu0 0
  %568 = vmatpush1.bf16.msra.mxu0 0
  %569 = vmatprep.subr.bf16.mxu0 0
  %570 = vmatpush1.bf16.msra.mxu0 0
  %571 = vmatprep.subr.bf16.mxu0 0
  %572 = vmatpush1.bf16.msra.mxu0 0
  %573 = vmatprep.subr.bf16.mxu0 0
  %574 = vmatpush1.bf16.msra.mxu0 0
  %575 = vmatprep.subr.bf16.mxu0 0
  %576 = vmatpush1.bf16.msra.mxu0 0
  %577 = vmatprep.subr.bf16.mxu0 0
  %578 = vmatpush1.bf16.msra.mxu0 %v561
  %579 = vmatprep.subr.bf16.mxu0 0
  %580 = vmatpush2.bf16.msra.mxu0 0
  %581 = vmatprep.subr.bf16.mxu0 0
  %582 = vmatpush2.bf16.msra.mxu0 0
  %583 = vmatprep.subr.bf16.mxu0 0
  %584 = vmatpush2.bf16.msra.mxu0 0
  %585 = vmatprep.subr.bf16.mxu0 0
  %586 = vmatpush2.bf16.msra.mxu0 0
  %587 = vmatprep.subr.bf16.mxu0 0
  %588 = vmatpush2.bf16.msra.mxu0 0
  %589 = vmatprep.subr.bf16.mxu0 0
  %590 = vmatpush2.bf16.msra.mxu0 0
  %591 = vmatprep.subr.bf16.mxu0 0
  %592 = vmatpush2.bf16.msra.mxu0 0
  %593 = vmatprep.subr.bf16.mxu0 0
  %594 = vmatpush2.bf16.msra.mxu0 0
  %595 = vmatprep.mubr.bf16.mxu0 0
  %596 = vmatmul.mubr.bf16.gmra.mxu0 %v558
  %v597 = vpop.f32.mrf.mxu0
  %v598 = vadd.f32 0.0, %v597
  %v599 = vpop.f32.mrf.mxu0
  %v600 = vpop.f32.mrf.mxu0
  %v601 = vadd.f32 0.0, %v600
  %v602 = vpop.f32.mrf.mxu0
  %603 = vdwg.mxu0
  %v604 = vmul.f32 %v598, 0.35355338
  %v605 = vmul.f32 %v601, 0.35355338
  %v606 = vadd.f32 %v604, %v36
  %v607 = vadd.f32 %v605, %v37
  %v608 = vsel %vm234, %v606, -inf
  %609 = vmax.xlane.f32.xlu0 %v608
  %v610 = vpop.xlane.xlu0 %609
  %v611 = vsel %vm234, %v607, -inf
  %612 = vmax.xlane.f32.xlu0 %v611
  %v613 = vpop.xlane.xlu0 %612
  %v614 = vsub.f32 %v606, %v610
  %v615 = vsub.f32 %v607, %v613
  %v616 = vmul.f32 %v614, 1.442695
  %v617 = vpow.pop %v616
  %v618 = vmul.f32 %v615, 1.442695
  %v619 = vpow.pop %v618
  %v620 = vsel %vm234, %v617, 0.0
  %621 = vadd.xlane.f32.xlu0 %v620
  %v622 = vpop.xlane.xlu0 %621
  %v623 = vsel %vm234, %v619, 0.0
  %624 = vadd.xlane.f32.xlu0 %v623
  %v625 = vpop.xlane.xlu0 %624
  %v626 = vrcp.pop %v622
  %v627 = vrcp.pop %v625
  %v628 = vmul.f32 %v617, %v626
  %v629 = vmul.f32 %v619, %v627
  %v630 = vpack.c.bf16 %v629, %v628
  %631 = vrot.lane.b32.xlu0 %v179, 40
  %v632 = vpop.permute.xlu0 %631
  %v635 = vsel %vm234, %v630, 0
  %637 = vmatprep.subr.bf16.mxu0 0
  %638 = vmatpush1.bf16.msra.mxu0 0
  %639 = vmatprep.subr.bf16.mxu0 0
  %640 = vmatpush1.bf16.msra.mxu0 0
  %641 = vmatprep.subr.bf16.mxu0 0
  %642 = vmatpush1.bf16.msra.mxu0 0
  %643 = vmatprep.subr.bf16.mxu0 0
  %644 = vmatpush1.bf16.msra.mxu0 0
  %645 = vmatprep.subr.bf16.mxu0 0
  %646 = vmatpush1.bf16.msra.mxu0 0
  %647 = vmatprep.subr.bf16.mxu0 0
  %648 = vmatpush1.bf16.msra.mxu0 0
  %649 = vmatprep.subr.bf16.mxu0 0
  %650 = vmatpush1.bf16.msra.mxu0 0
  %651 = vmatprep.subr.bf16.mxu0 0
  %652 = vmatpush1.bf16.msra.mxu0 %v632
  %653 = vmatprep.subr.bf16.mxu0 0
  %654 = vmatpush2.bf16.msra.mxu0 0
  %655 = vmatprep.subr.bf16.mxu0 0
  %656 = vmatpush2.bf16.msra.mxu0 0
  %657 = vmatprep.subr.bf16.mxu0 0
  %658 = vmatpush2.bf16.msra.mxu0 0
  %659 = vmatprep.subr.bf16.mxu0 0
  %660 = vmatpush2.bf16.msra.mxu0 0
  %661 = vmatprep.subr.bf16.mxu0 0
  %662 = vmatpush2.bf16.msra.mxu0 0
  %663 = vmatprep.subr.bf16.mxu0 0
  %664 = vmatpush2.bf16.msra.mxu0 0
  %665 = vmatprep.subr.bf16.mxu0 0
  %666 = vmatpush2.bf16.msra.mxu0 0
  %667 = vmatprep.subr.bf16.mxu0 0
  %668 = vmatpush2.bf16.msra.mxu0 0
  %669 = vmatprep.mubr.bf16.mxu0 0
  %670 = vmatmul.mubr.bf16.gmra.mxu0 %v635
  %v671 = vpop.f32.mrf.mxu0
  %v672 = vadd.f32 0.0, %v671
  %v673 = vpop.f32.mrf.mxu0
  %v674 = vpop.f32.mrf.mxu0
  %v675 = vadd.f32 0.0, %v674
  %v676 = vpop.f32.mrf.mxu0
  %677 = vdwg.mxu0
  %680 = vrot.lane.b32.xlu0 %v424, 8
  %v681 = vpop.permute.xlu0 %680
  %682 = vrot.lane.b32.xlu0 %v427, 8
  %v683 = vpop.permute.xlu0 %682
  %688 = vrot.lane.b32.xlu0 %v548, 16
  %v689 = vpop.permute.xlu0 %688
  %690 = vrot.lane.b32.xlu0 %v551, 16
  %v691 = vpop.permute.xlu0 %690
  %696 = vrot.lane.b32.xlu0 %v672, 24
  %v697 = vpop.permute.xlu0 %696
  %698 = vrot.lane.b32.xlu0 %v675, 24
  %v699 = vpop.permute.xlu0 %698
  %v702 = vsel %vm181, %v300, %v681
  %v703 = vsel %vm181, %v303, %v683
  %v704 = vsel %vm234, %v702, %v689
  %v705 = vsel %vm234, %v703, %v691
  %vm706 = vcmask 195584
  %v707 = vsel %vm706, %v704, %v697
  %v708 = vsel %vm706, %v705, %v699
  %v709 = vpack.c.bf16 %v708, %v707
  %710 = vrot.lane.b32.xlu0 %v91, 32
  %v711 = vpop.permute.xlu0 %710
  %712 = vrot.lane.b32.xlu0 %v92, 32
  %v713 = vpop.permute.xlu0 %712
  %v717 = vsel %vm38, %v709, 0
  %719 = vmatprep.subr.bf16.mxu0 0
  %720 = vmatpush1.bf16.msra.mxu0 0
  %721 = vmatprep.subr.bf16.mxu0 0
  %722 = vmatpush1.bf16.msra.mxu0 0
  %723 = vmatprep.subr.bf16.mxu0 0
  %724 = vmatpush1.bf16.msra.mxu0 0
  %725 = vmatprep.subr.bf16.mxu0 0
  %726 = vmatpush1.bf16.msra.mxu0 0
  %727 = vmatprep.subr.bf16.mxu0 0
  %728 = vmatpush1.bf16.msra.mxu0 0
  %729 = vmatprep.subr.bf16.mxu0 0
  %730 = vmatpush1.bf16.msra.mxu0 0
  %731 = vmatprep.subr.bf16.mxu0 0
  %732 = vmatpush1.bf16.msra.mxu0 %v713
  %733 = vmatprep.subr.bf16.mxu0 0
  %734 = vmatpush1.bf16.msra.mxu0 %v711
  %735 = vmatprep.subr.bf16.mxu0 0
  %736 = vmatpush2.bf16.msra.mxu0 0
  %737 = vmatprep.subr.bf16.mxu0 0
  %738 = vmatpush2.bf16.msra.mxu0 0
  %739 = vmatprep.subr.bf16.mxu0 0
  %740 = vmatpush2.bf16.msra.mxu0 0
  %741 = vmatprep.subr.bf16.mxu0 0
  %742 = vmatpush2.bf16.msra.mxu0 0
  %743 = vmatprep.subr.bf16.mxu0 0
  %744 = vmatpush2.bf16.msra.mxu0 0
  %745 = vmatprep.subr.bf16.mxu0 0
  %746 = vmatpush2.bf16.msra.mxu0 0
  %747 = vmatprep.subr.bf16.mxu0 0
  %748 = vmatpush2.bf16.msra.mxu0 0
  %749 = vmatprep.subr.bf16.mxu0 0
  %750 = vmatpush2.bf16.msra.mxu0 0
  %751 = vmatprep.mubr.bf16.mxu0 0
  %752 = vmatmul.mubr.bf16.gmra.mxu0 %v717
  %v753 = vpop.f32.mrf.mxu0
  %v754 = vadd.f32 0.0, %v753
  %v755 = vpop.f32.mrf.mxu0
  %v756 = vpop.f32.mrf.mxu0
  %v757 = vadd.f32 0.0, %v756
  %v758 = vpop.f32.mrf.mxu0
  %759 = vdwg.mxu0
  %v760 = vadd.f32 %v34, %v754
  %v761 = vadd.f32 %v35, %v757
  %v762 = vsel %vm38, %v760, 0.0
  %763 = vadd.xlane.f32.xlu0 %v762
  %v764 = vpop.xlane.xlu0 %763
  %v765 = vsel %vm38, %v761, 0.0
  %766 = vadd.xlane.f32.xlu0 %v765
  %v767 = vpop.xlane.xlu0 %766
  %v768 = vmul.f32 %v764, %v45
  %v769 = vmul.f32 %v767, %v45
  %v770 = vsub.f32 %v760, %v768
  %v771 = vsub.f32 %v761, %v769
  %v772 = vmul.f32 %v770, %v770
  %v773 = vmul.f32 %v771, %v771
  %v774 = vsel %vm38, %v772, 0.0
  %775 = vadd.xlane.f32.xlu0 %v774
  %v776 = vpop.xlane.xlu0 %775
  %v777 = vsel %vm38, %v773, 0.0
  %778 = vadd.xlane.f32.xlu0 %v777
  %v779 = vpop.xlane.xlu0 %778
  %v780 = vmul.f32 %v776, %v45
  %v781 = vmul.f32 %v779, %v45
  %v782 = vadd.f32 %v780, 1e-05
  %v783 = vadd.f32 %v781, 1e-05
  %v784 = vrsqrt.pop %v782
  %v785 = vrsqrt.pop %v783
  %v786 = vmul.f32 %v770, %v784
  %v787 = vmul.f32 %v771, %v785
  %v788 = vlaneseq
  %v789 = vshrl.u32 %v788, 7
  %v790 = vsub.s32 2, %v789
  %v791 = vrot.slane %v30, %v790
  %v792 = vmul.f32 %v786, %v791
  %v793 = vmul.f32 %v787, %v791
  %v794 = vlaneseq
  %v795 = vshrl.u32 %v794, 7
  %v796 = vsub.s32 3, %v795
  %v797 = vrot.slane %v30, %v796
  %v798 = vadd.f32 %v792, %v797
  %v799 = vadd.f32 %v793, %v797
  %v800 = vpack.c.bf16 %v799, %v798
  %v801 = vld [vmem:[%s6 + $0x4] sm:$0xf]
  %v802 = vld [vmem:[%s6 + $0x30] sm:$0xf]
  %v803 = vld [vmem:[%s6 + $0x5c] sm:$0xf]
  %v804 = vld [vmem:[%s6 + $0x88] sm:$0xf]
  %v805 = vlaneseq
  %v806 = vshrl.u32 %v805, 7
  %v807 = vsub.s32 4, %v806
  %v808 = vrot.slane %v30, %v807
  %v813 = vunpack.c.l.b16 %v801
  %v814 = vunpack.c.l.b16 %v802
  %v815 = vunpack.c.l.b16 %v803
  %v816 = vunpack.c.l.b16 %v804
  %v817 = vpack.c.b16 %v814, %v813
  %v818 = vpack.c.b16 %v816, %v815
  %v822 = vsel %vm38, %v800, 0
  %824 = vmatprep.subr.bf16.mxu0 0
  %825 = vmatpush1.bf16.msra.mxu0 0
  %826 = vmatprep.subr.bf16.mxu0 0
  %827 = vmatpush1.bf16.msra.mxu0 0
  %828 = vmatprep.subr.bf16.mxu0 0
  %829 = vmatpush1.bf16.msra.mxu0 0
  %830 = vmatprep.subr.bf16.mxu0 0
  %831 = vmatpush1.bf16.msra.mxu0 0
  %832 = vmatprep.subr.bf16.mxu0 0
  %833 = vmatpush1.bf16.msra.mxu0 0
  %834 = vmatprep.subr.bf16.mxu0 0
  %835 = vmatpush1.bf16.msra.mxu0 0
  %836 = vmatprep.subr.bf16.mxu0 0
  %837 = vmatpush1.bf16.msra.mxu0 %v818
  %838 = vmatprep.subr.bf16.mxu0 0
  %839 = vmatpush1.bf16.msra.mxu0 %v817
  %840 = vmatprep.subr.bf16.mxu0 0
  %841 = vmatpush2.bf16.msra.mxu0 0
  %842 = vmatprep.subr.bf16.mxu0 0
  %843 = vmatpush2.bf16.msra.mxu0 0
  %844 = vmatprep.subr.bf16.mxu0 0
  %845 = vmatpush2.bf16.msra.mxu0 0
  %846 = vmatprep.subr.bf16.mxu0 0
  %847 = vmatpush2.bf16.msra.mxu0 0
  %848 = vmatprep.subr.bf16.mxu0 0
  %849 = vmatpush2.bf16.msra.mxu0 0
  %850 = vmatprep.subr.bf16.mxu0 0
  %851 = vmatpush2.bf16.msra.mxu0 0
  %852 = vmatprep.subr.bf16.mxu0 0
  %853 = vmatpush2.bf16.msra.mxu0 0
  %854 = vmatprep.subr.bf16.mxu0 0
  %855 = vmatpush2.bf16.msra.mxu0 0
  %856 = vmatprep.mubr.bf16.mxu0 0
  %857 = vmatmul.mubr.bf16.gmra.mxu0 %v822
  %v858 = vpop.f32.mrf.mxu0
  %v859 = vadd.f32 %v808, %v858
  %v860 = vpop.f32.mrf.mxu0
  %v861 = vpop.f32.mrf.mxu0
  %v862 = vadd.f32 %v808, %v861
  %v863 = vpop.f32.mrf.mxu0
  %864 = vdwg.mxu0
  %v865 = vmax.f32 %v859, 0.0
  %v866 = vmax.f32 %v862, 0.0
  %v867 = vpack.c.bf16 %v866, %v865
  %v868 = vld [vmem:[%s7] sm:$0xf]
  %v869 = vld [vmem:[%s7 + $0x4] sm:$0xf]
  %v870 = vld [vmem:[%s7 + $0x8] sm:$0xf]
  %v871 = vld [vmem:[%s7 + $0xc] sm:$0xf]
  %v872 = vld [vmem:[%s7 + $0x10] sm:$0xf]
  %v873 = vld [vmem:[%s7 + $0x14] sm:$0xf]
  %v874 = vld [vmem:[%s7 + $0x18] sm:$0xf]
  %v875 = vld [vmem:[%s7 + $0x1c] sm:$0xf]
  %v876 = vld [vmem:[%s7 + $0x20] sm:$0xf]
  %v877 = vld [vmem:[%s7 + $0x24] sm:$0xf]
  %v878 = vld [vmem:[%s7 + $0x28] sm:$0xf]
  %v879 = vld [vmem:[%s7 + $0x2c] sm:$0xf]
  %v880 = vld [vmem:[%s7 + $0x30] sm:$0xf]
  %v881 = vld [vmem:[%s7 + $0x34] sm:$0xf]
  %v882 = vld [vmem:[%s7 + $0x38] sm:$0xf]
  %v883 = vld [vmem:[%s7 + $0x3c] sm:$0xf]
  %v884 = vlaneseq
  %v885 = vshrl.u32 %v884, 7
  %v886 = vsub.s32 5, %v885
  %v887 = vrot.slane %v30, %v886
  %v904 = vunpack.c.l.b16 %v868
  %v905 = vunpack.c.l.b16 %v869
  %v906 = vunpack.c.l.b16 %v870
  %v907 = vunpack.c.l.b16 %v871
  %v908 = vunpack.c.l.b16 %v872
  %v909 = vunpack.c.l.b16 %v873
  %v910 = vunpack.c.l.b16 %v874
  %v911 = vunpack.c.l.b16 %v875
  %v912 = vunpack.c.l.b16 %v876
  %v913 = vunpack.c.l.b16 %v877
  %v914 = vunpack.c.l.b16 %v878
  %v915 = vunpack.c.l.b16 %v879
  %v916 = vunpack.c.l.b16 %v880
  %v917 = vunpack.c.l.b16 %v881
  %v918 = vunpack.c.l.b16 %v882
  %v919 = vunpack.c.l.b16 %v883
  %v920 = vpack.c.b16 %v905, %v904
  %v921 = vpack.c.b16 %v907, %v906
  %v922 = vpack.c.b16 %v909, %v908
  %v923 = vpack.c.b16 %v911, %v910
  %v924 = vpack.c.b16 %v913, %v912
  %v925 = vpack.c.b16 %v915, %v914
  %v926 = vpack.c.b16 %v917, %v916
  %v927 = vpack.c.b16 %v919, %v918
  %936 = vmatprep.subr.bf16.mxu0 0
  %937 = vmatpush1.bf16.msra.mxu0 %v927
  %938 = vmatprep.subr.bf16.mxu0 0
  %939 = vmatpush1.bf16.msra.mxu0 %v926
  %940 = vmatprep.subr.bf16.mxu0 0
  %941 = vmatpush1.bf16.msra.mxu0 %v925
  %942 = vmatprep.subr.bf16.mxu0 0
  %943 = vmatpush1.bf16.msra.mxu0 %v924
  %944 = vmatprep.subr.bf16.mxu0 0
  %945 = vmatpush1.bf16.msra.mxu0 %v923
  %946 = vmatprep.subr.bf16.mxu0 0
  %947 = vmatpush1.bf16.msra.mxu0 %v922
  %948 = vmatprep.subr.bf16.mxu0 0
  %949 = vmatpush1.bf16.msra.mxu0 %v921
  %950 = vmatprep.subr.bf16.mxu0 0
  %951 = vmatpush1.bf16.msra.mxu0 %v920
  %952 = vmatprep.subr.bf16.mxu0 0
  %953 = vmatpush2.bf16.msra.mxu0 0
  %954 = vmatprep.subr.bf16.mxu0 0
  %955 = vmatpush2.bf16.msra.mxu0 0
  %956 = vmatprep.subr.bf16.mxu0 0
  %957 = vmatpush2.bf16.msra.mxu0 0
  %958 = vmatprep.subr.bf16.mxu0 0
  %959 = vmatpush2.bf16.msra.mxu0 0
  %960 = vmatprep.subr.bf16.mxu0 0
  %961 = vmatpush2.bf16.msra.mxu0 0
  %962 = vmatprep.subr.bf16.mxu0 0
  %963 = vmatpush2.bf16.msra.mxu0 0
  %964 = vmatprep.subr.bf16.mxu0 0
  %965 = vmatpush2.bf16.msra.mxu0 0
  %966 = vmatprep.subr.bf16.mxu0 0
  %967 = vmatpush2.bf16.msra.mxu0 0
  %968 = vmatprep.mubr.bf16.mxu0 0
  %969 = vmatmul.mubr.bf16.gmra.mxu0 %v867
  %v970 = vpop.f32.mrf.mxu0
  %v971 = vadd.f32 %v887, %v970
  %v972 = vpop.f32.mrf.mxu0
  %v973 = vpop.f32.mrf.mxu0
  %v974 = vadd.f32 %v887, %v973
  %v975 = vpop.f32.mrf.mxu0
  %976 = vdwg.mxu0
  %v977 = vadd.f32 %v760, %v971
  %v978 = vadd.f32 %v761, %v974
  %v979 = vsel %vm38, %v977, 0.0
  %980 = vadd.xlane.f32.xlu0 %v979
  %v981 = vpop.xlane.xlu0 %980
  %v982 = vsel %vm38, %v978, 0.0
  %983 = vadd.xlane.f32.xlu0 %v982
  %v984 = vpop.xlane.xlu0 %983
  %v985 = vmul.f32 %v981, %v45
  %v986 = vmul.f32 %v984, %v45
  %v987 = vsub.f32 %v977, %v985
  %v988 = vsub.f32 %v978, %v986
  %v989 = vmul.f32 %v987, %v987
  %v990 = vmul.f32 %v988, %v988
  %v991 = vsel %vm38, %v989, 0.0
  %992 = vadd.xlane.f32.xlu0 %v991
  %v993 = vpop.xlane.xlu0 %992
  %v994 = vsel %vm38, %v990, 0.0
  %995 = vadd.xlane.f32.xlu0 %v994
  %v996 = vpop.xlane.xlu0 %995
  %v997 = vmul.f32 %v993, %v45
  %v998 = vmul.f32 %v996, %v45
  %v999 = vadd.f32 %v997, 1e-05
  %v1000 = vadd.f32 %v998, 1e-05
  %v1001 = vrsqrt.pop %v999
  %v1002 = vrsqrt.pop %v1000
  %v1003 = vmul.f32 %v987, %v1001
  %v1004 = vmul.f32 %v988, %v1002
  %v1005 = vlaneseq
  %v1006 = vshrl.u32 %v1005, 7
  %v1007 = vsub.s32 6, %v1006
  %v1008 = vrot.slane %v30, %v1007
  %v1009 = vmul.f32 %v1003, %v1008
  %v1010 = vmul.f32 %v1004, %v1008
  %v1011 = vlaneseq
  %v1012 = vshrl.u32 %v1011, 7
  %v1013 = vsub.s32 7, %v1012
  %v1014 = vrot.slane %v30, %v1013
  %v1015 = vadd.f32 %v1009, %v1014
  %v1016 = vadd.f32 %v1010, %v1014
  %v1017 = vld [vmem:[%s6 + $0x8] sm:$0xf]
  %v1018 = vld [vmem:[%s6 + $0x34] sm:$0xf]
  %v1019 = vld [vmem:[%s6 + $0x60] sm:$0xf]
  %v1020 = vld [vmem:[%s6 + $0x8c] sm:$0xf]
  %v1021 = vpack.c.bf16 %v1016, %v1015
  %v1026 = vunpack.c.l.b16 %v1017
  %v1027 = vunpack.c.l.b16 %v1018
  %v1028 = vunpack.c.l.b16 %v1019
  %v1029 = vunpack.c.l.b16 %v1020
  %v1030 = vpack.c.b16 %v1027, %v1026
  %v1031 = vpack.c.b16 %v1029, %v1028
  %v1035 = vsel %vm38, %v1021, 0
  %1037 = vmatprep.subr.bf16.mxu0 0
  %1038 = vmatpush1.bf16.msra.mxu0 0
  %1039 = vmatprep.subr.bf16.mxu0 0
  %1040 = vmatpush1.bf16.msra.mxu0 0
  %1041 = vmatprep.subr.bf16.mxu0 0
  %1042 = vmatpush1.bf16.msra.mxu0 0
  %1043 = vmatprep.subr.bf16.mxu0 0
  %1044 = vmatpush1.bf16.msra.mxu0 0
  %1045 = vmatprep.subr.bf16.mxu0 0
  %1046 = vmatpush1.bf16.msra.mxu0 0
  %1047 = vmatprep.subr.bf16.mxu0 0
  %1048 = vmatpush1.bf16.msra.mxu0 0
  %1049 = vmatprep.subr.bf16.mxu0 0
  %1050 = vmatpush1.bf16.msra.mxu0 %v1031
  %1051 = vmatprep.subr.bf16.mxu0 0
  %1052 = vmatpush1.bf16.msra.mxu0 %v1030
  %1053 = vmatprep.subr.bf16.mxu0 0
  %1054 = vmatpush2.bf16.msra.mxu0 0
  %1055 = vmatprep.subr.bf16.mxu0 0
  %1056 = vmatpush2.bf16.msra.mxu0 0
  %1057 = vmatprep.subr.bf16.mxu0 0
  %1058 = vmatpush2.bf16.msra.mxu0 0
  %1059 = vmatprep.subr.bf16.mxu0 0
  %1060 = vmatpush2.bf16.msra.mxu0 0
  %1061 = vmatprep.subr.bf16.mxu0 0
  %1062 = vmatpush2.bf16.msra.mxu0 0
  %1063 = vmatprep.subr.bf16.mxu0 0
  %1064 = vmatpush2.bf16.msra.mxu0 0
  %1065 = vmatprep.subr.bf16.mxu0 0
  %1066 = vmatpush2.bf16.msra.mxu0 0
  %1067 = vmatprep.subr.bf16.mxu0 0
  %1068 = vmatpush2.bf16.msra.mxu0 0
  %1069 = vmatprep.mubr.bf16.mxu0 0
  %1070 = vmatmul.mubr.bf16.gmra.mxu0 %v1035
  %v1071 = vpop.f32.mrf.mxu0
  %v1072 = vadd.f32 0.0, %v1071
  %v1073 = vpop.f32.mrf.mxu0
  %v1074 = vpop.f32.mrf.mxu0
  %v1075 = vadd.f32 0.0, %v1074
  %v1076 = vpop.f32.mrf.mxu0
  %1077 = vdwg.mxu0
  %1080 = vrot.lane.b32.xlu0 %v1072, 96
  %v1081 = vpop.permute.xlu0 %1080
  %1082 = vrot.lane.b32.xlu0 %v1075, 96
  %v1083 = vpop.permute.xlu0 %1082
  %1086 = vxpose.xlu0.b32.start [1/16] %v1081, 128
  %1087 = vxpose.xlu0.b32.cont [2/16] %v1083, 128
  %1088 = vxpose.xlu0.b32.cont [3/16] 0.0, 128
  %1089 = vxpose.xlu0.b32.cont [4/16] 0.0, 128
  %1090 = vxpose.xlu0.b32.cont [5/16] 0.0, 128
  %1091 = vxpose.xlu0.b32.cont [6/16] 0.0, 128
  %1092 = vxpose.xlu0.b32.cont [7/16] 0.0, 128
  %1093 = vxpose.xlu0.b32.cont [8/16] 0.0, 128
  %1094 = vxpose.xlu0.b32.cont [9/16] 0.0, 128
  %1095 = vxpose.xlu0.b32.cont [10/16] 0.0, 128
  %1096 = vxpose.xlu0.b32.cont [11/16] 0.0, 128
  %1097 = vxpose.xlu0.b32.cont [12/16] 0.0, 128
  %1098 = vxpose.xlu0.b32.cont [13/16] 0.0, 128
  %1099 = vxpose.xlu0.b32.cont [14/16] 0.0, 128
  %1100 = vxpose.xlu0.b32.cont [15/16] 0.0, 128
  %1101 = vxpose.xlu0.b32.end [16/16] 0.0, 128
  %v1102 = vpop.trf.xlu0
  %v1103 = vpop.trf.xlu0
  %v1104 = vpop.trf.xlu0
  %v1105 = vpop.trf.xlu0
  %v1106 = vpop.trf.xlu0
  %v1107 = vpop.trf.xlu0
  %v1108 = vpop.trf.xlu0
  %v1109 = vpop.trf.xlu0
  %v1110 = vpop.trf.xlu0
  %v1111 = vpop.trf.xlu0
  %v1112 = vpop.trf.xlu0
  %v1113 = vpop.trf.xlu0
  %v1114 = vpop.trf.xlu0
  %v1115 = vpop.trf.xlu0
  %v1116 = vpop.trf.xlu0
  %v1117 = vpop.trf.xlu0
  %v1118 = vpack.c.bf16 %v1075, %v1072
  %v1119 = vpack.c.bf16 %v1102, %v1102
  %v1121 = vsel %vm181, %v1118, 0
  %v1124 = vsel %vm185, %v1119, 0
  %1126 = vmatprep.subr.bf16.mxu0 0
  %1127 = vmatpush1.bf16.msra.mxu0 0
  %1128 = vmatprep.subr.bf16.mxu0 0
  %1129 = vmatpush1.bf16.msra.mxu0 0
  %1130 = vmatprep.subr.bf16.mxu0 0
  %1131 = vmatpush1.bf16.msra.mxu0 0
  %1132 = vmatprep.subr.bf16.mxu0 0
  %1133 = vmatpush1.bf16.msra.mxu0 0
  %1134 = vmatprep.subr.bf16.mxu0 0
  %1135 = vmatpush1.bf16.msra.mxu0 0
  %1136 = vmatprep.subr.bf16.mxu0 0
  %1137 = vmatpush1.bf16.msra.mxu0 0
  %1138 = vmatprep.subr.bf16.mxu0 0
  %1139 = vmatpush1.bf16.msra.mxu0 0
  %1140 = vmatprep.subr.bf16.mxu0 0
  %1141 = vmatpush1.bf16.msra.mxu0 %v1124
  %1142 = vmatprep.subr.bf16.mxu0 0
  %1143 = vmatpush2.bf16.msra.mxu0 0
  %1144 = vmatprep.subr.bf16.mxu0 0
  %1145 = vmatpush2.bf16.msra.mxu0 0
  %1146 = vmatprep.subr.bf16.mxu0 0
  %1147 = vmatpush2.bf16.msra.mxu0 0
  %1148 = vmatprep.subr.bf16.mxu0 0
  %1149 = vmatpush2.bf16.msra.mxu0 0
  %1150 = vmatprep.subr.bf16.mxu0 0
  %1151 = vmatpush2.bf16.msra.mxu0 0
  %1152 = vmatprep.subr.bf16.mxu0 0
  %1153 = vmatpush2.bf16.msra.mxu0 0
  %1154 = vmatprep.subr.bf16.mxu0 0
  %1155 = vmatpush2.bf16.msra.mxu0 0
  %1156 = vmatprep.subr.bf16.mxu0 0
  %1157 = vmatpush2.bf16.msra.mxu0 0
  %1158 = vmatprep.mubr.bf16.mxu0 0
  %1159 = vmatmul.mubr.bf16.gmra.mxu0 %v1121
  %v1160 = vpop.f32.mrf.mxu0
  %v1161 = vadd.f32 0.0, %v1160
  %v1162 = vpop.f32.mrf.mxu0
  %v1163 = vpop.f32.mrf.mxu0
  %v1164 = vadd.f32 0.0, %v1163
  %v1165 = vpop.f32.mrf.mxu0
  %1166 = vdwg.mxu0
  %v1167 = vmul.f32 %v1161, 0.35355338
  %v1168 = vmul.f32 %v1164, 0.35355338
  %v1169 = vadd.f32 %v1167, %v36
  %v1170 = vadd.f32 %v1168, %v37
  %v1171 = vsel %vm234, %v1169, -inf
  %1172 = vmax.xlane.f32.xlu0 %v1171
  %v1173 = vpop.xlane.xlu0 %1172
  %v1174 = vsel %vm234, %v1170, -inf
  %1175 = vmax.xlane.f32.xlu0 %v1174
  %v1176 = vpop.xlane.xlu0 %1175
  %v1177 = vsub.f32 %v1169, %v1173
  %v1178 = vsub.f32 %v1170, %v1176
  %v1179 = vmul.f32 %v1177, 1.442695
  %v1180 = vpow.pop %v1179
  %v1181 = vmul.f32 %v1178, 1.442695
  %v1182 = vpow.pop %v1181
  %v1183 = vsel %vm234, %v1180, 0.0
  %1184 = vadd.xlane.f32.xlu0 %v1183
  %v1185 = vpop.xlane.xlu0 %1184
  %v1186 = vsel %vm234, %v1182, 0.0
  %1187 = vadd.xlane.f32.xlu0 %v1186
  %v1188 = vpop.xlane.xlu0 %1187
  %v1189 = vrcp.pop %v1185
  %v1190 = vrcp.pop %v1188
  %v1191 = vmul.f32 %v1180, %v1189
  %v1192 = vmul.f32 %v1182, %v1190
  %v1193 = vpack.c.bf16 %v1192, %v1191
  %1195 = vrot.lane.b32.xlu0 %v1118, 64
  %v1196 = vpop.permute.xlu0 %1195
  %v1199 = vsel %vm234, %v1193, 0
  %1201 = vmatprep.subr.bf16.mxu0 0
  %1202 = vmatpush1.bf16.msra.mxu0 0
  %1203 = vmatprep.subr.bf16.mxu0 0
  %1204 = vmatpush1.bf16.msra.mxu0 0
  %1205 = vmatprep.subr.bf16.mxu0 0
  %1206 = vmatpush1.bf16.msra.mxu0 0
  %1207 = vmatprep.subr.bf16.mxu0 0
  %1208 = vmatpush1.bf16.msra.mxu0 0
  %1209 = vmatprep.subr.bf16.mxu0 0
  %1210 = vmatpush1.bf16.msra.mxu0 0
  %1211 = vmatprep.subr.bf16.mxu0 0
  %1212 = vmatpush1.bf16.msra.mxu0 0
  %1213 = vmatprep.subr.bf16.mxu0 0
  %1214 = vmatpush1.bf16.msra.mxu0 0
  %1215 = vmatprep.subr.bf16.mxu0 0
  %1216 = vmatpush1.bf16.msra.mxu0 %v1196
  %1217 = vmatprep.subr.bf16.mxu0 0
  %1218 = vmatpush2.bf16.msra.mxu0 0
  %1219 = vmatprep.subr.bf16.mxu0 0
  %1220 = vmatpush2.bf16.msra.mxu0 0
  %1221 = vmatprep.subr.bf16.mxu0 0
  %1222 = vmatpush2.bf16.msra.mxu0 0
  %1223 = vmatprep.subr.bf16.mxu0 0
  %1224 = vmatpush2.bf16.msra.mxu0 0
  %1225 = vmatprep.subr.bf16.mxu0 0
  %1226 = vmatpush2.bf16.msra.mxu0 0
  %1227 = vmatprep.subr.bf16.mxu0 0
  %1228 = vmatpush2.bf16.msra.mxu0 0
  %1229 = vmatprep.subr.bf16.mxu0 0
  %1230 = vmatpush2.bf16.msra.mxu0 0
  %1231 = vmatprep.subr.bf16.mxu0 0
  %1232 = vmatpush2.bf16.msra.mxu0 0
  %1233 = vmatprep.mubr.bf16.mxu0 0
  %1234 = vmatmul.mubr.bf16.gmra.mxu0 %v1199
  %v1235 = vpop.f32.mrf.mxu0
  %v1236 = vadd.f32 0.0, %v1235
  %v1237 = vpop.f32.mrf.mxu0
  %v1238 = vpop.f32.mrf.mxu0
  %v1239 = vadd.f32 0.0, %v1238
  %v1240 = vpop.f32.mrf.mxu0
  %1241 = vdwg.mxu0
  %v1242 = vpack.c.bf16 %v1103, %v1103
  %1243 = vrot.lane.b32.xlu0 %v1118, 120
  %v1244 = vpop.permute.xlu0 %1243
  %v1246 = vsel %vm181, %v1244, 0
  %v1249 = vsel %vm185, %v1242, 0
  %1251 = vmatprep.subr.bf16.mxu0 0
  %1252 = vmatpush1.bf16.msra.mxu0 0
  %1253 = vmatprep.subr.bf16.mxu0 0
  %1254 = vmatpush1.bf16.msra.mxu0 0
  %1255 = vmatprep.subr.bf16.mxu0 0
  %1256 = vmatpush1.bf16.msra.mxu0 0
  %1257 = vmatprep.subr.bf16.mxu0 0
  %1258 = vmatpush1.bf16.msra.mxu0 0
  %1259 = vmatprep.subr.bf16.mxu0 0
  %1260 = vmatpush1.bf16.msra.mxu0 0
  %1261 = vmatprep.subr.bf16.mxu0 0
  %1262 = vmatpush1.bf16.msra.mxu0 0
  %1263 = vmatprep.subr.bf16.mxu0 0
  %1264 = vmatpush1.bf16.msra.mxu0 0
  %1265 = vmatprep.subr.bf16.mxu0 0
  %1266 = vmatpush1.bf16.msra.mxu0 %v1249
  %1267 = vmatprep.subr.bf16.mxu0 0
  %1268 = vmatpush2.bf16.msra.mxu0 0
  %1269 = vmatprep.subr.bf16.mxu0 0
  %1270 = vmatpush2.bf16.msra.mxu0 0
  %1271 = vmatprep.subr.bf16.mxu0 0
  %1272 = vmatpush2.bf16.msra.mxu0 0
  %1273 = vmatprep.subr.bf16.mxu0 0
  %1274 = vmatpush2.bf16.msra.mxu0 0
  %1275 = vmatprep.subr.bf16.mxu0 0
  %1276 = vmatpush2.bf16.msra.mxu0 0
  %1277 = vmatprep.subr.bf16.mxu0 0
  %1278 = vmatpush2.bf16.msra.mxu0 0
  %1279 = vmatprep.subr.bf16.mxu0 0
  %1280 = vmatpush2.bf16.msra.mxu0 0
  %1281 = vmatprep.subr.bf16.mxu0 0
  %1282 = vmatpush2.bf16.msra.mxu0 0
  %1283 = vmatprep.mubr.bf16.mxu0 0
  %1284 = vmatmul.mubr.bf16.gmra.mxu0 %v1246
  %v1285 = vpop.f32.mrf.mxu0
  %v1286 = vadd.f32 0.0, %v1285
  %v1287 = vpop.f32.mrf.mxu0
  %v1288 = vpop.f32.mrf.mxu0
  %v1289 = vadd.f32 0.0, %v1288
  %v1290 = vpop.f32.mrf.mxu0
  %1291 = vdwg.mxu0
  %v1292 = vmul.f32 %v1286, 0.35355338
  %v1293 = vmul.f32 %v1289, 0.35355338
  %v1294 = vadd.f32 %v1292, %v36
  %v1295 = vadd.f32 %v1293, %v37
  %v1296 = vsel %vm234, %v1294, -inf
  %1297 = vmax.xlane.f32.xlu0 %v1296
  %v1298 = vpop.xlane.xlu0 %1297
  %v1299 = vsel %vm234, %v1295, -inf
  %1300 = vmax.xlane.f32.xlu0 %v1299
  %v1301 = vpop.xlane.xlu0 %1300
  %v1302 = vsub.f32 %v1294, %v1298
  %v1303 = vsub.f32 %v1295, %v1301
  %v1304 = vmul.f32 %v1302, 1.442695
  %v1305 = vpow.pop %v1304
  %v1306 = vmul.f32 %v1303, 1.442695
  %v1307 = vpow.pop %v1306
  %v1308 = vsel %vm234, %v1305, 0.0
  %1309 = vadd.xlane.f32.xlu0 %v1308
  %v1310 = vpop.xlane.xlu0 %1309
  %v1311 = vsel %vm234, %v1307, 0.0
  %1312 = vadd.xlane.f32.xlu0 %v1311
  %v1313 = vpop.xlane.xlu0 %1312
  %v1314 = vrcp.pop %v1310
  %v1315 = vrcp.pop %v1313
  %v1316 = vmul.f32 %v1305, %v1314
  %v1317 = vmul.f32 %v1307, %v1315
  %v1318 = vpack.c.bf16 %v1317, %v1316
  %1319 = vrot.lane.b32.xlu0 %v1118, 56
  %v1320 = vpop.permute.xlu0 %1319
  %v1323 = vsel %vm234, %v1318, 0
  %1325 = vmatprep.subr.bf16.mxu0 0
  %1326 = vmatpush1.bf16.msra.mxu0 0
  %1327 = vmatprep.subr.bf16.mxu0 0
  %1328 = vmatpush1.bf16.msra.mxu0 0
  %1329 = vmatprep.subr.bf16.mxu0 0
  %1330 = vmatpush1.bf16.msra.mxu0 0
  %1331 = vmatprep.subr.bf16.mxu0 0
  %1332 = vmatpush1.bf16.msra.mxu0 0
  %1333 = vmatprep.subr.bf16.mxu0 0
  %1334 = vmatpush1.bf16.msra.mxu0 0
  %1335 = vmatprep.subr.bf16.mxu0 0
  %1336 = vmatpush1.bf16.msra.mxu0 0
  %1337 = vmatprep.subr.bf16.mxu0 0
  %1338 = vmatpush1.bf16.msra.mxu0 0
  %1339 = vmatprep.subr.bf16.mxu0 0
  %1340 = vmatpush1.bf16.msra.mxu0 %v1320
  %1341 = vmatprep.subr.bf16.mxu0 0
  %1342 = vmatpush2.bf16.msra.mxu0 0
  %1343 = vmatprep.subr.bf16.mxu0 0
  %1344 = vmatpush2.bf16.msra.mxu0 0
  %1345 = vmatprep.subr.bf16.mxu0 0
  %1346 = vmatpush2.bf16.msra.mxu0 0
  %1347 = vmatprep.subr.bf16.mxu0 0
  %1348 = vmatpush2.bf16.msra.mxu0 0
  %1349 = vmatprep.subr.bf16.mxu0 0
  %1350 = vmatpush2.bf16.msra.mxu0 0
  %1351 = vmatprep.subr.bf16.mxu0 0
  %1352 = vmatpush2.bf16.msra.mxu0 0
  %1353 = vmatprep.subr.bf16.mxu0 0
  %1354 = vmatpush2.bf16.msra.mxu0 0
  %1355 = vmatprep.subr.bf16.mxu0 0
  %1356 = vmatpush2.bf16.msra.mxu0 0
  %1357 = vmatprep.mubr.bf16.mxu0 0
  %1358 = vmatmul.mubr.bf16.gmra.mxu0 %v1323
  %v1359 = vpop.f32.mrf.mxu0
  %v1360 = vadd.f32 0.0, %v1359
  %v1361 = vpop.f32.mrf.mxu0
  %v1362 = vpop.f32.mrf.mxu0
  %v1363 = vadd.f32 0.0, %v1362
  %v1364 = vpop.f32.mrf.mxu0
  %1365 = vdwg.mxu0
  %v1366 = vpack.c.bf16 %v1104, %v1104
  %1367 = vrot.lane.b32.xlu0 %v1118, 112
  %v1368 = vpop.permute.xlu0 %1367
  %v1370 = vsel %vm181, %v1368, 0
  %v1373 = vsel %vm185, %v1366, 0
  %1375 = vmatprep.subr.bf16.mxu0 0
  %1376 = vmatpush1.bf16.msra.mxu0 0
  %1377 = vmatprep.subr.bf16.mxu0 0
  %1378 = vmatpush1.bf16.msra.mxu0 0
  %1379 = vmatprep.subr.bf16.mxu0 0
  %1380 = vmatpush1.bf16.msra.mxu0 0
  %1381 = vmatprep.subr.bf16.mxu0 0
  %1382 = vmatpush1.bf16.msra.mxu0 0
  %1383 = vmatprep.subr.bf16.mxu0 0
  %1384 = vmatpush1.bf16.msra.mxu0 0
  %1385 = vmatprep.subr.bf16.mxu0 0
  %1386 = vmatpush1.bf16.msra.mxu0 0
  %1387 = vmatprep.subr.bf16.mxu0 0
  %1388 = vmatpush1.bf16.msra.mxu0 0
  %1389 = vmatprep.subr.bf16.mxu0 0
  %1390 = vmatpush1.bf16.msra.mxu0 %v1373
  %1391 = vmatprep.subr.bf16.mxu0 0
  %1392 = vmatpush2.bf16.msra.mxu0 0
  %1393 = vmatprep.subr.bf16.mxu0 0
  %1394 = vmatpush2.bf16.msra.mxu0 0
  %1395 = vmatprep.subr.bf16.mxu0 0
  %1396 = vmatpush2.bf16.msra.mxu0 0
  %1397 = vmatprep.subr.bf16.mxu0 0
  %1398 = vmatpush2.bf16.msra.mxu0 0
  %1399 = vmatprep.subr.bf16.mxu0 0
  %1400 = vmatpush2.bf16.msra.mxu0 0
  %1401 = vmatprep.subr.bf16.mxu0 0
  %1402 = vmatpush2.bf16.msra.mxu0 0
  %1403 = vmatprep.subr.bf16.mxu0 0
  %1404 = vmatpush2.bf16.msra.mxu0 0
  %1405 = vmatprep.subr.bf16.mxu0 0
  %1406 = vmatpush2.bf16.msra.mxu0 0
  %1407 = vmatprep.mubr.bf16.mxu0 0
  %1408 = vmatmul.mubr.bf16.gmra.mxu0 %v1370
  %v1409 = vpop.f32.mrf.mxu0
  %v1410 = vadd.f32 0.0, %v1409
  %v1411 = vpop.f32.mrf.mxu0
  %v1412 = vpop.f32.mrf.mxu0
  %v1413 = vadd.f32 0.0, %v1412
  %v1414 = vpop.f32.mrf.mxu0
  %1415 = vdwg.mxu0
  %v1416 = vmul.f32 %v1410, 0.35355338
  %v1417 = vmul.f32 %v1413, 0.35355338
  %v1418 = vadd.f32 %v1416, %v36
  %v1419 = vadd.f32 %v1417, %v37
  %v1420 = vsel %vm234, %v1418, -inf
  %1421 = vmax.xlane.f32.xlu0 %v1420
  %v1422 = vpop.xlane.xlu0 %1421
  %v1423 = vsel %vm234, %v1419, -inf
  %1424 = vmax.xlane.f32.xlu0 %v1423
  %v1425 = vpop.xlane.xlu0 %1424
  %v1426 = vsub.f32 %v1418, %v1422
  %v1427 = vsub.f32 %v1419, %v1425
  %v1428 = vmul.f32 %v1426, 1.442695
  %v1429 = vpow.pop %v1428
  %v1430 = vmul.f32 %v1427, 1.442695
  %v1431 = vpow.pop %v1430
  %v1432 = vsel %vm234, %v1429, 0.0
  %1433 = vadd.xlane.f32.xlu0 %v1432
  %v1434 = vpop.xlane.xlu0 %1433
  %v1435 = vsel %vm234, %v1431, 0.0
  %1436 = vadd.xlane.f32.xlu0 %v1435
  %v1437 = vpop.xlane.xlu0 %1436
  %v1438 = vrcp.pop %v1434
  %v1439 = vrcp.pop %v1437
  %v1440 = vmul.f32 %v1429, %v1438
  %v1441 = vmul.f32 %v1431, %v1439
  %v1442 = vpack.c.bf16 %v1441, %v1440
  %1443 = vrot.lane.b32.xlu0 %v1118, 48
  %v1444 = vpop.permute.xlu0 %1443
  %v1447 = vsel %vm234, %v1442, 0
  %1449 = vmatprep.subr.bf16.mxu0 0
  %1450 = vmatpush1.bf16.msra.mxu0 0
  %1451 = vmatprep.subr.bf16.mxu0 0
  %1452 = vmatpush1.bf16.msra.mxu0 0
  %1453 = vmatprep.subr.bf16.mxu0 0
  %1454 = vmatpush1.bf16.msra.mxu0 0
  %1455 = vmatprep.subr.bf16.mxu0 0
  %1456 = vmatpush1.bf16.msra.mxu0 0
  %1457 = vmatprep.subr.bf16.mxu0 0
  %1458 = vmatpush1.bf16.msra.mxu0 0
  %1459 = vmatprep.subr.bf16.mxu0 0
  %1460 = vmatpush1.bf16.msra.mxu0 0
  %1461 = vmatprep.subr.bf16.mxu0 0
  %1462 = vmatpush1.bf16.msra.mxu0 0
  %1463 = vmatprep.subr.bf16.mxu0 0
  %1464 = vmatpush1.bf16.msra.mxu0 %v1444
  %1465 = vmatprep.subr.bf16.mxu0 0
  %1466 = vmatpush2.bf16.msra.mxu0 0
  %1467 = vmatprep.subr.bf16.mxu0 0
  %1468 = vmatpush2.bf16.msra.mxu0 0
  %1469 = vmatprep.subr.bf16.mxu0 0
  %1470 = vmatpush2.bf16.msra.mxu0 0
  %1471 = vmatprep.subr.bf16.mxu0 0
  %1472 = vmatpush2.bf16.msra.mxu0 0
  %1473 = vmatprep.subr.bf16.mxu0 0
  %1474 = vmatpush2.bf16.msra.mxu0 0
  %1475 = vmatprep.subr.bf16.mxu0 0
  %1476 = vmatpush2.bf16.msra.mxu0 0
  %1477 = vmatprep.subr.bf16.mxu0 0
  %1478 = vmatpush2.bf16.msra.mxu0 0
  %1479 = vmatprep.subr.bf16.mxu0 0
  %1480 = vmatpush2.bf16.msra.mxu0 0
  %1481 = vmatprep.mubr.bf16.mxu0 0
  %1482 = vmatmul.mubr.bf16.gmra.mxu0 %v1447
  %v1483 = vpop.f32.mrf.mxu0
  %v1484 = vadd.f32 0.0, %v1483
  %v1485 = vpop.f32.mrf.mxu0
  %v1486 = vpop.f32.mrf.mxu0
  %v1487 = vadd.f32 0.0, %v1486
  %v1488 = vpop.f32.mrf.mxu0
  %1489 = vdwg.mxu0
  %v1490 = vpack.c.bf16 %v1105, %v1105
  %1491 = vrot.lane.b32.xlu0 %v1118, 104
  %v1492 = vpop.permute.xlu0 %1491
  %v1494 = vsel %vm181, %v1492, 0
  %v1497 = vsel %vm185, %v1490, 0
  %1499 = vmatprep.subr.bf16.mxu0 0
  %1500 = vmatpush1.bf16.msra.mxu0 0
  %1501 = vmatprep.subr.bf16.mxu0 0
  %1502 = vmatpush1.bf16.msra.mxu0 0
  %1503 = vmatprep.subr.bf16.mxu0 0
  %1504 = vmatpush1.bf16.msra.mxu0 0
  %1505 = vmatprep.subr.bf16.mxu0 0
  %1506 = vmatpush1.bf16.msra.mxu0 0
  %1507 = vmatprep.subr.bf16.mxu0 0
  %1508 = vmatpush1.bf16.msra.mxu0 0
  %1509 = vmatprep.subr.bf16.mxu0 0
  %1510 = vmatpush1.bf16.msra.mxu0 0
  %1511 = vmatprep.subr.bf16.mxu0 0
  %1512 = vmatpush1.bf16.msra.mxu0 0
  %1513 = vmatprep.subr.bf16.mxu0 0
  %1514 = vmatpush1.bf16.msra.mxu0 %v1497
  %1515 = vmatprep.subr.bf16.mxu0 0
  %1516 = vmatpush2.bf16.msra.mxu0 0
  %1517 = vmatprep.subr.bf16.mxu0 0
  %1518 = vmatpush2.bf16.msra.mxu0 0
  %1519 = vmatprep.subr.bf16.mxu0 0
  %1520 = vmatpush2.bf16.msra.mxu0 0
  %1521 = vmatprep.subr.bf16.mxu0 0
  %1522 = vmatpush2.bf16.msra.mxu0 0
  %1523 = vmatprep.subr.bf16.mxu0 0
  %1524 = vmatpush2.bf16.msra.mxu0 0
  %1525 = vmatprep.subr.bf16.mxu0 0
  %1526 = vmatpush2.bf16.msra.mxu0 0
  %1527 = vmatprep.subr.bf16.mxu0 0
  %1528 = vmatpush2.bf16.msra.mxu0 0
  %1529 = vmatprep.subr.bf16.mxu0 0
  %1530 = vmatpush2.bf16.msra.mxu0 0
  %1531 = vmatprep.mubr.bf16.mxu0 0
  %1532 = vmatmul.mubr.bf16.gmra.mxu0 %v1494
  %v1533 = vpop.f32.mrf.mxu0
  %v1534 = vadd.f32 0.0, %v1533
  %v1535 = vpop.f32.mrf.mxu0
  %v1536 = vpop.f32.mrf.mxu0
  %v1537 = vadd.f32 0.0, %v1536
  %v1538 = vpop.f32.mrf.mxu0
  %1539 = vdwg.mxu0
  %v1540 = vmul.f32 %v1534, 0.35355338
  %v1541 = vmul.f32 %v1537, 0.35355338
  %v1542 = vadd.f32 %v1540, %v36
  %v1543 = vadd.f32 %v1541, %v37
  %v1544 = vsel %vm234, %v1542, -inf
  %1545 = vmax.xlane.f32.xlu0 %v1544
  %v1546 = vpop.xlane.xlu0 %1545
  %v1547 = vsel %vm234, %v1543, -inf
  %1548 = vmax.xlane.f32.xlu0 %v1547
  %v1549 = vpop.xlane.xlu0 %1548
  %v1550 = vsub.f32 %v1542, %v1546
  %v1551 = vsub.f32 %v1543, %v1549
  %v1552 = vmul.f32 %v1550, 1.442695
  %v1553 = vpow.pop %v1552
  %v1554 = vmul.f32 %v1551, 1.442695
  %v1555 = vpow.pop %v1554
  %v1556 = vsel %vm234, %v1553, 0.0
  %1557 = vadd.xlane.f32.xlu0 %v1556
  %v1558 = vpop.xlane.xlu0 %1557
  %v1559 = vsel %vm234, %v1555, 0.0
  %1560 = vadd.xlane.f32.xlu0 %v1559
  %v1561 = vpop.xlane.xlu0 %1560
  %v1562 = vrcp.pop %v1558
  %v1563 = vrcp.pop %v1561
  %v1564 = vmul.f32 %v1553, %v1562
  %v1565 = vmul.f32 %v1555, %v1563
  %v1566 = vpack.c.bf16 %v1565, %v1564
  %1567 = vrot.lane.b32.xlu0 %v1118, 40
  %v1568 = vpop.permute.xlu0 %1567
  %v1571 = vsel %vm234, %v1566, 0
  %1573 = vmatprep.subr.bf16.mxu0 0
  %1574 = vmatpush1.bf16.msra.mxu0 0
  %1575 = vmatprep.subr.bf16.mxu0 0
  %1576 = vmatpush1.bf16.msra.mxu0 0
  %1577 = vmatprep.subr.bf16.mxu0 0
  %1578 = vmatpush1.bf16.msra.mxu0 0
  %1579 = vmatprep.subr.bf16.mxu0 0
  %1580 = vmatpush1.bf16.msra.mxu0 0
  %1581 = vmatprep.subr.bf16.mxu0 0
  %1582 = vmatpush1.bf16.msra.mxu0 0
  %1583 = vmatprep.subr.bf16.mxu0 0
  %1584 = vmatpush1.bf16.msra.mxu0 0
  %1585 = vmatprep.subr.bf16.mxu0 0
  %1586 = vmatpush1.bf16.msra.mxu0 0
  %1587 = vmatprep.subr.bf16.mxu0 0
  %1588 = vmatpush1.bf16.msra.mxu0 %v1568
  %1589 = vmatprep.subr.bf16.mxu0 0
  %1590 = vmatpush2.bf16.msra.mxu0 0
  %1591 = vmatprep.subr.bf16.mxu0 0
  %1592 = vmatpush2.bf16.msra.mxu0 0
  %1593 = vmatprep.subr.bf16.mxu0 0
  %1594 = vmatpush2.bf16.msra.mxu0 0
  %1595 = vmatprep.subr.bf16.mxu0 0
  %1596 = vmatpush2.bf16.msra.mxu0 0
  %1597 = vmatprep.subr.bf16.mxu0 0
  %1598 = vmatpush2.bf16.msra.mxu0 0
  %1599 = vmatprep.subr.bf16.mxu0 0
  %1600 = vmatpush2.bf16.msra.mxu0 0
  %1601 = vmatprep.subr.bf16.mxu0 0
  %1602 = vmatpush2.bf16.msra.mxu0 0
  %1603 = vmatprep.subr.bf16.mxu0 0
  %1604 = vmatpush2.bf16.msra.mxu0 0
  %1605 = vmatprep.mubr.bf16.mxu0 0
  %1606 = vmatmul.mubr.bf16.gmra.mxu0 %v1571
  %v1607 = vpop.f32.mrf.mxu0
  %v1608 = vadd.f32 0.0, %v1607
  %v1609 = vpop.f32.mrf.mxu0
  %v1610 = vpop.f32.mrf.mxu0
  %v1611 = vadd.f32 0.0, %v1610
  %v1612 = vpop.f32.mrf.mxu0
  %1613 = vdwg.mxu0
  %1616 = vrot.lane.b32.xlu0 %v1360, 8
  %v1617 = vpop.permute.xlu0 %1616
  %1618 = vrot.lane.b32.xlu0 %v1363, 8
  %v1619 = vpop.permute.xlu0 %1618
  %1624 = vrot.lane.b32.xlu0 %v1484, 16
  %v1625 = vpop.permute.xlu0 %1624
  %1626 = vrot.lane.b32.xlu0 %v1487, 16
  %v1627 = vpop.permute.xlu0 %1626
  %1632 = vrot.lane.b32.xlu0 %v1608, 24
  %v1633 = vpop.permute.xlu0 %1632
  %1634 = vrot.lane.b32.xlu0 %v1611, 24
  %v1635 = vpop.permute.xlu0 %1634
  %v1638 = vsel %vm181, %v1236, %v1617
  %v1639 = vsel %vm181, %v1239, %v1619
  %v1640 = vsel %vm234, %v1638, %v1625
  %v1641 = vsel %vm234, %v1639, %v1627
  %v1642 = vsel %vm706, %v1640, %v1633
  %v1643 = vsel %vm706, %v1641, %v1635
  %v1644 = vpack.c.bf16 %v1643, %v1642
  %1645 = vrot.lane.b32.xlu0 %v1030, 32
  %v1646 = vpop.permute.xlu0 %1645
  %1647 = vrot.lane.b32.xlu0 %v1031, 32
  %v1648 = vpop.permute.xlu0 %1647
  %v1652 = vsel %vm38, %v1644, 0
  %1654 = vmatprep.subr.bf16.mxu0 0
  %1655 = vmatpush1.bf16.msra.mxu0 0
  %1656 = vmatprep.subr.bf16.mxu0 0
  %1657 = vmatpush1.bf16.msra.mxu0 0
  %1658 = vmatprep.subr.bf16.mxu0 0
  %1659 = vmatpush1.bf16.msra.mxu0 0
  %1660 = vmatprep.subr.bf16.mxu0 0
  %1661 = vmatpush1.bf16.msra.mxu0 0
  %1662 = vmatprep.subr.bf16.mxu0 0
  %1663 = vmatpush1.bf16.msra.mxu0 0
  %1664 = vmatprep.subr.bf16.mxu0 0
  %1665 = vmatpush1.bf16.msra.mxu0 0
  %1666 = vmatprep.subr.bf16.mxu0 0
  %1667 = vmatpush1.bf16.msra.mxu0 %v1648
  %1668 = vmatprep.subr.bf16.mxu0 0
  %1669 = vmatpush1.bf16.msra.mxu0 %v1646
  %1670 = vmatprep.subr.bf16.mxu0 0
  %1671 = vmatpush2.bf16.msra.mxu0 0
  %1672 = vmatprep.subr.bf16.mxu0 0
  %1673 = vmatpush2.bf16.msra.mxu0 0
  %1674 = vmatprep.subr.bf16.mxu0 0
  %1675 = vmatpush2.bf16.msra.mxu0 0
  %1676 = vmatprep.subr.bf16.mxu0 0
  %1677 = vmatpush2.bf16.msra.mxu0 0
  %1678 = vmatprep.subr.bf16.mxu0 0
  %1679 = vmatpush2.bf16.msra.mxu0 0
  %1680 = vmatprep.subr.bf16.mxu0 0
  %1681 = vmatpush2.bf16.msra.mxu0 0
  %1682 = vmatprep.subr.bf16.mxu0 0
  %1683 = vmatpush2.bf16.msra.mxu0 0
  %1684 = vmatprep.subr.bf16.mxu0 0
  %1685 = vmatpush2.bf16.msra.mxu0 0
  %1686 = vmatprep.mubr.bf16.mxu0 0
  %1687 = vmatmul.mubr.bf16.gmra.mxu0 %v1652
  %v1688 = vpop.f32.mrf.mxu0
  %v1689 = vadd.f32 0.0, %v1688
  %v1690 = vpop.f32.mrf.mxu0
  %v1691 = vpop.f32.mrf.mxu0
  %v1692 = vadd.f32 0.0, %v1691
  %v1693 = vpop.f32.mrf.mxu0
  %1694 = vdwg.mxu0
  %v1695 = vadd.f32 %v977, %v1689
  %v1696 = vadd.f32 %v978, %v1692
  %v1697 = vsel %vm38, %v1695, 0.0
  %1698 = vadd.xlane.f32.xlu0 %v1697
  %v1699 = vpop.xlane.xlu0 %1698
  %v1700 = vsel %vm38, %v1696, 0.0
  %1701 = vadd.xlane.f32.xlu0 %v1700
  %v1702 = vpop.xlane.xlu0 %1701
  %v1703 = vmul.f32 %v1699, %v45
  %v1704 = vmul.f32 %v1702, %v45
  %v1705 = vsub.f32 %v1695, %v1703
  %v1706 = vsub.f32 %v1696, %v1704
  %v1707 = vmul.f32 %v1705, %v1705
  %v1708 = vmul.f32 %v1706, %v1706
  %v1709 = vsel %vm38, %v1707, 0.0
  %1710 = vadd.xlane.f32.xlu0 %v1709
  %v1711 = vpop.xlane.xlu0 %1710
  %v1712 = vsel %vm38, %v1708, 0.0
  %1713 = vadd.xlane.f32.xlu0 %v1712
  %v1714 = vpop.xlane.xlu0 %1713
  %v1715 = vmul.f32 %v1711, %v45
  %v1716 = vmul.f32 %v1714, %v45
  %v1717 = vadd.f32 %v1715, 1e-05
  %v1718 = vadd.f32 %v1716, 1e-05
  %v1719 = vrsqrt.pop %v1717
  %v1720 = vrsqrt.pop %v1718
  %v1721 = vmul.f32 %v1705, %v1719
  %v1722 = vmul.f32 %v1706, %v1720
  %v1723 = vlaneseq
  %v1724 = vshrl.u32 %v1723, 7
  %v1725 = vsub.s32 0, %v1724
  %v1726 = vrot.slane %v31, %v1725
  %v1727 = vmul.f32 %v1721, %v1726
  %v1728 = vmul.f32 %v1722, %v1726
  %v1729 = vlaneseq
  %v1730 = vshrl.u32 %v1729, 7
  %v1731 = vsub.s32 1, %v1730
  %v1732 = vrot.slane %v31, %v1731
  %v1733 = vadd.f32 %v1727, %v1732
  %v1734 = vadd.f32 %v1728, %v1732
  %v1735 = vpack.c.bf16 %v1734, %v1733
  %v1736 = vld [vmem:[%s6 + $0xc] sm:$0xf]
  %v1737 = vld [vmem:[%s6 + $0x38] sm:$0xf]
  %v1738 = vld [vmem:[%s6 + $0x64] sm:$0xf]
  %v1739 = vld [vmem:[%s6 + $0x90] sm:$0xf]
  %v1740 = vlaneseq
  %v1741 = vshrl.u32 %v1740, 7
  %v1742 = vsub.s32 2, %v1741
  %v1743 = vrot.slane %v31, %v1742
  %v1748 = vunpack.c.l.b16 %v1736
  %v1749 = vunpack.c.l.b16 %v1737
  %v1750 = vunpack.c.l.b16 %v1738
  %v1751 = vunpack.c.l.b16 %v1739
  %v1752 = vpack.c.b16 %v1749, %v1748
  %v1753 = vpack.c.b16 %v1751, %v1750
  %v1757 = vsel %vm38, %v1735, 0
  %1759 = vmatprep.subr.bf16.mxu0 0
  %1760 = vmatpush1.bf16.msra.mxu0 0
  %1761 = vmatprep.subr.bf16.mxu0 0
  %1762 = vmatpush1.bf16.msra.mxu0 0
  %1763 = vmatprep.subr.bf16.mxu0 0
  %1764 = vmatpush1.bf16.msra.mxu0 0
  %1765 = vmatprep.subr.bf16.mxu0 0
  %1766 = vmatpush1.bf16.msra.mxu0 0
  %1767 = vmatprep.subr.bf16.mxu0 0
  %1768 = vmatpush1.bf16.msra.mxu0 0
  %1769 = vmatprep.subr.bf16.mxu0 0
  %1770 = vmatpush1.bf16.msra.mxu0 0
  %1771 = vmatprep.subr.bf16.mxu0 0
  %1772 = vmatpush1.bf16.msra.mxu0 %v1753
  %1773 = vmatprep.subr.bf16.mxu0 0
  %1774 = vmatpush1.bf16.msra.mxu0 %v1752
  %1775 = vmatprep.subr.bf16.mxu0 0
  %1776 = vmatpush2.bf16.msra.mxu0 0
  %1777 = vmatprep.subr.bf16.mxu0 0
  %1778 = vmatpush2.bf16.msra.mxu0 0
  %1779 = vmatprep.subr.bf16.mxu0 0
  %1780 = vmatpush2.bf16.msra.mxu0 0
  %1781 = vmatprep.subr.bf16.mxu0 0
  %1782 = vmatpush2.bf16.msra.mxu0 0
  %1783 = vmatprep.subr.bf16.mxu0 0
  %1784 = vmatpush2.bf16.msra.mxu0 0
  %1785 = vmatprep.subr.bf16.mxu0 0
  %1786 = vmatpush2.bf16.msra.mxu0 0
  %1787 = vmatprep.subr.bf16.mxu0 0
  %1788 = vmatpush2.bf16.msra.mxu0 0
  %1789 = vmatprep.subr.bf16.mxu0 0
  %1790 = vmatpush2.bf16.msra.mxu0 0
  %1791 = vmatprep.mubr.bf16.mxu0 0
  %1792 = vmatmul.mubr.bf16.gmra.mxu0 %v1757
  %v1793 = vpop.f32.mrf.mxu0
  %v1794 = vadd.f32 %v1743, %v1793
  %v1795 = vpop.f32.mrf.mxu0
  %v1796 = vpop.f32.mrf.mxu0
  %v1797 = vadd.f32 %v1743, %v1796
  %v1798 = vpop.f32.mrf.mxu0
  %1799 = vdwg.mxu0
  %v1800 = vmax.f32 %v1794, 0.0
  %v1801 = vmax.f32 %v1797, 0.0
  %v1802 = vpack.c.bf16 %v1801, %v1800
  %v1803 = vlaneseq
  %v1804 = vshrl.u32 %v1803, 7
  %v1805 = vsub.s32 3, %v1804
  %v1806 = vrot.slane %v31, %v1805
  %1807 = vrot.lane.b32.xlu0 %v920, 96
  %v1808 = vpop.permute.xlu0 %1807
  %1809 = vrot.lane.b32.xlu0 %v921, 96
  %v1810 = vpop.permute.xlu0 %1809
  %1811 = vrot.lane.b32.xlu0 %v922, 96
  %v1812 = vpop.permute.xlu0 %1811
  %1813 = vrot.lane.b32.xlu0 %v923, 96
  %v1814 = vpop.permute.xlu0 %1813
  %1815 = vrot.lane.b32.xlu0 %v924, 96
  %v1816 = vpop.permute.xlu0 %1815
  %1817 = vrot.lane.b32.xlu0 %v925, 96
  %v1818 = vpop.permute.xlu0 %1817
  %1819 = vrot.lane.b32.xlu0 %v926, 96
  %v1820 = vpop.permute.xlu0 %1819
  %1821 = vrot.lane.b32.xlu0 %v927, 96
  %v1822 = vpop.permute.xlu0 %1821
  %1831 = vmatprep.subr.bf16.mxu0 0
  %1832 = vmatpush1.bf16.msra.mxu0 %v1822
  %1833 = vmatprep.subr.bf16.mxu0 0
  %1834 = vmatpush1.bf16.msra.mxu0 %v1820
  %1835 = vmatprep.subr.bf16.mxu0 0
  %1836 = vmatpush1.bf16.msra.mxu0 %v1818
  %1837 = vmatprep.subr.bf16.mxu0 0
  %1838 = vmatpush1.bf16.msra.mxu0 %v1816
  %1839 = vmatprep.subr.bf16.mxu0 0
  %1840 = vmatpush1.bf16.msra.mxu0 %v1814
  %1841 = vmatprep.subr.bf16.mxu0 0
  %1842 = vmatpush1.bf16.msra.mxu0 %v1812
  %1843 = vmatprep.subr.bf16.mxu0 0
  %1844 = vmatpush1.bf16.msra.mxu0 %v1810
  %1845 = vmatprep.subr.bf16.mxu0 0
  %1846 = vmatpush1.bf16.msra.mxu0 %v1808
  %1847 = vmatprep.subr.bf16.mxu0 0
  %1848 = vmatpush2.bf16.msra.mxu0 0
  %1849 = vmatprep.subr.bf16.mxu0 0
  %1850 = vmatpush2.bf16.msra.mxu0 0
  %1851 = vmatprep.subr.bf16.mxu0 0
  %1852 = vmatpush2.bf16.msra.mxu0 0
  %1853 = vmatprep.subr.bf16.mxu0 0
  %1854 = vmatpush2.bf16.msra.mxu0 0
  %1855 = vmatprep.subr.bf16.mxu0 0
  %1856 = vmatpush2.bf16.msra.mxu0 0
  %1857 = vmatprep.subr.bf16.mxu0 0
  %1858 = vmatpush2.bf16.msra.mxu0 0
  %1859 = vmatprep.subr.bf16.mxu0 0
  %1860 = vmatpush2.bf16.msra.mxu0 0
  %1861 = vmatprep.subr.bf16.mxu0 0
  %1862 = vmatpush2.bf16.msra.mxu0 0
  %1863 = vmatprep.mubr.bf16.mxu0 0
  %1864 = vmatmul.mubr.bf16.gmra.mxu0 %v1802
  %v1865 = vpop.f32.mrf.mxu0
  %v1866 = vadd.f32 %v1806, %v1865
  %v1867 = vpop.f32.mrf.mxu0
  %v1868 = vpop.f32.mrf.mxu0
  %v1869 = vadd.f32 %v1806, %v1868
  %v1870 = vpop.f32.mrf.mxu0
  %1871 = vdwg.mxu0
  %v1872 = vadd.f32 %v1695, %v1866
  %v1873 = vadd.f32 %v1696, %v1869
  %v1874 = vld [vmem:[%s1] sm:$0xff]
  %v1875 = vld [vmem:[%s1 + $0x8] sm:$0xff]
  %v1876 = vld [vmem:[%s3] sm:$0xff]
  %v1877 = vld [vmem:[%s3 + $0x8] sm:$0xff]
  %v1878 = vld [vmem:[%s4] sm:$0xff]
  %v1879 = vld [vmem:[%s4 + $0x8] sm:$0xff]
  %v1880 = vsel %vm38, %v1874, 0.0
  %1881 = vadd.xlane.f32.xlu0 %v1880
  %v1882 = vpop.xlane.xlu0 %1881
  %v1883 = vsel %vm38, %v1875, 0.0
  %1884 = vadd.xlane.f32.xlu0 %v1883
  %v1885 = vpop.xlane.xlu0 %1884
  %v1886 = vmul.f32 %v1882, %v45
  %v1887 = vmul.f32 %v1885, %v45
  %v1888 = vsub.f32 %v1874, %v1886
  %v1889 = vsub.f32 %v1875, %v1887
  %v1890 = vmul.f32 %v1888, %v1888
  %v1891 = vmul.f32 %v1889, %v1889
  %v1892 = vsel %vm38, %v1890, 0.0
  %1893 = vadd.xlane.f32.xlu0 %v1892
  %v1894 = vpop.xlane.xlu0 %1893
  %v1895 = vsel %vm38, %v1891, 0.0
  %1896 = vadd.xlane.f32.xlu0 %v1895
  %v1897 = vpop.xlane.xlu0 %1896
  %v1898 = vmul.f32 %v1894, %v45
  %v1899 = vmul.f32 %v1897, %v45
  %v1900 = vadd.f32 %v1898, 1e-05
  %v1901 = vadd.f32 %v1899, 1e-05
  %v1902 = vrsqrt.pop %v1900
  %v1903 = vrsqrt.pop %v1901
  %v1904 = vmul.f32 %v1888, %v1902
  %v1905 = vmul.f32 %v1889, %v1903
  %v1906 = vlaneseq
  %v1907 = vshrl.u32 %v1906, 7
  %v1908 = vsub.s32 4, %v1907
  %v1909 = vrot.slane %v31, %v1908
  %v1910 = vmul.f32 %v1904, %v1909
  %v1911 = vmul.f32 %v1905, %v1909
  %v1912 = vlaneseq
  %v1913 = vshrl.u32 %v1912, 7
  %v1914 = vsub.s32 5, %v1913
  %v1915 = vrot.slane %v31, %v1914
  %v1916 = vadd.f32 %v1910, %v1915
  %v1917 = vadd.f32 %v1911, %v1915
  %v1918 = vld [vmem:[%s6 + $0x10] sm:$0xf]
  %v1919 = vld [vmem:[%s6 + $0x3c] sm:$0xf]
  %v1920 = vld [vmem:[%s6 + $0x68] sm:$0xf]
  %v1921 = vld [vmem:[%s6 + $0x94] sm:$0xf]
  %v1922 = vpack.c.bf16 %v1917, %v1916
  %v1927 = vunpack.c.l.b16 %v1918
  %v1928 = vunpack.c.l.b16 %v1919
  %v1929 = vunpack.c.l.b16 %v1920
  %v1930 = vunpack.c.l.b16 %v1921
  %v1931 = vpack.c.b16 %v1928, %v1927
  %v1932 = vpack.c.b16 %v1930, %v1929
  %v1936 = vsel %vm38, %v1922, 0
  %1938 = vmatprep.subr.bf16.mxu0 0
  %1939 = vmatpush1.bf16.msra.mxu0 0
  %1940 = vmatprep.subr.bf16.mxu0 0
  %1941 = vmatpush1.bf16.msra.mxu0 0
  %1942 = vmatprep.subr.bf16.mxu0 0
  %1943 = vmatpush1.bf16.msra.mxu0 0
  %1944 = vmatprep.subr.bf16.mxu0 0
  %1945 = vmatpush1.bf16.msra.mxu0 0
  %1946 = vmatprep.subr.bf16.mxu0 0
  %1947 = vmatpush1.bf16.msra.mxu0 0
  %1948 = vmatprep.subr.bf16.mxu0 0
  %1949 = vmatpush1.bf16.msra.mxu0 0
  %1950 = vmatprep.subr.bf16.mxu0 0
  %1951 = vmatpush1.bf16.msra.mxu0 %v1932
  %1952 = vmatprep.subr.bf16.mxu0 0
  %1953 = vmatpush1.bf16.msra.mxu0 %v1931
  %1954 = vmatprep.subr.bf16.mxu0 0
  %1955 = vmatpush2.bf16.msra.mxu0 0
  %1956 = vmatprep.subr.bf16.mxu0 0
  %1957 = vmatpush2.bf16.msra.mxu0 0
  %1958 = vmatprep.subr.bf16.mxu0 0
  %1959 = vmatpush2.bf16.msra.mxu0 0
  %1960 = vmatprep.subr.bf16.mxu0 0
  %1961 = vmatpush2.bf16.msra.mxu0 0
  %1962 = vmatprep.subr.bf16.mxu0 0
  %1963 = vmatpush2.bf16.msra.mxu0 0
  %1964 = vmatprep.subr.bf16.mxu0 0
  %1965 = vmatpush2.bf16.msra.mxu0 0
  %1966 = vmatprep.subr.bf16.mxu0 0
  %1967 = vmatpush2.bf16.msra.mxu0 0
  %1968 = vmatprep.subr.bf16.mxu0 0
  %1969 = vmatpush2.bf16.msra.mxu0 0
  %1970 = vmatprep.mubr.bf16.mxu0 0
  %1971 = vmatmul.mubr.bf16.gmra.mxu0 %v1936
  %v1972 = vpop.f32.mrf.mxu0
  %v1973 = vadd.f32 0.0, %v1972
  %v1974 = vpop.f32.mrf.mxu0
  %v1975 = vpop.f32.mrf.mxu0
  %v1976 = vadd.f32 0.0, %v1975
  %v1977 = vpop.f32.mrf.mxu0
  %1978 = vdwg.mxu0
  %1981 = vrot.lane.b32.xlu0 %v1973, 96
  %v1982 = vpop.permute.xlu0 %1981
  %1983 = vrot.lane.b32.xlu0 %v1976, 96
  %v1984 = vpop.permute.xlu0 %1983
  %1987 = vxpose.xlu0.b32.start [1/16] %v1982, 128
  %1988 = vxpose.xlu0.b32.cont [2/16] %v1984, 128
  %1989 = vxpose.xlu0.b32.cont [3/16] 0.0, 128
  %1990 = vxpose.xlu0.b32.cont [4/16] 0.0, 128
  %1991 = vxpose.xlu0.b32.cont [5/16] 0.0, 128
  %1992 = vxpose.xlu0.b32.cont [6/16] 0.0, 128
  %1993 = vxpose.xlu0.b32.cont [7/16] 0.0, 128
  %1994 = vxpose.xlu0.b32.cont [8/16] 0.0, 128
  %1995 = vxpose.xlu0.b32.cont [9/16] 0.0, 128
  %1996 = vxpose.xlu0.b32.cont [10/16] 0.0, 128
  %1997 = vxpose.xlu0.b32.cont [11/16] 0.0, 128
  %1998 = vxpose.xlu0.b32.cont [12/16] 0.0, 128
  %1999 = vxpose.xlu0.b32.cont [13/16] 0.0, 128
  %2000 = vxpose.xlu0.b32.cont [14/16] 0.0, 128
  %2001 = vxpose.xlu0.b32.cont [15/16] 0.0, 128
  %2002 = vxpose.xlu0.b32.end [16/16] 0.0, 128
  %v2003 = vpop.trf.xlu0
  %v2004 = vpop.trf.xlu0
  %v2005 = vpop.trf.xlu0
  %v2006 = vpop.trf.xlu0
  %v2007 = vpop.trf.xlu0
  %v2008 = vpop.trf.xlu0
  %v2009 = vpop.trf.xlu0
  %v2010 = vpop.trf.xlu0
  %v2011 = vpop.trf.xlu0
  %v2012 = vpop.trf.xlu0
  %v2013 = vpop.trf.xlu0
  %v2014 = vpop.trf.xlu0
  %v2015 = vpop.trf.xlu0
  %v2016 = vpop.trf.xlu0
  %v2017 = vpop.trf.xlu0
  %v2018 = vpop.trf.xlu0
  %v2019 = vpack.c.bf16 %v1976, %v1973
  %v2020 = vpack.c.bf16 %v2003, %v2003
  %v2022 = vsel %vm181, %v2019, 0
  %v2025 = vsel %vm185, %v2020, 0
  %2027 = vmatprep.subr.bf16.mxu0 0
  %2028 = vmatpush1.bf16.msra.mxu0 0
  %2029 = vmatprep.subr.bf16.mxu0 0
  %2030 = vmatpush1.bf16.msra.mxu0 0
  %2031 = vmatprep.subr.bf16.mxu0 0
  %2032 = vmatpush1.bf16.msra.mxu0 0
  %2033 = vmatprep.subr.bf16.mxu0 0
  %2034 = vmatpush1.bf16.msra.mxu0 0
  %2035 = vmatprep.subr.bf16.mxu0 0
  %2036 = vmatpush1.bf16.msra.mxu0 0
  %2037 = vmatprep.subr.bf16.mxu0 0
  %2038 = vmatpush1.bf16.msra.mxu0 0
  %2039 = vmatprep.subr.bf16.mxu0 0
  %2040 = vmatpush1.bf16.msra.mxu0 0
  %2041 = vmatprep.subr.bf16.mxu0 0
  %2042 = vmatpush1.bf16.msra.mxu0 %v2025
  %2043 = vmatprep.subr.bf16.mxu0 0
  %2044 = vmatpush2.bf16.msra.mxu0 0
  %2045 = vmatprep.subr.bf16.mxu0 0
  %2046 = vmatpush2.bf16.msra.mxu0 0
  %2047 = vmatprep.subr.bf16.mxu0 0
  %2048 = vmatpush2.bf16.msra.mxu0 0
  %2049 = vmatprep.subr.bf16.mxu0 0
  %2050 = vmatpush2.bf16.msra.mxu0 0
  %2051 = vmatprep.subr.bf16.mxu0 0
  %2052 = vmatpush2.bf16.msra.mxu0 0
  %2053 = vmatprep.subr.bf16.mxu0 0
  %2054 = vmatpush2.bf16.msra.mxu0 0
  %2055 = vmatprep.subr.bf16.mxu0 0
  %2056 = vmatpush2.bf16.msra.mxu0 0
  %2057 = vmatprep.subr.bf16.mxu0 0
  %2058 = vmatpush2.bf16.msra.mxu0 0
  %2059 = vmatprep.mubr.bf16.mxu0 0
  %2060 = vmatmul.mubr.bf16.gmra.mxu0 %v2022
  %v2061 = vpop.f32.mrf.mxu0
  %v2062 = vadd.f32 0.0, %v2061
  %v2063 = vpop.f32.mrf.mxu0
  %v2064 = vpop.f32.mrf.mxu0
  %v2065 = vadd.f32 0.0, %v2064
  %v2066 = vpop.f32.mrf.mxu0
  %2067 = vdwg.mxu0
  %v2068 = vmul.f32 %v2062, 0.35355338
  %v2069 = vmul.f32 %v2065, 0.35355338
  %v2070 = vadd.f32 %v2068, %v1876
  %v2071 = vadd.f32 %v2069, %v1877
  %v2072 = vsel %vm234, %v2070, -inf
  %2073 = vmax.xlane.f32.xlu0 %v2072
  %v2074 = vpop.xlane.xlu0 %2073
  %v2075 = vsel %vm234, %v2071, -inf
  %2076 = vmax.xlane.f32.xlu0 %v2075
  %v2077 = vpop.xlane.xlu0 %2076
  %v2078 = vsub.f32 %v2070, %v2074
  %v2079 = vsub.f32 %v2071, %v2077
  %v2080 = vmul.f32 %v2078, 1.442695
  %v2081 = vpow.pop %v2080
  %v2082 = vmul.f32 %v2079, 1.442695
  %v2083 = vpow.pop %v2082
  %v2084 = vsel %vm234, %v2081, 0.0
  %2085 = vadd.xlane.f32.xlu0 %v2084
  %v2086 = vpop.xlane.xlu0 %2085
  %v2087 = vsel %vm234, %v2083, 0.0
  %2088 = vadd.xlane.f32.xlu0 %v2087
  %v2089 = vpop.xlane.xlu0 %2088
  %v2090 = vrcp.pop %v2086
  %v2091 = vrcp.pop %v2089
  %v2092 = vmul.f32 %v2081, %v2090
  %v2093 = vmul.f32 %v2083, %v2091
  %v2094 = vpack.c.bf16 %v2093, %v2092
  %2096 = vrot.lane.b32.xlu0 %v2019, 64
  %v2097 = vpop.permute.xlu0 %2096
  %v2100 = vsel %vm234, %v2094, 0
  %2102 = vmatprep.subr.bf16.mxu0 0
  %2103 = vmatpush1.bf16.msra.mxu0 0
  %2104 = vmatprep.subr.bf16.mxu0 0
  %2105 = vmatpush1.bf16.msra.mxu0 0
  %2106 = vmatprep.subr.bf16.mxu0 0
  %2107 = vmatpush1.bf16.msra.mxu0 0
  %2108 = vmatprep.subr.bf16.mxu0 0
  %2109 = vmatpush1.bf16.msra.mxu0 0
  %2110 = vmatprep.subr.bf16.mxu0 0
  %2111 = vmatpush1.bf16.msra.mxu0 0
  %2112 = vmatprep.subr.bf16.mxu0 0
  %2113 = vmatpush1.bf16.msra.mxu0 0
  %2114 = vmatprep.subr.bf16.mxu0 0
  %2115 = vmatpush1.bf16.msra.mxu0 0
  %2116 = vmatprep.subr.bf16.mxu0 0
  %2117 = vmatpush1.bf16.msra.mxu0 %v2097
  %2118 = vmatprep.subr.bf16.mxu0 0
  %2119 = vmatpush2.bf16.msra.mxu0 0
  %2120 = vmatprep.subr.bf16.mxu0 0
  %2121 = vmatpush2.bf16.msra.mxu0 0
  %2122 = vmatprep.subr.bf16.mxu0 0
  %2123 = vmatpush2.bf16.msra.mxu0 0
  %2124 = vmatprep.subr.bf16.mxu0 0
  %2125 = vmatpush2.bf16.msra.mxu0 0
  %2126 = vmatprep.subr.bf16.mxu0 0
  %2127 = vmatpush2.bf16.msra.mxu0 0
  %2128 = vmatprep.subr.bf16.mxu0 0
  %2129 = vmatpush2.bf16.msra.mxu0 0
  %2130 = vmatprep.subr.bf16.mxu0 0
  %2131 = vmatpush2.bf16.msra.mxu0 0
  %2132 = vmatprep.subr.bf16.mxu0 0
  %2133 = vmatpush2.bf16.msra.mxu0 0
  %2134 = vmatprep.mubr.bf16.mxu0 0
  %2135 = vmatmul.mubr.bf16.gmra.mxu0 %v2100
  %v2136 = vpop.f32.mrf.mxu0
  %v2137 = vadd.f32 0.0, %v2136
  %v2138 = vpop.f32.mrf.mxu0
  %v2139 = vpop.f32.mrf.mxu0
  %v2140 = vadd.f32 0.0, %v2139
  %v2141 = vpop.f32.mrf.mxu0
  %2142 = vdwg.mxu0
  %v2143 = vpack.c.bf16 %v2004, %v2004
  %2144 = vrot.lane.b32.xlu0 %v2019, 120
  %v2145 = vpop.permute.xlu0 %2144
  %v2147 = vsel %vm181, %v2145, 0
  %v2150 = vsel %vm185, %v2143, 0
  %2152 = vmatprep.subr.bf16.mxu0 0
  %2153 = vmatpush1.bf16.msra.mxu0 0
  %2154 = vmatprep.subr.bf16.mxu0 0
  %2155 = vmatpush1.bf16.msra.mxu0 0
  %2156 = vmatprep.subr.bf16.mxu0 0
  %2157 = vmatpush1.bf16.msra.mxu0 0
  %2158 = vmatprep.subr.bf16.mxu0 0
  %2159 = vmatpush1.bf16.msra.mxu0 0
  %2160 = vmatprep.subr.bf16.mxu0 0
  %2161 = vmatpush1.bf16.msra.mxu0 0
  %2162 = vmatprep.subr.bf16.mxu0 0
  %2163 = vmatpush1.bf16.msra.mxu0 0
  %2164 = vmatprep.subr.bf16.mxu0 0
  %2165 = vmatpush1.bf16.msra.mxu0 0
  %2166 = vmatprep.subr.bf16.mxu0 0
  %2167 = vmatpush1.bf16.msra.mxu0 %v2150
  %2168 = vmatprep.subr.bf16.mxu0 0
  %2169 = vmatpush2.bf16.msra.mxu0 0
  %2170 = vmatprep.subr.bf16.mxu0 0
  %2171 = vmatpush2.bf16.msra.mxu0 0
  %2172 = vmatprep.subr.bf16.mxu0 0
  %2173 = vmatpush2.bf16.msra.mxu0 0
  %2174 = vmatprep.subr.bf16.mxu0 0
  %2175 = vmatpush2.bf16.msra.mxu0 0
  %2176 = vmatprep.subr.bf16.mxu0 0
  %2177 = vmatpush2.bf16.msra.mxu0 0
  %2178 = vmatprep.subr.bf16.mxu0 0
  %2179 = vmatpush2.bf16.msra.mxu0 0
  %2180 = vmatprep.subr.bf16.mxu0 0
  %2181 = vmatpush2.bf16.msra.mxu0 0
  %2182 = vmatprep.subr.bf16.mxu0 0
  %2183 = vmatpush2.bf16.msra.mxu0 0
  %2184 = vmatprep.mubr.bf16.mxu0 0
  %2185 = vmatmul.mubr.bf16.gmra.mxu0 %v2147
  %v2186 = vpop.f32.mrf.mxu0
  %v2187 = vadd.f32 0.0, %v2186
  %v2188 = vpop.f32.mrf.mxu0
  %v2189 = vpop.f32.mrf.mxu0
  %v2190 = vadd.f32 0.0, %v2189
  %v2191 = vpop.f32.mrf.mxu0
  %2192 = vdwg.mxu0
  %v2193 = vmul.f32 %v2187, 0.35355338
  %v2194 = vmul.f32 %v2190, 0.35355338
  %v2195 = vadd.f32 %v2193, %v1876
  %v2196 = vadd.f32 %v2194, %v1877
  %v2197 = vsel %vm234, %v2195, -inf
  %2198 = vmax.xlane.f32.xlu0 %v2197
  %v2199 = vpop.xlane.xlu0 %2198
  %v2200 = vsel %vm234, %v2196, -inf
  %2201 = vmax.xlane.f32.xlu0 %v2200
  %v2202 = vpop.xlane.xlu0 %2201
  %v2203 = vsub.f32 %v2195, %v2199
  %v2204 = vsub.f32 %v2196, %v2202
  %v2205 = vmul.f32 %v2203, 1.442695
  %v2206 = vpow.pop %v2205
  %v2207 = vmul.f32 %v2204, 1.442695
  %v2208 = vpow.pop %v2207
  %v2209 = vsel %vm234, %v2206, 0.0
  %2210 = vadd.xlane.f32.xlu0 %v2209
  %v2211 = vpop.xlane.xlu0 %2210
  %v2212 = vsel %vm234, %v2208, 0.0
  %2213 = vadd.xlane.f32.xlu0 %v2212
  %v2214 = vpop.xlane.xlu0 %2213
  %v2215 = vrcp.pop %v2211
  %v2216 = vrcp.pop %v2214
  %v2217 = vmul.f32 %v2206, %v2215
  %v2218 = vmul.f32 %v2208, %v2216
  %v2219 = vpack.c.bf16 %v2218, %v2217
  %2220 = vrot.lane.b32.xlu0 %v2019, 56
  %v2221 = vpop.permute.xlu0 %2220
  %v2224 = vsel %vm234, %v2219, 0
  %2226 = vmatprep.subr.bf16.mxu0 0
  %2227 = vmatpush1.bf16.msra.mxu0 0
  %2228 = vmatprep.subr.bf16.mxu0 0
  %2229 = vmatpush1.bf16.msra.mxu0 0
  %2230 = vmatprep.subr.bf16.mxu0 0
  %2231 = vmatpush1.bf16.msra.mxu0 0
  %2232 = vmatprep.subr.bf16.mxu0 0
  %2233 = vmatpush1.bf16.msra.mxu0 0
  %2234 = vmatprep.subr.bf16.mxu0 0
  %2235 = vmatpush1.bf16.msra.mxu0 0
  %2236 = vmatprep.subr.bf16.mxu0 0
  %2237 = vmatpush1.bf16.msra.mxu0 0
  %2238 = vmatprep.subr.bf16.mxu0 0
  %2239 = vmatpush1.bf16.msra.mxu0 0
  %2240 = vmatprep.subr.bf16.mxu0 0
  %2241 = vmatpush1.bf16.msra.mxu0 %v2221
  %2242 = vmatprep.subr.bf16.mxu0 0
  %2243 = vmatpush2.bf16.msra.mxu0 0
  %2244 = vmatprep.subr.bf16.mxu0 0
  %2245 = vmatpush2.bf16.msra.mxu0 0
  %2246 = vmatprep.subr.bf16.mxu0 0
  %2247 = vmatpush2.bf16.msra.mxu0 0
  %2248 = vmatprep.subr.bf16.mxu0 0
  %2249 = vmatpush2.bf16.msra.mxu0 0
  %2250 = vmatprep.subr.bf16.mxu0 0
  %2251 = vmatpush2.bf16.msra.mxu0 0
  %2252 = vmatprep.subr.bf16.mxu0 0
  %2253 = vmatpush2.bf16.msra.mxu0 0
  %2254 = vmatprep.subr.bf16.mxu0 0
  %2255 = vmatpush2.bf16.msra.mxu0 0
  %2256 = vmatprep.subr.bf16.mxu0 0
  %2257 = vmatpush2.bf16.msra.mxu0 0
  %2258 = vmatprep.mubr.bf16.mxu0 0
  %2259 = vmatmul.mubr.bf16.gmra.mxu0 %v2224
  %v2260 = vpop.f32.mrf.mxu0
  %v2261 = vadd.f32 0.0, %v2260
  %v2262 = vpop.f32.mrf.mxu0
  %v2263 = vpop.f32.mrf.mxu0
  %v2264 = vadd.f32 0.0, %v2263
  %v2265 = vpop.f32.mrf.mxu0
  %2266 = vdwg.mxu0
  %v2267 = vpack.c.bf16 %v2005, %v2005
  %2268 = vrot.lane.b32.xlu0 %v2019, 112
  %v2269 = vpop.permute.xlu0 %2268
  %v2271 = vsel %vm181, %v2269, 0
  %v2274 = vsel %vm185, %v2267, 0
  %2276 = vmatprep.subr.bf16.mxu0 0
  %2277 = vmatpush1.bf16.msra.mxu0 0
  %2278 = vmatprep.subr.bf16.mxu0 0
  %2279 = vmatpush1.bf16.msra.mxu0 0
  %2280 = vmatprep.subr.bf16.mxu0 0
  %2281 = vmatpush1.bf16.msra.mxu0 0
  %2282 = vmatprep.subr.bf16.mxu0 0
  %2283 = vmatpush1.bf16.msra.mxu0 0
  %2284 = vmatprep.subr.bf16.mxu0 0
  %2285 = vmatpush1.bf16.msra.mxu0 0
  %2286 = vmatprep.subr.bf16.mxu0 0
  %2287 = vmatpush1.bf16.msra.mxu0 0
  %2288 = vmatprep.subr.bf16.mxu0 0
  %2289 = vmatpush1.bf16.msra.mxu0 0
  %2290 = vmatprep.subr.bf16.mxu0 0
  %2291 = vmatpush1.bf16.msra.mxu0 %v2274
  %2292 = vmatprep.subr.bf16.mxu0 0
  %2293 = vmatpush2.bf16.msra.mxu0 0
  %2294 = vmatprep.subr.bf16.mxu0 0
  %2295 = vmatpush2.bf16.msra.mxu0 0
  %2296 = vmatprep.subr.bf16.mxu0 0
  %2297 = vmatpush2.bf16.msra.mxu0 0
  %2298 = vmatprep.subr.bf16.mxu0 0
  %2299 = vmatpush2.bf16.msra.mxu0 0
  %2300 = vmatprep.subr.bf16.mxu0 0
  %2301 = vmatpush2.bf16.msra.mxu0 0
  %2302 = vmatprep.subr.bf16.mxu0 0
  %2303 = vmatpush2.bf16.msra.mxu0 0
  %2304 = vmatprep.subr.bf16.mxu0 0
  %2305 = vmatpush2.bf16.msra.mxu0 0
  %2306 = vmatprep.subr.bf16.mxu0 0
  %2307 = vmatpush2.bf16.msra.mxu0 0
  %2308 = vmatprep.mubr.bf16.mxu0 0
  %2309 = vmatmul.mubr.bf16.gmra.mxu0 %v2271
  %v2310 = vpop.f32.mrf.mxu0
  %v2311 = vadd.f32 0.0, %v2310
  %v2312 = vpop.f32.mrf.mxu0
  %v2313 = vpop.f32.mrf.mxu0
  %v2314 = vadd.f32 0.0, %v2313
  %v2315 = vpop.f32.mrf.mxu0
  %2316 = vdwg.mxu0
  %v2317 = vmul.f32 %v2311, 0.35355338
  %v2318 = vmul.f32 %v2314, 0.35355338
  %v2319 = vadd.f32 %v2317, %v1876
  %v2320 = vadd.f32 %v2318, %v1877
  %v2321 = vsel %vm234, %v2319, -inf
  %2322 = vmax.xlane.f32.xlu0 %v2321
  %v2323 = vpop.xlane.xlu0 %2322
  %v2324 = vsel %vm234, %v2320, -inf
  %2325 = vmax.xlane.f32.xlu0 %v2324
  %v2326 = vpop.xlane.xlu0 %2325
  %v2327 = vsub.f32 %v2319, %v2323
  %v2328 = vsub.f32 %v2320, %v2326
  %v2329 = vmul.f32 %v2327, 1.442695
  %v2330 = vpow.pop %v2329
  %v2331 = vmul.f32 %v2328, 1.442695
  %v2332 = vpow.pop %v2331
  %v2333 = vsel %vm234, %v2330, 0.0
  %2334 = vadd.xlane.f32.xlu0 %v2333
  %v2335 = vpop.xlane.xlu0 %2334
  %v2336 = vsel %vm234, %v2332, 0.0
  %2337 = vadd.xlane.f32.xlu0 %v2336
  %v2338 = vpop.xlane.xlu0 %2337
  %v2339 = vrcp.pop %v2335
  %v2340 = vrcp.pop %v2338
  %v2341 = vmul.f32 %v2330, %v2339
  %v2342 = vmul.f32 %v2332, %v2340
  %v2343 = vpack.c.bf16 %v2342, %v2341
  %2344 = vrot.lane.b32.xlu0 %v2019, 48
  %v2345 = vpop.permute.xlu0 %2344
  %v2348 = vsel %vm234, %v2343, 0
  %2350 = vmatprep.subr.bf16.mxu0 0
  %2351 = vmatpush1.bf16.msra.mxu0 0
  %2352 = vmatprep.subr.bf16.mxu0 0
  %2353 = vmatpush1.bf16.msra.mxu0 0
  %2354 = vmatprep.subr.bf16.mxu0 0
  %2355 = vmatpush1.bf16.msra.mxu0 0
  %2356 = vmatprep.subr.bf16.mxu0 0
  %2357 = vmatpush1.bf16.msra.mxu0 0
  %2358 = vmatprep.subr.bf16.mxu0 0
  %2359 = vmatpush1.bf16.msra.mxu0 0
  %2360 = vmatprep.subr.bf16.mxu0 0
  %2361 = vmatpush1.bf16.msra.mxu0 0
  %2362 = vmatprep.subr.bf16.mxu0 0
  %2363 = vmatpush1.bf16.msra.mxu0 0
  %2364 = vmatprep.subr.bf16.mxu0 0
  %2365 = vmatpush1.bf16.msra.mxu0 %v2345
  %2366 = vmatprep.subr.bf16.mxu0 0
  %2367 = vmatpush2.bf16.msra.mxu0 0
  %2368 = vmatprep.subr.bf16.mxu0 0
  %2369 = vmatpush2.bf16.msra.mxu0 0
  %2370 = vmatprep.subr.bf16.mxu0 0
  %2371 = vmatpush2.bf16.msra.mxu0 0
  %2372 = vmatprep.subr.bf16.mxu0 0
  %2373 = vmatpush2.bf16.msra.mxu0 0
  %2374 = vmatprep.subr.bf16.mxu0 0
  %2375 = vmatpush2.bf16.msra.mxu0 0
  %2376 = vmatprep.subr.bf16.mxu0 0
  %2377 = vmatpush2.bf16.msra.mxu0 0
  %2378 = vmatprep.subr.bf16.mxu0 0
  %2379 = vmatpush2.bf16.msra.mxu0 0
  %2380 = vmatprep.subr.bf16.mxu0 0
  %2381 = vmatpush2.bf16.msra.mxu0 0
  %2382 = vmatprep.mubr.bf16.mxu0 0
  %2383 = vmatmul.mubr.bf16.gmra.mxu0 %v2348
  %v2384 = vpop.f32.mrf.mxu0
  %v2385 = vadd.f32 0.0, %v2384
  %v2386 = vpop.f32.mrf.mxu0
  %v2387 = vpop.f32.mrf.mxu0
  %v2388 = vadd.f32 0.0, %v2387
  %v2389 = vpop.f32.mrf.mxu0
  %2390 = vdwg.mxu0
  %v2391 = vpack.c.bf16 %v2006, %v2006
  %2392 = vrot.lane.b32.xlu0 %v2019, 104
  %v2393 = vpop.permute.xlu0 %2392
  %v2395 = vsel %vm181, %v2393, 0
  %v2398 = vsel %vm185, %v2391, 0
  %2400 = vmatprep.subr.bf16.mxu0 0
  %2401 = vmatpush1.bf16.msra.mxu0 0
  %2402 = vmatprep.subr.bf16.mxu0 0
  %2403 = vmatpush1.bf16.msra.mxu0 0
  %2404 = vmatprep.subr.bf16.mxu0 0
  %2405 = vmatpush1.bf16.msra.mxu0 0
  %2406 = vmatprep.subr.bf16.mxu0 0
  %2407 = vmatpush1.bf16.msra.mxu0 0
  %2408 = vmatprep.subr.bf16.mxu0 0
  %2409 = vmatpush1.bf16.msra.mxu0 0
  %2410 = vmatprep.subr.bf16.mxu0 0
  %2411 = vmatpush1.bf16.msra.mxu0 0
  %2412 = vmatprep.subr.bf16.mxu0 0
  %2413 = vmatpush1.bf16.msra.mxu0 0
  %2414 = vmatprep.subr.bf16.mxu0 0
  %2415 = vmatpush1.bf16.msra.mxu0 %v2398
  %2416 = vmatprep.subr.bf16.mxu0 0
  %2417 = vmatpush2.bf16.msra.mxu0 0
  %2418 = vmatprep.subr.bf16.mxu0 0
  %2419 = vmatpush2.bf16.msra.mxu0 0
  %2420 = vmatprep.subr.bf16.mxu0 0
  %2421 = vmatpush2.bf16.msra.mxu0 0
  %2422 = vmatprep.subr.bf16.mxu0 0
  %2423 = vmatpush2.bf16.msra.mxu0 0
  %2424 = vmatprep.subr.bf16.mxu0 0
  %2425 = vmatpush2.bf16.msra.mxu0 0
  %2426 = vmatprep.subr.bf16.mxu0 0
  %2427 = vmatpush2.bf16.msra.mxu0 0
  %2428 = vmatprep.subr.bf16.mxu0 0
  %2429 = vmatpush2.bf16.msra.mxu0 0
  %2430 = vmatprep.subr.bf16.mxu0 0
  %2431 = vmatpush2.bf16.msra.mxu0 0
  %2432 = vmatprep.mubr.bf16.mxu0 0
  %2433 = vmatmul.mubr.bf16.gmra.mxu0 %v2395
  %v2434 = vpop.f32.mrf.mxu0
  %v2435 = vadd.f32 0.0, %v2434
  %v2436 = vpop.f32.mrf.mxu0
  %v2437 = vpop.f32.mrf.mxu0
  %v2438 = vadd.f32 0.0, %v2437
  %v2439 = vpop.f32.mrf.mxu0
  %2440 = vdwg.mxu0
  %v2441 = vmul.f32 %v2435, 0.35355338
  %v2442 = vmul.f32 %v2438, 0.35355338
  %v2443 = vadd.f32 %v2441, %v1876
  %v2444 = vadd.f32 %v2442, %v1877
  %v2445 = vsel %vm234, %v2443, -inf
  %2446 = vmax.xlane.f32.xlu0 %v2445
  %v2447 = vpop.xlane.xlu0 %2446
  %v2448 = vsel %vm234, %v2444, -inf
  %2449 = vmax.xlane.f32.xlu0 %v2448
  %v2450 = vpop.xlane.xlu0 %2449
  %v2451 = vsub.f32 %v2443, %v2447
  %v2452 = vsub.f32 %v2444, %v2450
  %v2453 = vmul.f32 %v2451, 1.442695
  %v2454 = vpow.pop %v2453
  %v2455 = vmul.f32 %v2452, 1.442695
  %v2456 = vpow.pop %v2455
  %v2457 = vsel %vm234, %v2454, 0.0
  %2458 = vadd.xlane.f32.xlu0 %v2457
  %v2459 = vpop.xlane.xlu0 %2458
  %v2460 = vsel %vm234, %v2456, 0.0
  %2461 = vadd.xlane.f32.xlu0 %v2460
  %v2462 = vpop.xlane.xlu0 %2461
  %v2463 = vrcp.pop %v2459
  %v2464 = vrcp.pop %v2462
  %v2465 = vmul.f32 %v2454, %v2463
  %v2466 = vmul.f32 %v2456, %v2464
  %v2467 = vpack.c.bf16 %v2466, %v2465
  %2468 = vrot.lane.b32.xlu0 %v2019, 40
  %v2469 = vpop.permute.xlu0 %2468
  %v2472 = vsel %vm234, %v2467, 0
  %2474 = vmatprep.subr.bf16.mxu0 0
  %2475 = vmatpush1.bf16.msra.mxu0 0
  %2476 = vmatprep.subr.bf16.mxu0 0
  %2477 = vmatpush1.bf16.msra.mxu0 0
  %2478 = vmatprep.subr.bf16.mxu0 0
  %2479 = vmatpush1.bf16.msra.mxu0 0
  %2480 = vmatprep.subr.bf16.mxu0 0
  %2481 = vmatpush1.bf16.msra.mxu0 0
  %2482 = vmatprep.subr.bf16.mxu0 0
  %2483 = vmatpush1.bf16.msra.mxu0 0
  %2484 = vmatprep.subr.bf16.mxu0 0
  %2485 = vmatpush1.bf16.msra.mxu0 0
  %2486 = vmatprep.subr.bf16.mxu0 0
  %2487 = vmatpush1.bf16.msra.mxu0 0
  %2488 = vmatprep.subr.bf16.mxu0 0
  %2489 = vmatpush1.bf16.msra.mxu0 %v2469
  %2490 = vmatprep.subr.bf16.mxu0 0
  %2491 = vmatpush2.bf16.msra.mxu0 0
  %2492 = vmatprep.subr.bf16.mxu0 0
  %2493 = vmatpush2.bf16.msra.mxu0 0
  %2494 = vmatprep.subr.bf16.mxu0 0
  %2495 = vmatpush2.bf16.msra.mxu0 0
  %2496 = vmatprep.subr.bf16.mxu0 0
  %2497 = vmatpush2.bf16.msra.mxu0 0
  %2498 = vmatprep.subr.bf16.mxu0 0
  %2499 = vmatpush2.bf16.msra.mxu0 0
  %2500 = vmatprep.subr.bf16.mxu0 0
  %2501 = vmatpush2.bf16.msra.mxu0 0
  %2502 = vmatprep.subr.bf16.mxu0 0
  %2503 = vmatpush2.bf16.msra.mxu0 0
  %2504 = vmatprep.subr.bf16.mxu0 0
  %2505 = vmatpush2.bf16.msra.mxu0 0
  %2506 = vmatprep.mubr.bf16.mxu0 0
  %2507 = vmatmul.mubr.bf16.gmra.mxu0 %v2472
  %v2508 = vpop.f32.mrf.mxu0
  %v2509 = vadd.f32 0.0, %v2508
  %v2510 = vpop.f32.mrf.mxu0
  %v2511 = vpop.f32.mrf.mxu0
  %v2512 = vadd.f32 0.0, %v2511
  %v2513 = vpop.f32.mrf.mxu0
  %2514 = vdwg.mxu0
  %2517 = vrot.lane.b32.xlu0 %v2261, 8
  %v2518 = vpop.permute.xlu0 %2517
  %2519 = vrot.lane.b32.xlu0 %v2264, 8
  %v2520 = vpop.permute.xlu0 %2519
  %2525 = vrot.lane.b32.xlu0 %v2385, 16
  %v2526 = vpop.permute.xlu0 %2525
  %2527 = vrot.lane.b32.xlu0 %v2388, 16
  %v2528 = vpop.permute.xlu0 %2527
  %2533 = vrot.lane.b32.xlu0 %v2509, 24
  %v2534 = vpop.permute.xlu0 %2533
  %2535 = vrot.lane.b32.xlu0 %v2512, 24
  %v2536 = vpop.permute.xlu0 %2535
  %v2539 = vsel %vm181, %v2137, %v2518
  %v2540 = vsel %vm181, %v2140, %v2520
  %v2541 = vsel %vm234, %v2539, %v2526
  %v2542 = vsel %vm234, %v2540, %v2528
  %v2543 = vsel %vm706, %v2541, %v2534
  %v2544 = vsel %vm706, %v2542, %v2536
  %v2545 = vpack.c.bf16 %v2544, %v2543
  %2546 = vrot.lane.b32.xlu0 %v1931, 32
  %v2547 = vpop.permute.xlu0 %2546
  %2548 = vrot.lane.b32.xlu0 %v1932, 32
  %v2549 = vpop.permute.xlu0 %2548
  %v2553 = vsel %vm38, %v2545, 0
  %2555 = vmatprep.subr.bf16.mxu0 0
  %2556 = vmatpush1.bf16.msra.mxu0 0
  %2557 = vmatprep.subr.bf16.mxu0 0
  %2558 = vmatpush1.bf16.msra.mxu0 0
  %2559 = vmatprep.subr.bf16.mxu0 0
  %2560 = vmatpush1.bf16.msra.mxu0 0
  %2561 = vmatprep.subr.bf16.mxu0 0
  %2562 = vmatpush1.bf16.msra.mxu0 0
  %2563 = vmatprep.subr.bf16.mxu0 0
  %2564 = vmatpush1.bf16.msra.mxu0 0
  %2565 = vmatprep.subr.bf16.mxu0 0
  %2566 = vmatpush1.bf16.msra.mxu0 0
  %2567 = vmatprep.subr.bf16.mxu0 0
  %2568 = vmatpush1.bf16.msra.mxu0 %v2549
  %2569 = vmatprep.subr.bf16.mxu0 0
  %2570 = vmatpush1.bf16.msra.mxu0 %v2547
  %2571 = vmatprep.subr.bf16.mxu0 0
  %2572 = vmatpush2.bf16.msra.mxu0 0
  %2573 = vmatprep.subr.bf16.mxu0 0
  %2574 = vmatpush2.bf16.msra.mxu0 0
  %2575 = vmatprep.subr.bf16.mxu0 0
  %2576 = vmatpush2.bf16.msra.mxu0 0
  %2577 = vmatprep.subr.bf16.mxu0 0
  %2578 = vmatpush2.bf16.msra.mxu0 0
  %2579 = vmatprep.subr.bf16.mxu0 0
  %2580 = vmatpush2.bf16.msra.mxu0 0
  %2581 = vmatprep.subr.bf16.mxu0 0
  %2582 = vmatpush2.bf16.msra.mxu0 0
  %2583 = vmatprep.subr.bf16.mxu0 0
  %2584 = vmatpush2.bf16.msra.mxu0 0
  %2585 = vmatprep.subr.bf16.mxu0 0
  %2586 = vmatpush2.bf16.msra.mxu0 0
  %2587 = vmatprep.mubr.bf16.mxu0 0
  %2588 = vmatmul.mubr.bf16.gmra.mxu0 %v2553
  %v2589 = vpop.f32.mrf.mxu0
  %v2590 = vadd.f32 0.0, %v2589
  %v2591 = vpop.f32.mrf.mxu0
  %v2592 = vpop.f32.mrf.mxu0
  %v2593 = vadd.f32 0.0, %v2592
  %v2594 = vpop.f32.mrf.mxu0
  %2595 = vdwg.mxu0
  %v2596 = vadd.f32 %v1874, %v2590
  %v2597 = vadd.f32 %v1875, %v2593
  %v2598 = vsel %vm38, %v1872, 0.0
  %2599 = vadd.xlane.f32.xlu0 %v2598
  %v2600 = vpop.xlane.xlu0 %2599
  %v2601 = vsel %vm38, %v1873, 0.0
  %2602 = vadd.xlane.f32.xlu0 %v2601
  %v2603 = vpop.xlane.xlu0 %2602
  %v2604 = vmul.f32 %v2600, %v45
  %v2605 = vmul.f32 %v2603, %v45
  %v2606 = vsub.f32 %v1872, %v2604
  %v2607 = vsub.f32 %v1873, %v2605
  %v2608 = vmul.f32 %v2606, %v2606
  %v2609 = vmul.f32 %v2607, %v2607
  %v2610 = vsel %vm38, %v2608, 0.0
  %2611 = vadd.xlane.f32.xlu0 %v2610
  %v2612 = vpop.xlane.xlu0 %2611
  %v2613 = vsel %vm38, %v2609, 0.0
  %2614 = vadd.xlane.f32.xlu0 %v2613
  %v2615 = vpop.xlane.xlu0 %2614
  %v2616 = vmul.f32 %v2612, %v45
  %v2617 = vmul.f32 %v2615, %v45
  %v2618 = vadd.f32 %v2616, 1e-05
  %v2619 = vadd.f32 %v2617, 1e-05
  %v2620 = vrsqrt.pop %v2618
  %v2621 = vrsqrt.pop %v2619
  %v2622 = vmul.f32 %v2606, %v2620
  %v2623 = vmul.f32 %v2607, %v2621
  %v2624 = vlaneseq
  %v2625 = vshrl.u32 %v2624, 7
  %v2626 = vsub.s32 6, %v2625
  %v2627 = vrot.slane %v31, %v2626
  %v2628 = vmul.f32 %v2622, %v2627
  %v2629 = vmul.f32 %v2623, %v2627
  %v2630 = vlaneseq
  %v2631 = vshrl.u32 %v2630, 7
  %v2632 = vsub.s32 7, %v2631
  %v2633 = vrot.slane %v31, %v2632
  %v2634 = vadd.f32 %v2628, %v2633
  %v2635 = vadd.f32 %v2629, %v2633
  %v2636 = vsel %vm38, %v2596, 0.0
  %2637 = vadd.xlane.f32.xlu0 %v2636
  %v2638 = vpop.xlane.xlu0 %2637
  %v2639 = vsel %vm38, %v2597, 0.0
  %2640 = vadd.xlane.f32.xlu0 %v2639
  %v2641 = vpop.xlane.xlu0 %2640
  %v2642 = vmul.f32 %v2638, %v45
  %v2643 = vmul.f32 %v2641, %v45
  %v2644 = vsub.f32 %v2596, %v2642
  %v2645 = vsub.f32 %v2597, %v2643
  %v2646 = vmul.f32 %v2644, %v2644
  %v2647 = vmul.f32 %v2645, %v2645
  %v2648 = vsel %vm38, %v2646, 0.0
  %2649 = vadd.xlane.f32.xlu0 %v2648
  %v2650 = vpop.xlane.xlu0 %2649
  %v2651 = vsel %vm38, %v2647, 0.0
  %2652 = vadd.xlane.f32.xlu0 %v2651
  %v2653 = vpop.xlane.xlu0 %2652
  %v2654 = vmul.f32 %v2650, %v45
  %v2655 = vmul.f32 %v2653, %v45
  %v2656 = vadd.f32 %v2654, 1e-05
  %v2657 = vadd.f32 %v2655, 1e-05
  %v2658 = vrsqrt.pop %v2656
  %v2659 = vrsqrt.pop %v2657
  %v2660 = vmul.f32 %v2644, %v2658
  %v2661 = vmul.f32 %v2645, %v2659
  %v2662 = vmul.f32 %v2660, %v2627
  %v2663 = vmul.f32 %v2661, %v2627
  %v2664 = vadd.f32 %v2662, %v2633
  %v2665 = vadd.f32 %v2663, %v2633
  %v2666 = vld [vmem:[%s6 + $0x14] sm:$0xf]
  %v2667 = vld [vmem:[%s6 + $0x40] sm:$0xf]
  %v2668 = vld [vmem:[%s6 + $0x6c] sm:$0xf]
  %v2669 = vld [vmem:[%s6 + $0x98] sm:$0xf]
  %v2670 = vpack.c.bf16 %v2665, %v2664
  %v2671 = vpack.c.bf16 %v2635, %v2634
  %v2676 = vunpack.c.l.b16 %v2666
  %v2677 = vunpack.c.l.b16 %v2667
  %v2678 = vunpack.c.l.b16 %v2668
  %v2679 = vunpack.c.l.b16 %v2669
  %v2680 = vpack.c.b16 %v2677, %v2676
  %v2681 = vpack.c.b16 %v2679, %v2678
  %v2685 = vsel %vm38, %v2670, 0
  %2687 = vmatprep.subr.bf16.mxu0 0
  %2688 = vmatpush1.bf16.msra.mxu0 0
  %2689 = vmatprep.subr.bf16.mxu0 0
  %2690 = vmatpush1.bf16.msra.mxu0 0
  %2691 = vmatprep.subr.bf16.mxu0 0
  %2692 = vmatpush1.bf16.msra.mxu0 0
  %2693 = vmatprep.subr.bf16.mxu0 0
  %2694 = vmatpush1.bf16.msra.mxu0 0
  %2695 = vmatprep.subr.bf16.mxu0 0
  %2696 = vmatpush1.bf16.msra.mxu0 0
  %2697 = vmatprep.subr.bf16.mxu0 0
  %2698 = vmatpush1.bf16.msra.mxu0 0
  %2699 = vmatprep.subr.bf16.mxu0 0
  %2700 = vmatpush1.bf16.msra.mxu0 %v2681
  %2701 = vmatprep.subr.bf16.mxu0 0
  %2702 = vmatpush1.bf16.msra.mxu0 %v2680
  %2703 = vmatprep.subr.bf16.mxu0 0
  %2704 = vmatpush2.bf16.msra.mxu0 0
  %2705 = vmatprep.subr.bf16.mxu0 0
  %2706 = vmatpush2.bf16.msra.mxu0 0
  %2707 = vmatprep.subr.bf16.mxu0 0
  %2708 = vmatpush2.bf16.msra.mxu0 0
  %2709 = vmatprep.subr.bf16.mxu0 0
  %2710 = vmatpush2.bf16.msra.mxu0 0
  %2711 = vmatprep.subr.bf16.mxu0 0
  %2712 = vmatpush2.bf16.msra.mxu0 0
  %2713 = vmatprep.subr.bf16.mxu0 0
  %2714 = vmatpush2.bf16.msra.mxu0 0
  %2715 = vmatprep.subr.bf16.mxu0 0
  %2716 = vmatpush2.bf16.msra.mxu0 0
  %2717 = vmatprep.subr.bf16.mxu0 0
  %2718 = vmatpush2.bf16.msra.mxu0 0
  %2719 = vmatprep.mubr.bf16.mxu0 0
  %2720 = vmatmul.mubr.bf16.gmra.mxu0 %v2685
  %v2721 = vpop.f32.mrf.mxu0
  %v2722 = vadd.f32 0.0, %v2721
  %v2723 = vpop.f32.mrf.mxu0
  %v2724 = vpop.f32.mrf.mxu0
  %v2725 = vadd.f32 0.0, %v2724
  %v2726 = vpop.f32.mrf.mxu0
  %2727 = vdwg.mxu0
  %2728 = vrot.lane.b32.xlu0 %v2680, 96
  %v2729 = vpop.permute.xlu0 %2728
  %2730 = vrot.lane.b32.xlu0 %v2681, 96
  %v2731 = vpop.permute.xlu0 %2730
  %v2735 = vsel %vm38, %v2671, 0
  %2737 = vmatprep.subr.bf16.mxu0 0
  %2738 = vmatpush1.bf16.msra.mxu0 0
  %2739 = vmatprep.subr.bf16.mxu0 0
  %2740 = vmatpush1.bf16.msra.mxu0 0
  %2741 = vmatprep.subr.bf16.mxu0 0
  %2742 = vmatpush1.bf16.msra.mxu0 0
  %2743 = vmatprep.subr.bf16.mxu0 0
  %2744 = vmatpush1.bf16.msra.mxu0 0
  %2745 = vmatprep.subr.bf16.mxu0 0
  %2746 = vmatpush1.bf16.msra.mxu0 0
  %2747 = vmatprep.subr.bf16.mxu0 0
  %2748 = vmatpush1.bf16.msra.mxu0 0
  %2749 = vmatprep.subr.bf16.mxu0 0
  %2750 = vmatpush1.bf16.msra.mxu0 %v2731
  %2751 = vmatprep.subr.bf16.mxu0 0
  %2752 = vmatpush1.bf16.msra.mxu0 %v2729
  %2753 = vmatprep.subr.bf16.mxu0 0
  %2754 = vmatpush2.bf16.msra.mxu0 0
  %2755 = vmatprep.subr.bf16.mxu0 0
  %2756 = vmatpush2.bf16.msra.mxu0 0
  %2757 = vmatprep.subr.bf16.mxu0 0
  %2758 = vmatpush2.bf16.msra.mxu0 0
  %2759 = vmatprep.subr.bf16.mxu0 0
  %2760 = vmatpush2.bf16.msra.mxu0 0
  %2761 = vmatprep.subr.bf16.mxu0 0
  %2762 = vmatpush2.bf16.msra.mxu0 0
  %2763 = vmatprep.subr.bf16.mxu0 0
  %2764 = vmatpush2.bf16.msra.mxu0 0
  %2765 = vmatprep.subr.bf16.mxu0 0
  %2766 = vmatpush2.bf16.msra.mxu0 0
  %2767 = vmatprep.subr.bf16.mxu0 0
  %2768 = vmatpush2.bf16.msra.mxu0 0
  %2769 = vmatprep.mubr.bf16.mxu0 0
  %2770 = vmatmul.mubr.bf16.gmra.mxu0 %v2735
  %v2771 = vpop.f32.mrf.mxu0
  %v2772 = vadd.f32 0.0, %v2771
  %v2773 = vpop.f32.mrf.mxu0
  %v2774 = vpop.f32.mrf.mxu0
  %v2775 = vadd.f32 0.0, %v2774
  %v2776 = vpop.f32.mrf.mxu0
  %2777 = vdwg.mxu0
  %2778 = vxpose.xlu0.b32.start [1/16] %v2772, 128
  %2779 = vxpose.xlu0.b32.cont [2/16] %v2775, 128
  %2780 = vxpose.xlu0.b32.cont [3/16] 0.0, 128
  %2781 = vxpose.xlu0.b32.cont [4/16] 0.0, 128
  %2782 = vxpose.xlu0.b32.cont [5/16] 0.0, 128
  %2783 = vxpose.xlu0.b32.cont [6/16] 0.0, 128
  %2784 = vxpose.xlu0.b32.cont [7/16] 0.0, 128
  %2785 = vxpose.xlu0.b32.cont [8/16] 0.0, 128
  %2786 = vxpose.xlu0.b32.cont [9/16] 0.0, 128
  %2787 = vxpose.xlu0.b32.cont [10/16] 0.0, 128
  %2788 = vxpose.xlu0.b32.cont [11/16] 0.0, 128
  %2789 = vxpose.xlu0.b32.cont [12/16] 0.0, 128
  %2790 = vxpose.xlu0.b32.cont [13/16] 0.0, 128
  %2791 = vxpose.xlu0.b32.cont [14/16] 0.0, 128
  %2792 = vxpose.xlu0.b32.cont [15/16] 0.0, 128
  %2793 = vxpose.xlu0.b32.end [16/16] 0.0, 128
  %v2794 = vpop.trf.xlu0
  %v2795 = vpop.trf.xlu0
  %v2796 = vpop.trf.xlu0
  %v2797 = vpop.trf.xlu0
  %v2798 = vpop.trf.xlu0
  %v2799 = vpop.trf.xlu0
  %v2800 = vpop.trf.xlu0
  %v2801 = vpop.trf.xlu0
  %v2802 = vpop.trf.xlu0
  %v2803 = vpop.trf.xlu0
  %v2804 = vpop.trf.xlu0
  %v2805 = vpop.trf.xlu0
  %v2806 = vpop.trf.xlu0
  %v2807 = vpop.trf.xlu0
  %v2808 = vpop.trf.xlu0
  %v2809 = vpop.trf.xlu0
  %v2810 = vpack.c.bf16 %v2725, %v2722
  %v2811 = vpack.c.bf16 %v2794, %v2794
  %v2813 = vsel %vm181, %v2810, 0
  %v2816 = vsel %vm185, %v2811, 0
  %2818 = vmatprep.subr.bf16.mxu0 0
  %2819 = vmatpush1.bf16.msra.mxu0 0
  %2820 = vmatprep.subr.bf16.mxu0 0
  %2821 = vmatpush1.bf16.msra.mxu0 0
  %2822 = vmatprep.subr.bf16.mxu0 0
  %2823 = vmatpush1.bf16.msra.mxu0 0
  %2824 = vmatprep.subr.bf16.mxu0 0
  %2825 = vmatpush1.bf16.msra.mxu0 0
  %2826 = vmatprep.subr.bf16.mxu0 0
  %2827 = vmatpush1.bf16.msra.mxu0 0
  %2828 = vmatprep.subr.bf16.mxu0 0
  %2829 = vmatpush1.bf16.msra.mxu0 0
  %2830 = vmatprep.subr.bf16.mxu0 0
  %2831 = vmatpush1.bf16.msra.mxu0 0
  %2832 = vmatprep.subr.bf16.mxu0 0
  %2833 = vmatpush1.bf16.msra.mxu0 %v2816
  %2834 = vmatprep.subr.bf16.mxu0 0
  %2835 = vmatpush2.bf16.msra.mxu0 0
  %2836 = vmatprep.subr.bf16.mxu0 0
  %2837 = vmatpush2.bf16.msra.mxu0 0
  %2838 = vmatprep.subr.bf16.mxu0 0
  %2839 = vmatpush2.bf16.msra.mxu0 0
  %2840 = vmatprep.subr.bf16.mxu0 0
  %2841 = vmatpush2.bf16.msra.mxu0 0
  %2842 = vmatprep.subr.bf16.mxu0 0
  %2843 = vmatpush2.bf16.msra.mxu0 0
  %2844 = vmatprep.subr.bf16.mxu0 0
  %2845 = vmatpush2.bf16.msra.mxu0 0
  %2846 = vmatprep.subr.bf16.mxu0 0
  %2847 = vmatpush2.bf16.msra.mxu0 0
  %2848 = vmatprep.subr.bf16.mxu0 0
  %2849 = vmatpush2.bf16.msra.mxu0 0
  %2850 = vmatprep.mubr.bf16.mxu0 0
  %2851 = vmatmul.mubr.bf16.gmra.mxu0 %v2813
  %v2852 = vpop.f32.mrf.mxu0
  %v2853 = vadd.f32 0.0, %v2852
  %v2854 = vpop.f32.mrf.mxu0
  %v2855 = vpop.f32.mrf.mxu0
  %v2856 = vadd.f32 0.0, %v2855
  %v2857 = vpop.f32.mrf.mxu0
  %2858 = vdwg.mxu0
  %v2859 = vmul.f32 %v2853, 0.35355338
  %v2860 = vmul.f32 %v2856, 0.35355338
  %v2861 = vadd.f32 %v2859, %v1878
  %v2862 = vadd.f32 %v2860, %v1879
  %v2863 = vsel %vm234, %v2861, -inf
  %2864 = vmax.xlane.f32.xlu0 %v2863
  %v2865 = vpop.xlane.xlu0 %2864
  %v2866 = vsel %vm234, %v2862, -inf
  %2867 = vmax.xlane.f32.xlu0 %v2866
  %v2868 = vpop.xlane.xlu0 %2867
  %v2869 = vsub.f32 %v2861, %v2865
  %v2870 = vsub.f32 %v2862, %v2868
  %v2871 = vmul.f32 %v2869, 1.442695
  %v2872 = vpow.pop %v2871
  %v2873 = vmul.f32 %v2870, 1.442695
  %v2874 = vpow.pop %v2873
  %v2875 = vsel %vm234, %v2872, 0.0
  %2876 = vadd.xlane.f32.xlu0 %v2875
  %v2877 = vpop.xlane.xlu0 %2876
  %v2878 = vsel %vm234, %v2874, 0.0
  %2879 = vadd.xlane.f32.xlu0 %v2878
  %v2880 = vpop.xlane.xlu0 %2879
  %v2881 = vrcp.pop %v2877
  %v2882 = vrcp.pop %v2880
  %v2883 = vmul.f32 %v2872, %v2881
  %v2884 = vmul.f32 %v2874, %v2882
  %v2885 = vpack.c.bf16 %v2775, %v2772
  %v2886 = vpack.c.bf16 %v2884, %v2883
  %2888 = vrot.lane.b32.xlu0 %v2885, 96
  %v2889 = vpop.permute.xlu0 %2888
  %v2892 = vsel %vm234, %v2886, 0
  %2894 = vmatprep.subr.bf16.mxu0 0
  %2895 = vmatpush1.bf16.msra.mxu0 0
  %2896 = vmatprep.subr.bf16.mxu0 0
  %2897 = vmatpush1.bf16.msra.mxu0 0
  %2898 = vmatprep.subr.bf16.mxu0 0
  %2899 = vmatpush1.bf16.msra.mxu0 0
  %2900 = vmatprep.subr.bf16.mxu0 0
  %2901 = vmatpush1.bf16.msra.mxu0 0
  %2902 = vmatprep.subr.bf16.mxu0 0
  %2903 = vmatpush1.bf16.msra.mxu0 0
  %2904 = vmatprep.subr.bf16.mxu0 0
  %2905 = vmatpush1.bf16.msra.mxu0 0
  %2906 = vmatprep.subr.bf16.mxu0 0
  %2907 = vmatpush1.bf16.msra.mxu0 0
  %2908 = vmatprep.subr.bf16.mxu0 0
  %2909 = vmatpush1.bf16.msra.mxu0 %v2889
  %2910 = vmatprep.subr.bf16.mxu0 0
  %2911 = vmatpush2.bf16.msra.mxu0 0
  %2912 = vmatprep.subr.bf16.mxu0 0
  %2913 = vmatpush2.bf16.msra.mxu0 0
  %2914 = vmatprep.subr.bf16.mxu0 0
  %2915 = vmatpush2.bf16.msra.mxu0 0
  %2916 = vmatprep.subr.bf16.mxu0 0
  %2917 = vmatpush2.bf16.msra.mxu0 0
  %2918 = vmatprep.subr.bf16.mxu0 0
  %2919 = vmatpush2.bf16.msra.mxu0 0
  %2920 = vmatprep.subr.bf16.mxu0 0
  %2921 = vmatpush2.bf16.msra.mxu0 0
  %2922 = vmatprep.subr.bf16.mxu0 0
  %2923 = vmatpush2.bf16.msra.mxu0 0
  %2924 = vmatprep.subr.bf16.mxu0 0
  %2925 = vmatpush2.bf16.msra.mxu0 0
  %2926 = vmatprep.mubr.bf16.mxu0 0
  %2927 = vmatmul.mubr.bf16.gmra.mxu0 %v2892
  %v2928 = vpop.f32.mrf.mxu0
  %v2929 = vadd.f32 0.0, %v2928
  %v2930 = vpop.f32.mrf.mxu0
  %v2931 = vpop.f32.mrf.mxu0
  %v2932 = vadd.f32 0.0, %v2931
  %v2933 = vpop.f32.mrf.mxu0
  %2934 = vdwg.mxu0
  %v2935 = vpack.c.bf16 %v2795, %v2795
  %2937 = vrot.lane.b32.xlu0 %v2810, 120
  %v2938 = vpop.permute.xlu0 %2937
  %v2940 = vsel %vm181, %v2938, 0
  %v2943 = vsel %vm185, %v2935, 0
  %2945 = vmatprep.subr.bf16.mxu0 0
  %2946 = vmatpush1.bf16.msra.mxu0 0
  %2947 = vmatprep.subr.bf16.mxu0 0
  %2948 = vmatpush1.bf16.msra.mxu0 0
  %2949 = vmatprep.subr.bf16.mxu0 0
  %2950 = vmatpush1.bf16.msra.mxu0 0
  %2951 = vmatprep.subr.bf16.mxu0 0
  %2952 = vmatpush1.bf16.msra.mxu0 0
  %2953 = vmatprep.subr.bf16.mxu0 0
  %2954 = vmatpush1.bf16.msra.mxu0 0
  %2955 = vmatprep.subr.bf16.mxu0 0
  %2956 = vmatpush1.bf16.msra.mxu0 0
  %2957 = vmatprep.subr.bf16.mxu0 0
  %2958 = vmatpush1.bf16.msra.mxu0 0
  %2959 = vmatprep.subr.bf16.mxu0 0
  %2960 = vmatpush1.bf16.msra.mxu0 %v2943
  %2961 = vmatprep.subr.bf16.mxu0 0
  %2962 = vmatpush2.bf16.msra.mxu0 0
  %2963 = vmatprep.subr.bf16.mxu0 0
  %2964 = vmatpush2.bf16.msra.mxu0 0
  %2965 = vmatprep.subr.bf16.mxu0 0
  %2966 = vmatpush2.bf16.msra.mxu0 0
  %2967 = vmatprep.subr.bf16.mxu0 0
  %2968 = vmatpush2.bf16.msra.mxu0 0
  %2969 = vmatprep.subr.bf16.mxu0 0
  %2970 = vmatpush2.bf16.msra.mxu0 0
  %2971 = vmatprep.subr.bf16.mxu0 0
  %2972 = vmatpush2.bf16.msra.mxu0 0
  %2973 = vmatprep.subr.bf16.mxu0 0
  %2974 = vmatpush2.bf16.msra.mxu0 0
  %2975 = vmatprep.subr.bf16.mxu0 0
  %2976 = vmatpush2.bf16.msra.mxu0 0
  %2977 = vmatprep.mubr.bf16.mxu0 0
  %2978 = vmatmul.mubr.bf16.gmra.mxu0 %v2940
  %v2979 = vpop.f32.mrf.mxu0
  %v2980 = vadd.f32 0.0, %v2979
  %v2981 = vpop.f32.mrf.mxu0
  %v2982 = vpop.f32.mrf.mxu0
  %v2983 = vadd.f32 0.0, %v2982
  %v2984 = vpop.f32.mrf.mxu0
  %2985 = vdwg.mxu0
  %v2986 = vmul.f32 %v2980, 0.35355338
  %v2987 = vmul.f32 %v2983, 0.35355338
  %v2988 = vadd.f32 %v2986, %v1878
  %v2989 = vadd.f32 %v2987, %v1879
  %v2990 = vsel %vm234, %v2988, -inf
  %2991 = vmax.xlane.f32.xlu0 %v2990
  %v2992 = vpop.xlane.xlu0 %2991
  %v2993 = vsel %vm234, %v2989, -inf
  %2994 = vmax.xlane.f32.xlu0 %v2993
  %v2995 = vpop.xlane.xlu0 %2994
  %v2996 = vsub.f32 %v2988, %v2992
  %v2997 = vsub.f32 %v2989, %v2995
  %v2998 = vmul.f32 %v2996, 1.442695
  %v2999 = vpow.pop %v2998
  %v3000 = vmul.f32 %v2997, 1.442695
  %v3001 = vpow.pop %v3000
  %v3002 = vsel %vm234, %v2999, 0.0
  %3003 = vadd.xlane.f32.xlu0 %v3002
  %v3004 = vpop.xlane.xlu0 %3003
  %v3005 = vsel %vm234, %v3001, 0.0
  %3006 = vadd.xlane.f32.xlu0 %v3005
  %v3007 = vpop.xlane.xlu0 %3006
  %v3008 = vrcp.pop %v3004
  %v3009 = vrcp.pop %v3007
  %v3010 = vmul.f32 %v2999, %v3008
  %v3011 = vmul.f32 %v3001, %v3009
  %v3012 = vpack.c.bf16 %v3011, %v3010
  %3013 = vrot.lane.b32.xlu0 %v2885, 88
  %v3014 = vpop.permute.xlu0 %3013
  %v3017 = vsel %vm234, %v3012, 0
  %3019 = vmatprep.subr.bf16.mxu0 0
  %3020 = vmatpush1.bf16.msra.mxu0 0
  %3021 = vmatprep.subr.bf16.mxu0 0
  %3022 = vmatpush1.bf16.msra.mxu0 0
  %3023 = vmatprep.subr.bf16.mxu0 0
  %3024 = vmatpush1.bf16.msra.mxu0 0
  %3025 = vmatprep.subr.bf16.mxu0 0
  %3026 = vmatpush1.bf16.msra.mxu0 0
  %3027 = vmatprep.subr.bf16.mxu0 0
  %3028 = vmatpush1.bf16.msra.mxu0 0
  %3029 = vmatprep.subr.bf16.mxu0 0
  %3030 = vmatpush1.bf16.msra.mxu0 0
  %3031 = vmatprep.subr.bf16.mxu0 0
  %3032 = vmatpush1.bf16.msra.mxu0 0
  %3033 = vmatprep.subr.bf16.mxu0 0
  %3034 = vmatpush1.bf16.msra.mxu0 %v3014
  %3035 = vmatprep.subr.bf16.mxu0 0
  %3036 = vmatpush2.bf16.msra.mxu0 0
  %3037 = vmatprep.subr.bf16.mxu0 0
  %3038 = vmatpush2.bf16.msra.mxu0 0
  %3039 = vmatprep.subr.bf16.mxu0 0
  %3040 = vmatpush2.bf16.msra.mxu0 0
  %3041 = vmatprep.subr.bf16.mxu0 0
  %3042 = vmatpush2.bf16.msra.mxu0 0
  %3043 = vmatprep.subr.bf16.mxu0 0
  %3044 = vmatpush2.bf16.msra.mxu0 0
  %3045 = vmatprep.subr.bf16.mxu0 0
  %3046 = vmatpush2.bf16.msra.mxu0 0
  %3047 = vmatprep.subr.bf16.mxu0 0
  %3048 = vmatpush2.bf16.msra.mxu0 0
  %3049 = vmatprep.subr.bf16.mxu0 0
  %3050 = vmatpush2.bf16.msra.mxu0 0
  %3051 = vmatprep.mubr.bf16.mxu0 0
  %3052 = vmatmul.mubr.bf16.gmra.mxu0 %v3017
  %v3053 = vpop.f32.mrf.mxu0
  %v3054 = vadd.f32 0.0, %v3053
  %v3055 = vpop.f32.mrf.mxu0
  %v3056 = vpop.f32.mrf.mxu0
  %v3057 = vadd.f32 0.0, %v3056
  %v3058 = vpop.f32.mrf.mxu0
  %3059 = vdwg.mxu0
  %v3060 = vpack.c.bf16 %v2796, %v2796
  %3061 = vrot.lane.b32.xlu0 %v2810, 112
  %v3062 = vpop.permute.xlu0 %3061
  %v3064 = vsel %vm181, %v3062, 0
  %v3067 = vsel %vm185, %v3060, 0
  %3069 = vmatprep.subr.bf16.mxu0 0
  %3070 = vmatpush1.bf16.msra.mxu0 0
  %3071 = vmatprep.subr.bf16.mxu0 0
  %3072 = vmatpush1.bf16.msra.mxu0 0
  %3073 = vmatprep.subr.bf16.mxu0 0
  %3074 = vmatpush1.bf16.msra.mxu0 0
  %3075 = vmatprep.subr.bf16.mxu0 0
  %3076 = vmatpush1.bf16.msra.mxu0 0
  %3077 = vmatprep.subr.bf16.mxu0 0
  %3078 = vmatpush1.bf16.msra.mxu0 0
  %3079 = vmatprep.subr.bf16.mxu0 0
  %3080 = vmatpush1.bf16.msra.mxu0 0
  %3081 = vmatprep.subr.bf16.mxu0 0
  %3082 = vmatpush1.bf16.msra.mxu0 0
  %3083 = vmatprep.subr.bf16.mxu0 0
  %3084 = vmatpush1.bf16.msra.mxu0 %v3067
  %3085 = vmatprep.subr.bf16.mxu0 0
  %3086 = vmatpush2.bf16.msra.mxu0 0
  %3087 = vmatprep.subr.bf16.mxu0 0
  %3088 = vmatpush2.bf16.msra.mxu0 0
  %3089 = vmatprep.subr.bf16.mxu0 0
  %3090 = vmatpush2.bf16.msra.mxu0 0
  %3091 = vmatprep.subr.bf16.mxu0 0
  %3092 = vmatpush2.bf16.msra.mxu0 0
  %3093 = vmatprep.subr.bf16.mxu0 0
  %3094 = vmatpush2.bf16.msra.mxu0 0
  %3095 = vmatprep.subr.bf16.mxu0 0
  %3096 = vmatpush2.bf16.msra.mxu0 0
  %3097 = vmatprep.subr.bf16.mxu0 0
  %3098 = vmatpush2.bf16.msra.mxu0 0
  %3099 = vmatprep.subr.bf16.mxu0 0
  %3100 = vmatpush2.bf16.msra.mxu0 0
  %3101 = vmatprep.mubr.bf16.mxu0 0
  %3102 = vmatmul.mubr.bf16.gmra.mxu0 %v3064
  %v3103 = vpop.f32.mrf.mxu0
  %v3104 = vadd.f32 0.0, %v3103
  %v3105 = vpop.f32.mrf.mxu0
  %v3106 = vpop.f32.mrf.mxu0
  %v3107 = vadd.f32 0.0, %v3106
  %v3108 = vpop.f32.mrf.mxu0
  %3109 = vdwg.mxu0
  %v3110 = vmul.f32 %v3104, 0.35355338
  %v3111 = vmul.f32 %v3107, 0.35355338
  %v3112 = vadd.f32 %v3110, %v1878
  %v3113 = vadd.f32 %v3111, %v1879
  %v3114 = vsel %vm234, %v3112, -inf
  %3115 = vmax.xlane.f32.xlu0 %v3114
  %v3116 = vpop.xlane.xlu0 %3115
  %v3117 = vsel %vm234, %v3113, -inf
  %3118 = vmax.xlane.f32.xlu0 %v3117
  %v3119 = vpop.xlane.xlu0 %3118
  %v3120 = vsub.f32 %v3112, %v3116
  %v3121 = vsub.f32 %v3113, %v3119
  %v3122 = vmul.f32 %v3120, 1.442695
  %v3123 = vpow.pop %v3122
  %v3124 = vmul.f32 %v3121, 1.442695
  %v3125 = vpow.pop %v3124
  %v3126 = vsel %vm234, %v3123, 0.0
  %3127 = vadd.xlane.f32.xlu0 %v3126
  %v3128 = vpop.xlane.xlu0 %3127
  %v3129 = vsel %vm234, %v3125, 0.0
  %3130 = vadd.xlane.f32.xlu0 %v3129
  %v3131 = vpop.xlane.xlu0 %3130
  %v3132 = vrcp.pop %v3128
  %v3133 = vrcp.pop %v3131
  %v3134 = vmul.f32 %v3123, %v3132
  %v3135 = vmul.f32 %v3125, %v3133
  %v3136 = vpack.c.bf16 %v3135, %v3134
  %3137 = vrot.lane.b32.xlu0 %v2885, 80
  %v3138 = vpop.permute.xlu0 %3137
  %v3141 = vsel %vm234, %v3136, 0
  %3143 = vmatprep.subr.bf16.mxu0 0
  %3144 = vmatpush1.bf16.msra.mxu0 0
  %3145 = vmatprep.subr.bf16.mxu0 0
  %3146 = vmatpush1.bf16.msra.mxu0 0
  %3147 = vmatprep.subr.bf16.mxu0 0
  %3148 = vmatpush1.bf16.msra.mxu0 0
  %3149 = vmatprep.subr.bf16.mxu0 0
  %3150 = vmatpush1.bf16.msra.mxu0 0
  %3151 = vmatprep.subr.bf16.mxu0 0
  %3152 = vmatpush1.bf16.msra.mxu0 0
  %3153 = vmatprep.subr.bf16.mxu0 0
  %3154 = vmatpush1.bf16.msra.mxu0 0
  %3155 = vmatprep.subr.bf16.mxu0 0
  %3156 = vmatpush1.bf16.msra.mxu0 0
  %3157 = vmatprep.subr.bf16.mxu0 0
  %3158 = vmatpush1.bf16.msra.mxu0 %v3138
  %3159 = vmatprep.subr.bf16.mxu0 0
  %3160 = vmatpush2.bf16.msra.mxu0 0
  %3161 = vmatprep.subr.bf16.mxu0 0
  %3162 = vmatpush2.bf16.msra.mxu0 0
  %3163 = vmatprep.subr.bf16.mxu0 0
  %3164 = vmatpush2.bf16.msra.mxu0 0
  %3165 = vmatprep.subr.bf16.mxu0 0
  %3166 = vmatpush2.bf16.msra.mxu0 0
  %3167 = vmatprep.subr.bf16.mxu0 0
  %3168 = vmatpush2.bf16.msra.mxu0 0
  %3169 = vmatprep.subr.bf16.mxu0 0
  %3170 = vmatpush2.bf16.msra.mxu0 0
  %3171 = vmatprep.subr.bf16.mxu0 0
  %3172 = vmatpush2.bf16.msra.mxu0 0
  %3173 = vmatprep.subr.bf16.mxu0 0
  %3174 = vmatpush2.bf16.msra.mxu0 0
  %3175 = vmatprep.mubr.bf16.mxu0 0
  %3176 = vmatmul.mubr.bf16.gmra.mxu0 %v3141
  %v3177 = vpop.f32.mrf.mxu0
  %v3178 = vadd.f32 0.0, %v3177
  %v3179 = vpop.f32.mrf.mxu0
  %v3180 = vpop.f32.mrf.mxu0
  %v3181 = vadd.f32 0.0, %v3180
  %v3182 = vpop.f32.mrf.mxu0
  %3183 = vdwg.mxu0
  %v3184 = vpack.c.bf16 %v2797, %v2797
  %3185 = vrot.lane.b32.xlu0 %v2810, 104
  %v3186 = vpop.permute.xlu0 %3185
  %v3188 = vsel %vm181, %v3186, 0
  %v3191 = vsel %vm185, %v3184, 0
  %3193 = vmatprep.subr.bf16.mxu0 0
  %3194 = vmatpush1.bf16.msra.mxu0 0
  %3195 = vmatprep.subr.bf16.mxu0 0
  %3196 = vmatpush1.bf16.msra.mxu0 0
  %3197 = vmatprep.subr.bf16.mxu0 0
  %3198 = vmatpush1.bf16.msra.mxu0 0
  %3199 = vmatprep.subr.bf16.mxu0 0
  %3200 = vmatpush1.bf16.msra.mxu0 0
  %3201 = vmatprep.subr.bf16.mxu0 0
  %3202 = vmatpush1.bf16.msra.mxu0 0
  %3203 = vmatprep.subr.bf16.mxu0 0
  %3204 = vmatpush1.bf16.msra.mxu0 0
  %3205 = vmatprep.subr.bf16.mxu0 0
  %3206 = vmatpush1.bf16.msra.mxu0 0
  %3207 = vmatprep.subr.bf16.mxu0 0
  %3208 = vmatpush1.bf16.msra.mxu0 %v3191
  %3209 = vmatprep.subr.bf16.mxu0 0
  %3210 = vmatpush2.bf16.msra.mxu0 0
  %3211 = vmatprep.subr.bf16.mxu0 0
  %3212 = vmatpush2.bf16.msra.mxu0 0
  %3213 = vmatprep.subr.bf16.mxu0 0
  %3214 = vmatpush2.bf16.msra.mxu0 0
  %3215 = vmatprep.subr.bf16.mxu0 0
  %3216 = vmatpush2.bf16.msra.mxu0 0
  %3217 = vmatprep.subr.bf16.mxu0 0
  %3218 = vmatpush2.bf16.msra.mxu0 0
  %3219 = vmatprep.subr.bf16.mxu0 0
  %3220 = vmatpush2.bf16.msra.mxu0 0
  %3221 = vmatprep.subr.bf16.mxu0 0
  %3222 = vmatpush2.bf16.msra.mxu0 0
  %3223 = vmatprep.subr.bf16.mxu0 0
  %3224 = vmatpush2.bf16.msra.mxu0 0
  %3225 = vmatprep.mubr.bf16.mxu0 0
  %3226 = vmatmul.mubr.bf16.gmra.mxu0 %v3188
  %v3227 = vpop.f32.mrf.mxu0
  %v3228 = vadd.f32 0.0, %v3227
  %v3229 = vpop.f32.mrf.mxu0
  %v3230 = vpop.f32.mrf.mxu0
  %v3231 = vadd.f32 0.0, %v3230
  %v3232 = vpop.f32.mrf.mxu0
  %3233 = vdwg.mxu0
  %v3234 = vmul.f32 %v3228, 0.35355338
  %v3235 = vmul.f32 %v3231, 0.35355338
  %v3236 = vadd.f32 %v3234, %v1878
  %v3237 = vadd.f32 %v3235, %v1879
  %v3238 = vsel %vm234, %v3236, -inf
  %3239 = vmax.xlane.f32.xlu0 %v3238
  %v3240 = vpop.xlane.xlu0 %3239
  %v3241 = vsel %vm234, %v3237, -inf
  %3242 = vmax.xlane.f32.xlu0 %v3241
  %v3243 = vpop.xlane.xlu0 %3242
  %v3244 = vsub.f32 %v3236, %v3240
  %v3245 = vsub.f32 %v3237, %v3243
  %v3246 = vmul.f32 %v3244, 1.442695
  %v3247 = vpow.pop %v3246
  %v3248 = vmul.f32 %v3245, 1.442695
  %v3249 = vpow.pop %v3248
  %v3250 = vsel %vm234, %v3247, 0.0
  %3251 = vadd.xlane.f32.xlu0 %v3250
  %v3252 = vpop.xlane.xlu0 %3251
  %v3253 = vsel %vm234, %v3249, 0.0
  %3254 = vadd.xlane.f32.xlu0 %v3253
  %v3255 = vpop.xlane.xlu0 %3254
  %v3256 = vrcp.pop %v3252
  %v3257 = vrcp.pop %v3255
  %v3258 = vmul.f32 %v3247, %v3256
  %v3259 = vmul.f32 %v3249, %v3257
  %v3260 = vpack.c.bf16 %v3259, %v3258
  %3261 = vrot.lane.b32.xlu0 %v2885, 72
  %v3262 = vpop.permute.xlu0 %3261
  %v3265 = vsel %vm234, %v3260, 0
  %3267 = vmatprep.subr.bf16.mxu0 0
  %3268 = vmatpush1.bf16.msra.mxu0 0
  %3269 = vmatprep.subr.bf16.mxu0 0
  %3270 = vmatpush1.bf16.msra.mxu0 0
  %3271 = vmatprep.subr.bf16.mxu0 0
  %3272 = vmatpush1.bf16.msra.mxu0 0
  %3273 = vmatprep.subr.bf16.mxu0 0
  %3274 = vmatpush1.bf16.msra.mxu0 0
  %3275 = vmatprep.subr.bf16.mxu0 0
  %3276 = vmatpush1.bf16.msra.mxu0 0
  %3277 = vmatprep.subr.bf16.mxu0 0
  %3278 = vmatpush1.bf16.msra.mxu0 0
  %3279 = vmatprep.subr.bf16.mxu0 0
  %3280 = vmatpush1.bf16.msra.mxu0 0
  %3281 = vmatprep.subr.bf16.mxu0 0
  %3282 = vmatpush1.bf16.msra.mxu0 %v3262
  %3283 = vmatprep.subr.bf16.mxu0 0
  %3284 = vmatpush2.bf16.msra.mxu0 0
  %3285 = vmatprep.subr.bf16.mxu0 0
  %3286 = vmatpush2.bf16.msra.mxu0 0
  %3287 = vmatprep.subr.bf16.mxu0 0
  %3288 = vmatpush2.bf16.msra.mxu0 0
  %3289 = vmatprep.subr.bf16.mxu0 0
  %3290 = vmatpush2.bf16.msra.mxu0 0
  %3291 = vmatprep.subr.bf16.mxu0 0
  %3292 = vmatpush2.bf16.msra.mxu0 0
  %3293 = vmatprep.subr.bf16.mxu0 0
  %3294 = vmatpush2.bf16.msra.mxu0 0
  %3295 = vmatprep.subr.bf16.mxu0 0
  %3296 = vmatpush2.bf16.msra.mxu0 0
  %3297 = vmatprep.subr.bf16.mxu0 0
  %3298 = vmatpush2.bf16.msra.mxu0 0
  %3299 = vmatprep.mubr.bf16.mxu0 0
  %3300 = vmatmul.mubr.bf16.gmra.mxu0 %v3265
  %v3301 = vpop.f32.mrf.mxu0
  %v3302 = vadd.f32 0.0, %v3301
  %v3303 = vpop.f32.mrf.mxu0
  %v3304 = vpop.f32.mrf.mxu0
  %v3305 = vadd.f32 0.0, %v3304
  %v3306 = vpop.f32.mrf.mxu0
  %3307 = vdwg.mxu0
  %3310 = vrot.lane.b32.xlu0 %v3054, 8
  %v3311 = vpop.permute.xlu0 %3310
  %3312 = vrot.lane.b32.xlu0 %v3057, 8
  %v3313 = vpop.permute.xlu0 %3312
  %3318 = vrot.lane.b32.xlu0 %v3178, 16
  %v3319 = vpop.permute.xlu0 %3318
  %3320 = vrot.lane.b32.xlu0 %v3181, 16
  %v3321 = vpop.permute.xlu0 %3320
  %3326 = vrot.lane.b32.xlu0 %v3302, 24
  %v3327 = vpop.permute.xlu0 %3326
  %3328 = vrot.lane.b32.xlu0 %v3305, 24
  %v3329 = vpop.permute.xlu0 %3328
  %v3332 = vsel %vm181, %v2929, %v3311
  %v3333 = vsel %vm181, %v2932, %v3313
  %v3334 = vsel %vm234, %v3332, %v3319
  %v3335 = vsel %vm234, %v3333, %v3321
  %v3336 = vsel %vm706, %v3334, %v3327
  %v3337 = vsel %vm706, %v3335, %v3329
  %v3338 = vpack.c.bf16 %v3337, %v3336
  %3339 = vrot.lane.b32.xlu0 %v2680, 32
  %v3340 = vpop.permute.xlu0 %3339
  %3341 = vrot.lane.b32.xlu0 %v2681, 32
  %v3342 = vpop.permute.xlu0 %3341
  %v3346 = vsel %vm38, %v3338, 0
  %3348 = vmatprep.subr.bf16.mxu0 0
  %3349 = vmatpush1.bf16.msra.mxu0 0
  %3350 = vmatprep.subr.bf16.mxu0 0
  %3351 = vmatpush1.bf16.msra.mxu0 0
  %3352 = vmatprep.subr.bf16.mxu0 0
  %3353 = vmatpush1.bf16.msra.mxu0 0
  %3354 = vmatprep.subr.bf16.mxu0 0
  %3355 = vmatpush1.bf16.msra.mxu0 0
  %3356 = vmatprep.subr.bf16.mxu0 0
  %3357 = vmatpush1.bf16.msra.mxu0 0
  %3358 = vmatprep.subr.bf16.mxu0 0
  %3359 = vmatpush1.bf16.msra.mxu0 0
  %3360 = vmatprep.subr.bf16.mxu0 0
  %3361 = vmatpush1.bf16.msra.mxu0 %v3342
  %3362 = vmatprep.subr.bf16.mxu0 0
  %3363 = vmatpush1.bf16.msra.mxu0 %v3340
  %3364 = vmatprep.subr.bf16.mxu0 0
  %3365 = vmatpush2.bf16.msra.mxu0 0
  %3366 = vmatprep.subr.bf16.mxu0 0
  %3367 = vmatpush2.bf16.msra.mxu0 0
  %3368 = vmatprep.subr.bf16.mxu0 0
  %3369 = vmatpush2.bf16.msra.mxu0 0
  %3370 = vmatprep.subr.bf16.mxu0 0
  %3371 = vmatpush2.bf16.msra.mxu0 0
  %3372 = vmatprep.subr.bf16.mxu0 0
  %3373 = vmatpush2.bf16.msra.mxu0 0
  %3374 = vmatprep.subr.bf16.mxu0 0
  %3375 = vmatpush2.bf16.msra.mxu0 0
  %3376 = vmatprep.subr.bf16.mxu0 0
  %3377 = vmatpush2.bf16.msra.mxu0 0
  %3378 = vmatprep.subr.bf16.mxu0 0
  %3379 = vmatpush2.bf16.msra.mxu0 0
  %3380 = vmatprep.mubr.bf16.mxu0 0
  %3381 = vmatmul.mubr.bf16.gmra.mxu0 %v3346
  %v3382 = vpop.f32.mrf.mxu0
  %v3383 = vadd.f32 0.0, %v3382
  %v3384 = vpop.f32.mrf.mxu0
  %v3385 = vpop.f32.mrf.mxu0
  %v3386 = vadd.f32 0.0, %v3385
  %v3387 = vpop.f32.mrf.mxu0
  %3388 = vdwg.mxu0
  %v3389 = vadd.f32 %v2596, %v3383
  %v3390 = vadd.f32 %v2597, %v3386
  %v3391 = vsel %vm38, %v3389, 0.0
  %3392 = vadd.xlane.f32.xlu0 %v3391
  %v3393 = vpop.xlane.xlu0 %3392
  %v3394 = vsel %vm38, %v3390, 0.0
  %3395 = vadd.xlane.f32.xlu0 %v3394
  %v3396 = vpop.xlane.xlu0 %3395
  %v3397 = vmul.f32 %v3393, %v45
  %v3398 = vmul.f32 %v3396, %v45
  %v3399 = vsub.f32 %v3389, %v3397
  %v3400 = vsub.f32 %v3390, %v3398
  %v3401 = vmul.f32 %v3399, %v3399
  %v3402 = vmul.f32 %v3400, %v3400
  %v3403 = vsel %vm38, %v3401, 0.0
  %3404 = vadd.xlane.f32.xlu0 %v3403
  %v3405 = vpop.xlane.xlu0 %3404
  %v3406 = vsel %vm38, %v3402, 0.0
  %3407 = vadd.xlane.f32.xlu0 %v3406
  %v3408 = vpop.xlane.xlu0 %3407
  %v3409 = vmul.f32 %v3405, %v45
  %v3410 = vmul.f32 %v3408, %v45
  %v3411 = vadd.f32 %v3409, 1e-05
  %v3412 = vadd.f32 %v3410, 1e-05
  %v3413 = vrsqrt.pop %v3411
  %v3414 = vrsqrt.pop %v3412
  %v3415 = vmul.f32 %v3399, %v3413
  %v3416 = vmul.f32 %v3400, %v3414
  %v3417 = vlaneseq
  %v3418 = vshrl.u32 %v3417, 7
  %v3419 = vsub.s32 0, %v3418
  %v3420 = vrot.slane %v32, %v3419
  %v3421 = vmul.f32 %v3415, %v3420
  %v3422 = vmul.f32 %v3416, %v3420
  %v3423 = vlaneseq
  %v3424 = vshrl.u32 %v3423, 7
  %v3425 = vsub.s32 1, %v3424
  %v3426 = vrot.slane %v32, %v3425
  %v3427 = vadd.f32 %v3421, %v3426
  %v3428 = vadd.f32 %v3422, %v3426
  %v3429 = vpack.c.bf16 %v3428, %v3427
  %v3430 = vld [vmem:[%s6 + $0x18] sm:$0xf]
  %v3431 = vld [vmem:[%s6 + $0x44] sm:$0xf]
  %v3432 = vld [vmem:[%s6 + $0x70] sm:$0xf]
  %v3433 = vld [vmem:[%s6 + $0x9c] sm:$0xf]
  %v3434 = vlaneseq
  %v3435 = vshrl.u32 %v3434, 7
  %v3436 = vsub.s32 2, %v3435
  %v3437 = vrot.slane %v32, %v3436
  %v3442 = vunpack.c.l.b16 %v3430
  %v3443 = vunpack.c.l.b16 %v3431
  %v3444 = vunpack.c.l.b16 %v3432
  %v3445 = vunpack.c.l.b16 %v3433
  %v3446 = vpack.c.b16 %v3443, %v3442
  %v3447 = vpack.c.b16 %v3445, %v3444
  %v3451 = vsel %vm38, %v3429, 0
  %3453 = vmatprep.subr.bf16.mxu0 0
  %3454 = vmatpush1.bf16.msra.mxu0 0
  %3455 = vmatprep.subr.bf16.mxu0 0
  %3456 = vmatpush1.bf16.msra.mxu0 0
  %3457 = vmatprep.subr.bf16.mxu0 0
  %3458 = vmatpush1.bf16.msra.mxu0 0
  %3459 = vmatprep.subr.bf16.mxu0 0
  %3460 = vmatpush1.bf16.msra.mxu0 0
  %3461 = vmatprep.subr.bf16.mxu0 0
  %3462 = vmatpush1.bf16.msra.mxu0 0
  %3463 = vmatprep.subr.bf16.mxu0 0
  %3464 = vmatpush1.bf16.msra.mxu0 0
  %3465 = vmatprep.subr.bf16.mxu0 0
  %3466 = vmatpush1.bf16.msra.mxu0 %v3447
  %3467 = vmatprep.subr.bf16.mxu0 0
  %3468 = vmatpush1.bf16.msra.mxu0 %v3446
  %3469 = vmatprep.subr.bf16.mxu0 0
  %3470 = vmatpush2.bf16.msra.mxu0 0
  %3471 = vmatprep.subr.bf16.mxu0 0
  %3472 = vmatpush2.bf16.msra.mxu0 0
  %3473 = vmatprep.subr.bf16.mxu0 0
  %3474 = vmatpush2.bf16.msra.mxu0 0
  %3475 = vmatprep.subr.bf16.mxu0 0
  %3476 = vmatpush2.bf16.msra.mxu0 0
  %3477 = vmatprep.subr.bf16.mxu0 0
  %3478 = vmatpush2.bf16.msra.mxu0 0
  %3479 = vmatprep.subr.bf16.mxu0 0
  %3480 = vmatpush2.bf16.msra.mxu0 0
  %3481 = vmatprep.subr.bf16.mxu0 0
  %3482 = vmatpush2.bf16.msra.mxu0 0
  %3483 = vmatprep.subr.bf16.mxu0 0
  %3484 = vmatpush2.bf16.msra.mxu0 0
  %3485 = vmatprep.mubr.bf16.mxu0 0
  %3486 = vmatmul.mubr.bf16.gmra.mxu0 %v3451
  %v3487 = vpop.f32.mrf.mxu0
  %v3488 = vadd.f32 %v3437, %v3487
  %v3489 = vpop.f32.mrf.mxu0
  %v3490 = vpop.f32.mrf.mxu0
  %v3491 = vadd.f32 %v3437, %v3490
  %v3492 = vpop.f32.mrf.mxu0
  %3493 = vdwg.mxu0
  %v3494 = vmax.f32 %v3488, 0.0
  %v3495 = vmax.f32 %v3491, 0.0
  %v3496 = vpack.c.bf16 %v3495, %v3494
  %v3497 = vlaneseq
  %v3498 = vshrl.u32 %v3497, 7
  %v3499 = vsub.s32 3, %v3498
  %v3500 = vrot.slane %v32, %v3499
  %3501 = vrot.lane.b32.xlu0 %v920, 64
  %v3502 = vpop.permute.xlu0 %3501
  %3503 = vrot.lane.b32.xlu0 %v921, 64
  %v3504 = vpop.permute.xlu0 %3503
  %3505 = vrot.lane.b32.xlu0 %v922, 64
  %v3506 = vpop.permute.xlu0 %3505
  %3507 = vrot.lane.b32.xlu0 %v923, 64
  %v3508 = vpop.permute.xlu0 %3507
  %3509 = vrot.lane.b32.xlu0 %v924, 64
  %v3510 = vpop.permute.xlu0 %3509
  %3511 = vrot.lane.b32.xlu0 %v925, 64
  %v3512 = vpop.permute.xlu0 %3511
  %3513 = vrot.lane.b32.xlu0 %v926, 64
  %v3514 = vpop.permute.xlu0 %3513
  %3515 = vrot.lane.b32.xlu0 %v927, 64
  %v3516 = vpop.permute.xlu0 %3515
  %3525 = vmatprep.subr.bf16.mxu0 0
  %3526 = vmatpush1.bf16.msra.mxu0 %v3516
  %3527 = vmatprep.subr.bf16.mxu0 0
  %3528 = vmatpush1.bf16.msra.mxu0 %v3514
  %3529 = vmatprep.subr.bf16.mxu0 0
  %3530 = vmatpush1.bf16.msra.mxu0 %v3512
  %3531 = vmatprep.subr.bf16.mxu0 0
  %3532 = vmatpush1.bf16.msra.mxu0 %v3510
  %3533 = vmatprep.subr.bf16.mxu0 0
  %3534 = vmatpush1.bf16.msra.mxu0 %v3508
  %3535 = vmatprep.subr.bf16.mxu0 0
  %3536 = vmatpush1.bf16.msra.mxu0 %v3506
  %3537 = vmatprep.subr.bf16.mxu0 0
  %3538 = vmatpush1.bf16.msra.mxu0 %v3504
  %3539 = vmatprep.subr.bf16.mxu0 0
  %3540 = vmatpush1.bf16.msra.mxu0 %v3502
  %3541 = vmatprep.subr.bf16.mxu0 0
  %3542 = vmatpush2.bf16.msra.mxu0 0
  %3543 = vmatprep.subr.bf16.mxu0 0
  %3544 = vmatpush2.bf16.msra.mxu0 0
  %3545 = vmatprep.subr.bf16.mxu0 0
  %3546 = vmatpush2.bf16.msra.mxu0 0
  %3547 = vmatprep.subr.bf16.mxu0 0
  %3548 = vmatpush2.bf16.msra.mxu0 0
  %3549 = vmatprep.subr.bf16.mxu0 0
  %3550 = vmatpush2.bf16.msra.mxu0 0
  %3551 = vmatprep.subr.bf16.mxu0 0
  %3552 = vmatpush2.bf16.msra.mxu0 0
  %3553 = vmatprep.subr.bf16.mxu0 0
  %3554 = vmatpush2.bf16.msra.mxu0 0
  %3555 = vmatprep.subr.bf16.mxu0 0
  %3556 = vmatpush2.bf16.msra.mxu0 0
  %3557 = vmatprep.mubr.bf16.mxu0 0
  %3558 = vmatmul.mubr.bf16.gmra.mxu0 %v3496
  %v3559 = vpop.f32.mrf.mxu0
  %v3560 = vadd.f32 %v3500, %v3559
  %v3561 = vpop.f32.mrf.mxu0
  %v3562 = vpop.f32.mrf.mxu0
  %v3563 = vadd.f32 %v3500, %v3562
  %v3564 = vpop.f32.mrf.mxu0
  %3565 = vdwg.mxu0
  %v3566 = vadd.f32 %v3389, %v3560
  %v3567 = vadd.f32 %v3390, %v3563
  %v3568 = vsel %vm38, %v3566, 0.0
  %3569 = vadd.xlane.f32.xlu0 %v3568
  %v3570 = vpop.xlane.xlu0 %3569
  %v3571 = vsel %vm38, %v3567, 0.0
  %3572 = vadd.xlane.f32.xlu0 %v3571
  %v3573 = vpop.xlane.xlu0 %3572
  %v3574 = vmul.f32 %v3570, %v45
  %v3575 = vmul.f32 %v3573, %v45
  %v3576 = vsub.f32 %v3566, %v3574
  %v3577 = vsub.f32 %v3567, %v3575
  %v3578 = vmul.f32 %v3576, %v3576
  %v3579 = vmul.f32 %v3577, %v3577
  %v3580 = vsel %vm38, %v3578, 0.0
  %3581 = vadd.xlane.f32.xlu0 %v3580
  %v3582 = vpop.xlane.xlu0 %3581
  %v3583 = vsel %vm38, %v3579, 0.0
  %3584 = vadd.xlane.f32.xlu0 %v3583
  %v3585 = vpop.xlane.xlu0 %3584
  %v3586 = vmul.f32 %v3582, %v45
  %v3587 = vmul.f32 %v3585, %v45
  %v3588 = vadd.f32 %v3586, 1e-05
  %v3589 = vadd.f32 %v3587, 1e-05
  %v3590 = vrsqrt.pop %v3588
  %v3591 = vrsqrt.pop %v3589
  %v3592 = vmul.f32 %v3576, %v3590
  %v3593 = vmul.f32 %v3577, %v3591
  %v3594 = vlaneseq
  %v3595 = vshrl.u32 %v3594, 7
  %v3596 = vsub.s32 4, %v3595
  %v3597 = vrot.slane %v32, %v3596
  %v3598 = vmul.f32 %v3592, %v3597
  %v3599 = vmul.f32 %v3593, %v3597
  %v3600 = vlaneseq
  %v3601 = vshrl.u32 %v3600, 7
  %v3602 = vsub.s32 5, %v3601
  %v3603 = vrot.slane %v32, %v3602
  %v3604 = vadd.f32 %v3598, %v3603
  %v3605 = vadd.f32 %v3599, %v3603
  %v3606 = vld [vmem:[%s6 + $0x1c] sm:$0xf]
  %v3607 = vld [vmem:[%s6 + $0x48] sm:$0xf]
  %v3608 = vld [vmem:[%s6 + $0x74] sm:$0xf]
  %v3609 = vld [vmem:[%s6 + $0xa0] sm:$0xf]
  %v3610 = vpack.c.bf16 %v3605, %v3604
  %v3615 = vunpack.c.l.b16 %v3606
  %v3616 = vunpack.c.l.b16 %v3607
  %v3617 = vunpack.c.l.b16 %v3608
  %v3618 = vunpack.c.l.b16 %v3609
  %v3619 = vpack.c.b16 %v3616, %v3615
  %v3620 = vpack.c.b16 %v3618, %v3617
  %v3624 = vsel %vm38, %v3610, 0
  %3626 = vmatprep.subr.bf16.mxu0 0
  %3627 = vmatpush1.bf16.msra.mxu0 0
  %3628 = vmatprep.subr.bf16.mxu0 0
  %3629 = vmatpush1.bf16.msra.mxu0 0
  %3630 = vmatprep.subr.bf16.mxu0 0
  %3631 = vmatpush1.bf16.msra.mxu0 0
  %3632 = vmatprep.subr.bf16.mxu0 0
  %3633 = vmatpush1.bf16.msra.mxu0 0
  %3634 = vmatprep.subr.bf16.mxu0 0
  %3635 = vmatpush1.bf16.msra.mxu0 0
  %3636 = vmatprep.subr.bf16.mxu0 0
  %3637 = vmatpush1.bf16.msra.mxu0 0
  %3638 = vmatprep.subr.bf16.mxu0 0
  %3639 = vmatpush1.bf16.msra.mxu0 %v3620
  %3640 = vmatprep.subr.bf16.mxu0 0
  %3641 = vmatpush1.bf16.msra.mxu0 %v3619
  %3642 = vmatprep.subr.bf16.mxu0 0
  %3643 = vmatpush2.bf16.msra.mxu0 0
  %3644 = vmatprep.subr.bf16.mxu0 0
  %3645 = vmatpush2.bf16.msra.mxu0 0
  %3646 = vmatprep.subr.bf16.mxu0 0
  %3647 = vmatpush2.bf16.msra.mxu0 0
  %3648 = vmatprep.subr.bf16.mxu0 0
  %3649 = vmatpush2.bf16.msra.mxu0 0
  %3650 = vmatprep.subr.bf16.mxu0 0
  %3651 = vmatpush2.bf16.msra.mxu0 0
  %3652 = vmatprep.subr.bf16.mxu0 0
  %3653 = vmatpush2.bf16.msra.mxu0 0
  %3654 = vmatprep.subr.bf16.mxu0 0
  %3655 = vmatpush2.bf16.msra.mxu0 0
  %3656 = vmatprep.subr.bf16.mxu0 0
  %3657 = vmatpush2.bf16.msra.mxu0 0
  %3658 = vmatprep.mubr.bf16.mxu0 0
  %3659 = vmatmul.mubr.bf16.gmra.mxu0 %v3624
  %v3660 = vpop.f32.mrf.mxu0
  %v3661 = vadd.f32 0.0, %v3660
  %v3662 = vpop.f32.mrf.mxu0
  %v3663 = vpop.f32.mrf.mxu0
  %v3664 = vadd.f32 0.0, %v3663
  %v3665 = vpop.f32.mrf.mxu0
  %3666 = vdwg.mxu0
  %3669 = vrot.lane.b32.xlu0 %v3661, 96
  %v3670 = vpop.permute.xlu0 %3669
  %3671 = vrot.lane.b32.xlu0 %v3664, 96
  %v3672 = vpop.permute.xlu0 %3671
  %3675 = vxpose.xlu0.b32.start [1/16] %v3670, 128
  %3676 = vxpose.xlu0.b32.cont [2/16] %v3672, 128
  %3677 = vxpose.xlu0.b32.cont [3/16] 0.0, 128
  %3678 = vxpose.xlu0.b32.cont [4/16] 0.0, 128
  %3679 = vxpose.xlu0.b32.cont [5/16] 0.0, 128
  %3680 = vxpose.xlu0.b32.cont [6/16] 0.0, 128
  %3681 = vxpose.xlu0.b32.cont [7/16] 0.0, 128
  %3682 = vxpose.xlu0.b32.cont [8/16] 0.0, 128
  %3683 = vxpose.xlu0.b32.cont [9/16] 0.0, 128
  %3684 = vxpose.xlu0.b32.cont [10/16] 0.0, 128
  %3685 = vxpose.xlu0.b32.cont [11/16] 0.0, 128
  %3686 = vxpose.xlu0.b32.cont [12/16] 0.0, 128
  %3687 = vxpose.xlu0.b32.cont [13/16] 0.0, 128
  %3688 = vxpose.xlu0.b32.cont [14/16] 0.0, 128
  %3689 = vxpose.xlu0.b32.cont [15/16] 0.0, 128
  %3690 = vxpose.xlu0.b32.end [16/16] 0.0, 128
  %v3691 = vpop.trf.xlu0
  %v3692 = vpop.trf.xlu0
  %v3693 = vpop.trf.xlu0
  %v3694 = vpop.trf.xlu0
  %v3695 = vpop.trf.xlu0
  %v3696 = vpop.trf.xlu0
  %v3697 = vpop.trf.xlu0
  %v3698 = vpop.trf.xlu0
  %v3699 = vpop.trf.xlu0
  %v3700 = vpop.trf.xlu0
  %v3701 = vpop.trf.xlu0
  %v3702 = vpop.trf.xlu0
  %v3703 = vpop.trf.xlu0
  %v3704 = vpop.trf.xlu0
  %v3705 = vpop.trf.xlu0
  %v3706 = vpop.trf.xlu0
  %v3707 = vpack.c.bf16 %v3664, %v3661
  %v3708 = vpack.c.bf16 %v3691, %v3691
  %v3710 = vsel %vm181, %v3707, 0
  %v3713 = vsel %vm185, %v3708, 0
  %3715 = vmatprep.subr.bf16.mxu0 0
  %3716 = vmatpush1.bf16.msra.mxu0 0
  %3717 = vmatprep.subr.bf16.mxu0 0
  %3718 = vmatpush1.bf16.msra.mxu0 0
  %3719 = vmatprep.subr.bf16.mxu0 0
  %3720 = vmatpush1.bf16.msra.mxu0 0
  %3721 = vmatprep.subr.bf16.mxu0 0
  %3722 = vmatpush1.bf16.msra.mxu0 0
  %3723 = vmatprep.subr.bf16.mxu0 0
  %3724 = vmatpush1.bf16.msra.mxu0 0
  %3725 = vmatprep.subr.bf16.mxu0 0
  %3726 = vmatpush1.bf16.msra.mxu0 0
  %3727 = vmatprep.subr.bf16.mxu0 0
  %3728 = vmatpush1.bf16.msra.mxu0 0
  %3729 = vmatprep.subr.bf16.mxu0 0
  %3730 = vmatpush1.bf16.msra.mxu0 %v3713
  %3731 = vmatprep.subr.bf16.mxu0 0
  %3732 = vmatpush2.bf16.msra.mxu0 0
  %3733 = vmatprep.subr.bf16.mxu0 0
  %3734 = vmatpush2.bf16.msra.mxu0 0
  %3735 = vmatprep.subr.bf16.mxu0 0
  %3736 = vmatpush2.bf16.msra.mxu0 0
  %3737 = vmatprep.subr.bf16.mxu0 0
  %3738 = vmatpush2.bf16.msra.mxu0 0
  %3739 = vmatprep.subr.bf16.mxu0 0
  %3740 = vmatpush2.bf16.msra.mxu0 0
  %3741 = vmatprep.subr.bf16.mxu0 0
  %3742 = vmatpush2.bf16.msra.mxu0 0
  %3743 = vmatprep.subr.bf16.mxu0 0
  %3744 = vmatpush2.bf16.msra.mxu0 0
  %3745 = vmatprep.subr.bf16.mxu0 0
  %3746 = vmatpush2.bf16.msra.mxu0 0
  %3747 = vmatprep.mubr.bf16.mxu0 0
  %3748 = vmatmul.mubr.bf16.gmra.mxu0 %v3710
  %v3749 = vpop.f32.mrf.mxu0
  %v3750 = vadd.f32 0.0, %v3749
  %v3751 = vpop.f32.mrf.mxu0
  %v3752 = vpop.f32.mrf.mxu0
  %v3753 = vadd.f32 0.0, %v3752
  %v3754 = vpop.f32.mrf.mxu0
  %3755 = vdwg.mxu0
  %v3756 = vmul.f32 %v3750, 0.35355338
  %v3757 = vmul.f32 %v3753, 0.35355338
  %v3758 = vadd.f32 %v3756, %v1876
  %v3759 = vadd.f32 %v3757, %v1877
  %v3760 = vsel %vm234, %v3758, -inf
  %3761 = vmax.xlane.f32.xlu0 %v3760
  %v3762 = vpop.xlane.xlu0 %3761
  %v3763 = vsel %vm234, %v3759, -inf
  %3764 = vmax.xlane.f32.xlu0 %v3763
  %v3765 = vpop.xlane.xlu0 %3764
  %v3766 = vsub.f32 %v3758, %v3762
  %v3767 = vsub.f32 %v3759, %v3765
  %v3768 = vmul.f32 %v3766, 1.442695
  %v3769 = vpow.pop %v3768
  %v3770 = vmul.f32 %v3767, 1.442695
  %v3771 = vpow.pop %v3770
  %v3772 = vsel %vm234, %v3769, 0.0
  %3773 = vadd.xlane.f32.xlu0 %v3772
  %v3774 = vpop.xlane.xlu0 %3773
  %v3775 = vsel %vm234, %v3771, 0.0
  %3776 = vadd.xlane.f32.xlu0 %v3775
  %v3777 = vpop.xlane.xlu0 %3776
  %v3778 = vrcp.pop %v3774
  %v3779 = vrcp.pop %v3777
  %v3780 = vmul.f32 %v3769, %v3778
  %v3781 = vmul.f32 %v3771, %v3779
  %v3782 = vpack.c.bf16 %v3781, %v3780
  %3784 = vrot.lane.b32.xlu0 %v3707, 64
  %v3785 = vpop.permute.xlu0 %3784
  %v3788 = vsel %vm234, %v3782, 0
  %3790 = vmatprep.subr.bf16.mxu0 0
  %3791 = vmatpush1.bf16.msra.mxu0 0
  %3792 = vmatprep.subr.bf16.mxu0 0
  %3793 = vmatpush1.bf16.msra.mxu0 0
  %3794 = vmatprep.subr.bf16.mxu0 0
  %3795 = vmatpush1.bf16.msra.mxu0 0
  %3796 = vmatprep.subr.bf16.mxu0 0
  %3797 = vmatpush1.bf16.msra.mxu0 0
  %3798 = vmatprep.subr.bf16.mxu0 0
  %3799 = vmatpush1.bf16.msra.mxu0 0
  %3800 = vmatprep.subr.bf16.mxu0 0
  %3801 = vmatpush1.bf16.msra.mxu0 0
  %3802 = vmatprep.subr.bf16.mxu0 0
  %3803 = vmatpush1.bf16.msra.mxu0 0
  %3804 = vmatprep.subr.bf16.mxu0 0
  %3805 = vmatpush1.bf16.msra.mxu0 %v3785
  %3806 = vmatprep.subr.bf16.mxu0 0
  %3807 = vmatpush2.bf16.msra.mxu0 0
  %3808 = vmatprep.subr.bf16.mxu0 0
  %3809 = vmatpush2.bf16.msra.mxu0 0
  %3810 = vmatprep.subr.bf16.mxu0 0
  %3811 = vmatpush2.bf16.msra.mxu0 0
  %3812 = vmatprep.subr.bf16.mxu0 0
  %3813 = vmatpush2.bf16.msra.mxu0 0
  %3814 = vmatprep.subr.bf16.mxu0 0
  %3815 = vmatpush2.bf16.msra.mxu0 0
  %3816 = vmatprep.subr.bf16.mxu0 0
  %3817 = vmatpush2.bf16.msra.mxu0 0
  %3818 = vmatprep.subr.bf16.mxu0 0
  %3819 = vmatpush2.bf16.msra.mxu0 0
  %3820 = vmatprep.subr.bf16.mxu0 0
  %3821 = vmatpush2.bf16.msra.mxu0 0
  %3822 = vmatprep.mubr.bf16.mxu0 0
  %3823 = vmatmul.mubr.bf16.gmra.mxu0 %v3788
  %v3824 = vpop.f32.mrf.mxu0
  %v3825 = vadd.f32 0.0, %v3824
  %v3826 = vpop.f32.mrf.mxu0
  %v3827 = vpop.f32.mrf.mxu0
  %v3828 = vadd.f32 0.0, %v3827
  %v3829 = vpop.f32.mrf.mxu0
  %3830 = vdwg.mxu0
  %v3831 = vpack.c.bf16 %v3692, %v3692
  %3832 = vrot.lane.b32.xlu0 %v3707, 120
  %v3833 = vpop.permute.xlu0 %3832
  %v3835 = vsel %vm181, %v3833, 0
  %v3838 = vsel %vm185, %v3831, 0
  %3840 = vmatprep.subr.bf16.mxu0 0
  %3841 = vmatpush1.bf16.msra.mxu0 0
  %3842 = vmatprep.subr.bf16.mxu0 0
  %3843 = vmatpush1.bf16.msra.mxu0 0
  %3844 = vmatprep.subr.bf16.mxu0 0
  %3845 = vmatpush1.bf16.msra.mxu0 0
  %3846 = vmatprep.subr.bf16.mxu0 0
  %3847 = vmatpush1.bf16.msra.mxu0 0
  %3848 = vmatprep.subr.bf16.mxu0 0
  %3849 = vmatpush1.bf16.msra.mxu0 0
  %3850 = vmatprep.subr.bf16.mxu0 0
  %3851 = vmatpush1.bf16.msra.mxu0 0
  %3852 = vmatprep.subr.bf16.mxu0 0
  %3853 = vmatpush1.bf16.msra.mxu0 0
  %3854 = vmatprep.subr.bf16.mxu0 0
  %3855 = vmatpush1.bf16.msra.mxu0 %v3838
  %3856 = vmatprep.subr.bf16.mxu0 0
  %3857 = vmatpush2.bf16.msra.mxu0 0
  %3858 = vmatprep.subr.bf16.mxu0 0
  %3859 = vmatpush2.bf16.msra.mxu0 0
  %3860 = vmatprep.subr.bf16.mxu0 0
  %3861 = vmatpush2.bf16.msra.mxu0 0
  %3862 = vmatprep.subr.bf16.mxu0 0
  %3863 = vmatpush2.bf16.msra.mxu0 0
  %3864 = vmatprep.subr.bf16.mxu0 0
  %3865 = vmatpush2.bf16.msra.mxu0 0
  %3866 = vmatprep.subr.bf16.mxu0 0
  %3867 = vmatpush2.bf16.msra.mxu0 0
  %3868 = vmatprep.subr.bf16.mxu0 0
  %3869 = vmatpush2.bf16.msra.mxu0 0
  %3870 = vmatprep.subr.bf16.mxu0 0
  %3871 = vmatpush2.bf16.msra.mxu0 0
  %3872 = vmatprep.mubr.bf16.mxu0 0
  %3873 = vmatmul.mubr.bf16.gmra.mxu0 %v3835
  %v3874 = vpop.f32.mrf.mxu0
  %v3875 = vadd.f32 0.0, %v3874
  %v3876 = vpop.f32.mrf.mxu0
  %v3877 = vpop.f32.mrf.mxu0
  %v3878 = vadd.f32 0.0, %v3877
  %v3879 = vpop.f32.mrf.mxu0
  %3880 = vdwg.mxu0
  %v3881 = vmul.f32 %v3875, 0.35355338
  %v3882 = vmul.f32 %v3878, 0.35355338
  %v3883 = vadd.f32 %v3881, %v1876
  %v3884 = vadd.f32 %v3882, %v1877
  %v3885 = vsel %vm234, %v3883, -inf
  %3886 = vmax.xlane.f32.xlu0 %v3885
  %v3887 = vpop.xlane.xlu0 %3886
  %v3888 = vsel %vm234, %v3884, -inf
  %3889 = vmax.xlane.f32.xlu0 %v3888
  %v3890 = vpop.xlane.xlu0 %3889
  %v3891 = vsub.f32 %v3883, %v3887
  %v3892 = vsub.f32 %v3884, %v3890
  %v3893 = vmul.f32 %v3891, 1.442695
  %v3894 = vpow.pop %v3893
  %v3895 = vmul.f32 %v3892, 1.442695
  %v3896 = vpow.pop %v3895
  %v3897 = vsel %vm234, %v3894, 0.0
  %3898 = vadd.xlane.f32.xlu0 %v3897
  %v3899 = vpop.xlane.xlu0 %3898
  %v3900 = vsel %vm234, %v3896, 0.0
  %3901 = vadd.xlane.f32.xlu0 %v3900
  %v3902 = vpop.xlane.xlu0 %3901
  %v3903 = vrcp.pop %v3899
  %v3904 = vrcp.pop %v3902
  %v3905 = vmul.f32 %v3894, %v3903
  %v3906 = vmul.f32 %v3896, %v3904
  %v3907 = vpack.c.bf16 %v3906, %v3905
  %3908 = vrot.lane.b32.xlu0 %v3707, 56
  %v3909 = vpop.permute.xlu0 %3908
  %v3912 = vsel %vm234, %v3907, 0
  %3914 = vmatprep.subr.bf16.mxu0 0
  %3915 = vmatpush1.bf16.msra.mxu0 0
  %3916 = vmatprep.subr.bf16.mxu0 0
  %3917 = vmatpush1.bf16.msra.mxu0 0
  %3918 = vmatprep.subr.bf16.mxu0 0
  %3919 = vmatpush1.bf16.msra.mxu0 0
  %3920 = vmatprep.subr.bf16.mxu0 0
  %3921 = vmatpush1.bf16.msra.mxu0 0
  %3922 = vmatprep.subr.bf16.mxu0 0
  %3923 = vmatpush1.bf16.msra.mxu0 0
  %3924 = vmatprep.subr.bf16.mxu0 0
  %3925 = vmatpush1.bf16.msra.mxu0 0
  %3926 = vmatprep.subr.bf16.mxu0 0
  %3927 = vmatpush1.bf16.msra.mxu0 0
  %3928 = vmatprep.subr.bf16.mxu0 0
  %3929 = vmatpush1.bf16.msra.mxu0 %v3909
  %3930 = vmatprep.subr.bf16.mxu0 0
  %3931 = vmatpush2.bf16.msra.mxu0 0
  %3932 = vmatprep.subr.bf16.mxu0 0
  %3933 = vmatpush2.bf16.msra.mxu0 0
  %3934 = vmatprep.subr.bf16.mxu0 0
  %3935 = vmatpush2.bf16.msra.mxu0 0
  %3936 = vmatprep.subr.bf16.mxu0 0
  %3937 = vmatpush2.bf16.msra.mxu0 0
  %3938 = vmatprep.subr.bf16.mxu0 0
  %3939 = vmatpush2.bf16.msra.mxu0 0
  %3940 = vmatprep.subr.bf16.mxu0 0
  %3941 = vmatpush2.bf16.msra.mxu0 0
  %3942 = vmatprep.subr.bf16.mxu0 0
  %3943 = vmatpush2.bf16.msra.mxu0 0
  %3944 = vmatprep.subr.bf16.mxu0 0
  %3945 = vmatpush2.bf16.msra.mxu0 0
  %3946 = vmatprep.mubr.bf16.mxu0 0
  %3947 = vmatmul.mubr.bf16.gmra.mxu0 %v3912
  %v3948 = vpop.f32.mrf.mxu0
  %v3949 = vadd.f32 0.0, %v3948
  %v3950 = vpop.f32.mrf.mxu0
  %v3951 = vpop.f32.mrf.mxu0
  %v3952 = vadd.f32 0.0, %v3951
  %v3953 = vpop.f32.mrf.mxu0
  %3954 = vdwg.mxu0
  %v3955 = vpack.c.bf16 %v3693, %v3693
  %3956 = vrot.lane.b32.xlu0 %v3707, 112
  %v3957 = vpop.permute.xlu0 %3956
  %v3959 = vsel %vm181, %v3957, 0
  %v3962 = vsel %vm185, %v3955, 0
  %3964 = vmatprep.subr.bf16.mxu0 0
  %3965 = vmatpush1.bf16.msra.mxu0 0
  %3966 = vmatprep.subr.bf16.mxu0 0
  %3967 = vmatpush1.bf16.msra.mxu0 0
  %3968 = vmatprep.subr.bf16.mxu0 0
  %3969 = vmatpush1.bf16.msra.mxu0 0
  %3970 = vmatprep.subr.bf16.mxu0 0
  %3971 = vmatpush1.bf16.msra.mxu0 0
  %3972 = vmatprep.subr.bf16.mxu0 0
  %3973 = vmatpush1.bf16.msra.mxu0 0
  %3974 = vmatprep.subr.bf16.mxu0 0
  %3975 = vmatpush1.bf16.msra.mxu0 0
  %3976 = vmatprep.subr.bf16.mxu0 0
  %3977 = vmatpush1.bf16.msra.mxu0 0
  %3978 = vmatprep.subr.bf16.mxu0 0
  %3979 = vmatpush1.bf16.msra.mxu0 %v3962
  %3980 = vmatprep.subr.bf16.mxu0 0
  %3981 = vmatpush2.bf16.msra.mxu0 0
  %3982 = vmatprep.subr.bf16.mxu0 0
  %3983 = vmatpush2.bf16.msra.mxu0 0
  %3984 = vmatprep.subr.bf16.mxu0 0
  %3985 = vmatpush2.bf16.msra.mxu0 0
  %3986 = vmatprep.subr.bf16.mxu0 0
  %3987 = vmatpush2.bf16.msra.mxu0 0
  %3988 = vmatprep.subr.bf16.mxu0 0
  %3989 = vmatpush2.bf16.msra.mxu0 0
  %3990 = vmatprep.subr.bf16.mxu0 0
  %3991 = vmatpush2.bf16.msra.mxu0 0
  %3992 = vmatprep.subr.bf16.mxu0 0
  %3993 = vmatpush2.bf16.msra.mxu0 0
  %3994 = vmatprep.subr.bf16.mxu0 0
  %3995 = vmatpush2.bf16.msra.mxu0 0
  %3996 = vmatprep.mubr.bf16.mxu0 0
  %3997 = vmatmul.mubr.bf16.gmra.mxu0 %v3959
  %v3998 = vpop.f32.mrf.mxu0
  %v3999 = vadd.f32 0.0, %v3998
  %v4000 = vpop.f32.mrf.mxu0
  %v4001 = vpop.f32.mrf.mxu0
  %v4002 = vadd.f32 0.0, %v4001
  %v4003 = vpop.f32.mrf.mxu0
  %4004 = vdwg.mxu0
  %v4005 = vmul.f32 %v3999, 0.35355338
  %v4006 = vmul.f32 %v4002, 0.35355338
  %v4007 = vadd.f32 %v4005, %v1876
  %v4008 = vadd.f32 %v4006, %v1877
  %v4009 = vsel %vm234, %v4007, -inf
  %4010 = vmax.xlane.f32.xlu0 %v4009
  %v4011 = vpop.xlane.xlu0 %4010
  %v4012 = vsel %vm234, %v4008, -inf
  %4013 = vmax.xlane.f32.xlu0 %v4012
  %v4014 = vpop.xlane.xlu0 %4013
  %v4015 = vsub.f32 %v4007, %v4011
  %v4016 = vsub.f32 %v4008, %v4014
  %v4017 = vmul.f32 %v4015, 1.442695
  %v4018 = vpow.pop %v4017
  %v4019 = vmul.f32 %v4016, 1.442695
  %v4020 = vpow.pop %v4019
  %v4021 = vsel %vm234, %v4018, 0.0
  %4022 = vadd.xlane.f32.xlu0 %v4021
  %v4023 = vpop.xlane.xlu0 %4022
  %v4024 = vsel %vm234, %v4020, 0.0
  %4025 = vadd.xlane.f32.xlu0 %v4024
  %v4026 = vpop.xlane.xlu0 %4025
  %v4027 = vrcp.pop %v4023
  %v4028 = vrcp.pop %v4026
  %v4029 = vmul.f32 %v4018, %v4027
  %v4030 = vmul.f32 %v4020, %v4028
  %v4031 = vpack.c.bf16 %v4030, %v4029
  %4032 = vrot.lane.b32.xlu0 %v3707, 48
  %v4033 = vpop.permute.xlu0 %4032
  %v4036 = vsel %vm234, %v4031, 0
  %4038 = vmatprep.subr.bf16.mxu0 0
  %4039 = vmatpush1.bf16.msra.mxu0 0
  %4040 = vmatprep.subr.bf16.mxu0 0
  %4041 = vmatpush1.bf16.msra.mxu0 0
  %4042 = vmatprep.subr.bf16.mxu0 0
  %4043 = vmatpush1.bf16.msra.mxu0 0
  %4044 = vmatprep.subr.bf16.mxu0 0
  %4045 = vmatpush1.bf16.msra.mxu0 0
  %4046 = vmatprep.subr.bf16.mxu0 0
  %4047 = vmatpush1.bf16.msra.mxu0 0
  %4048 = vmatprep.subr.bf16.mxu0 0
  %4049 = vmatpush1.bf16.msra.mxu0 0
  %4050 = vmatprep.subr.bf16.mxu0 0
  %4051 = vmatpush1.bf16.msra.mxu0 0
  %4052 = vmatprep.subr.bf16.mxu0 0
  %4053 = vmatpush1.bf16.msra.mxu0 %v4033
  %4054 = vmatprep.subr.bf16.mxu0 0
  %4055 = vmatpush2.bf16.msra.mxu0 0
  %4056 = vmatprep.subr.bf16.mxu0 0
  %4057 = vmatpush2.bf16.msra.mxu0 0
  %4058 = vmatprep.subr.bf16.mxu0 0
  %4059 = vmatpush2.bf16.msra.mxu0 0
  %4060 = vmatprep.subr.bf16.mxu0 0
  %4061 = vmatpush2.bf16.msra.mxu0 0
  %4062 = vmatprep.subr.bf16.mxu0 0
  %4063 = vmatpush2.bf16.msra.mxu0 0
  %4064 = vmatprep.subr.bf16.mxu0 0
  %4065 = vmatpush2.bf16.msra.mxu0 0
  %4066 = vmatprep.subr.bf16.mxu0 0
  %4067 = vmatpush2.bf16.msra.mxu0 0
  %4068 = vmatprep.subr.bf16.mxu0 0
  %4069 = vmatpush2.bf16.msra.mxu0 0
  %4070 = vmatprep.mubr.bf16.mxu0 0
  %4071 = vmatmul.mubr.bf16.gmra.mxu0 %v4036
  %v4072 = vpop.f32.mrf.mxu0
  %v4073 = vadd.f32 0.0, %v4072
  %v4074 = vpop.f32.mrf.mxu0
  %v4075 = vpop.f32.mrf.mxu0
  %v4076 = vadd.f32 0.0, %v4075
  %v4077 = vpop.f32.mrf.mxu0
  %4078 = vdwg.mxu0
  %v4079 = vpack.c.bf16 %v3694, %v3694
  %4080 = vrot.lane.b32.xlu0 %v3707, 104
  %v4081 = vpop.permute.xlu0 %4080
  %v4083 = vsel %vm181, %v4081, 0
  %v4086 = vsel %vm185, %v4079, 0
  %4088 = vmatprep.subr.bf16.mxu0 0
  %4089 = vmatpush1.bf16.msra.mxu0 0
  %4090 = vmatprep.subr.bf16.mxu0 0
  %4091 = vmatpush1.bf16.msra.mxu0 0
  %4092 = vmatprep.subr.bf16.mxu0 0
  %4093 = vmatpush1.bf16.msra.mxu0 0
  %4094 = vmatprep.subr.bf16.mxu0 0
  %4095 = vmatpush1.bf16.msra.mxu0 0
  %4096 = vmatprep.subr.bf16.mxu0 0
  %4097 = vmatpush1.bf16.msra.mxu0 0
  %4098 = vmatprep.subr.bf16.mxu0 0
  %4099 = vmatpush1.bf16.msra.mxu0 0
  %4100 = vmatprep.subr.bf16.mxu0 0
  %4101 = vmatpush1.bf16.msra.mxu0 0
  %4102 = vmatprep.subr.bf16.mxu0 0
  %4103 = vmatpush1.bf16.msra.mxu0 %v4086
  %4104 = vmatprep.subr.bf16.mxu0 0
  %4105 = vmatpush2.bf16.msra.mxu0 0
  %4106 = vmatprep.subr.bf16.mxu0 0
  %4107 = vmatpush2.bf16.msra.mxu0 0
  %4108 = vmatprep.subr.bf16.mxu0 0
  %4109 = vmatpush2.bf16.msra.mxu0 0
  %4110 = vmatprep.subr.bf16.mxu0 0
  %4111 = vmatpush2.bf16.msra.mxu0 0
  %4112 = vmatprep.subr.bf16.mxu0 0
  %4113 = vmatpush2.bf16.msra.mxu0 0
  %4114 = vmatprep.subr.bf16.mxu0 0
  %4115 = vmatpush2.bf16.msra.mxu0 0
  %4116 = vmatprep.subr.bf16.mxu0 0
  %4117 = vmatpush2.bf16.msra.mxu0 0
  %4118 = vmatprep.subr.bf16.mxu0 0
  %4119 = vmatpush2.bf16.msra.mxu0 0
  %4120 = vmatprep.mubr.bf16.mxu0 0
  %4121 = vmatmul.mubr.bf16.gmra.mxu0 %v4083
  %v4122 = vpop.f32.mrf.mxu0
  %v4123 = vadd.f32 0.0, %v4122
  %v4124 = vpop.f32.mrf.mxu0
  %v4125 = vpop.f32.mrf.mxu0
  %v4126 = vadd.f32 0.0, %v4125
  %v4127 = vpop.f32.mrf.mxu0
  %4128 = vdwg.mxu0
  %v4129 = vmul.f32 %v4123, 0.35355338
  %v4130 = vmul.f32 %v4126, 0.35355338
  %v4131 = vadd.f32 %v4129, %v1876
  %v4132 = vadd.f32 %v4130, %v1877
  %v4133 = vsel %vm234, %v4131, -inf
  %4134 = vmax.xlane.f32.xlu0 %v4133
  %v4135 = vpop.xlane.xlu0 %4134
  %v4136 = vsel %vm234, %v4132, -inf
  %4137 = vmax.xlane.f32.xlu0 %v4136
  %v4138 = vpop.xlane.xlu0 %4137
  %v4139 = vsub.f32 %v4131, %v4135
  %v4140 = vsub.f32 %v4132, %v4138
  %v4141 = vmul.f32 %v4139, 1.442695
  %v4142 = vpow.pop %v4141
  %v4143 = vmul.f32 %v4140, 1.442695
  %v4144 = vpow.pop %v4143
  %v4145 = vsel %vm234, %v4142, 0.0
  %4146 = vadd.xlane.f32.xlu0 %v4145
  %v4147 = vpop.xlane.xlu0 %4146
  %v4148 = vsel %vm234, %v4144, 0.0
  %4149 = vadd.xlane.f32.xlu0 %v4148
  %v4150 = vpop.xlane.xlu0 %4149
  %v4151 = vrcp.pop %v4147
  %v4152 = vrcp.pop %v4150
  %v4153 = vmul.f32 %v4142, %v4151
  %v4154 = vmul.f32 %v4144, %v4152
  %v4155 = vpack.c.bf16 %v4154, %v4153
  %4156 = vrot.lane.b32.xlu0 %v3707, 40
  %v4157 = vpop.permute.xlu0 %4156
  %v4160 = vsel %vm234, %v4155, 0
  %4162 = vmatprep.subr.bf16.mxu0 0
  %4163 = vmatpush1.bf16.msra.mxu0 0
  %4164 = vmatprep.subr.bf16.mxu0 0
  %4165 = vmatpush1.bf16.msra.mxu0 0
  %4166 = vmatprep.subr.bf16.mxu0 0
  %4167 = vmatpush1.bf16.msra.mxu0 0
  %4168 = vmatprep.subr.bf16.mxu0 0
  %4169 = vmatpush1.bf16.msra.mxu0 0
  %4170 = vmatprep.subr.bf16.mxu0 0
  %4171 = vmatpush1.bf16.msra.mxu0 0
  %4172 = vmatprep.subr.bf16.mxu0 0
  %4173 = vmatpush1.bf16.msra.mxu0 0
  %4174 = vmatprep.subr.bf16.mxu0 0
  %4175 = vmatpush1.bf16.msra.mxu0 0
  %4176 = vmatprep.subr.bf16.mxu0 0
  %4177 = vmatpush1.bf16.msra.mxu0 %v4157
  %4178 = vmatprep.subr.bf16.mxu0 0
  %4179 = vmatpush2.bf16.msra.mxu0 0
  %4180 = vmatprep.subr.bf16.mxu0 0
  %4181 = vmatpush2.bf16.msra.mxu0 0
  %4182 = vmatprep.subr.bf16.mxu0 0
  %4183 = vmatpush2.bf16.msra.mxu0 0
  %4184 = vmatprep.subr.bf16.mxu0 0
  %4185 = vmatpush2.bf16.msra.mxu0 0
  %4186 = vmatprep.subr.bf16.mxu0 0
  %4187 = vmatpush2.bf16.msra.mxu0 0
  %4188 = vmatprep.subr.bf16.mxu0 0
  %4189 = vmatpush2.bf16.msra.mxu0 0
  %4190 = vmatprep.subr.bf16.mxu0 0
  %4191 = vmatpush2.bf16.msra.mxu0 0
  %4192 = vmatprep.subr.bf16.mxu0 0
  %4193 = vmatpush2.bf16.msra.mxu0 0
  %4194 = vmatprep.mubr.bf16.mxu0 0
  %4195 = vmatmul.mubr.bf16.gmra.mxu0 %v4160
  %v4196 = vpop.f32.mrf.mxu0
  %v4197 = vadd.f32 0.0, %v4196
  %v4198 = vpop.f32.mrf.mxu0
  %v4199 = vpop.f32.mrf.mxu0
  %v4200 = vadd.f32 0.0, %v4199
  %v4201 = vpop.f32.mrf.mxu0
  %4202 = vdwg.mxu0
  %4205 = vrot.lane.b32.xlu0 %v3949, 8
  %v4206 = vpop.permute.xlu0 %4205
  %4207 = vrot.lane.b32.xlu0 %v3952, 8
  %v4208 = vpop.permute.xlu0 %4207
  %4213 = vrot.lane.b32.xlu0 %v4073, 16
  %v4214 = vpop.permute.xlu0 %4213
  %4215 = vrot.lane.b32.xlu0 %v4076, 16
  %v4216 = vpop.permute.xlu0 %4215
  %4221 = vrot.lane.b32.xlu0 %v4197, 24
  %v4222 = vpop.permute.xlu0 %4221
  %4223 = vrot.lane.b32.xlu0 %v4200, 24
  %v4224 = vpop.permute.xlu0 %4223
  %v4227 = vsel %vm181, %v3825, %v4206
  %v4228 = vsel %vm181, %v3828, %v4208
  %v4229 = vsel %vm234, %v4227, %v4214
  %v4230 = vsel %vm234, %v4228, %v4216
  %v4231 = vsel %vm706, %v4229, %v4222
  %v4232 = vsel %vm706, %v4230, %v4224
  %v4233 = vpack.c.bf16 %v4232, %v4231
  %4234 = vrot.lane.b32.xlu0 %v3619, 32
  %v4235 = vpop.permute.xlu0 %4234
  %4236 = vrot.lane.b32.xlu0 %v3620, 32
  %v4237 = vpop.permute.xlu0 %4236
  %v4241 = vsel %vm38, %v4233, 0
  %4243 = vmatprep.subr.bf16.mxu0 0
  %4244 = vmatpush1.bf16.msra.mxu0 0
  %4245 = vmatprep.subr.bf16.mxu0 0
  %4246 = vmatpush1.bf16.msra.mxu0 0
  %4247 = vmatprep.subr.bf16.mxu0 0
  %4248 = vmatpush1.bf16.msra.mxu0 0
  %4249 = vmatprep.subr.bf16.mxu0 0
  %4250 = vmatpush1.bf16.msra.mxu0 0
  %4251 = vmatprep.subr.bf16.mxu0 0
  %4252 = vmatpush1.bf16.msra.mxu0 0
  %4253 = vmatprep.subr.bf16.mxu0 0
  %4254 = vmatpush1.bf16.msra.mxu0 0
  %4255 = vmatprep.subr.bf16.mxu0 0
  %4256 = vmatpush1.bf16.msra.mxu0 %v4237
  %4257 = vmatprep.subr.bf16.mxu0 0
  %4258 = vmatpush1.bf16.msra.mxu0 %v4235
  %4259 = vmatprep.subr.bf16.mxu0 0
  %4260 = vmatpush2.bf16.msra.mxu0 0
  %4261 = vmatprep.subr.bf16.mxu0 0
  %4262 = vmatpush2.bf16.msra.mxu0 0
  %4263 = vmatprep.subr.bf16.mxu0 0
  %4264 = vmatpush2.bf16.msra.mxu0 0
  %4265 = vmatprep.subr.bf16.mxu0 0
  %4266 = vmatpush2.bf16.msra.mxu0 0
  %4267 = vmatprep.subr.bf16.mxu0 0
  %4268 = vmatpush2.bf16.msra.mxu0 0
  %4269 = vmatprep.subr.bf16.mxu0 0
  %4270 = vmatpush2.bf16.msra.mxu0 0
  %4271 = vmatprep.subr.bf16.mxu0 0
  %4272 = vmatpush2.bf16.msra.mxu0 0
  %4273 = vmatprep.subr.bf16.mxu0 0
  %4274 = vmatpush2.bf16.msra.mxu0 0
  %4275 = vmatprep.mubr.bf16.mxu0 0
  %4276 = vmatmul.mubr.bf16.gmra.mxu0 %v4241
  %v4277 = vpop.f32.mrf.mxu0
  %v4278 = vadd.f32 0.0, %v4277
  %v4279 = vpop.f32.mrf.mxu0
  %v4280 = vpop.f32.mrf.mxu0
  %v4281 = vadd.f32 0.0, %v4280
  %v4282 = vpop.f32.mrf.mxu0
  %4283 = vdwg.mxu0
  %v4284 = vadd.f32 %v3566, %v4278
  %v4285 = vadd.f32 %v3567, %v4281
  %v4286 = vlaneseq
  %v4287 = vshrl.u32 %v4286, 7
  %v4288 = vsub.s32 6, %v4287
  %v4289 = vrot.slane %v32, %v4288
  %v4290 = vmul.f32 %v2622, %v4289
  %v4291 = vmul.f32 %v2623, %v4289
  %v4292 = vlaneseq
  %v4293 = vshrl.u32 %v4292, 7
  %v4294 = vsub.s32 7, %v4293
  %v4295 = vrot.slane %v32, %v4294
  %v4296 = vadd.f32 %v4290, %v4295
  %v4297 = vadd.f32 %v4291, %v4295
  %v4298 = vsel %vm38, %v4284, 0.0
  %4299 = vadd.xlane.f32.xlu0 %v4298
  %v4300 = vpop.xlane.xlu0 %4299
  %v4301 = vsel %vm38, %v4285, 0.0
  %4302 = vadd.xlane.f32.xlu0 %v4301
  %v4303 = vpop.xlane.xlu0 %4302
  %v4304 = vmul.f32 %v4300, %v45
  %v4305 = vmul.f32 %v4303, %v45
  %v4306 = vsub.f32 %v4284, %v4304
  %v4307 = vsub.f32 %v4285, %v4305
  %v4308 = vmul.f32 %v4306, %v4306
  %v4309 = vmul.f32 %v4307, %v4307
  %v4310 = vsel %vm38, %v4308, 0.0
  %4311 = vadd.xlane.f32.xlu0 %v4310
  %v4312 = vpop.xlane.xlu0 %4311
  %v4313 = vsel %vm38, %v4309, 0.0
  %4314 = vadd.xlane.f32.xlu0 %v4313
  %v4315 = vpop.xlane.xlu0 %4314
  %v4316 = vmul.f32 %v4312, %v45
  %v4317 = vmul.f32 %v4315, %v45
  %v4318 = vadd.f32 %v4316, 1e-05
  %v4319 = vadd.f32 %v4317, 1e-05
  %v4320 = vrsqrt.pop %v4318
  %v4321 = vrsqrt.pop %v4319
  %v4322 = vmul.f32 %v4306, %v4320
  %v4323 = vmul.f32 %v4307, %v4321
  %v4324 = vmul.f32 %v4322, %v4289
  %v4325 = vmul.f32 %v4323, %v4289
  %v4326 = vadd.f32 %v4324, %v4295
  %v4327 = vadd.f32 %v4325, %v4295
  %v4328 = vld [vmem:[%s6 + $0x20] sm:$0xf]
  %v4329 = vld [vmem:[%s6 + $0x4c] sm:$0xf]
  %v4330 = vld [vmem:[%s6 + $0x78] sm:$0xf]
  %v4331 = vld [vmem:[%s6 + $0xa4] sm:$0xf]
  %v4332 = vpack.c.bf16 %v4327, %v4326
  %v4333 = vpack.c.bf16 %v4297, %v4296
  %v4338 = vunpack.c.l.b16 %v4328
  %v4339 = vunpack.c.l.b16 %v4329
  %v4340 = vunpack.c.l.b16 %v4330
  %v4341 = vunpack.c.l.b16 %v4331
  %v4342 = vpack.c.b16 %v4339, %v4338
  %v4343 = vpack.c.b16 %v4341, %v4340
  %v4347 = vsel %vm38, %v4332, 0
  %4349 = vmatprep.subr.bf16.mxu0 0
  %4350 = vmatpush1.bf16.msra.mxu0 0
  %4351 = vmatprep.subr.bf16.mxu0 0
  %4352 = vmatpush1.bf16.msra.mxu0 0
  %4353 = vmatprep.subr.bf16.mxu0 0
  %4354 = vmatpush1.bf16.msra.mxu0 0
  %4355 = vmatprep.subr.bf16.mxu0 0
  %4356 = vmatpush1.bf16.msra.mxu0 0
  %4357 = vmatprep.subr.bf16.mxu0 0
  %4358 = vmatpush1.bf16.msra.mxu0 0
  %4359 = vmatprep.subr.bf16.mxu0 0
  %4360 = vmatpush1.bf16.msra.mxu0 0
  %4361 = vmatprep.subr.bf16.mxu0 0
  %4362 = vmatpush1.bf16.msra.mxu0 %v4343
  %4363 = vmatprep.subr.bf16.mxu0 0
  %4364 = vmatpush1.bf16.msra.mxu0 %v4342
  %4365 = vmatprep.subr.bf16.mxu0 0
  %4366 = vmatpush2.bf16.msra.mxu0 0
  %4367 = vmatprep.subr.bf16.mxu0 0
  %4368 = vmatpush2.bf16.msra.mxu0 0
  %4369 = vmatprep.subr.bf16.mxu0 0
  %4370 = vmatpush2.bf16.msra.mxu0 0
  %4371 = vmatprep.subr.bf16.mxu0 0
  %4372 = vmatpush2.bf16.msra.mxu0 0
  %4373 = vmatprep.subr.bf16.mxu0 0
  %4374 = vmatpush2.bf16.msra.mxu0 0
  %4375 = vmatprep.subr.bf16.mxu0 0
  %4376 = vmatpush2.bf16.msra.mxu0 0
  %4377 = vmatprep.subr.bf16.mxu0 0
  %4378 = vmatpush2.bf16.msra.mxu0 0
  %4379 = vmatprep.subr.bf16.mxu0 0
  %4380 = vmatpush2.bf16.msra.mxu0 0
  %4381 = vmatprep.mubr.bf16.mxu0 0
  %4382 = vmatmul.mubr.bf16.gmra.mxu0 %v4347
  %v4383 = vpop.f32.mrf.mxu0
  %v4384 = vadd.f32 0.0, %v4383
  %v4385 = vpop.f32.mrf.mxu0
  %v4386 = vpop.f32.mrf.mxu0
  %v4387 = vadd.f32 0.0, %v4386
  %v4388 = vpop.f32.mrf.mxu0
  %4389 = vdwg.mxu0
  %4390 = vrot.lane.b32.xlu0 %v4342, 96
  %v4391 = vpop.permute.xlu0 %4390
  %4392 = vrot.lane.b32.xlu0 %v4343, 96
  %v4393 = vpop.permute.xlu0 %4392
  %v4397 = vsel %vm38, %v4333, 0
  %4399 = vmatprep.subr.bf16.mxu0 0
  %4400 = vmatpush1.bf16.msra.mxu0 0
  %4401 = vmatprep.subr.bf16.mxu0 0
  %4402 = vmatpush1.bf16.msra.mxu0 0
  %4403 = vmatprep.subr.bf16.mxu0 0
  %4404 = vmatpush1.bf16.msra.mxu0 0
  %4405 = vmatprep.subr.bf16.mxu0 0
  %4406 = vmatpush1.bf16.msra.mxu0 0
  %4407 = vmatprep.subr.bf16.mxu0 0
  %4408 = vmatpush1.bf16.msra.mxu0 0
  %4409 = vmatprep.subr.bf16.mxu0 0
  %4410 = vmatpush1.bf16.msra.mxu0 0
  %4411 = vmatprep.subr.bf16.mxu0 0
  %4412 = vmatpush1.bf16.msra.mxu0 %v4393
  %4413 = vmatprep.subr.bf16.mxu0 0
  %4414 = vmatpush1.bf16.msra.mxu0 %v4391
  %4415 = vmatprep.subr.bf16.mxu0 0
  %4416 = vmatpush2.bf16.msra.mxu0 0
  %4417 = vmatprep.subr.bf16.mxu0 0
  %4418 = vmatpush2.bf16.msra.mxu0 0
  %4419 = vmatprep.subr.bf16.mxu0 0
  %4420 = vmatpush2.bf16.msra.mxu0 0
  %4421 = vmatprep.subr.bf16.mxu0 0
  %4422 = vmatpush2.bf16.msra.mxu0 0
  %4423 = vmatprep.subr.bf16.mxu0 0
  %4424 = vmatpush2.bf16.msra.mxu0 0
  %4425 = vmatprep.subr.bf16.mxu0 0
  %4426 = vmatpush2.bf16.msra.mxu0 0
  %4427 = vmatprep.subr.bf16.mxu0 0
  %4428 = vmatpush2.bf16.msra.mxu0 0
  %4429 = vmatprep.subr.bf16.mxu0 0
  %4430 = vmatpush2.bf16.msra.mxu0 0
  %4431 = vmatprep.mubr.bf16.mxu0 0
  %4432 = vmatmul.mubr.bf16.gmra.mxu0 %v4397
  %v4433 = vpop.f32.mrf.mxu0
  %v4434 = vadd.f32 0.0, %v4433
  %v4435 = vpop.f32.mrf.mxu0
  %v4436 = vpop.f32.mrf.mxu0
  %v4437 = vadd.f32 0.0, %v4436
  %v4438 = vpop.f32.mrf.mxu0
  %4439 = vdwg.mxu0
  %4440 = vxpose.xlu0.b32.start [1/16] %v4434, 128
  %4441 = vxpose.xlu0.b32.cont [2/16] %v4437, 128
  %4442 = vxpose.xlu0.b32.cont [3/16] 0.0, 128
  %4443 = vxpose.xlu0.b32.cont [4/16] 0.0, 128
  %4444 = vxpose.xlu0.b32.cont [5/16] 0.0, 128
  %4445 = vxpose.xlu0.b32.cont [6/16] 0.0, 128
  %4446 = vxpose.xlu0.b32.cont [7/16] 0.0, 128
  %4447 = vxpose.xlu0.b32.cont [8/16] 0.0, 128
  %4448 = vxpose.xlu0.b32.cont [9/16] 0.0, 128
  %4449 = vxpose.xlu0.b32.cont [10/16] 0.0, 128
  %4450 = vxpose.xlu0.b32.cont [11/16] 0.0, 128
  %4451 = vxpose.xlu0.b32.cont [12/16] 0.0, 128
  %4452 = vxpose.xlu0.b32.cont [13/16] 0.0, 128
  %4453 = vxpose.xlu0.b32.cont [14/16] 0.0, 128
  %4454 = vxpose.xlu0.b32.cont [15/16] 0.0, 128
  %4455 = vxpose.xlu0.b32.end [16/16] 0.0, 128
  %v4456 = vpop.trf.xlu0
  %v4457 = vpop.trf.xlu0
  %v4458 = vpop.trf.xlu0
  %v4459 = vpop.trf.xlu0
  %v4460 = vpop.trf.xlu0
  %v4461 = vpop.trf.xlu0
  %v4462 = vpop.trf.xlu0
  %v4463 = vpop.trf.xlu0
  %v4464 = vpop.trf.xlu0
  %v4465 = vpop.trf.xlu0
  %v4466 = vpop.trf.xlu0
  %v4467 = vpop.trf.xlu0
  %v4468 = vpop.trf.xlu0
  %v4469 = vpop.trf.xlu0
  %v4470 = vpop.trf.xlu0
  %v4471 = vpop.trf.xlu0
  %v4472 = vpack.c.bf16 %v4387, %v4384
  %v4473 = vpack.c.bf16 %v4456, %v4456
  %v4475 = vsel %vm181, %v4472, 0
  %v4478 = vsel %vm185, %v4473, 0
  %4480 = vmatprep.subr.bf16.mxu0 0
  %4481 = vmatpush1.bf16.msra.mxu0 0
  %4482 = vmatprep.subr.bf16.mxu0 0
  %4483 = vmatpush1.bf16.msra.mxu0 0
  %4484 = vmatprep.subr.bf16.mxu0 0
  %4485 = vmatpush1.bf16.msra.mxu0 0
  %4486 = vmatprep.subr.bf16.mxu0 0
  %4487 = vmatpush1.bf16.msra.mxu0 0
  %4488 = vmatprep.subr.bf16.mxu0 0
  %4489 = vmatpush1.bf16.msra.mxu0 0
  %4490 = vmatprep.subr.bf16.mxu0 0
  %4491 = vmatpush1.bf16.msra.mxu0 0
  %4492 = vmatprep.subr.bf16.mxu0 0
  %4493 = vmatpush1.bf16.msra.mxu0 0
  %4494 = vmatprep.subr.bf16.mxu0 0
  %4495 = vmatpush1.bf16.msra.mxu0 %v4478
  %4496 = vmatprep.subr.bf16.mxu0 0
  %4497 = vmatpush2.bf16.msra.mxu0 0
  %4498 = vmatprep.subr.bf16.mxu0 0
  %4499 = vmatpush2.bf16.msra.mxu0 0
  %4500 = vmatprep.subr.bf16.mxu0 0
  %4501 = vmatpush2.bf16.msra.mxu0 0
  %4502 = vmatprep.subr.bf16.mxu0 0
  %4503 = vmatpush2.bf16.msra.mxu0 0
  %4504 = vmatprep.subr.bf16.mxu0 0
  %4505 = vmatpush2.bf16.msra.mxu0 0
  %4506 = vmatprep.subr.bf16.mxu0 0
  %4507 = vmatpush2.bf16.msra.mxu0 0
  %4508 = vmatprep.subr.bf16.mxu0 0
  %4509 = vmatpush2.bf16.msra.mxu0 0
  %4510 = vmatprep.subr.bf16.mxu0 0
  %4511 = vmatpush2.bf16.msra.mxu0 0
  %4512 = vmatprep.mubr.bf16.mxu0 0
  %4513 = vmatmul.mubr.bf16.gmra.mxu0 %v4475
  %v4514 = vpop.f32.mrf.mxu0
  %v4515 = vadd.f32 0.0, %v4514
  %v4516 = vpop.f32.mrf.mxu0
  %v4517 = vpop.f32.mrf.mxu0
  %v4518 = vadd.f32 0.0, %v4517
  %v4519 = vpop.f32.mrf.mxu0
  %4520 = vdwg.mxu0
  %v4521 = vmul.f32 %v4515, 0.35355338
  %v4522 = vmul.f32 %v4518, 0.35355338
  %v4523 = vadd.f32 %v4521, %v1878
  %v4524 = vadd.f32 %v4522, %v1879
  %v4525 = vsel %vm234, %v4523, -inf
  %4526 = vmax.xlane.f32.xlu0 %v4525
  %v4527 = vpop.xlane.xlu0 %4526
  %v4528 = vsel %vm234, %v4524, -inf
  %4529 = vmax.xlane.f32.xlu0 %v4528
  %v4530 = vpop.xlane.xlu0 %4529
  %v4531 = vsub.f32 %v4523, %v4527
  %v4532 = vsub.f32 %v4524, %v4530
  %v4533 = vmul.f32 %v4531, 1.442695
  %v4534 = vpow.pop %v4533
  %v4535 = vmul.f32 %v4532, 1.442695
  %v4536 = vpow.pop %v4535
  %v4537 = vsel %vm234, %v4534, 0.0
  %4538 = vadd.xlane.f32.xlu0 %v4537
  %v4539 = vpop.xlane.xlu0 %4538
  %v4540 = vsel %vm234, %v4536, 0.0
  %4541 = vadd.xlane.f32.xlu0 %v4540
  %v4542 = vpop.xlane.xlu0 %4541
  %v4543 = vrcp.pop %v4539
  %v4544 = vrcp.pop %v4542
  %v4545 = vmul.f32 %v4534, %v4543
  %v4546 = vmul.f32 %v4536, %v4544
  %v4547 = vpack.c.bf16 %v4437, %v4434
  %v4548 = vpack.c.bf16 %v4546, %v4545
  %4550 = vrot.lane.b32.xlu0 %v4547, 96
  %v4551 = vpop.permute.xlu0 %4550
  %v4554 = vsel %vm234, %v4548, 0
  %4556 = vmatprep.subr.bf16.mxu0 0
  %4557 = vmatpush1.bf16.msra.mxu0 0
  %4558 = vmatprep.subr.bf16.mxu0 0
  %4559 = vmatpush1.bf16.msra.mxu0 0
  %4560 = vmatprep.subr.bf16.mxu0 0
  %4561 = vmatpush1.bf16.msra.mxu0 0
  %4562 = vmatprep.subr.bf16.mxu0 0
  %4563 = vmatpush1.bf16.msra.mxu0 0
  %4564 = vmatprep.subr.bf16.mxu0 0
  %4565 = vmatpush1.bf16.msra.mxu0 0
  %4566 = vmatprep.subr.bf16.mxu0 0
  %4567 = vmatpush1.bf16.msra.mxu0 0
  %4568 = vmatprep.subr.bf16.mxu0 0
  %4569 = vmatpush1.bf16.msra.mxu0 0
  %4570 = vmatprep.subr.bf16.mxu0 0
  %4571 = vmatpush1.bf16.msra.mxu0 %v4551
  %4572 = vmatprep.subr.bf16.mxu0 0
  %4573 = vmatpush2.bf16.msra.mxu0 0
  %4574 = vmatprep.subr.bf16.mxu0 0
  %4575 = vmatpush2.bf16.msra.mxu0 0
  %4576 = vmatprep.subr.bf16.mxu0 0
  %4577 = vmatpush2.bf16.msra.mxu0 0
  %4578 = vmatprep.subr.bf16.mxu0 0
  %4579 = vmatpush2.bf16.msra.mxu0 0
  %4580 = vmatprep.subr.bf16.mxu0 0
  %4581 = vmatpush2.bf16.msra.mxu0 0
  %4582 = vmatprep.subr.bf16.mxu0 0
  %4583 = vmatpush2.bf16.msra.mxu0 0
  %4584 = vmatprep.subr.bf16.mxu0 0
  %4585 = vmatpush2.bf16.msra.mxu0 0
  %4586 = vmatprep.subr.bf16.mxu0 0
  %4587 = vmatpush2.bf16.msra.mxu0 0
  %4588 = vmatprep.mubr.bf16.mxu0 0
  %4589 = vmatmul.mubr.bf16.gmra.mxu0 %v4554
  %v4590 = vpop.f32.mrf.mxu0
  %v4591 = vadd.f32 0.0, %v4590
  %v4592 = vpop.f32.mrf.mxu0
  %v4593 = vpop.f32.mrf.mxu0
  %v4594 = vadd.f32 0.0, %v4593
  %v4595 = vpop.f32.mrf.mxu0
  %4596 = vdwg.mxu0
  %v4597 = vpack.c.bf16 %v4457, %v4457
  %4599 = vrot.lane.b32.xlu0 %v4472, 120
  %v4600 = vpop.permute.xlu0 %4599
  %v4602 = vsel %vm181, %v4600, 0
  %v4605 = vsel %vm185, %v4597, 0
  %4607 = vmatprep.subr.bf16.mxu0 0
  %4608 = vmatpush1.bf16.msra.mxu0 0
  %4609 = vmatprep.subr.bf16.mxu0 0
  %4610 = vmatpush1.bf16.msra.mxu0 0
  %4611 = vmatprep.subr.bf16.mxu0 0
  %4612 = vmatpush1.bf16.msra.mxu0 0
  %4613 = vmatprep.subr.bf16.mxu0 0
  %4614 = vmatpush1.bf16.msra.mxu0 0
  %4615 = vmatprep.subr.bf16.mxu0 0
  %4616 = vmatpush1.bf16.msra.mxu0 0
  %4617 = vmatprep.subr.bf16.mxu0 0
  %4618 = vmatpush1.bf16.msra.mxu0 0
  %4619 = vmatprep.subr.bf16.mxu0 0
  %4620 = vmatpush1.bf16.msra.mxu0 0
  %4621 = vmatprep.subr.bf16.mxu0 0
  %4622 = vmatpush1.bf16.msra.mxu0 %v4605
  %4623 = vmatprep.subr.bf16.mxu0 0
  %4624 = vmatpush2.bf16.msra.mxu0 0
  %4625 = vmatprep.subr.bf16.mxu0 0
  %4626 = vmatpush2.bf16.msra.mxu0 0
  %4627 = vmatprep.subr.bf16.mxu0 0
  %4628 = vmatpush2.bf16.msra.mxu0 0
  %4629 = vmatprep.subr.bf16.mxu0 0
  %4630 = vmatpush2.bf16.msra.mxu0 0
  %4631 = vmatprep.subr.bf16.mxu0 0
  %4632 = vmatpush2.bf16.msra.mxu0 0
  %4633 = vmatprep.subr.bf16.mxu0 0
  %4634 = vmatpush2.bf16.msra.mxu0 0
  %4635 = vmatprep.subr.bf16.mxu0 0
  %4636 = vmatpush2.bf16.msra.mxu0 0
  %4637 = vmatprep.subr.bf16.mxu0 0
  %4638 = vmatpush2.bf16.msra.mxu0 0
  %4639 = vmatprep.mubr.bf16.mxu0 0
  %4640 = vmatmul.mubr.bf16.gmra.mxu0 %v4602
  %v4641 = vpop.f32.mrf.mxu0
  %v4642 = vadd.f32 0.0, %v4641
  %v4643 = vpop.f32.mrf.mxu0
  %v4644 = vpop.f32.mrf.mxu0
  %v4645 = vadd.f32 0.0, %v4644
  %v4646 = vpop.f32.mrf.mxu0
  %4647 = vdwg.mxu0
  %v4648 = vmul.f32 %v4642, 0.35355338
  %v4649 = vmul.f32 %v4645, 0.35355338
  %v4650 = vadd.f32 %v4648, %v1878
  %v4651 = vadd.f32 %v4649, %v1879
  %v4652 = vsel %vm234, %v4650, -inf
  %4653 = vmax.xlane.f32.xlu0 %v4652
  %v4654 = vpop.xlane.xlu0 %4653
  %v4655 = vsel %vm234, %v4651, -inf
  %4656 = vmax.xlane.f32.xlu0 %v4655
  %v4657 = vpop.xlane.xlu0 %4656
  %v4658 = vsub.f32 %v4650, %v4654
  %v4659 = vsub.f32 %v4651, %v4657
  %v4660 = vmul.f32 %v4658, 1.442695
  %v4661 = vpow.pop %v4660
  %v4662 = vmul.f32 %v4659, 1.442695
  %v4663 = vpow.pop %v4662
  %v4664 = vsel %vm234, %v4661, 0.0
  %4665 = vadd.xlane.f32.xlu0 %v4664
  %v4666 = vpop.xlane.xlu0 %4665
  %v4667 = vsel %vm234, %v4663, 0.0
  %4668 = vadd.xlane.f32.xlu0 %v4667
  %v4669 = vpop.xlane.xlu0 %4668
  %v4670 = vrcp.pop %v4666
  %v4671 = vrcp.pop %v4669
  %v4672 = vmul.f32 %v4661, %v4670
  %v4673 = vmul.f32 %v4663, %v4671
  %v4674 = vpack.c.bf16 %v4673, %v4672
  %4675 = vrot.lane.b32.xlu0 %v4547, 88
  %v4676 = vpop.permute.xlu0 %4675
  %v4679 = vsel %vm234, %v4674, 0
  %4681 = vmatprep.subr.bf16.mxu0 0
  %4682 = vmatpush1.bf16.msra.mxu0 0
  %4683 = vmatprep.subr.bf16.mxu0 0
  %4684 = vmatpush1.bf16.msra.mxu0 0
  %4685 = vmatprep.subr.bf16.mxu0 0
  %4686 = vmatpush1.bf16.msra.mxu0 0
  %4687 = vmatprep.subr.bf16.mxu0 0
  %4688 = vmatpush1.bf16.msra.mxu0 0
  %4689 = vmatprep.subr.bf16.mxu0 0
  %4690 = vmatpush1.bf16.msra.mxu0 0
  %4691 = vmatprep.subr.bf16.mxu0 0
  %4692 = vmatpush1.bf16.msra.mxu0 0
  %4693 = vmatprep.subr.bf16.mxu0 0
  %4694 = vmatpush1.bf16.msra.mxu0 0
  %4695 = vmatprep.subr.bf16.mxu0 0
  %4696 = vmatpush1.bf16.msra.mxu0 %v4676
  %4697 = vmatprep.subr.bf16.mxu0 0
  %4698 = vmatpush2.bf16.msra.mxu0 0
  %4699 = vmatprep.subr.bf16.mxu0 0
  %4700 = vmatpush2.bf16.msra.mxu0 0
  %4701 = vmatprep.subr.bf16.mxu0 0
  %4702 = vmatpush2.bf16.msra.mxu0 0
  %4703 = vmatprep.subr.bf16.mxu0 0
  %4704 = vmatpush2.bf16.msra.mxu0 0
  %4705 = vmatprep.subr.bf16.mxu0 0
  %4706 = vmatpush2.bf16.msra.mxu0 0
  %4707 = vmatprep.subr.bf16.mxu0 0
  %4708 = vmatpush2.bf16.msra.mxu0 0
  %4709 = vmatprep.subr.bf16.mxu0 0
  %4710 = vmatpush2.bf16.msra.mxu0 0
  %4711 = vmatprep.subr.bf16.mxu0 0
  %4712 = vmatpush2.bf16.msra.mxu0 0
  %4713 = vmatprep.mubr.bf16.mxu0 0
  %4714 = vmatmul.mubr.bf16.gmra.mxu0 %v4679
  %v4715 = vpop.f32.mrf.mxu0
  %v4716 = vadd.f32 0.0, %v4715
  %v4717 = vpop.f32.mrf.mxu0
  %v4718 = vpop.f32.mrf.mxu0
  %v4719 = vadd.f32 0.0, %v4718
  %v4720 = vpop.f32.mrf.mxu0
  %4721 = vdwg.mxu0
  %v4722 = vpack.c.bf16 %v4458, %v4458
  %4723 = vrot.lane.b32.xlu0 %v4472, 112
  %v4724 = vpop.permute.xlu0 %4723
  %v4726 = vsel %vm181, %v4724, 0
  %v4729 = vsel %vm185, %v4722, 0
  %4731 = vmatprep.subr.bf16.mxu0 0
  %4732 = vmatpush1.bf16.msra.mxu0 0
  %4733 = vmatprep.subr.bf16.mxu0 0
  %4734 = vmatpush1.bf16.msra.mxu0 0
  %4735 = vmatprep.subr.bf16.mxu0 0
  %4736 = vmatpush1.bf16.msra.mxu0 0
  %4737 = vmatprep.subr.bf16.mxu0 0
  %4738 = vmatpush1.bf16.msra.mxu0 0
  %4739 = vmatprep.subr.bf16.mxu0 0
  %4740 = vmatpush1.bf16.msra.mxu0 0
  %4741 = vmatprep.subr.bf16.mxu0 0
  %4742 = vmatpush1.bf16.msra.mxu0 0
  %4743 = vmatprep.subr.bf16.mxu0 0
  %4744 = vmatpush1.bf16.msra.mxu0 0
  %4745 = vmatprep.subr.bf16.mxu0 0
  %4746 = vmatpush1.bf16.msra.mxu0 %v4729
  %4747 = vmatprep.subr.bf16.mxu0 0
  %4748 = vmatpush2.bf16.msra.mxu0 0
  %4749 = vmatprep.subr.bf16.mxu0 0
  %4750 = vmatpush2.bf16.msra.mxu0 0
  %4751 = vmatprep.subr.bf16.mxu0 0
  %4752 = vmatpush2.bf16.msra.mxu0 0
  %4753 = vmatprep.subr.bf16.mxu0 0
  %4754 = vmatpush2.bf16.msra.mxu0 0
  %4755 = vmatprep.subr.bf16.mxu0 0
  %4756 = vmatpush2.bf16.msra.mxu0 0
  %4757 = vmatprep.subr.bf16.mxu0 0
  %4758 = vmatpush2.bf16.msra.mxu0 0
  %4759 = vmatprep.subr.bf16.mxu0 0
  %4760 = vmatpush2.bf16.msra.mxu0 0
  %4761 = vmatprep.subr.bf16.mxu0 0
  %4762 = vmatpush2.bf16.msra.mxu0 0
  %4763 = vmatprep.mubr.bf16.mxu0 0
  %4764 = vmatmul.mubr.bf16.gmra.mxu0 %v4726
  %v4765 = vpop.f32.mrf.mxu0
  %v4766 = vadd.f32 0.0, %v4765
  %v4767 = vpop.f32.mrf.mxu0
  %v4768 = vpop.f32.mrf.mxu0
  %v4769 = vadd.f32 0.0, %v4768
  %v4770 = vpop.f32.mrf.mxu0
  %4771 = vdwg.mxu0
  %v4772 = vmul.f32 %v4766, 0.35355338
  %v4773 = vmul.f32 %v4769, 0.35355338
  %v4774 = vadd.f32 %v4772, %v1878
  %v4775 = vadd.f32 %v4773, %v1879
  %v4776 = vsel %vm234, %v4774, -inf
  %4777 = vmax.xlane.f32.xlu0 %v4776
  %v4778 = vpop.xlane.xlu0 %4777
  %v4779 = vsel %vm234, %v4775, -inf
  %4780 = vmax.xlane.f32.xlu0 %v4779
  %v4781 = vpop.xlane.xlu0 %4780
  %v4782 = vsub.f32 %v4774, %v4778
  %v4783 = vsub.f32 %v4775, %v4781
  %v4784 = vmul.f32 %v4782, 1.442695
  %v4785 = vpow.pop %v4784
  %v4786 = vmul.f32 %v4783, 1.442695
  %v4787 = vpow.pop %v4786
  %v4788 = vsel %vm234, %v4785, 0.0
  %4789 = vadd.xlane.f32.xlu0 %v4788
  %v4790 = vpop.xlane.xlu0 %4789
  %v4791 = vsel %vm234, %v4787, 0.0
  %4792 = vadd.xlane.f32.xlu0 %v4791
  %v4793 = vpop.xlane.xlu0 %4792
  %v4794 = vrcp.pop %v4790
  %v4795 = vrcp.pop %v4793
  %v4796 = vmul.f32 %v4785, %v4794
  %v4797 = vmul.f32 %v4787, %v4795
  %v4798 = vpack.c.bf16 %v4797, %v4796
  %4799 = vrot.lane.b32.xlu0 %v4547, 80
  %v4800 = vpop.permute.xlu0 %4799
  %v4803 = vsel %vm234, %v4798, 0
  %4805 = vmatprep.subr.bf16.mxu0 0
  %4806 = vmatpush1.bf16.msra.mxu0 0
  %4807 = vmatprep.subr.bf16.mxu0 0
  %4808 = vmatpush1.bf16.msra.mxu0 0
  %4809 = vmatprep.subr.bf16.mxu0 0
  %4810 = vmatpush1.bf16.msra.mxu0 0
  %4811 = vmatprep.subr.bf16.mxu0 0
  %4812 = vmatpush1.bf16.msra.mxu0 0
  %4813 = vmatprep.subr.bf16.mxu0 0
  %4814 = vmatpush1.bf16.msra.mxu0 0
  %4815 = vmatprep.subr.bf16.mxu0 0
  %4816 = vmatpush1.bf16.msra.mxu0 0
  %4817 = vmatprep.subr.bf16.mxu0 0
  %4818 = vmatpush1.bf16.msra.mxu0 0
  %4819 = vmatprep.subr.bf16.mxu0 0
  %4820 = vmatpush1.bf16.msra.mxu0 %v4800
  %4821 = vmatprep.subr.bf16.mxu0 0
  %4822 = vmatpush2.bf16.msra.mxu0 0
  %4823 = vmatprep.subr.bf16.mxu0 0
  %4824 = vmatpush2.bf16.msra.mxu0 0
  %4825 = vmatprep.subr.bf16.mxu0 0
  %4826 = vmatpush2.bf16.msra.mxu0 0
  %4827 = vmatprep.subr.bf16.mxu0 0
  %4828 = vmatpush2.bf16.msra.mxu0 0
  %4829 = vmatprep.subr.bf16.mxu0 0
  %4830 = vmatpush2.bf16.msra.mxu0 0
  %4831 = vmatprep.subr.bf16.mxu0 0
  %4832 = vmatpush2.bf16.msra.mxu0 0
  %4833 = vmatprep.subr.bf16.mxu0 0
  %4834 = vmatpush2.bf16.msra.mxu0 0
  %4835 = vmatprep.subr.bf16.mxu0 0
  %4836 = vmatpush2.bf16.msra.mxu0 0
  %4837 = vmatprep.mubr.bf16.mxu0 0
  %4838 = vmatmul.mubr.bf16.gmra.mxu0 %v4803
  %v4839 = vpop.f32.mrf.mxu0
  %v4840 = vadd.f32 0.0, %v4839
  %v4841 = vpop.f32.mrf.mxu0
  %v4842 = vpop.f32.mrf.mxu0
  %v4843 = vadd.f32 0.0, %v4842
  %v4844 = vpop.f32.mrf.mxu0
  %4845 = vdwg.mxu0
  %v4846 = vpack.c.bf16 %v4459, %v4459
  %4847 = vrot.lane.b32.xlu0 %v4472, 104
  %v4848 = vpop.permute.xlu0 %4847
  %v4850 = vsel %vm181, %v4848, 0
  %v4853 = vsel %vm185, %v4846, 0
  %4855 = vmatprep.subr.bf16.mxu0 0
  %4856 = vmatpush1.bf16.msra.mxu0 0
  %4857 = vmatprep.subr.bf16.mxu0 0
  %4858 = vmatpush1.bf16.msra.mxu0 0
  %4859 = vmatprep.subr.bf16.mxu0 0
  %4860 = vmatpush1.bf16.msra.mxu0 0
  %4861 = vmatprep.subr.bf16.mxu0 0
  %4862 = vmatpush1.bf16.msra.mxu0 0
  %4863 = vmatprep.subr.bf16.mxu0 0
  %4864 = vmatpush1.bf16.msra.mxu0 0
  %4865 = vmatprep.subr.bf16.mxu0 0
  %4866 = vmatpush1.bf16.msra.mxu0 0
  %4867 = vmatprep.subr.bf16.mxu0 0
  %4868 = vmatpush1.bf16.msra.mxu0 0
  %4869 = vmatprep.subr.bf16.mxu0 0
  %4870 = vmatpush1.bf16.msra.mxu0 %v4853
  %4871 = vmatprep.subr.bf16.mxu0 0
  %4872 = vmatpush2.bf16.msra.mxu0 0
  %4873 = vmatprep.subr.bf16.mxu0 0
  %4874 = vmatpush2.bf16.msra.mxu0 0
  %4875 = vmatprep.subr.bf16.mxu0 0
  %4876 = vmatpush2.bf16.msra.mxu0 0
  %4877 = vmatprep.subr.bf16.mxu0 0
  %4878 = vmatpush2.bf16.msra.mxu0 0
  %4879 = vmatprep.subr.bf16.mxu0 0
  %4880 = vmatpush2.bf16.msra.mxu0 0
  %4881 = vmatprep.subr.bf16.mxu0 0
  %4882 = vmatpush2.bf16.msra.mxu0 0
  %4883 = vmatprep.subr.bf16.mxu0 0
  %4884 = vmatpush2.bf16.msra.mxu0 0
  %4885 = vmatprep.subr.bf16.mxu0 0
  %4886 = vmatpush2.bf16.msra.mxu0 0
  %4887 = vmatprep.mubr.bf16.mxu0 0
  %4888 = vmatmul.mubr.bf16.gmra.mxu0 %v4850
  %v4889 = vpop.f32.mrf.mxu0
  %v4890 = vadd.f32 0.0, %v4889
  %v4891 = vpop.f32.mrf.mxu0
  %v4892 = vpop.f32.mrf.mxu0
  %v4893 = vadd.f32 0.0, %v4892
  %v4894 = vpop.f32.mrf.mxu0
  %4895 = vdwg.mxu0
  %v4896 = vmul.f32 %v4890, 0.35355338
  %v4897 = vmul.f32 %v4893, 0.35355338
  %v4898 = vadd.f32 %v4896, %v1878
  %v4899 = vadd.f32 %v4897, %v1879
  %v4900 = vsel %vm234, %v4898, -inf
  %4901 = vmax.xlane.f32.xlu0 %v4900
  %v4902 = vpop.xlane.xlu0 %4901
  %v4903 = vsel %vm234, %v4899, -inf
  %4904 = vmax.xlane.f32.xlu0 %v4903
  %v4905 = vpop.xlane.xlu0 %4904
  %v4906 = vsub.f32 %v4898, %v4902
  %v4907 = vsub.f32 %v4899, %v4905
  %v4908 = vmul.f32 %v4906, 1.442695
  %v4909 = vpow.pop %v4908
  %v4910 = vmul.f32 %v4907, 1.442695
  %v4911 = vpow.pop %v4910
  %v4912 = vsel %vm234, %v4909, 0.0
  %4913 = vadd.xlane.f32.xlu0 %v4912
  %v4914 = vpop.xlane.xlu0 %4913
  %v4915 = vsel %vm234, %v4911, 0.0
  %4916 = vadd.xlane.f32.xlu0 %v4915
  %v4917 = vpop.xlane.xlu0 %4916
  %v4918 = vrcp.pop %v4914
  %v4919 = vrcp.pop %v4917
  %v4920 = vmul.f32 %v4909, %v4918
  %v4921 = vmul.f32 %v4911, %v4919
  %v4922 = vpack.c.bf16 %v4921, %v4920
  %4923 = vrot.lane.b32.xlu0 %v4547, 72
  %v4924 = vpop.permute.xlu0 %4923
  %v4927 = vsel %vm234, %v4922, 0
  %4929 = vmatprep.subr.bf16.mxu0 0
  %4930 = vmatpush1.bf16.msra.mxu0 0
  %4931 = vmatprep.subr.bf16.mxu0 0
  %4932 = vmatpush1.bf16.msra.mxu0 0
  %4933 = vmatprep.subr.bf16.mxu0 0
  %4934 = vmatpush1.bf16.msra.mxu0 0
  %4935 = vmatprep.subr.bf16.mxu0 0
  %4936 = vmatpush1.bf16.msra.mxu0 0
  %4937 = vmatprep.subr.bf16.mxu0 0
  %4938 = vmatpush1.bf16.msra.mxu0 0
  %4939 = vmatprep.subr.bf16.mxu0 0
  %4940 = vmatpush1.bf16.msra.mxu0 0
  %4941 = vmatprep.subr.bf16.mxu0 0
  %4942 = vmatpush1.bf16.msra.mxu0 0
  %4943 = vmatprep.subr.bf16.mxu0 0
  %4944 = vmatpush1.bf16.msra.mxu0 %v4924
  %4945 = vmatprep.subr.bf16.mxu0 0
  %4946 = vmatpush2.bf16.msra.mxu0 0
  %4947 = vmatprep.subr.bf16.mxu0 0
  %4948 = vmatpush2.bf16.msra.mxu0 0
  %4949 = vmatprep.subr.bf16.mxu0 0
  %4950 = vmatpush2.bf16.msra.mxu0 0
  %4951 = vmatprep.subr.bf16.mxu0 0
  %4952 = vmatpush2.bf16.msra.mxu0 0
  %4953 = vmatprep.subr.bf16.mxu0 0
  %4954 = vmatpush2.bf16.msra.mxu0 0
  %4955 = vmatprep.subr.bf16.mxu0 0
  %4956 = vmatpush2.bf16.msra.mxu0 0
  %4957 = vmatprep.subr.bf16.mxu0 0
  %4958 = vmatpush2.bf16.msra.mxu0 0
  %4959 = vmatprep.subr.bf16.mxu0 0
  %4960 = vmatpush2.bf16.msra.mxu0 0
  %4961 = vmatprep.mubr.bf16.mxu0 0
  %4962 = vmatmul.mubr.bf16.gmra.mxu0 %v4927
  %v4963 = vpop.f32.mrf.mxu0
  %v4964 = vadd.f32 0.0, %v4963
  %v4965 = vpop.f32.mrf.mxu0
  %v4966 = vpop.f32.mrf.mxu0
  %v4967 = vadd.f32 0.0, %v4966
  %v4968 = vpop.f32.mrf.mxu0
  %4969 = vdwg.mxu0
  %4972 = vrot.lane.b32.xlu0 %v4716, 8
  %v4973 = vpop.permute.xlu0 %4972
  %4974 = vrot.lane.b32.xlu0 %v4719, 8
  %v4975 = vpop.permute.xlu0 %4974
  %4980 = vrot.lane.b32.xlu0 %v4840, 16
  %v4981 = vpop.permute.xlu0 %4980
  %4982 = vrot.lane.b32.xlu0 %v4843, 16
  %v4983 = vpop.permute.xlu0 %4982
  %4988 = vrot.lane.b32.xlu0 %v4964, 24
  %v4989 = vpop.permute.xlu0 %4988
  %4990 = vrot.lane.b32.xlu0 %v4967, 24
  %v4991 = vpop.permute.xlu0 %4990
  %v4994 = vsel %vm181, %v4591, %v4973
  %v4995 = vsel %vm181, %v4594, %v4975
  %v4996 = vsel %vm234, %v4994, %v4981
  %v4997 = vsel %vm234, %v4995, %v4983
  %v4998 = vsel %vm706, %v4996, %v4989
  %v4999 = vsel %vm706, %v4997, %v4991
  %v5000 = vpack.c.bf16 %v4999, %v4998
  %5001 = vrot.lane.b32.xlu0 %v4342, 32
  %v5002 = vpop.permute.xlu0 %5001
  %5003 = vrot.lane.b32.xlu0 %v4343, 32
  %v5004 = vpop.permute.xlu0 %5003
  %v5008 = vsel %vm38, %v5000, 0
  %5010 = vmatprep.subr.bf16.mxu0 0
  %5011 = vmatpush1.bf16.msra.mxu0 0
  %5012 = vmatprep.subr.bf16.mxu0 0
  %5013 = vmatpush1.bf16.msra.mxu0 0
  %5014 = vmatprep.subr.bf16.mxu0 0
  %5015 = vmatpush1.bf16.msra.mxu0 0
  %5016 = vmatprep.subr.bf16.mxu0 0
  %5017 = vmatpush1.bf16.msra.mxu0 0
  %5018 = vmatprep.subr.bf16.mxu0 0
  %5019 = vmatpush1.bf16.msra.mxu0 0
  %5020 = vmatprep.subr.bf16.mxu0 0
  %5021 = vmatpush1.bf16.msra.mxu0 0
  %5022 = vmatprep.subr.bf16.mxu0 0
  %5023 = vmatpush1.bf16.msra.mxu0 %v5004
  %5024 = vmatprep.subr.bf16.mxu0 0
  %5025 = vmatpush1.bf16.msra.mxu0 %v5002
  %5026 = vmatprep.subr.bf16.mxu0 0
  %5027 = vmatpush2.bf16.msra.mxu0 0
  %5028 = vmatprep.subr.bf16.mxu0 0
  %5029 = vmatpush2.bf16.msra.mxu0 0
  %5030 = vmatprep.subr.bf16.mxu0 0
  %5031 = vmatpush2.bf16.msra.mxu0 0
  %5032 = vmatprep.subr.bf16.mxu0 0
  %5033 = vmatpush2.bf16.msra.mxu0 0
  %5034 = vmatprep.subr.bf16.mxu0 0
  %5035 = vmatpush2.bf16.msra.mxu0 0
  %5036 = vmatprep.subr.bf16.mxu0 0
  %5037 = vmatpush2.bf16.msra.mxu0 0
  %5038 = vmatprep.subr.bf16.mxu0 0
  %5039 = vmatpush2.bf16.msra.mxu0 0
  %5040 = vmatprep.subr.bf16.mxu0 0
  %5041 = vmatpush2.bf16.msra.mxu0 0
  %5042 = vmatprep.mubr.bf16.mxu0 0
  %5043 = vmatmul.mubr.bf16.gmra.mxu0 %v5008
  %v5044 = vpop.f32.mrf.mxu0
  %v5045 = vadd.f32 0.0, %v5044
  %v5046 = vpop.f32.mrf.mxu0
  %v5047 = vpop.f32.mrf.mxu0
  %v5048 = vadd.f32 0.0, %v5047
  %v5049 = vpop.f32.mrf.mxu0
  %5050 = vdwg.mxu0
  %v5051 = vadd.f32 %v4284, %v5045
  %v5052 = vadd.f32 %v4285, %v5048
  %v5053 = vsel %vm38, %v5051, 0.0
  %5054 = vadd.xlane.f32.xlu0 %v5053
  %v5055 = vpop.xlane.xlu0 %5054
  %v5056 = vsel %vm38, %v5052, 0.0
  %5057 = vadd.xlane.f32.xlu0 %v5056
  %v5058 = vpop.xlane.xlu0 %5057
  %v5059 = vmul.f32 %v5055, %v45
  %v5060 = vmul.f32 %v5058, %v45
  %v5061 = vsub.f32 %v5051, %v5059
  %v5062 = vsub.f32 %v5052, %v5060
  %v5063 = vmul.f32 %v5061, %v5061
  %v5064 = vmul.f32 %v5062, %v5062
  %v5065 = vsel %vm38, %v5063, 0.0
  %5066 = vadd.xlane.f32.xlu0 %v5065
  %v5067 = vpop.xlane.xlu0 %5066
  %v5068 = vsel %vm38, %v5064, 0.0
  %5069 = vadd.xlane.f32.xlu0 %v5068
  %v5070 = vpop.xlane.xlu0 %5069
  %v5071 = vmul.f32 %v5067, %v45
  %v5072 = vmul.f32 %v5070, %v45
  %v5073 = vadd.f32 %v5071, 1e-05
  %v5074 = vadd.f32 %v5072, 1e-05
  %v5075 = vrsqrt.pop %v5073
  %v5076 = vrsqrt.pop %v5074
  %v5077 = vmul.f32 %v5061, %v5075
  %v5078 = vmul.f32 %v5062, %v5076
  %v5079 = vlaneseq
  %v5080 = vshrl.u32 %v5079, 7
  %v5081 = vsub.s32 0, %v5080
  %v5082 = vrot.slane %v33, %v5081
  %v5083 = vmul.f32 %v5077, %v5082
  %v5084 = vmul.f32 %v5078, %v5082
  %v5085 = vlaneseq
  %v5086 = vshrl.u32 %v5085, 7
  %v5087 = vsub.s32 1, %v5086
  %v5088 = vrot.slane %v33, %v5087
  %v5089 = vadd.f32 %v5083, %v5088
  %v5090 = vadd.f32 %v5084, %v5088
  %v5091 = vpack.c.bf16 %v5090, %v5089
  %v5092 = vld [vmem:[%s6 + $0x24] sm:$0xf]
  %v5093 = vld [vmem:[%s6 + $0x50] sm:$0xf]
  %v5094 = vld [vmem:[%s6 + $0x7c] sm:$0xf]
  %v5095 = vld [vmem:[%s6 + $0xa8] sm:$0xf]
  %v5096 = vlaneseq
  %v5097 = vshrl.u32 %v5096, 7
  %v5098 = vsub.s32 2, %v5097
  %v5099 = vrot.slane %v33, %v5098
  %v5104 = vunpack.c.l.b16 %v5092
  %v5105 = vunpack.c.l.b16 %v5093
  %v5106 = vunpack.c.l.b16 %v5094
  %v5107 = vunpack.c.l.b16 %v5095
  %v5108 = vpack.c.b16 %v5105, %v5104
  %v5109 = vpack.c.b16 %v5107, %v5106
  %v5113 = vsel %vm38, %v5091, 0
  %5115 = vmatprep.subr.bf16.mxu0 0
  %5116 = vmatpush1.bf16.msra.mxu0 0
  %5117 = vmatprep.subr.bf16.mxu0 0
  %5118 = vmatpush1.bf16.msra.mxu0 0
  %5119 = vmatprep.subr.bf16.mxu0 0
  %5120 = vmatpush1.bf16.msra.mxu0 0
  %5121 = vmatprep.subr.bf16.mxu0 0
  %5122 = vmatpush1.bf16.msra.mxu0 0
  %5123 = vmatprep.subr.bf16.mxu0 0
  %5124 = vmatpush1.bf16.msra.mxu0 0
  %5125 = vmatprep.subr.bf16.mxu0 0
  %5126 = vmatpush1.bf16.msra.mxu0 0
  %5127 = vmatprep.subr.bf16.mxu0 0
  %5128 = vmatpush1.bf16.msra.mxu0 %v5109
  %5129 = vmatprep.subr.bf16.mxu0 0
  %5130 = vmatpush1.bf16.msra.mxu0 %v5108
  %5131 = vmatprep.subr.bf16.mxu0 0
  %5132 = vmatpush2.bf16.msra.mxu0 0
  %5133 = vmatprep.subr.bf16.mxu0 0
  %5134 = vmatpush2.bf16.msra.mxu0 0
  %5135 = vmatprep.subr.bf16.mxu0 0
  %5136 = vmatpush2.bf16.msra.mxu0 0
  %5137 = vmatprep.subr.bf16.mxu0 0
  %5138 = vmatpush2.bf16.msra.mxu0 0
  %5139 = vmatprep.subr.bf16.mxu0 0
  %5140 = vmatpush2.bf16.msra.mxu0 0
  %5141 = vmatprep.subr.bf16.mxu0 0
  %5142 = vmatpush2.bf16.msra.mxu0 0
  %5143 = vmatprep.subr.bf16.mxu0 0
  %5144 = vmatpush2.bf16.msra.mxu0 0
  %5145 = vmatprep.subr.bf16.mxu0 0
  %5146 = vmatpush2.bf16.msra.mxu0 0
  %5147 = vmatprep.mubr.bf16.mxu0 0
  %5148 = vmatmul.mubr.bf16.gmra.mxu0 %v5113
  %v5149 = vpop.f32.mrf.mxu0
  %v5150 = vadd.f32 %v5099, %v5149
  %v5151 = vpop.f32.mrf.mxu0
  %v5152 = vpop.f32.mrf.mxu0
  %v5153 = vadd.f32 %v5099, %v5152
  %v5154 = vpop.f32.mrf.mxu0
  %5155 = vdwg.mxu0
  %v5156 = vmax.f32 %v5150, 0.0
  %v5157 = vmax.f32 %v5153, 0.0
  %v5158 = vpack.c.bf16 %v5157, %v5156
  %v5159 = vlaneseq
  %v5160 = vshrl.u32 %v5159, 7
  %v5161 = vsub.s32 3, %v5160
  %v5162 = vrot.slane %v33, %v5161
  %5163 = vrot.lane.b32.xlu0 %v920, 32
  %v5164 = vpop.permute.xlu0 %5163
  %5165 = vrot.lane.b32.xlu0 %v921, 32
  %v5166 = vpop.permute.xlu0 %5165
  %5167 = vrot.lane.b32.xlu0 %v922, 32
  %v5168 = vpop.permute.xlu0 %5167
  %5169 = vrot.lane.b32.xlu0 %v923, 32
  %v5170 = vpop.permute.xlu0 %5169
  %5171 = vrot.lane.b32.xlu0 %v924, 32
  %v5172 = vpop.permute.xlu0 %5171
  %5173 = vrot.lane.b32.xlu0 %v925, 32
  %v5174 = vpop.permute.xlu0 %5173
  %5175 = vrot.lane.b32.xlu0 %v926, 32
  %v5176 = vpop.permute.xlu0 %5175
  %5177 = vrot.lane.b32.xlu0 %v927, 32
  %v5178 = vpop.permute.xlu0 %5177
  %5187 = vmatprep.subr.bf16.mxu0 0
  %5188 = vmatpush1.bf16.msra.mxu0 %v5178
  %5189 = vmatprep.subr.bf16.mxu0 0
  %5190 = vmatpush1.bf16.msra.mxu0 %v5176
  %5191 = vmatprep.subr.bf16.mxu0 0
  %5192 = vmatpush1.bf16.msra.mxu0 %v5174
  %5193 = vmatprep.subr.bf16.mxu0 0
  %5194 = vmatpush1.bf16.msra.mxu0 %v5172
  %5195 = vmatprep.subr.bf16.mxu0 0
  %5196 = vmatpush1.bf16.msra.mxu0 %v5170
  %5197 = vmatprep.subr.bf16.mxu0 0
  %5198 = vmatpush1.bf16.msra.mxu0 %v5168
  %5199 = vmatprep.subr.bf16.mxu0 0
  %5200 = vmatpush1.bf16.msra.mxu0 %v5166
  %5201 = vmatprep.subr.bf16.mxu0 0
  %5202 = vmatpush1.bf16.msra.mxu0 %v5164
  %5203 = vmatprep.subr.bf16.mxu0 0
  %5204 = vmatpush2.bf16.msra.mxu0 0
  %5205 = vmatprep.subr.bf16.mxu0 0
  %5206 = vmatpush2.bf16.msra.mxu0 0
  %5207 = vmatprep.subr.bf16.mxu0 0
  %5208 = vmatpush2.bf16.msra.mxu0 0
  %5209 = vmatprep.subr.bf16.mxu0 0
  %5210 = vmatpush2.bf16.msra.mxu0 0
  %5211 = vmatprep.subr.bf16.mxu0 0
  %5212 = vmatpush2.bf16.msra.mxu0 0
  %5213 = vmatprep.subr.bf16.mxu0 0
  %5214 = vmatpush2.bf16.msra.mxu0 0
  %5215 = vmatprep.subr.bf16.mxu0 0
  %5216 = vmatpush2.bf16.msra.mxu0 0
  %5217 = vmatprep.subr.bf16.mxu0 0
  %5218 = vmatpush2.bf16.msra.mxu0 0
  %5219 = vmatprep.mubr.bf16.mxu0 0
  %5220 = vmatmul.mubr.bf16.gmra.mxu0 %v5158
  %v5221 = vpop.f32.mrf.mxu0
  %v5222 = vadd.f32 %v5162, %v5221
  %v5223 = vpop.f32.mrf.mxu0
  %v5224 = vpop.f32.mrf.mxu0
  %v5225 = vadd.f32 %v5162, %v5224
  %v5226 = vpop.f32.mrf.mxu0
  %5227 = vdwg.mxu0
  %v5228 = vadd.f32 %v5051, %v5222
  %v5229 = vadd.f32 %v5052, %v5225
  %v5230 = vsel %vm38, %v5228, 0.0
  %5231 = vadd.xlane.f32.xlu0 %v5230
  %v5232 = vpop.xlane.xlu0 %5231
  %v5233 = vsel %vm38, %v5229, 0.0
  %5234 = vadd.xlane.f32.xlu0 %v5233
  %v5235 = vpop.xlane.xlu0 %5234
  %v5236 = vmul.f32 %v5232, %v45
  %v5237 = vmul.f32 %v5235, %v45
  %v5238 = vsub.f32 %v5228, %v5236
  %v5239 = vsub.f32 %v5229, %v5237
  %v5240 = vmul.f32 %v5238, %v5238
  %v5241 = vmul.f32 %v5239, %v5239
  %v5242 = vsel %vm38, %v5240, 0.0
  %5243 = vadd.xlane.f32.xlu0 %v5242
  %v5244 = vpop.xlane.xlu0 %5243
  %v5245 = vsel %vm38, %v5241, 0.0
  %5246 = vadd.xlane.f32.xlu0 %v5245
  %v5247 = vpop.xlane.xlu0 %5246
  %v5248 = vmul.f32 %v5244, %v45
  %v5249 = vmul.f32 %v5247, %v45
  %v5250 = vadd.f32 %v5248, 1e-05
  %v5251 = vadd.f32 %v5249, 1e-05
  %v5252 = vrsqrt.pop %v5250
  %v5253 = vrsqrt.pop %v5251
  %v5254 = vmul.f32 %v5238, %v5252
  %v5255 = vmul.f32 %v5239, %v5253
  %v5256 = vlaneseq
  %v5257 = vshrl.u32 %v5256, 7
  %v5258 = vsub.s32 4, %v5257
  %v5259 = vrot.slane %v33, %v5258
  %v5260 = vmul.f32 %v5254, %v5259
  %v5261 = vmul.f32 %v5255, %v5259
  %v5262 = vlaneseq
  %v5263 = vshrl.u32 %v5262, 7
  %v5264 = vsub.s32 5, %v5263
  %v5265 = vrot.slane %v33, %v5264
  %v5266 = vadd.f32 %v5260, %v5265
  %v5267 = vadd.f32 %v5261, %v5265
  %v5268 = vpack.c.bf16 %v5267, %v5266
  %v5269 = vld [vmem:[%s6 + $0x28] sm:$0xf]
  %v5270 = vld [vmem:[%s6 + $0x54] sm:$0xf]
  %v5271 = vld [vmem:[%s6 + $0x80] sm:$0xf]
  %v5272 = vld [vmem:[%s6 + $0xac] sm:$0xf]
  %v5273 = vlaneseq
  %v5274 = vshrl.u32 %v5273, 7
  %v5275 = vsub.s32 6, %v5274
  %v5276 = vrot.slane %v33, %v5275
  %v5281 = vunpack.c.l.b16 %v5269
  %v5282 = vunpack.c.l.b16 %v5270
  %v5283 = vunpack.c.l.b16 %v5271
  %v5284 = vunpack.c.l.b16 %v5272
  %v5285 = vpack.c.b16 %v5282, %v5281
  %v5286 = vpack.c.b16 %v5284, %v5283
  %v5290 = vsel %vm38, %v5268, 0
  %5292 = vmatprep.subr.bf16.mxu0 0
  %5293 = vmatpush1.bf16.msra.mxu0 0
  %5294 = vmatprep.subr.bf16.mxu0 0
  %5295 = vmatpush1.bf16.msra.mxu0 0
  %5296 = vmatprep.subr.bf16.mxu0 0
  %5297 = vmatpush1.bf16.msra.mxu0 0
  %5298 = vmatprep.subr.bf16.mxu0 0
  %5299 = vmatpush1.bf16.msra.mxu0 0
  %5300 = vmatprep.subr.bf16.mxu0 0
  %5301 = vmatpush1.bf16.msra.mxu0 0
  %5302 = vmatprep.subr.bf16.mxu0 0
  %5303 = vmatpush1.bf16.msra.mxu0 0
  %5304 = vmatprep.subr.bf16.mxu0 0
  %5305 = vmatpush1.bf16.msra.mxu0 %v5286
  %5306 = vmatprep.subr.bf16.mxu0 0
  %5307 = vmatpush1.bf16.msra.mxu0 %v5285
  %5308 = vmatprep.subr.bf16.mxu0 0
  %5309 = vmatpush2.bf16.msra.mxu0 0
  %5310 = vmatprep.subr.bf16.mxu0 0
  %5311 = vmatpush2.bf16.msra.mxu0 0
  %5312 = vmatprep.subr.bf16.mxu0 0
  %5313 = vmatpush2.bf16.msra.mxu0 0
  %5314 = vmatprep.subr.bf16.mxu0 0
  %5315 = vmatpush2.bf16.msra.mxu0 0
  %5316 = vmatprep.subr.bf16.mxu0 0
  %5317 = vmatpush2.bf16.msra.mxu0 0
  %5318 = vmatprep.subr.bf16.mxu0 0
  %5319 = vmatpush2.bf16.msra.mxu0 0
  %5320 = vmatprep.subr.bf16.mxu0 0
  %5321 = vmatpush2.bf16.msra.mxu0 0
  %5322 = vmatprep.subr.bf16.mxu0 0
  %5323 = vmatpush2.bf16.msra.mxu0 0
  %5324 = vmatprep.mubr.bf16.mxu0 0
  %5325 = vmatmul.mubr.bf16.gmra.mxu0 %v5290
  %v5326 = vpop.f32.mrf.mxu0
  %v5327 = vadd.f32 %v5276, %v5326
  %v5328 = vpop.f32.mrf.mxu0
  %v5329 = vpop.f32.mrf.mxu0
  %v5330 = vadd.f32 %v5276, %v5329
  %v5331 = vpop.f32.mrf.mxu0
  %5332 = vdwg.mxu0
  %5333 = vmax.xlane.f32.xlu0 %v5327
  %v5334 = vpop.xlane.xlu0 %5333
  %5335 = vmax.xlane.f32.xlu0 %v5330
  %v5336 = vpop.xlane.xlu0 %5335
  %v5337 = vsub.f32 %v5327, %v5334
  %v5338 = vsub.f32 %v5330, %v5336
  %v5339 = vmul.f32 %v5337, 1.442695
  %v5340 = vpow.pop %v5339
  %v5341 = vmul.f32 %v5338, 1.442695
  %v5342 = vpow.pop %v5341
  %5343 = vadd.xlane.f32.xlu0 %v5340
  %v5344 = vpop.xlane.xlu0 %5343
  %5345 = vadd.xlane.f32.xlu0 %v5342
  %v5346 = vpop.xlane.xlu0 %5345
  %v5347 = vlog2.pop %v5344
  %v5348 = vmul.f32 %v5347, 0.6931472
  %v5349 = vlog2.pop %v5346
  %v5350 = vmul.f32 %v5349, 0.6931472
  %v5351 = vadd.f32 %v5334, %v5348
  %v5352 = vadd.f32 %v5336, %v5350
  %v5353 = vsub.f32 %v5327, %v5351
  %v5354 = vsub.f32 %v5330, %v5352
  %5355 = vst [vmem:[%s8] sm:$0xff] %v5353
  %5356 = vst [vmem:[%s8 + $0x8] sm:$0xff] %v5354
  // Predicated region
  $region34: #{transformer_forward.1} parent=0 // pred_check
    _
  $region35: #{transformer_forward.1} parent=0 // pred_check_branch
    %5358 = sbr.rel (0) target = $region37
  $region36: #{transformer_forward.1} parent=0 // pred_region
    _
  $region37: #{transformer_forward.1} parent=0 // pred_fallthru
    _
  // Predicated region
  $region38: #{transformer_forward.1} parent=0 // pred_check
    _
  $region39: #{transformer_forward.1} parent=0 // pred_check_branch
    %5360 = sbr.rel (0) target = $region41
  $region40: #{transformer_forward.1} parent=0 // pred_region
    _
  $region41: #{transformer_forward.1} parent=0 // pred_fallthru
    _

</llo_original>
